<compile_context>
chip_gen: v7x
topology: tpu7x:2x2x1
jax: 0.10.0
libtpu: 0.0.40
codegen_flags: <defaults>
</compile_context>

<pallas_src>
import functools

import jax
import jax.numpy as jnp
from jax import lax
from jax.experimental import pallas as pl
from jax.experimental.pallas import tpu as pltpu

D_MODEL = 64
N_HEAD = 4
HEAD_DIM = D_MODEL // N_HEAD
FF_DIM = 2048
N_LAYERS = 2
LN_EPS = 1e-5

LAYER_KEYS = ("wq", "bq", "wk", "bk", "wv", "bv", "wo", "bo",
              "ln1_g", "ln1_b", "ff1_w", "ff1_b", "ff2_w", "ff2_b",
              "ln2_g", "ln2_b")
PER_LAYER = len(LAYER_KEYS)


def _layernorm(x, g, b):
    mu = jnp.mean(x, axis=-1, keepdims=True)
    xc = x - mu
    var = jnp.mean(xc * xc, axis=-1, keepdims=True)
    return xc * lax.rsqrt(var + LN_EPS) * g + b


# ----------------------------- fused Pallas kernel --------------------------

def _fused_forward_kernel(*refs, B, S):
    """refs = (x, emb_w, emb_b, *layer_params, fc_w, fc_b, pool, out, attn_scr)."""
    n_l = 3 + PER_LAYER * N_LAYERS
    x_ref, emb_w, emb_b = refs[0], refs[1], refs[2]
    fc_w, fc_b, pool = refs[n_l], refs[n_l + 1], refs[n_l + 2]
    out_ref = refs[n_l + 3]
    attn_scr = refs[n_l + 4]

    def matmul(a, w_ref, b_ref):
        return jnp.dot(a, w_ref[...],
                       preferred_element_type=jnp.float32) + b_ref[...]

    # embedding (nn.Linear on the last dim); h rows are (b, s) flattened b*S+s
    h = matmul(x_ref[...], emb_w, emb_b)                       # (B*S, D)

    scale = 1.0 / float(HEAD_DIM) ** 0.5
    for li in range(N_LAYERS):
        base = 3 + PER_LAYER * li
        (wq, bq, wk, bk, wv, bv, wo, bo,
         ln1_g, ln1_b, ff1_w, ff1_b, ff2_w, ff2_b,
         ln2_g, ln2_b) = refs[base:base + PER_LAYER]

        # ---- self attention (nn.MultiheadAttention, no mask) ----
        q = matmul(h, wq, bq)                                  # (B*S, D)
        k = matmul(h, wk, bk)
        v = matmul(h, wv, bv)
        wo_v = wo[...]                                         # (D, D) (in,out)

        for b in range(B):                                     # unrolled, static
            r0, r1 = b * S, (b + 1) * S
            qb, kb, vb = q[r0:r1, :], k[r0:r1, :], v[r0:r1, :]
            acc = None
            for hd in range(N_HEAD):                           # unrolled, static
                c0, c1 = hd * HEAD_DIM, (hd + 1) * HEAD_DIM
                qh, kh, vh = qb[:, c0:c1], kb[:, c0:c1], vb[:, c0:c1]
                s = lax.dot_general(qh, kh, (((1,), (1,)), ((), ())),
                                    preferred_element_type=jnp.float32) * scale
                s = s - jnp.max(s, axis=-1, keepdims=True)
                p = jnp.exp(s)
                p = p * pl.reciprocal(jnp.sum(p, axis=-1, keepdims=True),
                                      approx=False)
                oh = jnp.dot(p, vh, preferred_element_type=jnp.float32)  # (S,Dh)
                # fold the output projection per head (avoids lane-dim concat)
                contrib = jnp.dot(oh, wo_v[c0:c1, :],
                                  preferred_element_type=jnp.float32)    # (S,D)
                acc = contrib if acc is None else acc + contrib
            attn_scr[r0:r1, :] = acc

        a = attn_scr[...] + bo[...]
        h = _layernorm(h + a, ln1_g[...], ln1_b[...])          # post-norm

        # ---- feed forward (FF activation never leaves VMEM) ----
        f = jnp.maximum(matmul(h, ff1_w, ff1_b), 0.0)          # (B*S, FF)
        f = matmul(f, ff2_w, ff2_b)                            # (B*S, D)
        h = _layernorm(h + f, ln2_g[...], ln2_b[...])

    # mean over the sequence per batch, as a tiny pooling matmul: (B,B*S)@(B*S,D)
    pooled = jnp.dot(pool[...], h, preferred_element_type=jnp.float32)   # (B, D)
    out_ref[...] = matmul(pooled, fc_w, fc_b)                  # (B, num_classes)


# ------------------------------ model glue ---------------------------------

def init_params(key, input_size, num_classes):
    """Weights stored kernel-ready: (in, out) matrices, (1, out) biases."""
    def dense(k, in_dim, out_dim):
        kw, kb = jax.random.split(k)
        w = jax.random.normal(kw, (in_dim, out_dim), jnp.float32) * 0.05
        b = jax.random.normal(kb, (1, out_dim), jnp.float32) * 0.02
        return w, b

    keys = jax.random.split(key, 2 + N_LAYERS)
    params = {}
    params["emb_w"], params["emb_b"] = dense(keys[0], input_size, D_MODEL)
    params["fc_w"], params["fc_b"] = dense(keys[1], D_MODEL, num_classes)

    layers = []
    for li in range(N_LAYERS):
        lk = jax.random.split(keys[2 + li], 6)
        layer = {}
        layer["wq"], layer["bq"] = dense(lk[0], D_MODEL, D_MODEL)
        layer["wk"], layer["bk"] = dense(lk[1], D_MODEL, D_MODEL)
        layer["wv"], layer["bv"] = dense(lk[2], D_MODEL, D_MODEL)
        layer["wo"], layer["bo"] = dense(lk[3], D_MODEL, D_MODEL)
        layer["ff1_w"], layer["ff1_b"] = dense(lk[4], D_MODEL, FF_DIM)
        layer["ff2_w"], layer["ff2_b"] = dense(lk[5], FF_DIM, D_MODEL)
        layer["ln1_g"] = jnp.ones((1, D_MODEL), jnp.float32)
        layer["ln1_b"] = jnp.zeros((1, D_MODEL), jnp.float32)
        layer["ln2_g"] = jnp.ones((1, D_MODEL), jnp.float32)
        layer["ln2_b"] = jnp.zeros((1, D_MODEL), jnp.float32)
        layers.append(layer)
    params["layers"] = layers
    return params


@jax.jit
def transformer_forward(x, params):
    B, S, F = x.shape
    num_classes = params["fc_b"].shape[-1]
    # pooling matrix: row b has 1/S at columns b*S .. (b+1)*S-1
    pool = jnp.repeat(jnp.eye(B, dtype=jnp.float32) / S, S, axis=1)   # (B, B*S)

    args = [x.reshape(B * S, F), params["emb_w"], params["emb_b"]]
    for layer in params["layers"]:
        args.extend(layer[k] for k in LAYER_KEYS)
    args.extend([params["fc_w"], params["fc_b"], pool])

    return pl.pallas_call(
        functools.partial(_fused_forward_kernel, B=B, S=S),
        out_shape=jax.ShapeDtypeStruct((B, num_classes), jnp.float32),
        scratch_shapes=[pltpu.VMEM((B * S, D_MODEL), jnp.float32)],
        compiler_params=pltpu.CompilerParams(vmem_limit_bytes=32 << 20),
    )(*args)


# --------------------------- pure-JAX reference -----------------------------

def reference_forward(x, params):
    B, S, _ = x.shape
    h = x.reshape(B * S, -1) @ params["emb_w"] + params["emb_b"]
    for layer in params["layers"]:
        q = h @ layer["wq"] + layer["bq"]
        k = h @ layer["wk"] + layer["bk"]
        v = h @ layer["wv"] + layer["bv"]

        def heads(t):
            return t.reshape(B, S, N_HEAD, HEAD_DIM).transpose(0, 2, 1, 3)

        s = jnp.einsum("bhqd,bhkd->bhqk", heads(q), heads(k)) / (HEAD_DIM ** 0.5)
        p = jax.nn.softmax(s, axis=-1)
        o = jnp.einsum("bhqk,bhkd->bhqd", p, heads(v))
        o = o.transpose(0, 2, 1, 3).reshape(B * S, D_MODEL)
        a = o @ layer["wo"] + layer["bo"]
        h = _layernorm(h + a, layer["ln1_g"], layer["ln1_b"])
        f = jax.nn.relu(h @ layer["ff1_w"] + layer["ff1_b"])
        f = f @ layer["ff2_w"] + layer["ff2_b"]
        h = _layernorm(h + f, layer["ln2_g"], layer["ln2_b"])
    pooled = h.reshape(B, S, D_MODEL).mean(axis=1)
    return pooled @ params["fc_w"] + params["fc_b"]


if __name__ == "__main__":
    key = jax.random.PRNGKey(0)
    k_x, k_p = jax.random.split(key)

    batch, seq, input_size, num_classes = 2, 8, 16, 5
    x = jax.random.normal(k_x, (batch, seq, input_size), jnp.float32)
    params = init_params(k_p, input_size, num_classes)

    out = transformer_forward(x, params)
    out = jax.block_until_ready(out)
    assert out.shape == (batch, num_classes), out.shape
    assert bool(jnp.all(jnp.isfinite(out)))

    ref = reference_forward(x, params)
    assert jnp.allclose(out, ref, atol=5e-2, rtol=5e-2), float(
        jnp.max(jnp.abs(out - ref)))
    print("KERNEL_OK")
</pallas_src>

<mosaic_0001>
module attributes {stable_mosaic.version = 11 : i64} {
  func.func @_fused_forward_kernel(%arg0: memref<16x16xf32, #tpu.memory_space<vmem>>, %arg1: memref<16x64xf32, #tpu.memory_space<vmem>>, %arg2: memref<1x64xf32, #tpu.memory_space<vmem>>, %arg3: memref<64x64xf32, #tpu.memory_space<vmem>>, %arg4: memref<1x64xf32, #tpu.memory_space<vmem>>, %arg5: memref<64x64xf32, #tpu.memory_space<vmem>>, %arg6: memref<1x64xf32, #tpu.memory_space<vmem>>, %arg7: memref<64x64xf32, #tpu.memory_space<vmem>>, %arg8: memref<1x64xf32, #tpu.memory_space<vmem>>, %arg9: memref<64x64xf32, #tpu.memory_space<vmem>>, %arg10: memref<1x64xf32, #tpu.memory_space<vmem>>, %arg11: memref<1x64xf32, #tpu.memory_space<vmem>>, %arg12: memref<1x64xf32, #tpu.memory_space<vmem>>, %arg13: memref<64x2048xf32, #tpu.memory_space<vmem>>, %arg14: memref<1x2048xf32, #tpu.memory_space<vmem>>, %arg15: memref<2048x64xf32, #tpu.memory_space<vmem>>, %arg16: memref<1x64xf32, #tpu.memory_space<vmem>>, %arg17: memref<1x64xf32, #tpu.memory_space<vmem>>, %arg18: memref<1x64xf32, #tpu.memory_space<vmem>>, %arg19: memref<64x64xf32, #tpu.memory_space<vmem>>, %arg20: memref<1x64xf32, #tpu.memory_space<vmem>>, %arg21: memref<64x64xf32, #tpu.memory_space<vmem>>, %arg22: memref<1x64xf32, #tpu.memory_space<vmem>>, %arg23: memref<64x64xf32, #tpu.memory_space<vmem>>, %arg24: memref<1x64xf32, #tpu.memory_space<vmem>>, %arg25: memref<64x64xf32, #tpu.memory_space<vmem>>, %arg26: memref<1x64xf32, #tpu.memory_space<vmem>>, %arg27: memref<1x64xf32, #tpu.memory_space<vmem>>, %arg28: memref<1x64xf32, #tpu.memory_space<vmem>>, %arg29: memref<64x2048xf32, #tpu.memory_space<vmem>>, %arg30: memref<1x2048xf32, #tpu.memory_space<vmem>>, %arg31: memref<2048x64xf32, #tpu.memory_space<vmem>>, %arg32: memref<1x64xf32, #tpu.memory_space<vmem>>, %arg33: memref<1x64xf32, #tpu.memory_space<vmem>>, %arg34: memref<1x64xf32, #tpu.memory_space<vmem>>, %arg35: memref<64x5xf32, #tpu.memory_space<vmem>>, %arg36: memref<1x5xf32, #tpu.memory_space<vmem>>, %arg37: memref<2x16xf32, #tpu.memory_space<vmem>>, %arg38: memref<2x5xf32, #tpu.memory_space<vmem>>, %arg39: memref<16x64xf32, #tpu.memory_space<vmem>>) attributes {dimension_semantics = [], scalar_prefetch = 0 : i64, scratch_operands = 1 : i64, tpu.core_type = #tpu.core_type<tc>} {
    %c0 = arith.constant 0 : index
    %c0_0 = arith.constant 0 : index
    %0 = vector.load %arg0[%c0, %c0_0] : memref<16x16xf32, #tpu.memory_space<vmem>>, vector<16x16xf32>
    %c0_1 = arith.constant 0 : index
    %c0_2 = arith.constant 0 : index
    %1 = vector.load %arg1[%c0_1, %c0_2] : memref<16x64xf32, #tpu.memory_space<vmem>>, vector<16x64xf32>
    %cst = arith.constant dense<0.000000e+00> : vector<16x64xf32>
    %2 = tpu.matmul %0, %1, %cst {dimension_numbers = #tpu.dot_dimension_numbers<[1], [0], [0], [1], [0, 0, 1, 1], [], []>} : vector<16x16xf32>, vector<16x64xf32>, vector<16x64xf32> -> vector<16x64xf32>
    %c0_3 = arith.constant 0 : index
    %c0_4 = arith.constant 0 : index
    %3 = vector.load %arg2[%c0_3, %c0_4] : memref<1x64xf32, #tpu.memory_space<vmem>>, vector<1x64xf32>
    %4 = vector.broadcast %3 : vector<1x64xf32> to vector<16x64xf32>
    %5 = arith.addf %2, %4 : vector<16x64xf32>
    %c0_5 = arith.constant 0 : index
    %c0_6 = arith.constant 0 : index
    %6 = vector.load %arg3[%c0_5, %c0_6] : memref<64x64xf32, #tpu.memory_space<vmem>>, vector<64x64xf32>
    %cst_7 = arith.constant dense<0.000000e+00> : vector<16x64xf32>
    %7 = tpu.matmul %5, %6, %cst_7 {dimension_numbers = #tpu.dot_dimension_numbers<[1], [0], [0], [1], [0, 0, 1, 1], [], []>} : vector<16x64xf32>, vector<64x64xf32>, vector<16x64xf32> -> vector<16x64xf32>
    %c0_8 = arith.constant 0 : index
    %c0_9 = arith.constant 0 : index
    %8 = vector.load %arg4[%c0_8, %c0_9] : memref<1x64xf32, #tpu.memory_space<vmem>>, vector<1x64xf32>
    %9 = vector.broadcast %8 : vector<1x64xf32> to vector<16x64xf32>
    %10 = arith.addf %7, %9 : vector<16x64xf32>
    %c0_10 = arith.constant 0 : index
    %c0_11 = arith.constant 0 : index
    %11 = vector.load %arg5[%c0_10, %c0_11] : memref<64x64xf32, #tpu.memory_space<vmem>>, vector<64x64xf32>
    %cst_12 = arith.constant dense<0.000000e+00> : vector<16x64xf32>
    %12 = tpu.matmul %5, %11, %cst_12 {dimension_numbers = #tpu.dot_dimension_numbers<[1], [0], [0], [1], [0, 0, 1, 1], [], []>} : vector<16x64xf32>, vector<64x64xf32>, vector<16x64xf32> -> vector<16x64xf32>
    %c0_13 = arith.constant 0 : index
    %c0_14 = arith.constant 0 : index
    %13 = vector.load %arg6[%c0_13, %c0_14] : memref<1x64xf32, #tpu.memory_space<vmem>>, vector<1x64xf32>
    %14 = vector.broadcast %13 : vector<1x64xf32> to vector<16x64xf32>
    %15 = arith.addf %12, %14 : vector<16x64xf32>
    %c0_15 = arith.constant 0 : index
    %c0_16 = arith.constant 0 : index
    %16 = vector.load %arg7[%c0_15, %c0_16] : memref<64x64xf32, #tpu.memory_space<vmem>>, vector<64x64xf32>
    %cst_17 = arith.constant dense<0.000000e+00> : vector<16x64xf32>
    %17 = tpu.matmul %5, %16, %cst_17 {dimension_numbers = #tpu.dot_dimension_numbers<[1], [0], [0], [1], [0, 0, 1, 1], [], []>} : vector<16x64xf32>, vector<64x64xf32>, vector<16x64xf32> -> vector<16x64xf32>
    %c0_18 = arith.constant 0 : index
    %c0_19 = arith.constant 0 : index
    %18 = vector.load %arg8[%c0_18, %c0_19] : memref<1x64xf32, #tpu.memory_space<vmem>>, vector<1x64xf32>
    %19 = vector.broadcast %18 : vector<1x64xf32> to vector<16x64xf32>
    %20 = arith.addf %17, %19 : vector<16x64xf32>
    %c0_20 = arith.constant 0 : index
    %c0_21 = arith.constant 0 : index
    %21 = vector.load %arg9[%c0_20, %c0_21] : memref<64x64xf32, #tpu.memory_space<vmem>>, vector<64x64xf32>
    %22 = vector.extract_strided_slice %10 {offsets = [0, 0], sizes = [8, 64], strides = [1, 1]} : vector<16x64xf32> to vector<8x64xf32>
    %23 = vector.extract_strided_slice %15 {offsets = [0, 0], sizes = [8, 64], strides = [1, 1]} : vector<16x64xf32> to vector<8x64xf32>
    %24 = vector.extract_strided_slice %20 {offsets = [0, 0], sizes = [8, 64], strides = [1, 1]} : vector<16x64xf32> to vector<8x64xf32>
    %25 = vector.extract_strided_slice %22 {offsets = [0, 0], sizes = [8, 16], strides = [1, 1]} : vector<8x64xf32> to vector<8x16xf32>
    %26 = vector.extract_strided_slice %23 {offsets = [0, 0], sizes = [8, 16], strides = [1, 1]} : vector<8x64xf32> to vector<8x16xf32>
    %27 = vector.extract_strided_slice %24 {offsets = [0, 0], sizes = [8, 16], strides = [1, 1]} : vector<8x64xf32> to vector<8x16xf32>
    %cst_22 = arith.constant dense<0.000000e+00> : vector<8x8xf32>
    %28 = tpu.matmul %25, %26, %cst_22 {dimension_numbers = #tpu.dot_dimension_numbers<[1], [1], [0], [0], [0, 0, 1, 0], [], []>} : vector<8x16xf32>, vector<8x16xf32>, vector<8x8xf32> -> vector<8x8xf32>
    %cst_23 = arith.constant 2.500000e-01 : f32
    %29 = vector.broadcast %cst_23 : f32 to vector<8x8xf32>
    %30 = arith.mulf %28, %29 : vector<8x8xf32>
    %cst_24 = arith.constant dense<0xFF800000> : vector<8xf32>
    %31 = vector.multi_reduction <maximumf>, %30, %cst_24 [1] : vector<8x8xf32> to vector<8xf32>
    %32 = vector.shape_cast %31 : vector<8xf32> to vector<8x1xf32>
    %33 = vector.broadcast %32 : vector<8x1xf32> to vector<8x8xf32>
    %34 = arith.subf %30, %33 : vector<8x8xf32>
    %35 = math.exp %34 : vector<8x8xf32>
    %cst_25 = arith.constant dense<0.000000e+00> : vector<8xf32>
    %36 = vector.multi_reduction <add>, %35, %cst_25 [1] : vector<8x8xf32> to vector<8xf32>
    %37 = vector.shape_cast %36 : vector<8xf32> to vector<8x1xf32>
    %38 = tpu.reciprocal %37 : vector<8x1xf32> -> vector<8x1xf32>
    %39 = vector.broadcast %38 : vector<8x1xf32> to vector<8x8xf32>
    %40 = arith.mulf %35, %39 : vector<8x8xf32>
    %cst_26 = arith.constant dense<0.000000e+00> : vector<8x16xf32>
    %41 = tpu.matmul %40, %27, %cst_26 {dimension_numbers = #tpu.dot_dimension_numbers<[1], [0], [0], [1], [0, 0, 1, 1], [], []>} : vector<8x8xf32>, vector<8x16xf32>, vector<8x16xf32> -> vector<8x16xf32>
    %42 = vector.extract_strided_slice %21 {offsets = [0, 0], sizes = [16, 64], strides = [1, 1]} : vector<64x64xf32> to vector<16x64xf32>
    %cst_27 = arith.constant dense<0.000000e+00> : vector<8x64xf32>
    %43 = tpu.matmul %41, %42, %cst_27 {dimension_numbers = #tpu.dot_dimension_numbers<[1], [0], [0], [1], [0, 0, 1, 1], [], []>} : vector<8x16xf32>, vector<16x64xf32>, vector<8x64xf32> -> vector<8x64xf32>
    %44 = vector.extract_strided_slice %22 {offsets = [0, 16], sizes = [8, 16], strides = [1, 1]} : vector<8x64xf32> to vector<8x16xf32>
    %45 = vector.extract_strided_slice %23 {offsets = [0, 16], sizes = [8, 16], strides = [1, 1]} : vector<8x64xf32> to vector<8x16xf32>
    %46 = vector.extract_strided_slice %24 {offsets = [0, 16], sizes = [8, 16], strides = [1, 1]} : vector<8x64xf32> to vector<8x16xf32>
    %cst_28 = arith.constant dense<0.000000e+00> : vector<8x8xf32>
    %47 = tpu.matmul %44, %45, %cst_28 {dimension_numbers = #tpu.dot_dimension_numbers<[1], [1], [0], [0], [0, 0, 1, 0], [], []>} : vector<8x16xf32>, vector<8x16xf32>, vector<8x8xf32> -> vector<8x8xf32>
    %cst_29 = arith.constant 2.500000e-01 : f32
    %48 = vector.broadcast %cst_29 : f32 to vector<8x8xf32>
    %49 = arith.mulf %47, %48 : vector<8x8xf32>
    %cst_30 = arith.constant dense<0xFF800000> : vector<8xf32>
    %50 = vector.multi_reduction <maximumf>, %49, %cst_30 [1] : vector<8x8xf32> to vector<8xf32>
    %51 = vector.shape_cast %50 : vector<8xf32> to vector<8x1xf32>
    %52 = vector.broadcast %51 : vector<8x1xf32> to vector<8x8xf32>
    %53 = arith.subf %49, %52 : vector<8x8xf32>
    %54 = math.exp %53 : vector<8x8xf32>
    %cst_31 = arith.constant dense<0.000000e+00> : vector<8xf32>
    %55 = vector.multi_reduction <add>, %54, %cst_31 [1] : vector<8x8xf32> to vector<8xf32>
    %56 = vector.shape_cast %55 : vector<8xf32> to vector<8x1xf32>
    %57 = tpu.reciprocal %56 : vector<8x1xf32> -> vector<8x1xf32>
    %58 = vector.broadcast %57 : vector<8x1xf32> to vector<8x8xf32>
    %59 = arith.mulf %54, %58 : vector<8x8xf32>
    %cst_32 = arith.constant dense<0.000000e+00> : vector<8x16xf32>
    %60 = tpu.matmul %59, %46, %cst_32 {dimension_numbers = #tpu.dot_dimension_numbers<[1], [0], [0], [1], [0, 0, 1, 1], [], []>} : vector<8x8xf32>, vector<8x16xf32>, vector<8x16xf32> -> vector<8x16xf32>
    %61 = vector.extract_strided_slice %21 {offsets = [16, 0], sizes = [16, 64], strides = [1, 1]} : vector<64x64xf32> to vector<16x64xf32>
    %cst_33 = arith.constant dense<0.000000e+00> : vector<8x64xf32>
    %62 = tpu.matmul %60, %61, %cst_33 {dimension_numbers = #tpu.dot_dimension_numbers<[1], [0], [0], [1], [0, 0, 1, 1], [], []>} : vector<8x16xf32>, vector<16x64xf32>, vector<8x64xf32> -> vector<8x64xf32>
    %63 = arith.addf %43, %62 : vector<8x64xf32>
    %64 = vector.extract_strided_slice %22 {offsets = [0, 32], sizes = [8, 16], strides = [1, 1]} : vector<8x64xf32> to vector<8x16xf32>
    %65 = vector.extract_strided_slice %23 {offsets = [0, 32], sizes = [8, 16], strides = [1, 1]} : vector<8x64xf32> to vector<8x16xf32>
    %66 = vector.extract_strided_slice %24 {offsets = [0, 32], sizes = [8, 16], strides = [1, 1]} : vector<8x64xf32> to vector<8x16xf32>
    %cst_34 = arith.constant dense<0.000000e+00> : vector<8x8xf32>
    %67 = tpu.matmul %64, %65, %cst_34 {dimension_numbers = #tpu.dot_dimension_numbers<[1], [1], [0], [0], [0, 0, 1, 0], [], []>} : vector<8x16xf32>, vector<8x16xf32>, vector<8x8xf32> -> vector<8x8xf32>
    %cst_35 = arith.constant 2.500000e-01 : f32
    %68 = vector.broadcast %cst_35 : f32 to vector<8x8xf32>
    %69 = arith.mulf %67, %68 : vector<8x8xf32>
    %cst_36 = arith.constant dense<0xFF800000> : vector<8xf32>
    %70 = vector.multi_reduction <maximumf>, %69, %cst_36 [1] : vector<8x8xf32> to vector<8xf32>
    %71 = vector.shape_cast %70 : vector<8xf32> to vector<8x1xf32>
    %72 = vector.broadcast %71 : vector<8x1xf32> to vector<8x8xf32>
    %73 = arith.subf %69, %72 : vector<8x8xf32>
    %74 = math.exp %73 : vector<8x8xf32>
    %cst_37 = arith.constant dense<0.000000e+00> : vector<8xf32>
    %75 = vector.multi_reduction <add>, %74, %cst_37 [1] : vector<8x8xf32> to vector<8xf32>
    %76 = vector.shape_cast %75 : vector<8xf32> to vector<8x1xf32>
    %77 = tpu.reciprocal %76 : vector<8x1xf32> -> vector<8x1xf32>
    %78 = vector.broadcast %77 : vector<8x1xf32> to vector<8x8xf32>
    %79 = arith.mulf %74, %78 : vector<8x8xf32>
    %cst_38 = arith.constant dense<0.000000e+00> : vector<8x16xf32>
    %80 = tpu.matmul %79, %66, %cst_38 {dimension_numbers = #tpu.dot_dimension_numbers<[1], [0], [0], [1], [0, 0, 1, 1], [], []>} : vector<8x8xf32>, vector<8x16xf32>, vector<8x16xf32> -> vector<8x16xf32>
    %81 = vector.extract_strided_slice %21 {offsets = [32, 0], sizes = [16, 64], strides = [1, 1]} : vector<64x64xf32> to vector<16x64xf32>
    %cst_39 = arith.constant dense<0.000000e+00> : vector<8x64xf32>
    %82 = tpu.matmul %80, %81, %cst_39 {dimension_numbers = #tpu.dot_dimension_numbers<[1], [0], [0], [1], [0, 0, 1, 1], [], []>} : vector<8x16xf32>, vector<16x64xf32>, vector<8x64xf32> -> vector<8x64xf32>
    %83 = arith.addf %63, %82 : vector<8x64xf32>
    %84 = vector.extract_strided_slice %22 {offsets = [0, 48], sizes = [8, 16], strides = [1, 1]} : vector<8x64xf32> to vector<8x16xf32>
    %85 = vector.extract_strided_slice %23 {offsets = [0, 48], sizes = [8, 16], strides = [1, 1]} : vector<8x64xf32> to vector<8x16xf32>
    %86 = vector.extract_strided_slice %24 {offsets = [0, 48], sizes = [8, 16], strides = [1, 1]} : vector<8x64xf32> to vector<8x16xf32>
    %cst_40 = arith.constant dense<0.000000e+00> : vector<8x8xf32>
    %87 = tpu.matmul %84, %85, %cst_40 {dimension_numbers = #tpu.dot_dimension_numbers<[1], [1], [0], [0], [0, 0, 1, 0], [], []>} : vector<8x16xf32>, vector<8x16xf32>, vector<8x8xf32> -> vector<8x8xf32>
    %cst_41 = arith.constant 2.500000e-01 : f32
    %88 = vector.broadcast %cst_41 : f32 to vector<8x8xf32>
    %89 = arith.mulf %87, %88 : vector<8x8xf32>
    %cst_42 = arith.constant dense<0xFF800000> : vector<8xf32>
    %90 = vector.multi_reduction <maximumf>, %89, %cst_42 [1] : vector<8x8xf32> to vector<8xf32>
    %91 = vector.shape_cast %90 : vector<8xf32> to vector<8x1xf32>
    %92 = vector.broadcast %91 : vector<8x1xf32> to vector<8x8xf32>
    %93 = arith.subf %89, %92 : vector<8x8xf32>
    %94 = math.exp %93 : vector<8x8xf32>
    %cst_43 = arith.constant dense<0.000000e+00> : vector<8xf32>
    %95 = vector.multi_reduction <add>, %94, %cst_43 [1] : vector<8x8xf32> to vector<8xf32>
    %96 = vector.shape_cast %95 : vector<8xf32> to vector<8x1xf32>
    %97 = tpu.reciprocal %96 : vector<8x1xf32> -> vector<8x1xf32>
    %98 = vector.broadcast %97 : vector<8x1xf32> to vector<8x8xf32>
    %99 = arith.mulf %94, %98 : vector<8x8xf32>
    %cst_44 = arith.constant dense<0.000000e+00> : vector<8x16xf32>
    %100 = tpu.matmul %99, %86, %cst_44 {dimension_numbers = #tpu.dot_dimension_numbers<[1], [0], [0], [1], [0, 0, 1, 1], [], []>} : vector<8x8xf32>, vector<8x16xf32>, vector<8x16xf32> -> vector<8x16xf32>
    %101 = vector.extract_strided_slice %21 {offsets = [48, 0], sizes = [16, 64], strides = [1, 1]} : vector<64x64xf32> to vector<16x64xf32>
    %cst_45 = arith.constant dense<0.000000e+00> : vector<8x64xf32>
    %102 = tpu.matmul %100, %101, %cst_45 {dimension_numbers = #tpu.dot_dimension_numbers<[1], [0], [0], [1], [0, 0, 1, 1], [], []>} : vector<8x16xf32>, vector<16x64xf32>, vector<8x64xf32> -> vector<8x64xf32>
    %103 = arith.addf %83, %102 : vector<8x64xf32>
    %c0_46 = arith.constant 0 : index
    %c0_47 = arith.constant 0 : index
    %104 = vector.load %arg39[%c0_46, %c0_47] : memref<16x64xf32, #tpu.memory_space<vmem>>, vector<8x64xf32>
    tpu.vector_store %arg39[%c0_46, %c0_47], %103 {strides = array<i32>} : memref<16x64xf32, #tpu.memory_space<vmem>>, vector<8x64xf32>,
    %105 = vector.extract_strided_slice %10 {offsets = [8, 0], sizes = [8, 64], strides = [1, 1]} : vector<16x64xf32> to vector<8x64xf32>
    %106 = vector.extract_strided_slice %15 {offsets = [8, 0], sizes = [8, 64], strides = [1, 1]} : vector<16x64xf32> to vector<8x64xf32>
    %107 = vector.extract_strided_slice %20 {offsets = [8, 0], sizes = [8, 64], strides = [1, 1]} : vector<16x64xf32> to vector<8x64xf32>
    %108 = vector.extract_strided_slice %105 {offsets = [0, 0], sizes = [8, 16], strides = [1, 1]} : vector<8x64xf32> to vector<8x16xf32>
    %109 = vector.extract_strided_slice %106 {offsets = [0, 0], sizes = [8, 16], strides = [1, 1]} : vector<8x64xf32> to vector<8x16xf32>
    %110 = vector.extract_strided_slice %107 {offsets = [0, 0], sizes = [8, 16], strides = [1, 1]} : vector<8x64xf32> to vector<8x16xf32>
    %cst_48 = arith.constant dense<0.000000e+00> : vector<8x8xf32>
    %111 = tpu.matmul %108, %109, %cst_48 {dimension_numbers = #tpu.dot_dimension_numbers<[1], [1], [0], [0], [0, 0, 1, 0], [], []>} : vector<8x16xf32>, vector<8x16xf32>, vector<8x8xf32> -> vector<8x8xf32>
    %cst_49 = arith.constant 2.500000e-01 : f32
    %112 = vector.broadcast %cst_49 : f32 to vector<8x8xf32>
    %113 = arith.mulf %111, %112 : vector<8x8xf32>
    %cst_50 = arith.constant dense<0xFF800000> : vector<8xf32>
    %114 = vector.multi_reduction <maximumf>, %113, %cst_50 [1] : vector<8x8xf32> to vector<8xf32>
    %115 = vector.shape_cast %114 : vector<8xf32> to vector<8x1xf32>
    %116 = vector.broadcast %115 : vector<8x1xf32> to vector<8x8xf32>
    %117 = arith.subf %113, %116 : vector<8x8xf32>
    %118 = math.exp %117 : vector<8x8xf32>
    %cst_51 = arith.constant dense<0.000000e+00> : vector<8xf32>
    %119 = vector.multi_reduction <add>, %118, %cst_51 [1] : vector<8x8xf32> to vector<8xf32>
    %120 = vector.shape_cast %119 : vector<8xf32> to vector<8x1xf32>
    %121 = tpu.reciprocal %120 : vector<8x1xf32> -> vector<8x1xf32>
    %122 = vector.broadcast %121 : vector<8x1xf32> to vector<8x8xf32>
    %123 = arith.mulf %118, %122 : vector<8x8xf32>
    %cst_52 = arith.constant dense<0.000000e+00> : vector<8x16xf32>
    %124 = tpu.matmul %123, %110, %cst_52 {dimension_numbers = #tpu.dot_dimension_numbers<[1], [0], [0], [1], [0, 0, 1, 1], [], []>} : vector<8x8xf32>, vector<8x16xf32>, vector<8x16xf32> -> vector<8x16xf32>
    %125 = vector.extract_strided_slice %21 {offsets = [0, 0], sizes = [16, 64], strides = [1, 1]} : vector<64x64xf32> to vector<16x64xf32>
    %cst_53 = arith.constant dense<0.000000e+00> : vector<8x64xf32>
    %126 = tpu.matmul %124, %125, %cst_53 {dimension_numbers = #tpu.dot_dimension_numbers<[1], [0], [0], [1], [0, 0, 1, 1], [], []>} : vector<8x16xf32>, vector<16x64xf32>, vector<8x64xf32> -> vector<8x64xf32>
    %127 = vector.extract_strided_slice %105 {offsets = [0, 16], sizes = [8, 16], strides = [1, 1]} : vector<8x64xf32> to vector<8x16xf32>
    %128 = vector.extract_strided_slice %106 {offsets = [0, 16], sizes = [8, 16], strides = [1, 1]} : vector<8x64xf32> to vector<8x16xf32>
    %129 = vector.extract_strided_slice %107 {offsets = [0, 16], sizes = [8, 16], strides = [1, 1]} : vector<8x64xf32> to vector<8x16xf32>
    %cst_54 = arith.constant dense<0.000000e+00> : vector<8x8xf32>
    %130 = tpu.matmul %127, %128, %cst_54 {dimension_numbers = #tpu.dot_dimension_numbers<[1], [1], [0], [0], [0, 0, 1, 0], [], []>} : vector<8x16xf32>, vector<8x16xf32>, vector<8x8xf32> -> vector<8x8xf32>
    %cst_55 = arith.constant 2.500000e-01 : f32
    %131 = vector.broadcast %cst_55 : f32 to vector<8x8xf32>
    %132 = arith.mulf %130, %131 : vector<8x8xf32>
    %cst_56 = arith.constant dense<0xFF800000> : vector<8xf32>
    %133 = vector.multi_reduction <maximumf>, %132, %cst_56 [1] : vector<8x8xf32> to vector<8xf32>
    %134 = vector.shape_cast %133 : vector<8xf32> to vector<8x1xf32>
    %135 = vector.broadcast %134 : vector<8x1xf32> to vector<8x8xf32>
    %136 = arith.subf %132, %135 : vector<8x8xf32>
    %137 = math.exp %136 : vector<8x8xf32>
    %cst_57 = arith.constant dense<0.000000e+00> : vector<8xf32>
    %138 = vector.multi_reduction <add>, %137, %cst_57 [1] : vector<8x8xf32> to vector<8xf32>
    %139 = vector.shape_cast %138 : vector<8xf32> to vector<8x1xf32>
    %140 = tpu.reciprocal %139 : vector<8x1xf32> -> vector<8x1xf32>
    %141 = vector.broadcast %140 : vector<8x1xf32> to vector<8x8xf32>
    %142 = arith.mulf %137, %141 : vector<8x8xf32>
    %cst_58 = arith.constant dense<0.000000e+00> : vector<8x16xf32>
    %143 = tpu.matmul %142, %129, %cst_58 {dimension_numbers = #tpu.dot_dimension_numbers<[1], [0], [0], [1], [0, 0, 1, 1], [], []>} : vector<8x8xf32>, vector<8x16xf32>, vector<8x16xf32> -> vector<8x16xf32>
    %144 = vector.extract_strided_slice %21 {offsets = [16, 0], sizes = [16, 64], strides = [1, 1]} : vector<64x64xf32> to vector<16x64xf32>
    %cst_59 = arith.constant dense<0.000000e+00> : vector<8x64xf32>
    %145 = tpu.matmul %143, %144, %cst_59 {dimension_numbers = #tpu.dot_dimension_numbers<[1], [0], [0], [1], [0, 0, 1, 1], [], []>} : vector<8x16xf32>, vector<16x64xf32>, vector<8x64xf32> -> vector<8x64xf32>
    %146 = arith.addf %126, %145 : vector<8x64xf32>
    %147 = vector.extract_strided_slice %105 {offsets = [0, 32], sizes = [8, 16], strides = [1, 1]} : vector<8x64xf32> to vector<8x16xf32>
    %148 = vector.extract_strided_slice %106 {offsets = [0, 32], sizes = [8, 16], strides = [1, 1]} : vector<8x64xf32> to vector<8x16xf32>
    %149 = vector.extract_strided_slice %107 {offsets = [0, 32], sizes = [8, 16], strides = [1, 1]} : vector<8x64xf32> to vector<8x16xf32>
    %cst_60 = arith.constant dense<0.000000e+00> : vector<8x8xf32>
    %150 = tpu.matmul %147, %148, %cst_60 {dimension_numbers = #tpu.dot_dimension_numbers<[1], [1], [0], [0], [0, 0, 1, 0], [], []>} : vector<8x16xf32>, vector<8x16xf32>, vector<8x8xf32> -> vector<8x8xf32>
    %cst_61 = arith.constant 2.500000e-01 : f32
    %151 = vector.broadcast %cst_61 : f32 to vector<8x8xf32>
    %152 = arith.mulf %150, %151 : vector<8x8xf32>
    %cst_62 = arith.constant dense<0xFF800000> : vector<8xf32>
    %153 = vector.multi_reduction <maximumf>, %152, %cst_62 [1] : vector<8x8xf32> to vector<8xf32>
    %154 = vector.shape_cast %153 : vector<8xf32> to vector<8x1xf32>
    %155 = vector.broadcast %154 : vector<8x1xf32> to vector<8x8xf32>
    %156 = arith.subf %152, %155 : vector<8x8xf32>
    %157 = math.exp %156 : vector<8x8xf32>
    %cst_63 = arith.constant dense<0.000000e+00> : vector<8xf32>
    %158 = vector.multi_reduction <add>, %157, %cst_63 [1] : vector<8x8xf32> to vector<8xf32>
    %159 = vector.shape_cast %158 : vector<8xf32> to vector<8x1xf32>
    %160 = tpu.reciprocal %159 : vector<8x1xf32> -> vector<8x1xf32>
    %161 = vector.broadcast %160 : vector<8x1xf32> to vector<8x8xf32>
    %162 = arith.mulf %157, %161 : vector<8x8xf32>
    %cst_64 = arith.constant dense<0.000000e+00> : vector<8x16xf32>
    %163 = tpu.matmul %162, %149, %cst_64 {dimension_numbers = #tpu.dot_dimension_numbers<[1], [0], [0], [1], [0, 0, 1, 1], [], []>} : vector<8x8xf32>, vector<8x16xf32>, vector<8x16xf32> -> vector<8x16xf32>
    %164 = vector.extract_strided_slice %21 {offsets = [32, 0], sizes = [16, 64], strides = [1, 1]} : vector<64x64xf32> to vector<16x64xf32>
    %cst_65 = arith.constant dense<0.000000e+00> : vector<8x64xf32>
    %165 = tpu.matmul %163, %164, %cst_65 {dimension_numbers = #tpu.dot_dimension_numbers<[1], [0], [0], [1], [0, 0, 1, 1], [], []>} : vector<8x16xf32>, vector<16x64xf32>, vector<8x64xf32> -> vector<8x64xf32>
    %166 = arith.addf %146, %165 : vector<8x64xf32>
    %167 = vector.extract_strided_slice %105 {offsets = [0, 48], sizes = [8, 16], strides = [1, 1]} : vector<8x64xf32> to vector<8x16xf32>
    %168 = vector.extract_strided_slice %106 {offsets = [0, 48], sizes = [8, 16], strides = [1, 1]} : vector<8x64xf32> to vector<8x16xf32>
    %169 = vector.extract_strided_slice %107 {offsets = [0, 48], sizes = [8, 16], strides = [1, 1]} : vector<8x64xf32> to vector<8x16xf32>
    %cst_66 = arith.constant dense<0.000000e+00> : vector<8x8xf32>
    %170 = tpu.matmul %167, %168, %cst_66 {dimension_numbers = #tpu.dot_dimension_numbers<[1], [1], [0], [0], [0, 0, 1, 0], [], []>} : vector<8x16xf32>, vector<8x16xf32>, vector<8x8xf32> -> vector<8x8xf32>
    %cst_67 = arith.constant 2.500000e-01 : f32
    %171 = vector.broadcast %cst_67 : f32 to vector<8x8xf32>
    %172 = arith.mulf %170, %171 : vector<8x8xf32>
    %cst_68 = arith.constant dense<0xFF800000> : vector<8xf32>
    %173 = vector.multi_reduction <maximumf>, %172, %cst_68 [1] : vector<8x8xf32> to vector<8xf32>
    %174 = vector.shape_cast %173 : vector<8xf32> to vector<8x1xf32>
    %175 = vector.broadcast %174 : vector<8x1xf32> to vector<8x8xf32>
    %176 = arith.subf %172, %175 : vector<8x8xf32>
    %177 = math.exp %176 : vector<8x8xf32>
    %cst_69 = arith.constant dense<0.000000e+00> : vector<8xf32>
    %178 = vector.multi_reduction <add>, %177, %cst_69 [1] : vector<8x8xf32> to vector<8xf32>
    %179 = vector.shape_cast %178 : vector<8xf32> to vector<8x1xf32>
    %180 = tpu.reciprocal %179 : vector<8x1xf32> -> vector<8x1xf32>
    %181 = vector.broadcast %180 : vector<8x1xf32> to vector<8x8xf32>
    %182 = arith.mulf %177, %181 : vector<8x8xf32>
    %cst_70 = arith.constant dense<0.000000e+00> : vector<8x16xf32>
    %183 = tpu.matmul %182, %169, %cst_70 {dimension_numbers = #tpu.dot_dimension_numbers<[1], [0], [0], [1], [0, 0, 1, 1], [], []>} : vector<8x8xf32>, vector<8x16xf32>, vector<8x16xf32> -> vector<8x16xf32>
    %184 = vector.extract_strided_slice %21 {offsets = [48, 0], sizes = [16, 64], strides = [1, 1]} : vector<64x64xf32> to vector<16x64xf32>
    %cst_71 = arith.constant dense<0.000000e+00> : vector<8x64xf32>
    %185 = tpu.matmul %183, %184, %cst_71 {dimension_numbers = #tpu.dot_dimension_numbers<[1], [0], [0], [1], [0, 0, 1, 1], [], []>} : vector<8x16xf32>, vector<16x64xf32>, vector<8x64xf32> -> vector<8x64xf32>
    %186 = arith.addf %166, %185 : vector<8x64xf32>
    %c8 = arith.constant 8 : index
    %c0_72 = arith.constant 0 : index
    %187 = vector.load %arg39[%c8, %c0_72] : memref<16x64xf32, #tpu.memory_space<vmem>>, vector<8x64xf32>
    tpu.vector_store %arg39[%c8, %c0_72], %186 {strides = array<i32>} : memref<16x64xf32, #tpu.memory_space<vmem>>, vector<8x64xf32>,
    %c0_73 = arith.constant 0 : index
    %c0_74 = arith.constant 0 : index
    %188 = vector.load %arg39[%c0_73, %c0_74] : memref<16x64xf32, #tpu.memory_space<vmem>>, vector<16x64xf32>
    %c0_75 = arith.constant 0 : index
    %c0_76 = arith.constant 0 : index
    %189 = vector.load %arg10[%c0_75, %c0_76] : memref<1x64xf32, #tpu.memory_space<vmem>>, vector<1x64xf32>
    %190 = vector.broadcast %189 : vector<1x64xf32> to vector<16x64xf32>
    %191 = arith.addf %188, %190 : vector<16x64xf32>
    %192 = arith.addf %5, %191 : vector<16x64xf32>
    %c0_77 = arith.constant 0 : index
    %c0_78 = arith.constant 0 : index
    %193 = vector.load %arg11[%c0_77, %c0_78] : memref<1x64xf32, #tpu.memory_space<vmem>>, vector<1x64xf32>
    %c0_79 = arith.constant 0 : index
    %c0_80 = arith.constant 0 : index
    %194 = vector.load %arg12[%c0_79, %c0_80] : memref<1x64xf32, #tpu.memory_space<vmem>>, vector<1x64xf32>
    %cst_81 = arith.constant dense<0.000000e+00> : vector<16xf32>
    %195 = vector.multi_reduction <add>, %192, %cst_81 [1] : vector<16x64xf32> to vector<16xf32>
    %196 = vector.shape_cast %195 : vector<16xf32> to vector<16x1xf32>
    %cst_82 = arith.constant 6.400000e+01 : f32
    %197 = vector.broadcast %cst_82 : f32 to vector<16x1xf32>
    %198 = arith.divf %196, %197 : vector<16x1xf32>
    %199 = vector.broadcast %198 : vector<16x1xf32> to vector<16x64xf32>
    %200 = arith.subf %192, %199 : vector<16x64xf32>
    %201 = arith.mulf %200, %200 : vector<16x64xf32>
    %cst_83 = arith.constant dense<0.000000e+00> : vector<16xf32>
    %202 = vector.multi_reduction <add>, %201, %cst_83 [1] : vector<16x64xf32> to vector<16xf32>
    %203 = vector.shape_cast %202 : vector<16xf32> to vector<16x1xf32>
    %cst_84 = arith.constant 6.400000e+01 : f32
    %204 = vector.broadcast %cst_84 : f32 to vector<16x1xf32>
    %205 = arith.divf %203, %204 : vector<16x1xf32>
    %cst_85 = arith.constant 9.99999974E-6 : f32
    %206 = vector.broadcast %cst_85 : f32 to vector<16x1xf32>
    %207 = arith.addf %205, %206 : vector<16x1xf32>
    %208 = math.rsqrt %207 : vector<16x1xf32>
    %209 = vector.broadcast %208 : vector<16x1xf32> to vector<16x64xf32>
    %210 = arith.mulf %200, %209 : vector<16x64xf32>
    %211 = vector.broadcast %193 : vector<1x64xf32> to vector<16x64xf32>
    %212 = arith.mulf %210, %211 : vector<16x64xf32>
    %213 = vector.broadcast %194 : vector<1x64xf32> to vector<16x64xf32>
    %214 = arith.addf %212, %213 : vector<16x64xf32>
    %c0_86 = arith.constant 0 : index
    %c0_87 = arith.constant 0 : index
    %215 = vector.load %arg13[%c0_86, %c0_87] : memref<64x2048xf32, #tpu.memory_space<vmem>>, vector<64x2048xf32>
    %cst_88 = arith.constant dense<0.000000e+00> : vector<16x2048xf32>
    %216 = tpu.matmul %214, %215, %cst_88 {dimension_numbers = #tpu.dot_dimension_numbers<[1], [0], [0], [1], [0, 0, 1, 1], [], []>} : vector<16x64xf32>, vector<64x2048xf32>, vector<16x2048xf32> -> vector<16x2048xf32>
    %c0_89 = arith.constant 0 : index
    %c0_90 = arith.constant 0 : index
    %217 = vector.load %arg14[%c0_89, %c0_90] : memref<1x2048xf32, #tpu.memory_space<vmem>>, vector<1x2048xf32>
    %218 = vector.broadcast %217 : vector<1x2048xf32> to vector<16x2048xf32>
    %219 = arith.addf %216, %218 : vector<16x2048xf32>
    %cst_91 = arith.constant 0.000000e+00 : f32
    %220 = vector.broadcast %cst_91 : f32 to vector<16x2048xf32>
    %221 = arith.maximumf %219, %220 : vector<16x2048xf32>
    %c0_92 = arith.constant 0 : index
    %c0_93 = arith.constant 0 : index
    %222 = vector.load %arg15[%c0_92, %c0_93] : memref<2048x64xf32, #tpu.memory_space<vmem>>, vector<2048x64xf32>
    %cst_94 = arith.constant dense<0.000000e+00> : vector<16x64xf32>
    %223 = tpu.matmul %221, %222, %cst_94 {dimension_numbers = #tpu.dot_dimension_numbers<[1], [0], [0], [1], [0, 0, 1, 1], [], []>} : vector<16x2048xf32>, vector<2048x64xf32>, vector<16x64xf32> -> vector<16x64xf32>
    %c0_95 = arith.constant 0 : index
    %c0_96 = arith.constant 0 : index
    %224 = vector.load %arg16[%c0_95, %c0_96] : memref<1x64xf32, #tpu.memory_space<vmem>>, vector<1x64xf32>
    %225 = vector.broadcast %224 : vector<1x64xf32> to vector<16x64xf32>
    %226 = arith.addf %223, %225 : vector<16x64xf32>
    %227 = arith.addf %214, %226 : vector<16x64xf32>
    %c0_97 = arith.constant 0 : index
    %c0_98 = arith.constant 0 : index
    %228 = vector.load %arg17[%c0_97, %c0_98] : memref<1x64xf32, #tpu.memory_space<vmem>>, vector<1x64xf32>
    %c0_99 = arith.constant 0 : index
    %c0_100 = arith.constant 0 : index
    %229 = vector.load %arg18[%c0_99, %c0_100] : memref<1x64xf32, #tpu.memory_space<vmem>>, vector<1x64xf32>
    %cst_101 = arith.constant dense<0.000000e+00> : vector<16xf32>
    %230 = vector.multi_reduction <add>, %227, %cst_101 [1] : vector<16x64xf32> to vector<16xf32>
    %231 = vector.shape_cast %230 : vector<16xf32> to vector<16x1xf32>
    %cst_102 = arith.constant 6.400000e+01 : f32
    %232 = vector.broadcast %cst_102 : f32 to vector<16x1xf32>
    %233 = arith.divf %231, %232 : vector<16x1xf32>
    %234 = vector.broadcast %233 : vector<16x1xf32> to vector<16x64xf32>
    %235 = arith.subf %227, %234 : vector<16x64xf32>
    %236 = arith.mulf %235, %235 : vector<16x64xf32>
    %cst_103 = arith.constant dense<0.000000e+00> : vector<16xf32>
    %237 = vector.multi_reduction <add>, %236, %cst_103 [1] : vector<16x64xf32> to vector<16xf32>
    %238 = vector.shape_cast %237 : vector<16xf32> to vector<16x1xf32>
    %cst_104 = arith.constant 6.400000e+01 : f32
    %239 = vector.broadcast %cst_104 : f32 to vector<16x1xf32>
    %240 = arith.divf %238, %239 : vector<16x1xf32>
    %cst_105 = arith.constant 9.99999974E-6 : f32
    %241 = vector.broadcast %cst_105 : f32 to vector<16x1xf32>
    %242 = arith.addf %240, %241 : vector<16x1xf32>
    %243 = math.rsqrt %242 : vector<16x1xf32>
    %244 = vector.broadcast %243 : vector<16x1xf32> to vector<16x64xf32>
    %245 = arith.mulf %235, %244 : vector<16x64xf32>
    %246 = vector.broadcast %228 : vector<1x64xf32> to vector<16x64xf32>
    %247 = arith.mulf %245, %246 : vector<16x64xf32>
    %248 = vector.broadcast %229 : vector<1x64xf32> to vector<16x64xf32>
    %249 = arith.addf %247, %248 : vector<16x64xf32>
    %c0_106 = arith.constant 0 : index
    %c0_107 = arith.constant 0 : index
    %250 = vector.load %arg19[%c0_106, %c0_107] : memref<64x64xf32, #tpu.memory_space<vmem>>, vector<64x64xf32>
    %cst_108 = arith.constant dense<0.000000e+00> : vector<16x64xf32>
    %251 = tpu.matmul %249, %250, %cst_108 {dimension_numbers = #tpu.dot_dimension_numbers<[1], [0], [0], [1], [0, 0, 1, 1], [], []>} : vector<16x64xf32>, vector<64x64xf32>, vector<16x64xf32> -> vector<16x64xf32>
    %c0_109 = arith.constant 0 : index
    %c0_110 = arith.constant 0 : index
    %252 = vector.load %arg20[%c0_109, %c0_110] : memref<1x64xf32, #tpu.memory_space<vmem>>, vector<1x64xf32>
    %253 = vector.broadcast %252 : vector<1x64xf32> to vector<16x64xf32>
    %254 = arith.addf %251, %253 : vector<16x64xf32>
    %c0_111 = arith.constant 0 : index
    %c0_112 = arith.constant 0 : index
    %255 = vector.load %arg21[%c0_111, %c0_112] : memref<64x64xf32, #tpu.memory_space<vmem>>, vector<64x64xf32>
    %cst_113 = arith.constant dense<0.000000e+00> : vector<16x64xf32>
    %256 = tpu.matmul %249, %255, %cst_113 {dimension_numbers = #tpu.dot_dimension_numbers<[1], [0], [0], [1], [0, 0, 1, 1], [], []>} : vector<16x64xf32>, vector<64x64xf32>, vector<16x64xf32> -> vector<16x64xf32>
    %c0_114 = arith.constant 0 : index
    %c0_115 = arith.constant 0 : index
    %257 = vector.load %arg22[%c0_114, %c0_115] : memref<1x64xf32, #tpu.memory_space<vmem>>, vector<1x64xf32>
    %258 = vector.broadcast %257 : vector<1x64xf32> to vector<16x64xf32>
    %259 = arith.addf %256, %258 : vector<16x64xf32>
    %c0_116 = arith.constant 0 : index
    %c0_117 = arith.constant 0 : index
    %260 = vector.load %arg23[%c0_116, %c0_117] : memref<64x64xf32, #tpu.memory_space<vmem>>, vector<64x64xf32>
    %cst_118 = arith.constant dense<0.000000e+00> : vector<16x64xf32>
    %261 = tpu.matmul %249, %260, %cst_118 {dimension_numbers = #tpu.dot_dimension_numbers<[1], [0], [0], [1], [0, 0, 1, 1], [], []>} : vector<16x64xf32>, vector<64x64xf32>, vector<16x64xf32> -> vector<16x64xf32>
    %c0_119 = arith.constant 0 : index
    %c0_120 = arith.constant 0 : index
    %262 = vector.load %arg24[%c0_119, %c0_120] : memref<1x64xf32, #tpu.memory_space<vmem>>, vector<1x64xf32>
    %263 = vector.broadcast %262 : vector<1x64xf32> to vector<16x64xf32>
    %264 = arith.addf %261, %263 : vector<16x64xf32>
    %c0_121 = arith.constant 0 : index
    %c0_122 = arith.constant 0 : index
    %265 = vector.load %arg25[%c0_121, %c0_122] : memref<64x64xf32, #tpu.memory_space<vmem>>, vector<64x64xf32>
    %266 = vector.extract_strided_slice %254 {offsets = [0, 0], sizes = [8, 64], strides = [1, 1]} : vector<16x64xf32> to vector<8x64xf32>
    %267 = vector.extract_strided_slice %259 {offsets = [0, 0], sizes = [8, 64], strides = [1, 1]} : vector<16x64xf32> to vector<8x64xf32>
    %268 = vector.extract_strided_slice %264 {offsets = [0, 0], sizes = [8, 64], strides = [1, 1]} : vector<16x64xf32> to vector<8x64xf32>
    %269 = vector.extract_strided_slice %266 {offsets = [0, 0], sizes = [8, 16], strides = [1, 1]} : vector<8x64xf32> to vector<8x16xf32>
    %270 = vector.extract_strided_slice %267 {offsets = [0, 0], sizes = [8, 16], strides = [1, 1]} : vector<8x64xf32> to vector<8x16xf32>
    %271 = vector.extract_strided_slice %268 {offsets = [0, 0], sizes = [8, 16], strides = [1, 1]} : vector<8x64xf32> to vector<8x16xf32>
    %cst_123 = arith.constant dense<0.000000e+00> : vector<8x8xf32>
    %272 = tpu.matmul %269, %270, %cst_123 {dimension_numbers = #tpu.dot_dimension_numbers<[1], [1], [0], [0], [0, 0, 1, 0], [], []>} : vector<8x16xf32>, vector<8x16xf32>, vector<8x8xf32> -> vector<8x8xf32>
    %cst_124 = arith.constant 2.500000e-01 : f32
    %273 = vector.broadcast %cst_124 : f32 to vector<8x8xf32>
    %274 = arith.mulf %272, %273 : vector<8x8xf32>
    %cst_125 = arith.constant dense<0xFF800000> : vector<8xf32>
    %275 = vector.multi_reduction <maximumf>, %274, %cst_125 [1] : vector<8x8xf32> to vector<8xf32>
    %276 = vector.shape_cast %275 : vector<8xf32> to vector<8x1xf32>
    %277 = vector.broadcast %276 : vector<8x1xf32> to vector<8x8xf32>
    %278 = arith.subf %274, %277 : vector<8x8xf32>
    %279 = math.exp %278 : vector<8x8xf32>
    %cst_126 = arith.constant dense<0.000000e+00> : vector<8xf32>
    %280 = vector.multi_reduction <add>, %279, %cst_126 [1] : vector<8x8xf32> to vector<8xf32>
    %281 = vector.shape_cast %280 : vector<8xf32> to vector<8x1xf32>
    %282 = tpu.reciprocal %281 : vector<8x1xf32> -> vector<8x1xf32>
    %283 = vector.broadcast %282 : vector<8x1xf32> to vector<8x8xf32>
    %284 = arith.mulf %279, %283 : vector<8x8xf32>
    %cst_127 = arith.constant dense<0.000000e+00> : vector<8x16xf32>
    %285 = tpu.matmul %284, %271, %cst_127 {dimension_numbers = #tpu.dot_dimension_numbers<[1], [0], [0], [1], [0, 0, 1, 1], [], []>} : vector<8x8xf32>, vector<8x16xf32>, vector<8x16xf32> -> vector<8x16xf32>
    %286 = vector.extract_strided_slice %265 {offsets = [0, 0], sizes = [16, 64], strides = [1, 1]} : vector<64x64xf32> to vector<16x64xf32>
    %cst_128 = arith.constant dense<0.000000e+00> : vector<8x64xf32>
    %287 = tpu.matmul %285, %286, %cst_128 {dimension_numbers = #tpu.dot_dimension_numbers<[1], [0], [0], [1], [0, 0, 1, 1], [], []>} : vector<8x16xf32>, vector<16x64xf32>, vector<8x64xf32> -> vector<8x64xf32>
    %288 = vector.extract_strided_slice %266 {offsets = [0, 16], sizes = [8, 16], strides = [1, 1]} : vector<8x64xf32> to vector<8x16xf32>
    %289 = vector.extract_strided_slice %267 {offsets = [0, 16], sizes = [8, 16], strides = [1, 1]} : vector<8x64xf32> to vector<8x16xf32>
    %290 = vector.extract_strided_slice %268 {offsets = [0, 16], sizes = [8, 16], strides = [1, 1]} : vector<8x64xf32> to vector<8x16xf32>
    %cst_129 = arith.constant dense<0.000000e+00> : vector<8x8xf32>
    %291 = tpu.matmul %288, %289, %cst_129 {dimension_numbers = #tpu.dot_dimension_numbers<[1], [1], [0], [0], [0, 0, 1, 0], [], []>} : vector<8x16xf32>, vector<8x16xf32>, vector<8x8xf32> -> vector<8x8xf32>
    %cst_130 = arith.constant 2.500000e-01 : f32
    %292 = vector.broadcast %cst_130 : f32 to vector<8x8xf32>
    %293 = arith.mulf %291, %292 : vector<8x8xf32>
    %cst_131 = arith.constant dense<0xFF800000> : vector<8xf32>
    %294 = vector.multi_reduction <maximumf>, %293, %cst_131 [1] : vector<8x8xf32> to vector<8xf32>
    %295 = vector.shape_cast %294 : vector<8xf32> to vector<8x1xf32>
    %296 = vector.broadcast %295 : vector<8x1xf32> to vector<8x8xf32>
    %297 = arith.subf %293, %296 : vector<8x8xf32>
    %298 = math.exp %297 : vector<8x8xf32>
    %cst_132 = arith.constant dense<0.000000e+00> : vector<8xf32>
    %299 = vector.multi_reduction <add>, %298, %cst_132 [1] : vector<8x8xf32> to vector<8xf32>
    %300 = vector.shape_cast %299 : vector<8xf32> to vector<8x1xf32>
    %301 = tpu.reciprocal %300 : vector<8x1xf32> -> vector<8x1xf32>
    %302 = vector.broadcast %301 : vector<8x1xf32> to vector<8x8xf32>
    %303 = arith.mulf %298, %302 : vector<8x8xf32>
    %cst_133 = arith.constant dense<0.000000e+00> : vector<8x16xf32>
    %304 = tpu.matmul %303, %290, %cst_133 {dimension_numbers = #tpu.dot_dimension_numbers<[1], [0], [0], [1], [0, 0, 1, 1], [], []>} : vector<8x8xf32>, vector<8x16xf32>, vector<8x16xf32> -> vector<8x16xf32>
    %305 = vector.extract_strided_slice %265 {offsets = [16, 0], sizes = [16, 64], strides = [1, 1]} : vector<64x64xf32> to vector<16x64xf32>
    %cst_134 = arith.constant dense<0.000000e+00> : vector<8x64xf32>
    %306 = tpu.matmul %304, %305, %cst_134 {dimension_numbers = #tpu.dot_dimension_numbers<[1], [0], [0], [1], [0, 0, 1, 1], [], []>} : vector<8x16xf32>, vector<16x64xf32>, vector<8x64xf32> -> vector<8x64xf32>
    %307 = arith.addf %287, %306 : vector<8x64xf32>
    %308 = vector.extract_strided_slice %266 {offsets = [0, 32], sizes = [8, 16], strides = [1, 1]} : vector<8x64xf32> to vector<8x16xf32>
    %309 = vector.extract_strided_slice %267 {offsets = [0, 32], sizes = [8, 16], strides = [1, 1]} : vector<8x64xf32> to vector<8x16xf32>
    %310 = vector.extract_strided_slice %268 {offsets = [0, 32], sizes = [8, 16], strides = [1, 1]} : vector<8x64xf32> to vector<8x16xf32>
    %cst_135 = arith.constant dense<0.000000e+00> : vector<8x8xf32>
    %311 = tpu.matmul %308, %309, %cst_135 {dimension_numbers = #tpu.dot_dimension_numbers<[1], [1], [0], [0], [0, 0, 1, 0], [], []>} : vector<8x16xf32>, vector<8x16xf32>, vector<8x8xf32> -> vector<8x8xf32>
    %cst_136 = arith.constant 2.500000e-01 : f32
    %312 = vector.broadcast %cst_136 : f32 to vector<8x8xf32>
    %313 = arith.mulf %311, %312 : vector<8x8xf32>
    %cst_137 = arith.constant dense<0xFF800000> : vector<8xf32>
    %314 = vector.multi_reduction <maximumf>, %313, %cst_137 [1] : vector<8x8xf32> to vector<8xf32>
    %315 = vector.shape_cast %314 : vector<8xf32> to vector<8x1xf32>
    %316 = vector.broadcast %315 : vector<8x1xf32> to vector<8x8xf32>
    %317 = arith.subf %313, %316 : vector<8x8xf32>
    %318 = math.exp %317 : vector<8x8xf32>
    %cst_138 = arith.constant dense<0.000000e+00> : vector<8xf32>
    %319 = vector.multi_reduction <add>, %318, %cst_138 [1] : vector<8x8xf32> to vector<8xf32>
    %320 = vector.shape_cast %319 : vector<8xf32> to vector<8x1xf32>
    %321 = tpu.reciprocal %320 : vector<8x1xf32> -> vector<8x1xf32>
    %322 = vector.broadcast %321 : vector<8x1xf32> to vector<8x8xf32>
    %323 = arith.mulf %318, %322 : vector<8x8xf32>
    %cst_139 = arith.constant dense<0.000000e+00> : vector<8x16xf32>
    %324 = tpu.matmul %323, %310, %cst_139 {dimension_numbers = #tpu.dot_dimension_numbers<[1], [0], [0], [1], [0, 0, 1, 1], [], []>} : vector<8x8xf32>, vector<8x16xf32>, vector<8x16xf32> -> vector<8x16xf32>
    %325 = vector.extract_strided_slice %265 {offsets = [32, 0], sizes = [16, 64], strides = [1, 1]} : vector<64x64xf32> to vector<16x64xf32>
    %cst_140 = arith.constant dense<0.000000e+00> : vector<8x64xf32>
    %326 = tpu.matmul %324, %325, %cst_140 {dimension_numbers = #tpu.dot_dimension_numbers<[1], [0], [0], [1], [0, 0, 1, 1], [], []>} : vector<8x16xf32>, vector<16x64xf32>, vector<8x64xf32> -> vector<8x64xf32>
    %327 = arith.addf %307, %326 : vector<8x64xf32>
    %328 = vector.extract_strided_slice %266 {offsets = [0, 48], sizes = [8, 16], strides = [1, 1]} : vector<8x64xf32> to vector<8x16xf32>
    %329 = vector.extract_strided_slice %267 {offsets = [0, 48], sizes = [8, 16], strides = [1, 1]} : vector<8x64xf32> to vector<8x16xf32>
    %330 = vector.extract_strided_slice %268 {offsets = [0, 48], sizes = [8, 16], strides = [1, 1]} : vector<8x64xf32> to vector<8x16xf32>
    %cst_141 = arith.constant dense<0.000000e+00> : vector<8x8xf32>
    %331 = tpu.matmul %328, %329, %cst_141 {dimension_numbers = #tpu.dot_dimension_numbers<[1], [1], [0], [0], [0, 0, 1, 0], [], []>} : vector<8x16xf32>, vector<8x16xf32>, vector<8x8xf32> -> vector<8x8xf32>
    %cst_142 = arith.constant 2.500000e-01 : f32
    %332 = vector.broadcast %cst_142 : f32 to vector<8x8xf32>
    %333 = arith.mulf %331, %332 : vector<8x8xf32>
    %cst_143 = arith.constant dense<0xFF800000> : vector<8xf32>
    %334 = vector.multi_reduction <maximumf>, %333, %cst_143 [1] : vector<8x8xf32> to vector<8xf32>
    %335 = vector.shape_cast %334 : vector<8xf32> to vector<8x1xf32>
    %336 = vector.broadcast %335 : vector<8x1xf32> to vector<8x8xf32>
    %337 = arith.subf %333, %336 : vector<8x8xf32>
    %338 = math.exp %337 : vector<8x8xf32>
    %cst_144 = arith.constant dense<0.000000e+00> : vector<8xf32>
    %339 = vector.multi_reduction <add>, %338, %cst_144 [1] : vector<8x8xf32> to vector<8xf32>
    %340 = vector.shape_cast %339 : vector<8xf32> to vector<8x1xf32>
    %341 = tpu.reciprocal %340 : vector<8x1xf32> -> vector<8x1xf32>
    %342 = vector.broadcast %341 : vector<8x1xf32> to vector<8x8xf32>
    %343 = arith.mulf %338, %342 : vector<8x8xf32>
    %cst_145 = arith.constant dense<0.000000e+00> : vector<8x16xf32>
    %344 = tpu.matmul %343, %330, %cst_145 {dimension_numbers = #tpu.dot_dimension_numbers<[1], [0], [0], [1], [0, 0, 1, 1], [], []>} : vector<8x8xf32>, vector<8x16xf32>, vector<8x16xf32> -> vector<8x16xf32>
    %345 = vector.extract_strided_slice %265 {offsets = [48, 0], sizes = [16, 64], strides = [1, 1]} : vector<64x64xf32> to vector<16x64xf32>
    %cst_146 = arith.constant dense<0.000000e+00> : vector<8x64xf32>
    %346 = tpu.matmul %344, %345, %cst_146 {dimension_numbers = #tpu.dot_dimension_numbers<[1], [0], [0], [1], [0, 0, 1, 1], [], []>} : vector<8x16xf32>, vector<16x64xf32>, vector<8x64xf32> -> vector<8x64xf32>
    %347 = arith.addf %327, %346 : vector<8x64xf32>
    %c0_147 = arith.constant 0 : index
    %c0_148 = arith.constant 0 : index
    %348 = vector.load %arg39[%c0_147, %c0_148] : memref<16x64xf32, #tpu.memory_space<vmem>>, vector<8x64xf32>
    tpu.vector_store %arg39[%c0_147, %c0_148], %347 {strides = array<i32>} : memref<16x64xf32, #tpu.memory_space<vmem>>, vector<8x64xf32>,
    %349 = vector.extract_strided_slice %254 {offsets = [8, 0], sizes = [8, 64], strides = [1, 1]} : vector<16x64xf32> to vector<8x64xf32>
    %350 = vector.extract_strided_slice %259 {offsets = [8, 0], sizes = [8, 64], strides = [1, 1]} : vector<16x64xf32> to vector<8x64xf32>
    %351 = vector.extract_strided_slice %264 {offsets = [8, 0], sizes = [8, 64], strides = [1, 1]} : vector<16x64xf32> to vector<8x64xf32>
    %352 = vector.extract_strided_slice %349 {offsets = [0, 0], sizes = [8, 16], strides = [1, 1]} : vector<8x64xf32> to vector<8x16xf32>
    %353 = vector.extract_strided_slice %350 {offsets = [0, 0], sizes = [8, 16], strides = [1, 1]} : vector<8x64xf32> to vector<8x16xf32>
    %354 = vector.extract_strided_slice %351 {offsets = [0, 0], sizes = [8, 16], strides = [1, 1]} : vector<8x64xf32> to vector<8x16xf32>
    %cst_149 = arith.constant dense<0.000000e+00> : vector<8x8xf32>
    %355 = tpu.matmul %352, %353, %cst_149 {dimension_numbers = #tpu.dot_dimension_numbers<[1], [1], [0], [0], [0, 0, 1, 0], [], []>} : vector<8x16xf32>, vector<8x16xf32>, vector<8x8xf32> -> vector<8x8xf32>
    %cst_150 = arith.constant 2.500000e-01 : f32
    %356 = vector.broadcast %cst_150 : f32 to vector<8x8xf32>
    %357 = arith.mulf %355, %356 : vector<8x8xf32>
    %cst_151 = arith.constant dense<0xFF800000> : vector<8xf32>
    %358 = vector.multi_reduction <maximumf>, %357, %cst_151 [1] : vector<8x8xf32> to vector<8xf32>
    %359 = vector.shape_cast %358 : vector<8xf32> to vector<8x1xf32>
    %360 = vector.broadcast %359 : vector<8x1xf32> to vector<8x8xf32>
    %361 = arith.subf %357, %360 : vector<8x8xf32>
    %362 = math.exp %361 : vector<8x8xf32>
    %cst_152 = arith.constant dense<0.000000e+00> : vector<8xf32>
    %363 = vector.multi_reduction <add>, %362, %cst_152 [1] : vector<8x8xf32> to vector<8xf32>
    %364 = vector.shape_cast %363 : vector<8xf32> to vector<8x1xf32>
    %365 = tpu.reciprocal %364 : vector<8x1xf32> -> vector<8x1xf32>
    %366 = vector.broadcast %365 : vector<8x1xf32> to vector<8x8xf32>
    %367 = arith.mulf %362, %366 : vector<8x8xf32>
    %cst_153 = arith.constant dense<0.000000e+00> : vector<8x16xf32>
    %368 = tpu.matmul %367, %354, %cst_153 {dimension_numbers = #tpu.dot_dimension_numbers<[1], [0], [0], [1], [0, 0, 1, 1], [], []>} : vector<8x8xf32>, vector<8x16xf32>, vector<8x16xf32> -> vector<8x16xf32>
    %369 = vector.extract_strided_slice %265 {offsets = [0, 0], sizes = [16, 64], strides = [1, 1]} : vector<64x64xf32> to vector<16x64xf32>
    %cst_154 = arith.constant dense<0.000000e+00> : vector<8x64xf32>
    %370 = tpu.matmul %368, %369, %cst_154 {dimension_numbers = #tpu.dot_dimension_numbers<[1], [0], [0], [1], [0, 0, 1, 1], [], []>} : vector<8x16xf32>, vector<16x64xf32>, vector<8x64xf32> -> vector<8x64xf32>
    %371 = vector.extract_strided_slice %349 {offsets = [0, 16], sizes = [8, 16], strides = [1, 1]} : vector<8x64xf32> to vector<8x16xf32>
    %372 = vector.extract_strided_slice %350 {offsets = [0, 16], sizes = [8, 16], strides = [1, 1]} : vector<8x64xf32> to vector<8x16xf32>
    %373 = vector.extract_strided_slice %351 {offsets = [0, 16], sizes = [8, 16], strides = [1, 1]} : vector<8x64xf32> to vector<8x16xf32>
    %cst_155 = arith.constant dense<0.000000e+00> : vector<8x8xf32>
    %374 = tpu.matmul %371, %372, %cst_155 {dimension_numbers = #tpu.dot_dimension_numbers<[1], [1], [0], [0], [0, 0, 1, 0], [], []>} : vector<8x16xf32>, vector<8x16xf32>, vector<8x8xf32> -> vector<8x8xf32>
    %cst_156 = arith.constant 2.500000e-01 : f32
    %375 = vector.broadcast %cst_156 : f32 to vector<8x8xf32>
    %376 = arith.mulf %374, %375 : vector<8x8xf32>
    %cst_157 = arith.constant dense<0xFF800000> : vector<8xf32>
    %377 = vector.multi_reduction <maximumf>, %376, %cst_157 [1] : vector<8x8xf32> to vector<8xf32>
    %378 = vector.shape_cast %377 : vector<8xf32> to vector<8x1xf32>
    %379 = vector.broadcast %378 : vector<8x1xf32> to vector<8x8xf32>
    %380 = arith.subf %376, %379 : vector<8x8xf32>
    %381 = math.exp %380 : vector<8x8xf32>
    %cst_158 = arith.constant dense<0.000000e+00> : vector<8xf32>
    %382 = vector.multi_reduction <add>, %381, %cst_158 [1] : vector<8x8xf32> to vector<8xf32>
    %383 = vector.shape_cast %382 : vector<8xf32> to vector<8x1xf32>
    %384 = tpu.reciprocal %383 : vector<8x1xf32> -> vector<8x1xf32>
    %385 = vector.broadcast %384 : vector<8x1xf32> to vector<8x8xf32>
    %386 = arith.mulf %381, %385 : vector<8x8xf32>
    %cst_159 = arith.constant dense<0.000000e+00> : vector<8x16xf32>
    %387 = tpu.matmul %386, %373, %cst_159 {dimension_numbers = #tpu.dot_dimension_numbers<[1], [0], [0], [1], [0, 0, 1, 1], [], []>} : vector<8x8xf32>, vector<8x16xf32>, vector<8x16xf32> -> vector<8x16xf32>
    %388 = vector.extract_strided_slice %265 {offsets = [16, 0], sizes = [16, 64], strides = [1, 1]} : vector<64x64xf32> to vector<16x64xf32>
    %cst_160 = arith.constant dense<0.000000e+00> : vector<8x64xf32>
    %389 = tpu.matmul %387, %388, %cst_160 {dimension_numbers = #tpu.dot_dimension_numbers<[1], [0], [0], [1], [0, 0, 1, 1], [], []>} : vector<8x16xf32>, vector<16x64xf32>, vector<8x64xf32> -> vector<8x64xf32>
    %390 = arith.addf %370, %389 : vector<8x64xf32>
    %391 = vector.extract_strided_slice %349 {offsets = [0, 32], sizes = [8, 16], strides = [1, 1]} : vector<8x64xf32> to vector<8x16xf32>
    %392 = vector.extract_strided_slice %350 {offsets = [0, 32], sizes = [8, 16], strides = [1, 1]} : vector<8x64xf32> to vector<8x16xf32>
    %393 = vector.extract_strided_slice %351 {offsets = [0, 32], sizes = [8, 16], strides = [1, 1]} : vector<8x64xf32> to vector<8x16xf32>
    %cst_161 = arith.constant dense<0.000000e+00> : vector<8x8xf32>
    %394 = tpu.matmul %391, %392, %cst_161 {dimension_numbers = #tpu.dot_dimension_numbers<[1], [1], [0], [0], [0, 0, 1, 0], [], []>} : vector<8x16xf32>, vector<8x16xf32>, vector<8x8xf32> -> vector<8x8xf32>
    %cst_162 = arith.constant 2.500000e-01 : f32
    %395 = vector.broadcast %cst_162 : f32 to vector<8x8xf32>
    %396 = arith.mulf %394, %395 : vector<8x8xf32>
    %cst_163 = arith.constant dense<0xFF800000> : vector<8xf32>
    %397 = vector.multi_reduction <maximumf>, %396, %cst_163 [1] : vector<8x8xf32> to vector<8xf32>
    %398 = vector.shape_cast %397 : vector<8xf32> to vector<8x1xf32>
    %399 = vector.broadcast %398 : vector<8x1xf32> to vector<8x8xf32>
    %400 = arith.subf %396, %399 : vector<8x8xf32>
    %401 = math.exp %400 : vector<8x8xf32>
    %cst_164 = arith.constant dense<0.000000e+00> : vector<8xf32>
    %402 = vector.multi_reduction <add>, %401, %cst_164 [1] : vector<8x8xf32> to vector<8xf32>
    %403 = vector.shape_cast %402 : vector<8xf32> to vector<8x1xf32>
    %404 = tpu.reciprocal %403 : vector<8x1xf32> -> vector<8x1xf32>
    %405 = vector.broadcast %404 : vector<8x1xf32> to vector<8x8xf32>
    %406 = arith.mulf %401, %405 : vector<8x8xf32>
    %cst_165 = arith.constant dense<0.000000e+00> : vector<8x16xf32>
    %407 = tpu.matmul %406, %393, %cst_165 {dimension_numbers = #tpu.dot_dimension_numbers<[1], [0], [0], [1], [0, 0, 1, 1], [], []>} : vector<8x8xf32>, vector<8x16xf32>, vector<8x16xf32> -> vector<8x16xf32>
    %408 = vector.extract_strided_slice %265 {offsets = [32, 0], sizes = [16, 64], strides = [1, 1]} : vector<64x64xf32> to vector<16x64xf32>
    %cst_166 = arith.constant dense<0.000000e+00> : vector<8x64xf32>
    %409 = tpu.matmul %407, %408, %cst_166 {dimension_numbers = #tpu.dot_dimension_numbers<[1], [0], [0], [1], [0, 0, 1, 1], [], []>} : vector<8x16xf32>, vector<16x64xf32>, vector<8x64xf32> -> vector<8x64xf32>
    %410 = arith.addf %390, %409 : vector<8x64xf32>
    %411 = vector.extract_strided_slice %349 {offsets = [0, 48], sizes = [8, 16], strides = [1, 1]} : vector<8x64xf32> to vector<8x16xf32>
    %412 = vector.extract_strided_slice %350 {offsets = [0, 48], sizes = [8, 16], strides = [1, 1]} : vector<8x64xf32> to vector<8x16xf32>
    %413 = vector.extract_strided_slice %351 {offsets = [0, 48], sizes = [8, 16], strides = [1, 1]} : vector<8x64xf32> to vector<8x16xf32>
    %cst_167 = arith.constant dense<0.000000e+00> : vector<8x8xf32>
    %414 = tpu.matmul %411, %412, %cst_167 {dimension_numbers = #tpu.dot_dimension_numbers<[1], [1], [0], [0], [0, 0, 1, 0], [], []>} : vector<8x16xf32>, vector<8x16xf32>, vector<8x8xf32> -> vector<8x8xf32>
    %cst_168 = arith.constant 2.500000e-01 : f32
    %415 = vector.broadcast %cst_168 : f32 to vector<8x8xf32>
    %416 = arith.mulf %414, %415 : vector<8x8xf32>
    %cst_169 = arith.constant dense<0xFF800000> : vector<8xf32>
    %417 = vector.multi_reduction <maximumf>, %416, %cst_169 [1] : vector<8x8xf32> to vector<8xf32>
    %418 = vector.shape_cast %417 : vector<8xf32> to vector<8x1xf32>
    %419 = vector.broadcast %418 : vector<8x1xf32> to vector<8x8xf32>
    %420 = arith.subf %416, %419 : vector<8x8xf32>
    %421 = math.exp %420 : vector<8x8xf32>
    %cst_170 = arith.constant dense<0.000000e+00> : vector<8xf32>
    %422 = vector.multi_reduction <add>, %421, %cst_170 [1] : vector<8x8xf32> to vector<8xf32>
    %423 = vector.shape_cast %422 : vector<8xf32> to vector<8x1xf32>
    %424 = tpu.reciprocal %423 : vector<8x1xf32> -> vector<8x1xf32>
    %425 = vector.broadcast %424 : vector<8x1xf32> to vector<8x8xf32>
    %426 = arith.mulf %421, %425 : vector<8x8xf32>
    %cst_171 = arith.constant dense<0.000000e+00> : vector<8x16xf32>
    %427 = tpu.matmul %426, %413, %cst_171 {dimension_numbers = #tpu.dot_dimension_numbers<[1], [0], [0], [1], [0, 0, 1, 1], [], []>} : vector<8x8xf32>, vector<8x16xf32>, vector<8x16xf32> -> vector<8x16xf32>
    %428 = vector.extract_strided_slice %265 {offsets = [48, 0], sizes = [16, 64], strides = [1, 1]} : vector<64x64xf32> to vector<16x64xf32>
    %cst_172 = arith.constant dense<0.000000e+00> : vector<8x64xf32>
    %429 = tpu.matmul %427, %428, %cst_172 {dimension_numbers = #tpu.dot_dimension_numbers<[1], [0], [0], [1], [0, 0, 1, 1], [], []>} : vector<8x16xf32>, vector<16x64xf32>, vector<8x64xf32> -> vector<8x64xf32>
    %430 = arith.addf %410, %429 : vector<8x64xf32>
    %c8_173 = arith.constant 8 : index
    %c0_174 = arith.constant 0 : index
    %431 = vector.load %arg39[%c8_173, %c0_174] : memref<16x64xf32, #tpu.memory_space<vmem>>, vector<8x64xf32>
    tpu.vector_store %arg39[%c8_173, %c0_174], %430 {strides = array<i32>} : memref<16x64xf32, #tpu.memory_space<vmem>>, vector<8x64xf32>,
    %c0_175 = arith.constant 0 : index
    %c0_176 = arith.constant 0 : index
    %432 = vector.load %arg39[%c0_175, %c0_176] : memref<16x64xf32, #tpu.memory_space<vmem>>, vector<16x64xf32>
    %c0_177 = arith.constant 0 : index
    %c0_178 = arith.constant 0 : index
    %433 = vector.load %arg26[%c0_177, %c0_178] : memref<1x64xf32, #tpu.memory_space<vmem>>, vector<1x64xf32>
    %434 = vector.broadcast %433 : vector<1x64xf32> to vector<16x64xf32>
    %435 = arith.addf %432, %434 : vector<16x64xf32>
    %436 = arith.addf %249, %435 : vector<16x64xf32>
    %c0_179 = arith.constant 0 : index
    %c0_180 = arith.constant 0 : index
    %437 = vector.load %arg27[%c0_179, %c0_180] : memref<1x64xf32, #tpu.memory_space<vmem>>, vector<1x64xf32>
    %c0_181 = arith.constant 0 : index
    %c0_182 = arith.constant 0 : index
    %438 = vector.load %arg28[%c0_181, %c0_182] : memref<1x64xf32, #tpu.memory_space<vmem>>, vector<1x64xf32>
    %cst_183 = arith.constant dense<0.000000e+00> : vector<16xf32>
    %439 = vector.multi_reduction <add>, %436, %cst_183 [1] : vector<16x64xf32> to vector<16xf32>
    %440 = vector.shape_cast %439 : vector<16xf32> to vector<16x1xf32>
    %cst_184 = arith.constant 6.400000e+01 : f32
    %441 = vector.broadcast %cst_184 : f32 to vector<16x1xf32>
    %442 = arith.divf %440, %441 : vector<16x1xf32>
    %443 = vector.broadcast %442 : vector<16x1xf32> to vector<16x64xf32>
    %444 = arith.subf %436, %443 : vector<16x64xf32>
    %445 = arith.mulf %444, %444 : vector<16x64xf32>
    %cst_185 = arith.constant dense<0.000000e+00> : vector<16xf32>
    %446 = vector.multi_reduction <add>, %445, %cst_185 [1] : vector<16x64xf32> to vector<16xf32>
    %447 = vector.shape_cast %446 : vector<16xf32> to vector<16x1xf32>
    %cst_186 = arith.constant 6.400000e+01 : f32
    %448 = vector.broadcast %cst_186 : f32 to vector<16x1xf32>
    %449 = arith.divf %447, %448 : vector<16x1xf32>
    %cst_187 = arith.constant 9.99999974E-6 : f32
    %450 = vector.broadcast %cst_187 : f32 to vector<16x1xf32>
    %451 = arith.addf %449, %450 : vector<16x1xf32>
    %452 = math.rsqrt %451 : vector<16x1xf32>
    %453 = vector.broadcast %452 : vector<16x1xf32> to vector<16x64xf32>
    %454 = arith.mulf %444, %453 : vector<16x64xf32>
    %455 = vector.broadcast %437 : vector<1x64xf32> to vector<16x64xf32>
    %456 = arith.mulf %454, %455 : vector<16x64xf32>
    %457 = vector.broadcast %438 : vector<1x64xf32> to vector<16x64xf32>
    %458 = arith.addf %456, %457 : vector<16x64xf32>
    %c0_188 = arith.constant 0 : index
    %c0_189 = arith.constant 0 : index
    %459 = vector.load %arg29[%c0_188, %c0_189] : memref<64x2048xf32, #tpu.memory_space<vmem>>, vector<64x2048xf32>
    %cst_190 = arith.constant dense<0.000000e+00> : vector<16x2048xf32>
    %460 = tpu.matmul %458, %459, %cst_190 {dimension_numbers = #tpu.dot_dimension_numbers<[1], [0], [0], [1], [0, 0, 1, 1], [], []>} : vector<16x64xf32>, vector<64x2048xf32>, vector<16x2048xf32> -> vector<16x2048xf32>
    %c0_191 = arith.constant 0 : index
    %c0_192 = arith.constant 0 : index
    %461 = vector.load %arg30[%c0_191, %c0_192] : memref<1x2048xf32, #tpu.memory_space<vmem>>, vector<1x2048xf32>
    %462 = vector.broadcast %461 : vector<1x2048xf32> to vector<16x2048xf32>
    %463 = arith.addf %460, %462 : vector<16x2048xf32>
    %cst_193 = arith.constant 0.000000e+00 : f32
    %464 = vector.broadcast %cst_193 : f32 to vector<16x2048xf32>
    %465 = arith.maximumf %463, %464 : vector<16x2048xf32>
    %c0_194 = arith.constant 0 : index
    %c0_195 = arith.constant 0 : index
    %466 = vector.load %arg31[%c0_194, %c0_195] : memref<2048x64xf32, #tpu.memory_space<vmem>>, vector<2048x64xf32>
    %cst_196 = arith.constant dense<0.000000e+00> : vector<16x64xf32>
    %467 = tpu.matmul %465, %466, %cst_196 {dimension_numbers = #tpu.dot_dimension_numbers<[1], [0], [0], [1], [0, 0, 1, 1], [], []>} : vector<16x2048xf32>, vector<2048x64xf32>, vector<16x64xf32> -> vector<16x64xf32>
    %c0_197 = arith.constant 0 : index
    %c0_198 = arith.constant 0 : index
    %468 = vector.load %arg32[%c0_197, %c0_198] : memref<1x64xf32, #tpu.memory_space<vmem>>, vector<1x64xf32>
    %469 = vector.broadcast %468 : vector<1x64xf32> to vector<16x64xf32>
    %470 = arith.addf %467, %469 : vector<16x64xf32>
    %471 = arith.addf %458, %470 : vector<16x64xf32>
    %c0_199 = arith.constant 0 : index
    %c0_200 = arith.constant 0 : index
    %472 = vector.load %arg33[%c0_199, %c0_200] : memref<1x64xf32, #tpu.memory_space<vmem>>, vector<1x64xf32>
    %c0_201 = arith.constant 0 : index
    %c0_202 = arith.constant 0 : index
    %473 = vector.load %arg34[%c0_201, %c0_202] : memref<1x64xf32, #tpu.memory_space<vmem>>, vector<1x64xf32>
    %cst_203 = arith.constant dense<0.000000e+00> : vector<16xf32>
    %474 = vector.multi_reduction <add>, %471, %cst_203 [1] : vector<16x64xf32> to vector<16xf32>
    %475 = vector.shape_cast %474 : vector<16xf32> to vector<16x1xf32>
    %cst_204 = arith.constant 6.400000e+01 : f32
    %476 = vector.broadcast %cst_204 : f32 to vector<16x1xf32>
    %477 = arith.divf %475, %476 : vector<16x1xf32>
    %478 = vector.broadcast %477 : vector<16x1xf32> to vector<16x64xf32>
    %479 = arith.subf %471, %478 : vector<16x64xf32>
    %480 = arith.mulf %479, %479 : vector<16x64xf32>
    %cst_205 = arith.constant dense<0.000000e+00> : vector<16xf32>
    %481 = vector.multi_reduction <add>, %480, %cst_205 [1] : vector<16x64xf32> to vector<16xf32>
    %482 = vector.shape_cast %481 : vector<16xf32> to vector<16x1xf32>
    %cst_206 = arith.constant 6.400000e+01 : f32
    %483 = vector.broadcast %cst_206 : f32 to vector<16x1xf32>
    %484 = arith.divf %482, %483 : vector<16x1xf32>
    %cst_207 = arith.constant 9.99999974E-6 : f32
    %485 = vector.broadcast %cst_207 : f32 to vector<16x1xf32>
    %486 = arith.addf %484, %485 : vector<16x1xf32>
    %487 = math.rsqrt %486 : vector<16x1xf32>
    %488 = vector.broadcast %487 : vector<16x1xf32> to vector<16x64xf32>
    %489 = arith.mulf %479, %488 : vector<16x64xf32>
    %490 = vector.broadcast %472 : vector<1x64xf32> to vector<16x64xf32>
    %491 = arith.mulf %489, %490 : vector<16x64xf32>
    %492 = vector.broadcast %473 : vector<1x64xf32> to vector<16x64xf32>
    %493 = arith.addf %491, %492 : vector<16x64xf32>
    %c0_208 = arith.constant 0 : index
    %c0_209 = arith.constant 0 : index
    %494 = vector.load %arg37[%c0_208, %c0_209] : memref<2x16xf32, #tpu.memory_space<vmem>>, vector<2x16xf32>
    %cst_210 = arith.constant dense<0.000000e+00> : vector<2x64xf32>
    %495 = tpu.matmul %494, %493, %cst_210 {dimension_numbers = #tpu.dot_dimension_numbers<[1], [0], [0], [1], [0, 0, 1, 1], [], []>} : vector<2x16xf32>, vector<16x64xf32>, vector<2x64xf32> -> vector<2x64xf32>
    %c0_211 = arith.constant 0 : index
    %c0_212 = arith.constant 0 : index
    %496 = vector.load %arg35[%c0_211, %c0_212] : memref<64x5xf32, #tpu.memory_space<vmem>>, vector<64x5xf32>
    %cst_213 = arith.constant dense<0.000000e+00> : vector<2x5xf32>
    %497 = tpu.matmul %495, %496, %cst_213 {dimension_numbers = #tpu.dot_dimension_numbers<[1], [0], [0], [1], [0, 0, 1, 1], [], []>} : vector<2x64xf32>, vector<64x5xf32>, vector<2x5xf32> -> vector<2x5xf32>
    %c0_214 = arith.constant 0 : index
    %c0_215 = arith.constant 0 : index
    %498 = vector.load %arg36[%c0_214, %c0_215] : memref<1x5xf32, #tpu.memory_space<vmem>>, vector<1x5xf32>
    %499 = vector.broadcast %498 : vector<1x5xf32> to vector<2x5xf32>
    %500 = arith.addf %497, %499 : vector<2x5xf32>
    %c0_216 = arith.constant 0 : index
    %c0_217 = arith.constant 0 : index
    %501 = vector.load %arg38[%c0_216, %c0_217] : memref<2x5xf32, #tpu.memory_space<vmem>>, vector<2x5xf32>
    tpu.vector_store %arg38[%c0_216, %c0_217], %500 {strides = array<i32>} : memref<2x5xf32, #tpu.memory_space<vmem>>, vector<2x5xf32>,
    return
  }
}

</mosaic_0001>

<llo_original>
// kernel: transformer_forward.1
$region0: #{transformer_forward.1}
  #allocation0 [shape = 'u32[]', space=smem, size = 0x4, offset = 0x4, fixed_abs, tag = 'smem constant byte address 0x4 - core index']
  #allocation1 [shape = 'u32[144,128]{1,0:T(1,128)}', space=vmem, size = 0x12000, scoped, tag = 'internal scratch']
  #allocation2 [shape = 'f32[16,64]{1,0:T(8,128)}', space=vmem, size = 0x2000, scoped, tag = 'scratch operand']
  %s0 = inlined_call_operand.smem [shape: u32[39], index: -1, kind: input, shape index: {}]
  %s1 = sld [smem:[%s0]]
  %s2 = scalar_lea.smem %s0, 1
  %s3 = sld [smem:[%s2]]
  %s4 = scalar_lea.smem %s0, 2
  %s5 = sld [smem:[%s4]]
  %s6 = scalar_lea.smem %s0, 3
  %s7 = sld [smem:[%s6]]
  %s8 = scalar_lea.smem %s0, 4
  %s9 = sld [smem:[%s8]]
  %s10 = scalar_lea.smem %s0, 5
  %s11 = sld [smem:[%s10]]
  %s12 = scalar_lea.smem %s0, 6
  %s13 = sld [smem:[%s12]]
  %s14 = scalar_lea.smem %s0, 7
  %s15 = sld [smem:[%s14]]
  %s16 = scalar_lea.smem %s0, 8
  %s17 = sld [smem:[%s16]]
  %s18 = scalar_lea.smem %s0, 9
  %s19 = sld [smem:[%s18]]
  %s20 = scalar_lea.smem %s0, 10
  %s21 = sld [smem:[%s20]]
  %s22 = scalar_lea.smem %s0, 11
  %s23 = sld [smem:[%s22]]
  %s24 = scalar_lea.smem %s0, 12
  %s25 = sld [smem:[%s24]]
  %s26 = scalar_lea.smem %s0, 13
  %s27 = sld [smem:[%s26]]
  %s28 = scalar_lea.smem %s0, 14
  %s29 = sld [smem:[%s28]]
  %s30 = scalar_lea.smem %s0, 15
  %s31 = sld [smem:[%s30]]
  %s32 = scalar_lea.smem %s0, 16
  %s33 = sld [smem:[%s32]]
  %s34 = scalar_lea.smem %s0, 17
  %s35 = sld [smem:[%s34]]
  %s36 = scalar_lea.smem %s0, 18
  %s37 = sld [smem:[%s36]]
  %s38 = scalar_lea.smem %s0, 19
  %s39 = sld [smem:[%s38]]
  %s40 = scalar_lea.smem %s0, 20
  %s41 = sld [smem:[%s40]]
  %s42 = scalar_lea.smem %s0, 21
  %s43 = sld [smem:[%s42]]
  %s44 = scalar_lea.smem %s0, 22
  %s45 = sld [smem:[%s44]]
  %s46 = scalar_lea.smem %s0, 23
  %s47 = sld [smem:[%s46]]
  %s48 = scalar_lea.smem %s0, 24
  %s49 = sld [smem:[%s48]]
  %s50 = scalar_lea.smem %s0, 25
  %s51 = sld [smem:[%s50]]
  %s52 = scalar_lea.smem %s0, 26
  %s53 = sld [smem:[%s52]]
  %s54 = scalar_lea.smem %s0, 27
  %s55 = sld [smem:[%s54]]
  %s56 = scalar_lea.smem %s0, 28
  %s57 = sld [smem:[%s56]]
  %s58 = scalar_lea.smem %s0, 29
  %s59 = sld [smem:[%s58]]
  %s60 = scalar_lea.smem %s0, 30
  %s61 = sld [smem:[%s60]]
  %s62 = scalar_lea.smem %s0, 31
  %s63 = sld [smem:[%s62]]
  %s64 = scalar_lea.smem %s0, 32
  %s65 = sld [smem:[%s64]]
  %s66 = scalar_lea.smem %s0, 33
  %s67 = sld [smem:[%s66]]
  %s68 = scalar_lea.smem %s0, 34
  %s69 = sld [smem:[%s68]]
  %s70 = scalar_lea.smem %s0, 35
  %s71 = sld [smem:[%s70]]
  %s72 = scalar_lea.smem %s0, 36
  %s73 = sld [smem:[%s72]]
  %s74 = scalar_lea.smem %s0, 37
  %s75 = sld [smem:[%s74]]
  %s76 = scalar_lea.smem %s0, 38
  %s77 = sld [smem:[%s76]]
  %s78 = sld [smem:[#allocation0]]
  $region162: #{transformer_forward.1} parent=0
    _
  %s80 = ssub.s32 1, %s78
  %s81 = scalar_select 0, %s80, %s78
  $region1: #{transformer_forward.1} parent=0
    #allocation3 [shape = 'u8[1024]{0}', space=vmem, size = 0x400, scoped, tag = 'output window, operand 0, single buffered']
    #allocation4 [shape = 's32[1]{0}', space=sflag, size = 0x4, scoped, tag = 'scoped memory for transformer_forward.1']
    %82 = vsyncpa [#allocation4], 0
    // Predicated region
    $region2: #{transformer_forward.1} parent=1 // pred_check
      _
    $region3: #{transformer_forward.1} parent=1 // pred_check_branch
      %84 = sbr.rel (0) target = $region5
    $region4: #{transformer_forward.1} parent=1 // pred_region
      _
    $region5: #{transformer_forward.1} parent=1 // pred_fallthru
      _
    // Predicated region
    $region6: #{transformer_forward.1} parent=1 // pred_check
      _
    $region7: #{transformer_forward.1} parent=1 // pred_check_branch
      %86 = sbr.rel (0) target = $region9
    $region8: #{transformer_forward.1} parent=1 // pred_region
      _
    $region9: #{transformer_forward.1} parent=1 // pred_fallthru
      _
    // Predicated region
    $region10: #{transformer_forward.1} parent=1 // pred_check
      _
    $region11: #{transformer_forward.1} parent=1 // pred_check_branch
      %88 = sbr.rel (0) target = $region13
    $region12: #{transformer_forward.1} parent=1 // pred_region
      _
    $region13: #{transformer_forward.1} parent=1 // pred_fallthru
      _
    // Predicated region
    $region14: #{transformer_forward.1} parent=1 // pred_check
      _
    $region15: #{transformer_forward.1} parent=1 // pred_check_branch
      %90 = sbr.rel (0) target = $region17
    $region16: #{transformer_forward.1} parent=1 // pred_region
      _
    $region17: #{transformer_forward.1} parent=1 // pred_fallthru
      _
    // Predicated region
    $region18: #{transformer_forward.1} parent=1 // pred_check
      _
    $region19: #{transformer_forward.1} parent=1 // pred_check_branch
      %92 = sbr.rel (0) target = $region21
    $region20: #{transformer_forward.1} parent=1 // pred_region
      _
    $region21: #{transformer_forward.1} parent=1 // pred_fallthru
      _
    // Predicated region
    $region22: #{transformer_forward.1} parent=1 // pred_check
      _
    $region23: #{transformer_forward.1} parent=1 // pred_check_branch
      %94 = sbr.rel (0) target = $region25
    $region24: #{transformer_forward.1} parent=1 // pred_region
      _
    $region25: #{transformer_forward.1} parent=1 // pred_fallthru
      _
    // Predicated region
    $region26: #{transformer_forward.1} parent=1 // pred_check
      _
    $region27: #{transformer_forward.1} parent=1 // pred_check_branch
      %96 = sbr.rel (0) target = $region29
    $region28: #{transformer_forward.1} parent=1 // pred_region
      _
    $region29: #{transformer_forward.1} parent=1 // pred_fallthru
      _
    // Predicated region
    $region30: #{transformer_forward.1} parent=1 // pred_check
      _
    $region31: #{transformer_forward.1} parent=1 // pred_check_branch
      %98 = sbr.rel (0) target = $region33
    $region32: #{transformer_forward.1} parent=1 // pred_region
      _
    $region33: #{transformer_forward.1} parent=1 // pred_fallthru
      _
    // Predicated region
    $region34: #{transformer_forward.1} parent=1 // pred_check
      _
    $region35: #{transformer_forward.1} parent=1 // pred_check_branch
      %100 = sbr.rel (0) target = $region37
    $region36: #{transformer_forward.1} parent=1 // pred_region
      _
    $region37: #{transformer_forward.1} parent=1 // pred_fallthru
      _
    // Predicated region
    $region38: #{transformer_forward.1} parent=1 // pred_check
      _
    $region39: #{transformer_forward.1} parent=1 // pred_check_branch
      %102 = sbr.rel (0) target = $region41
    $region40: #{transformer_forward.1} parent=1 // pred_region
      _
    $region41: #{transformer_forward.1} parent=1 // pred_fallthru
      _
    // Predicated region
    $region42: #{transformer_forward.1} parent=1 // pred_check
      _
    $region43: #{transformer_forward.1} parent=1 // pred_check_branch
      %104 = sbr.rel (0) target = $region45
    $region44: #{transformer_forward.1} parent=1 // pred_region
      _
    $region45: #{transformer_forward.1} parent=1 // pred_fallthru
      _
    // Predicated region
    $region46: #{transformer_forward.1} parent=1 // pred_check
      _
    $region47: #{transformer_forward.1} parent=1 // pred_check_branch
      %106 = sbr.rel (0) target = $region49
    $region48: #{transformer_forward.1} parent=1 // pred_region
      _
    $region49: #{transformer_forward.1} parent=1 // pred_fallthru
      _
    // Predicated region
    $region50: #{transformer_forward.1} parent=1 // pred_check
      _
    $region51: #{transformer_forward.1} parent=1 // pred_check_branch
      %108 = sbr.rel (0) target = $region53
    $region52: #{transformer_forward.1} parent=1 // pred_region
      _
    $region53: #{transformer_forward.1} parent=1 // pred_fallthru
      _
    // Predicated region
    $region54: #{transformer_forward.1} parent=1 // pred_check
      _
    $region55: #{transformer_forward.1} parent=1 // pred_check_branch
      %110 = sbr.rel (0) target = $region57
    $region56: #{transformer_forward.1} parent=1 // pred_region
      _
    $region57: #{transformer_forward.1} parent=1 // pred_fallthru
      _
    // Predicated region
    $region58: #{transformer_forward.1} parent=1 // pred_check
      _
    $region59: #{transformer_forward.1} parent=1 // pred_check_branch
      %112 = sbr.rel (0) target = $region61
    $region60: #{transformer_forward.1} parent=1 // pred_region
      _
    $region61: #{transformer_forward.1} parent=1 // pred_fallthru
      _
    // Predicated region
    $region62: #{transformer_forward.1} parent=1 // pred_check
      _
    $region63: #{transformer_forward.1} parent=1 // pred_check_branch
      %114 = sbr.rel (0) target = $region65
    $region64: #{transformer_forward.1} parent=1 // pred_region
      _
    $region65: #{transformer_forward.1} parent=1 // pred_fallthru
      _
    // Predicated region
    $region66: #{transformer_forward.1} parent=1 // pred_check
      _
    $region67: #{transformer_forward.1} parent=1 // pred_check_branch
      %116 = sbr.rel (0) target = $region69
    $region68: #{transformer_forward.1} parent=1 // pred_region
      _
    $region69: #{transformer_forward.1} parent=1 // pred_fallthru
      _
    // Predicated region
    $region70: #{transformer_forward.1} parent=1 // pred_check
      _
    $region71: #{transformer_forward.1} parent=1 // pred_check_branch
      %118 = sbr.rel (0) target = $region73
    $region72: #{transformer_forward.1} parent=1 // pred_region
      _
    $region73: #{transformer_forward.1} parent=1 // pred_fallthru
      _
    // Predicated region
    $region74: #{transformer_forward.1} parent=1 // pred_check
      _
    $region75: #{transformer_forward.1} parent=1 // pred_check_branch
      %120 = sbr.rel (0) target = $region77
    $region76: #{transformer_forward.1} parent=1 // pred_region
      _
    $region77: #{transformer_forward.1} parent=1 // pred_fallthru
      _
    // Predicated region
    $region78: #{transformer_forward.1} parent=1 // pred_check
      _
    $region79: #{transformer_forward.1} parent=1 // pred_check_branch
      %122 = sbr.rel (0) target = $region81
    $region80: #{transformer_forward.1} parent=1 // pred_region
      _
    $region81: #{transformer_forward.1} parent=1 // pred_fallthru
      _
    // Predicated region
    $region82: #{transformer_forward.1} parent=1 // pred_check
      _
    $region83: #{transformer_forward.1} parent=1 // pred_check_branch
      %124 = sbr.rel (0) target = $region85
    $region84: #{transformer_forward.1} parent=1 // pred_region
      _
    $region85: #{transformer_forward.1} parent=1 // pred_fallthru
      _
    // Predicated region
    $region86: #{transformer_forward.1} parent=1 // pred_check
      _
    $region87: #{transformer_forward.1} parent=1 // pred_check_branch
      %126 = sbr.rel (0) target = $region89
    $region88: #{transformer_forward.1} parent=1 // pred_region
      _
    $region89: #{transformer_forward.1} parent=1 // pred_fallthru
      _
    // Predicated region
    $region90: #{transformer_forward.1} parent=1 // pred_check
      _
    $region91: #{transformer_forward.1} parent=1 // pred_check_branch
      %128 = sbr.rel (0) target = $region93
    $region92: #{transformer_forward.1} parent=1 // pred_region
      _
    $region93: #{transformer_forward.1} parent=1 // pred_fallthru
      _
    // Predicated region
    $region94: #{transformer_forward.1} parent=1 // pred_check
      _
    $region95: #{transformer_forward.1} parent=1 // pred_check_branch
      %130 = sbr.rel (0) target = $region97
    $region96: #{transformer_forward.1} parent=1 // pred_region
      _
    $region97: #{transformer_forward.1} parent=1 // pred_fallthru
      _
    // Predicated region
    $region98: #{transformer_forward.1} parent=1 // pred_check
      _
    $region99: #{transformer_forward.1} parent=1 // pred_check_branch
      %132 = sbr.rel (0) target = $region101
    $region100: #{transformer_forward.1} parent=1 // pred_region
      _
    $region101: #{transformer_forward.1} parent=1 // pred_fallthru
      _
    // Predicated region
    $region102: #{transformer_forward.1} parent=1 // pred_check
      _
    $region103: #{transformer_forward.1} parent=1 // pred_check_branch
      %134 = sbr.rel (0) target = $region105
    $region104: #{transformer_forward.1} parent=1 // pred_region
      _
    $region105: #{transformer_forward.1} parent=1 // pred_fallthru
      _
    // Predicated region
    $region106: #{transformer_forward.1} parent=1 // pred_check
      _
    $region107: #{transformer_forward.1} parent=1 // pred_check_branch
      %136 = sbr.rel (0) target = $region109
    $region108: #{transformer_forward.1} parent=1 // pred_region
      _
    $region109: #{transformer_forward.1} parent=1 // pred_fallthru
      _
    // Predicated region
    $region110: #{transformer_forward.1} parent=1 // pred_check
      _
    $region111: #{transformer_forward.1} parent=1 // pred_check_branch
      %138 = sbr.rel (0) target = $region113
    $region112: #{transformer_forward.1} parent=1 // pred_region
      _
    $region113: #{transformer_forward.1} parent=1 // pred_fallthru
      _
    // Predicated region
    $region114: #{transformer_forward.1} parent=1 // pred_check
      _
    $region115: #{transformer_forward.1} parent=1 // pred_check_branch
      %140 = sbr.rel (0) target = $region117
    $region116: #{transformer_forward.1} parent=1 // pred_region
      _
    $region117: #{transformer_forward.1} parent=1 // pred_fallthru
      _
    // Predicated region
    $region118: #{transformer_forward.1} parent=1 // pred_check
      _
    $region119: #{transformer_forward.1} parent=1 // pred_check_branch
      %142 = sbr.rel (0) target = $region121
    $region120: #{transformer_forward.1} parent=1 // pred_region
      _
    $region121: #{transformer_forward.1} parent=1 // pred_fallthru
      _
    // Predicated region
    $region122: #{transformer_forward.1} parent=1 // pred_check
      _
    $region123: #{transformer_forward.1} parent=1 // pred_check_branch
      %144 = sbr.rel (0) target = $region125
    $region124: #{transformer_forward.1} parent=1 // pred_region
      _
    $region125: #{transformer_forward.1} parent=1 // pred_fallthru
      _
    // Predicated region
    $region126: #{transformer_forward.1} parent=1 // pred_check
      _
    $region127: #{transformer_forward.1} parent=1 // pred_check_branch
      %146 = sbr.rel (0) target = $region129
    $region128: #{transformer_forward.1} parent=1 // pred_region
      _
    $region129: #{transformer_forward.1} parent=1 // pred_fallthru
      _
    // Predicated region
    $region130: #{transformer_forward.1} parent=1 // pred_check
      _
    $region131: #{transformer_forward.1} parent=1 // pred_check_branch
      %148 = sbr.rel (0) target = $region133
    $region132: #{transformer_forward.1} parent=1 // pred_region
      _
    $region133: #{transformer_forward.1} parent=1 // pred_fallthru
      _
    // Predicated region
    $region134: #{transformer_forward.1} parent=1 // pred_check
      _
    $region135: #{transformer_forward.1} parent=1 // pred_check_branch
      %150 = sbr.rel (0) target = $region137
    $region136: #{transformer_forward.1} parent=1 // pred_region
      _
    $region137: #{transformer_forward.1} parent=1 // pred_fallthru
      _
    // Predicated region
    $region138: #{transformer_forward.1} parent=1 // pred_check
      _
    $region139: #{transformer_forward.1} parent=1 // pred_check_branch
      %152 = sbr.rel (0) target = $region141
    $region140: #{transformer_forward.1} parent=1 // pred_region
      _
    $region141: #{transformer_forward.1} parent=1 // pred_fallthru
      _
    // Predicated region
    $region142: #{transformer_forward.1} parent=1 // pred_check
      _
    $region143: #{transformer_forward.1} parent=1 // pred_check_branch
      %154 = sbr.rel (0) target = $region145
    $region144: #{transformer_forward.1} parent=1 // pred_region
      _
    $region145: #{transformer_forward.1} parent=1 // pred_fallthru
      _
    // Predicated region
    $region146: #{transformer_forward.1} parent=1 // pred_check
      _
    $region147: #{transformer_forward.1} parent=1 // pred_check_branch
      %156 = sbr.rel (0) target = $region149
    $region148: #{transformer_forward.1} parent=1 // pred_region
      _
    $region149: #{transformer_forward.1} parent=1 // pred_fallthru
      _
    // Predicated region
    $region150: #{transformer_forward.1} parent=1 // pred_check
      _
    $region151: #{transformer_forward.1} parent=1 // pred_check_branch
      %158 = sbr.rel (0) target = $region153
    $region152: #{transformer_forward.1} parent=1 // pred_region
      _
    $region153: #{transformer_forward.1} parent=1 // pred_fallthru
      _
    %v159 = vld [vmem:[%s1] sm:$0xff]
    %v160 = vld [vmem:[%s1 + $0x8] sm:$0xff]
    %v161 = vld [vmem:[%s3] sm:$0xff]
    %v162 = vld [vmem:[%s3 + $0x8] sm:$0xff]
    %v163 = vld [vmem:[%s5] sm:$0x1]
    %v165 = vlaneseq
    %v166 = vshrl.u32 %v165, 7
    %v167 = vsub.s32 0, %v166
    %v168 = vrot.slane %v163, %v167
    %vm170 = vcmask 130048
    %v172 = vsel %vm170, %v159, 0
    %v175 = vsel %vm170, %v160, 0
    %177 = vmatprep.subr.mxu0 0.0
    %178 = vmatpush1.msra.mxu0 %v161
    %179 = vmatprep.subr.mxu0 0.0
    %180 = vmatpush1.msra.mxu0 %v162
    %181 = vmatprep.subr.mxu0 0.0
    %182 = vmatpush1.msra.mxu0 0.0
    %183 = vmatprep.subr.mxu0 0.0
    %184 = vmatpush1.msra.mxu0 0.0
    %185 = vmatprep.subr.mxu0 0.0
    %186 = vmatpush1.msra.mxu0 0.0
    %187 = vmatprep.subr.mxu0 0.0
    %188 = vmatpush1.msra.mxu0 0.0
    %189 = vmatprep.subr.mxu0 0.0
    %190 = vmatpush1.msra.mxu0 0.0
    %191 = vmatprep.subr.mxu0 0.0
    %192 = vmatpush1.msra.mxu0 0.0
    %193 = vmatprep.subr.mxu0 0.0
    %194 = vmatpush1.msra.mxu0 0.0
    %195 = vmatprep.subr.mxu0 0.0
    %196 = vmatpush1.msra.mxu0 0.0
    %197 = vmatprep.subr.mxu0 0.0
    %198 = vmatpush1.msra.mxu0 0.0
    %199 = vmatprep.subr.mxu0 0.0
    %200 = vmatpush1.msra.mxu0 0.0
    %201 = vmatprep.subr.mxu0 0.0
    %202 = vmatpush1.msra.mxu0 0.0
    %203 = vmatprep.subr.mxu0 0.0
    %204 = vmatpush1.msra.mxu0 0.0
    %205 = vmatprep.subr.mxu0 0.0
    %206 = vmatpush1.msra.mxu0 0.0
    %207 = vmatprep.subr.mxu0 0.0
    %208 = vmatpush1.msra.mxu0 0.0
    %209 = vmatprep.subr.mxu0 0.0
    %210 = vmatpush1.msra.mxu0 0.0
    %211 = vmatprep.subr.mxu0 0.0
    %212 = vmatpush1.msra.mxu0 0.0
    %213 = vmatprep.subr.mxu0 0.0
    %214 = vmatpush1.msra.mxu0 0.0
    %215 = vmatprep.subr.mxu0 0.0
    %216 = vmatpush1.msra.mxu0 0.0
    %217 = vmatprep.subr.mxu0 0.0
    %218 = vmatpush1.msra.mxu0 0.0
    %219 = vmatprep.subr.mxu0 0.0
    %220 = vmatpush1.msra.mxu0 0.0
    %221 = vmatprep.subr.mxu0 0.0
    %222 = vmatpush1.msra.mxu0 0.0
    %223 = vmatprep.subr.mxu0 0.0
    %224 = vmatpush1.msra.mxu0 0.0
    %225 = vmatprep.subr.mxu0 0.0
    %226 = vmatpush1.msra.mxu0 0.0
    %227 = vmatprep.subr.mxu0 0.0
    %228 = vmatpush1.msra.mxu0 0.0
    %229 = vmatprep.subr.mxu0 0.0
    %230 = vmatpush1.msra.mxu0 0.0
    %231 = vmatprep.subr.mxu0 0.0
    %232 = vmatpush1.msra.mxu0 0.0
    %233 = vmatprep.subr.mxu0 0.0
    %234 = vmatpush1.msra.mxu0 0.0
    %235 = vmatprep.subr.mxu0 0.0
    %236 = vmatpush1.msra.mxu0 0.0
    %237 = vmatprep.subr.mxu0 0.0
    %238 = vmatpush1.msra.mxu0 0.0
    %239 = vmatprep.subr.mxu0 0.0
    %240 = vmatpush1.msra.mxu0 0.0
    %241 = vmatprep.mubr.f32.mxu0 0.0
    %242 = vmatmul.mubr.f32.gmra.mrb[0].mxu0 %v172
    %v243 = vpop.f32.mrb[0].mxu0
    %v244 = vadd.f32 %v168, %v243
    %v245 = vpop.f32.mrb[0].mxu0
    %246 = vmatprep.mubr.f32.mxu0 0.0
    %247 = vmatmul.mubr.f32.gmra.mrb[0].mxu0 %v175
    %v248 = vpop.f32.mrb[0].mxu0
    %v249 = vadd.f32 %v168, %v248
    %v250 = vpop.f32.mrb[0].mxu0
    %251 = vdwg.mxu0
    %v252 = vld [vmem:[%s7] sm:$0xff]
    %v253 = vld [vmem:[%s7 + $0x8] sm:$0xff]
    %v254 = vld [vmem:[%s7 + $0x10] sm:$0xff]
    %v255 = vld [vmem:[%s7 + $0x18] sm:$0xff]
    %v256 = vld [vmem:[%s7 + $0x20] sm:$0xff]
    %v257 = vld [vmem:[%s7 + $0x28] sm:$0xff]
    %v258 = vld [vmem:[%s7 + $0x30] sm:$0xff]
    %v259 = vld [vmem:[%s7 + $0x38] sm:$0xff]
    %v260 = vld [vmem:[%s9] sm:$0x1]
    %v262 = vlaneseq
    %v263 = vshrl.u32 %v262, 7
    %v264 = vsub.s32 0, %v263
    %v265 = vrot.slane %v260, %v264
    %vm267 = vcmask 523264
    %v269 = vsel %vm267, %v244, 0
    %v272 = vsel %vm267, %v249, 0
    %274 = vmatprep.subr.mxu0 0.0
    %275 = vmatpush1.msra.mxu0 %v252
    %276 = vmatprep.subr.mxu0 0.0
    %277 = vmatpush1.msra.mxu0 %v253
    %278 = vmatprep.subr.mxu0 0.0
    %279 = vmatpush1.msra.mxu0 %v254
    %280 = vmatprep.subr.mxu0 0.0
    %281 = vmatpush1.msra.mxu0 %v255
    %282 = vmatprep.subr.mxu0 0.0
    %283 = vmatpush1.msra.mxu0 %v256
    %284 = vmatprep.subr.mxu0 0.0
    %285 = vmatpush1.msra.mxu0 %v257
    %286 = vmatprep.subr.mxu0 0.0
    %287 = vmatpush1.msra.mxu0 %v258
    %288 = vmatprep.subr.mxu0 0.0
    %289 = vmatpush1.msra.mxu0 %v259
    %290 = vmatprep.subr.mxu0 0.0
    %291 = vmatpush1.msra.mxu0 0.0
    %292 = vmatprep.subr.mxu0 0.0
    %293 = vmatpush1.msra.mxu0 0.0
    %294 = vmatprep.subr.mxu0 0.0
    %295 = vmatpush1.msra.mxu0 0.0
    %296 = vmatprep.subr.mxu0 0.0
    %297 = vmatpush1.msra.mxu0 0.0
    %298 = vmatprep.subr.mxu0 0.0
    %299 = vmatpush1.msra.mxu0 0.0
    %300 = vmatprep.subr.mxu0 0.0
    %301 = vmatpush1.msra.mxu0 0.0
    %302 = vmatprep.subr.mxu0 0.0
    %303 = vmatpush1.msra.mxu0 0.0
    %304 = vmatprep.subr.mxu0 0.0
    %305 = vmatpush1.msra.mxu0 0.0
    %306 = vmatprep.subr.mxu0 0.0
    %307 = vmatpush1.msra.mxu0 0.0
    %308 = vmatprep.subr.mxu0 0.0
    %309 = vmatpush1.msra.mxu0 0.0
    %310 = vmatprep.subr.mxu0 0.0
    %311 = vmatpush1.msra.mxu0 0.0
    %312 = vmatprep.subr.mxu0 0.0
    %313 = vmatpush1.msra.mxu0 0.0
    %314 = vmatprep.subr.mxu0 0.0
    %315 = vmatpush1.msra.mxu0 0.0
    %316 = vmatprep.subr.mxu0 0.0
    %317 = vmatpush1.msra.mxu0 0.0
    %318 = vmatprep.subr.mxu0 0.0
    %319 = vmatpush1.msra.mxu0 0.0
    %320 = vmatprep.subr.mxu0 0.0
    %321 = vmatpush1.msra.mxu0 0.0
    %322 = vmatprep.subr.mxu0 0.0
    %323 = vmatpush1.msra.mxu0 0.0
    %324 = vmatprep.subr.mxu0 0.0
    %325 = vmatpush1.msra.mxu0 0.0
    %326 = vmatprep.subr.mxu0 0.0
    %327 = vmatpush1.msra.mxu0 0.0
    %328 = vmatprep.subr.mxu0 0.0
    %329 = vmatpush1.msra.mxu0 0.0
    %330 = vmatprep.subr.mxu0 0.0
    %331 = vmatpush1.msra.mxu0 0.0
    %332 = vmatprep.subr.mxu0 0.0
    %333 = vmatpush1.msra.mxu0 0.0
    %334 = vmatprep.subr.mxu0 0.0
    %335 = vmatpush1.msra.mxu0 0.0
    %336 = vmatprep.subr.mxu0 0.0
    %337 = vmatpush1.msra.mxu0 0.0
    %338 = vmatprep.mubr.f32.mxu0 0.0
    %339 = vmatmul.mubr.f32.gmra.mrb[0].mxu0 %v269
    %v340 = vpop.f32.mrb[0].mxu0
    %v341 = vadd.f32 %v265, %v340
    %v342 = vpop.f32.mrb[0].mxu0
    %343 = vmatprep.mubr.f32.mxu0 0.0
    %344 = vmatmul.mubr.f32.gmra.mrb[0].mxu0 %v272
    %v345 = vpop.f32.mrb[0].mxu0
    %v346 = vadd.f32 %v265, %v345
    %v347 = vpop.f32.mrb[0].mxu0
    %348 = vdwg.mxu0
    %v349 = vld [vmem:[%s11] sm:$0xff]
    %v350 = vld [vmem:[%s11 + $0x8] sm:$0xff]
    %v351 = vld [vmem:[%s11 + $0x10] sm:$0xff]
    %v352 = vld [vmem:[%s11 + $0x18] sm:$0xff]
    %v353 = vld [vmem:[%s11 + $0x20] sm:$0xff]
    %v354 = vld [vmem:[%s11 + $0x28] sm:$0xff]
    %v355 = vld [vmem:[%s11 + $0x30] sm:$0xff]
    %v356 = vld [vmem:[%s11 + $0x38] sm:$0xff]
    %v357 = vld [vmem:[%s13] sm:$0x1]
    %v359 = vlaneseq
    %v360 = vshrl.u32 %v359, 7
    %v361 = vsub.s32 0, %v360
    %v362 = vrot.slane %v357, %v361
    %364 = vmatprep.subr.mxu0 0.0
    %365 = vmatpush1.msra.mxu0 %v349
    %366 = vmatprep.subr.mxu0 0.0
    %367 = vmatpush1.msra.mxu0 %v350
    %368 = vmatprep.subr.mxu0 0.0
    %369 = vmatpush1.msra.mxu0 %v351
    %370 = vmatprep.subr.mxu0 0.0
    %371 = vmatpush1.msra.mxu0 %v352
    %372 = vmatprep.subr.mxu0 0.0
    %373 = vmatpush1.msra.mxu0 %v353
    %374 = vmatprep.subr.mxu0 0.0
    %375 = vmatpush1.msra.mxu0 %v354
    %376 = vmatprep.subr.mxu0 0.0
    %377 = vmatpush1.msra.mxu0 %v355
    %378 = vmatprep.subr.mxu0 0.0
    %379 = vmatpush1.msra.mxu0 %v356
    %380 = vmatprep.subr.mxu0 0.0
    %381 = vmatpush1.msra.mxu0 0.0
    %382 = vmatprep.subr.mxu0 0.0
    %383 = vmatpush1.msra.mxu0 0.0
    %384 = vmatprep.subr.mxu0 0.0
    %385 = vmatpush1.msra.mxu0 0.0
    %386 = vmatprep.subr.mxu0 0.0
    %387 = vmatpush1.msra.mxu0 0.0
    %388 = vmatprep.subr.mxu0 0.0
    %389 = vmatpush1.msra.mxu0 0.0
    %390 = vmatprep.subr.mxu0 0.0
    %391 = vmatpush1.msra.mxu0 0.0
    %392 = vmatprep.subr.mxu0 0.0
    %393 = vmatpush1.msra.mxu0 0.0
    %394 = vmatprep.subr.mxu0 0.0
    %395 = vmatpush1.msra.mxu0 0.0
    %396 = vmatprep.subr.mxu0 0.0
    %397 = vmatpush1.msra.mxu0 0.0
    %398 = vmatprep.subr.mxu0 0.0
    %399 = vmatpush1.msra.mxu0 0.0
    %400 = vmatprep.subr.mxu0 0.0
    %401 = vmatpush1.msra.mxu0 0.0
    %402 = vmatprep.subr.mxu0 0.0
    %403 = vmatpush1.msra.mxu0 0.0
    %404 = vmatprep.subr.mxu0 0.0
    %405 = vmatpush1.msra.mxu0 0.0
    %406 = vmatprep.subr.mxu0 0.0
    %407 = vmatpush1.msra.mxu0 0.0
    %408 = vmatprep.subr.mxu0 0.0
    %409 = vmatpush1.msra.mxu0 0.0
    %410 = vmatprep.subr.mxu0 0.0
    %411 = vmatpush1.msra.mxu0 0.0
    %412 = vmatprep.subr.mxu0 0.0
    %413 = vmatpush1.msra.mxu0 0.0
    %414 = vmatprep.subr.mxu0 0.0
    %415 = vmatpush1.msra.mxu0 0.0
    %416 = vmatprep.subr.mxu0 0.0
    %417 = vmatpush1.msra.mxu0 0.0
    %418 = vmatprep.subr.mxu0 0.0
    %419 = vmatpush1.msra.mxu0 0.0
    %420 = vmatprep.subr.mxu0 0.0
    %421 = vmatpush1.msra.mxu0 0.0
    %422 = vmatprep.subr.mxu0 0.0
    %423 = vmatpush1.msra.mxu0 0.0
    %424 = vmatprep.subr.mxu0 0.0
    %425 = vmatpush1.msra.mxu0 0.0
    %426 = vmatprep.subr.mxu0 0.0
    %427 = vmatpush1.msra.mxu0 0.0
    %428 = vmatprep.mubr.f32.mxu0 0.0
    %429 = vmatmul.mubr.f32.gmra.mrb[0].mxu0 %v269
    %v430 = vpop.f32.mrb[0].mxu0
    %v431 = vadd.f32 %v362, %v430
    %v432 = vpop.f32.mrb[0].mxu0
    %433 = vmatprep.mubr.f32.mxu0 0.0
    %434 = vmatmul.mubr.f32.gmra.mrb[0].mxu0 %v272
    %v435 = vpop.f32.mrb[0].mxu0
    %v436 = vadd.f32 %v362, %v435
    %v437 = vpop.f32.mrb[0].mxu0
    %438 = vdwg.mxu0
    %v439 = vld [vmem:[%s15] sm:$0xff]
    %v440 = vld [vmem:[%s15 + $0x8] sm:$0xff]
    %v441 = vld [vmem:[%s15 + $0x10] sm:$0xff]
    %v442 = vld [vmem:[%s15 + $0x18] sm:$0xff]
    %v443 = vld [vmem:[%s15 + $0x20] sm:$0xff]
    %v444 = vld [vmem:[%s15 + $0x28] sm:$0xff]
    %v445 = vld [vmem:[%s15 + $0x30] sm:$0xff]
    %v446 = vld [vmem:[%s15 + $0x38] sm:$0xff]
    %v447 = vld [vmem:[%s17] sm:$0x1]
    %v449 = vlaneseq
    %v450 = vshrl.u32 %v449, 7
    %v451 = vsub.s32 0, %v450
    %v452 = vrot.slane %v447, %v451
    %454 = vmatprep.subr.mxu0 0.0
    %455 = vmatpush1.msra.mxu0 %v439
    %456 = vmatprep.subr.mxu0 0.0
    %457 = vmatpush1.msra.mxu0 %v440
    %458 = vmatprep.subr.mxu0 0.0
    %459 = vmatpush1.msra.mxu0 %v441
    %460 = vmatprep.subr.mxu0 0.0
    %461 = vmatpush1.msra.mxu0 %v442
    %462 = vmatprep.subr.mxu0 0.0
    %463 = vmatpush1.msra.mxu0 %v443
    %464 = vmatprep.subr.mxu0 0.0
    %465 = vmatpush1.msra.mxu0 %v444
    %466 = vmatprep.subr.mxu0 0.0
    %467 = vmatpush1.msra.mxu0 %v445
    %468 = vmatprep.subr.mxu0 0.0
    %469 = vmatpush1.msra.mxu0 %v446
    %470 = vmatprep.subr.mxu0 0.0
    %471 = vmatpush1.msra.mxu0 0.0
    %472 = vmatprep.subr.mxu0 0.0
    %473 = vmatpush1.msra.mxu0 0.0
    %474 = vmatprep.subr.mxu0 0.0
    %475 = vmatpush1.msra.mxu0 0.0
    %476 = vmatprep.subr.mxu0 0.0
    %477 = vmatpush1.msra.mxu0 0.0
    %478 = vmatprep.subr.mxu0 0.0
    %479 = vmatpush1.msra.mxu0 0.0
    %480 = vmatprep.subr.mxu0 0.0
    %481 = vmatpush1.msra.mxu0 0.0
    %482 = vmatprep.subr.mxu0 0.0
    %483 = vmatpush1.msra.mxu0 0.0
    %484 = vmatprep.subr.mxu0 0.0
    %485 = vmatpush1.msra.mxu0 0.0
    %486 = vmatprep.subr.mxu0 0.0
    %487 = vmatpush1.msra.mxu0 0.0
    %488 = vmatprep.subr.mxu0 0.0
    %489 = vmatpush1.msra.mxu0 0.0
    %490 = vmatprep.subr.mxu0 0.0
    %491 = vmatpush1.msra.mxu0 0.0
    %492 = vmatprep.subr.mxu0 0.0
    %493 = vmatpush1.msra.mxu0 0.0
    %494 = vmatprep.subr.mxu0 0.0
    %495 = vmatpush1.msra.mxu0 0.0
    %496 = vmatprep.subr.mxu0 0.0
    %497 = vmatpush1.msra.mxu0 0.0
    %498 = vmatprep.subr.mxu0 0.0
    %499 = vmatpush1.msra.mxu0 0.0
    %500 = vmatprep.subr.mxu0 0.0
    %501 = vmatpush1.msra.mxu0 0.0
    %502 = vmatprep.subr.mxu0 0.0
    %503 = vmatpush1.msra.mxu0 0.0
    %504 = vmatprep.subr.mxu0 0.0
    %505 = vmatpush1.msra.mxu0 0.0
    %506 = vmatprep.subr.mxu0 0.0
    %507 = vmatpush1.msra.mxu0 0.0
    %508 = vmatprep.subr.mxu0 0.0
    %509 = vmatpush1.msra.mxu0 0.0
    %510 = vmatprep.subr.mxu0 0.0
    %511 = vmatpush1.msra.mxu0 0.0
    %512 = vmatprep.subr.mxu0 0.0
    %513 = vmatpush1.msra.mxu0 0.0
    %514 = vmatprep.subr.mxu0 0.0
    %515 = vmatpush1.msra.mxu0 0.0
    %516 = vmatprep.subr.mxu0 0.0
    %517 = vmatpush1.msra.mxu0 0.0
    %518 = vmatprep.mubr.f32.mxu0 0.0
    %519 = vmatmul.mubr.f32.gmra.mrb[0].mxu0 %v269
    %v520 = vpop.f32.mrb[0].mxu0
    %v521 = vadd.f32 %v452, %v520
    %v522 = vpop.f32.mrb[0].mxu0
    %523 = vmatprep.mubr.f32.mxu0 0.0
    %524 = vmatmul.mubr.f32.gmra.mrb[0].mxu0 %v272
    %v525 = vpop.f32.mrb[0].mxu0
    %v526 = vadd.f32 %v452, %v525
    %v527 = vpop.f32.mrb[0].mxu0
    %528 = vdwg.mxu0
    %v529 = vld [vmem:[%s19] sm:$0xff]
    %v530 = vld [vmem:[%s19 + $0x8] sm:$0xff]
    %v531 = vld [vmem:[%s19 + $0x10] sm:$0xff]
    %v532 = vld [vmem:[%s19 + $0x18] sm:$0xff]
    %v533 = vld [vmem:[%s19 + $0x20] sm:$0xff]
    %v534 = vld [vmem:[%s19 + $0x28] sm:$0xff]
    %v535 = vld [vmem:[%s19 + $0x30] sm:$0xff]
    %v536 = vld [vmem:[%s19 + $0x38] sm:$0xff]
    %v538 = vsel %vm170, %v341, 0
    %v541 = vsel %vm170, %v431, 0
    %543 = vmatprep.subr.mxu0 0.0
    %544 = vmatpush1.xpose.msra.mxu0 %v541
    %545 = vmatprep.subr.mxu0 0.0
    %546 = vmatpush1.xpose.msra.mxu0 0.0
    %547 = vmatprep.subr.mxu0 0.0
    %548 = vmatpush1.xpose.msra.mxu0 0.0
    %549 = vmatprep.subr.mxu0 0.0
    %550 = vmatpush1.xpose.msra.mxu0 0.0
    %551 = vmatprep.subr.mxu0 0.0
    %552 = vmatpush1.xpose.msra.mxu0 0.0
    %553 = vmatprep.subr.mxu0 0.0
    %554 = vmatpush1.xpose.msra.mxu0 0.0
    %555 = vmatprep.subr.mxu0 0.0
    %556 = vmatpush1.xpose.msra.mxu0 0.0
    %557 = vmatprep.subr.mxu0 0.0
    %558 = vmatpush1.xpose.msra.mxu0 0.0
    %559 = vmatprep.subr.mxu0 0.0
    %560 = vmatpush1.xpose.msra.mxu0 0.0
    %561 = vmatprep.subr.mxu0 0.0
    %562 = vmatpush1.xpose.msra.mxu0 0.0
    %563 = vmatprep.subr.mxu0 0.0
    %564 = vmatpush1.xpose.msra.mxu0 0.0
    %565 = vmatprep.subr.mxu0 0.0
    %566 = vmatpush1.xpose.msra.mxu0 0.0
    %567 = vmatprep.subr.mxu0 0.0
    %568 = vmatpush1.xpose.msra.mxu0 0.0
    %569 = vmatprep.subr.mxu0 0.0
    %570 = vmatpush1.xpose.msra.mxu0 0.0
    %571 = vmatprep.subr.mxu0 0.0
    %572 = vmatpush1.xpose.msra.mxu0 0.0
    %573 = vmatprep.subr.mxu0 0.0
    %574 = vmatpush1.xpose.msra.mxu0 0.0
    %575 = vmatprep.subr.mxu0 0.0
    %576 = vmatpush1.xpose.msra.mxu0 0.0
    %577 = vmatprep.subr.mxu0 0.0
    %578 = vmatpush1.xpose.msra.mxu0 0.0
    %579 = vmatprep.subr.mxu0 0.0
    %580 = vmatpush1.xpose.msra.mxu0 0.0
    %581 = vmatprep.subr.mxu0 0.0
    %582 = vmatpush1.xpose.msra.mxu0 0.0
    %583 = vmatprep.subr.mxu0 0.0
    %584 = vmatpush1.xpose.msra.mxu0 0.0
    %585 = vmatprep.subr.mxu0 0.0
    %586 = vmatpush1.xpose.msra.mxu0 0.0
    %587 = vmatprep.subr.mxu0 0.0
    %588 = vmatpush1.xpose.msra.mxu0 0.0
    %589 = vmatprep.subr.mxu0 0.0
    %590 = vmatpush1.xpose.msra.mxu0 0.0
    %591 = vmatprep.subr.mxu0 0.0
    %592 = vmatpush1.xpose.msra.mxu0 0.0
    %593 = vmatprep.subr.mxu0 0.0
    %594 = vmatpush1.xpose.msra.mxu0 0.0
    %595 = vmatprep.subr.mxu0 0.0
    %596 = vmatpush1.xpose.msra.mxu0 0.0
    %597 = vmatprep.subr.mxu0 0.0
    %598 = vmatpush1.xpose.msra.mxu0 0.0
    %599 = vmatprep.subr.mxu0 0.0
    %600 = vmatpush1.xpose.msra.mxu0 0.0
    %601 = vmatprep.subr.mxu0 0.0
    %602 = vmatpush1.xpose.msra.mxu0 0.0
    %603 = vmatprep.subr.mxu0 0.0
    %604 = vmatpush1.xpose.msra.mxu0 0.0
    %605 = vmatprep.subr.mxu0 0.0
    %606 = vmatpush1.xpose.msra.mxu0 0.0
    %607 = vmatprep.mubr.f32.mxu0 0.0
    %608 = vmatmul.mubr.f32.gmra.mrb[0].mxu0 %v538
    %v609 = vpop.f32.mrb[0].mxu0
    %v610 = vadd.f32 0.0, %v609
    %v611 = vpop.f32.mrb[0].mxu0
    %612 = vdwg.mxu0
    %v613 = vmul.f32 %v610, 0.25
    %vm614 = vcmask 64512
    %v615 = vsel %vm614, %v613, -inf
    %616 = vmax.xlane.f32.xlu0 %v615
    %v617 = vpop.xlane.xlu0 %616
    %v618 = vsub.f32 %v613, %v617
    %v619 = vmul.f32 %v618, 1.442695
    %v620 = vpow.pop %v619
    %v621 = vsel %vm614, %v620, 0.0
    %622 = vadd.xlane.f32.xlu0 %v621
    %v623 = vpop.xlane.xlu0 %622
    %v624 = vrcp.pop %v623
    %v625 = vmul.f32 %v620, %v624
    %v627 = vsel %vm614, %v625, 0
    %629 = vmatprep.subr.mxu0 0.0
    %630 = vmatpush1.msra.mxu0 %v521
    %631 = vmatprep.subr.mxu0 0.0
    %632 = vmatpush1.msra.mxu0 0.0
    %633 = vmatprep.subr.mxu0 0.0
    %634 = vmatpush1.msra.mxu0 0.0
    %635 = vmatprep.subr.mxu0 0.0
    %636 = vmatpush1.msra.mxu0 0.0
    %637 = vmatprep.subr.mxu0 0.0
    %638 = vmatpush1.msra.mxu0 0.0
    %639 = vmatprep.subr.mxu0 0.0
    %640 = vmatpush1.msra.mxu0 0.0
    %641 = vmatprep.subr.mxu0 0.0
    %642 = vmatpush1.msra.mxu0 0.0
    %643 = vmatprep.subr.mxu0 0.0
    %644 = vmatpush1.msra.mxu0 0.0
    %645 = vmatprep.subr.mxu0 0.0
    %646 = vmatpush1.msra.mxu0 0.0
    %647 = vmatprep.subr.mxu0 0.0
    %648 = vmatpush1.msra.mxu0 0.0
    %649 = vmatprep.subr.mxu0 0.0
    %650 = vmatpush1.msra.mxu0 0.0
    %651 = vmatprep.subr.mxu0 0.0
    %652 = vmatpush1.msra.mxu0 0.0
    %653 = vmatprep.subr.mxu0 0.0
    %654 = vmatpush1.msra.mxu0 0.0
    %655 = vmatprep.subr.mxu0 0.0
    %656 = vmatpush1.msra.mxu0 0.0
    %657 = vmatprep.subr.mxu0 0.0
    %658 = vmatpush1.msra.mxu0 0.0
    %659 = vmatprep.subr.mxu0 0.0
    %660 = vmatpush1.msra.mxu0 0.0
    %661 = vmatprep.subr.mxu0 0.0
    %662 = vmatpush1.msra.mxu0 0.0
    %663 = vmatprep.subr.mxu0 0.0
    %664 = vmatpush1.msra.mxu0 0.0
    %665 = vmatprep.subr.mxu0 0.0
    %666 = vmatpush1.msra.mxu0 0.0
    %667 = vmatprep.subr.mxu0 0.0
    %668 = vmatpush1.msra.mxu0 0.0
    %669 = vmatprep.subr.mxu0 0.0
    %670 = vmatpush1.msra.mxu0 0.0
    %671 = vmatprep.subr.mxu0 0.0
    %672 = vmatpush1.msra.mxu0 0.0
    %673 = vmatprep.subr.mxu0 0.0
    %674 = vmatpush1.msra.mxu0 0.0
    %675 = vmatprep.subr.mxu0 0.0
    %676 = vmatpush1.msra.mxu0 0.0
    %677 = vmatprep.subr.mxu0 0.0
    %678 = vmatpush1.msra.mxu0 0.0
    %679 = vmatprep.subr.mxu0 0.0
    %680 = vmatpush1.msra.mxu0 0.0
    %681 = vmatprep.subr.mxu0 0.0
    %682 = vmatpush1.msra.mxu0 0.0
    %683 = vmatprep.subr.mxu0 0.0
    %684 = vmatpush1.msra.mxu0 0.0
    %685 = vmatprep.subr.mxu0 0.0
    %686 = vmatpush1.msra.mxu0 0.0
    %687 = vmatprep.subr.mxu0 0.0
    %688 = vmatpush1.msra.mxu0 0.0
    %689 = vmatprep.subr.mxu0 0.0
    %690 = vmatpush1.msra.mxu0 0.0
    %691 = vmatprep.subr.mxu0 0.0
    %692 = vmatpush1.msra.mxu0 0.0
    %693 = vmatprep.mubr.f32.mxu0 0.0
    %694 = vmatmul.mubr.f32.gmra.mrb[0].mxu0 %v627
    %v695 = vpop.f32.mrb[0].mxu0
    %v696 = vadd.f32 0.0, %v695
    %v697 = vpop.f32.mrb[0].mxu0
    %698 = vdwg.mxu0
    %699 = vrot.lane.b32.xlu0 %v341, 112
    %v700 = vpop.permute.xlu0 %699
    %701 = vrot.lane.b32.xlu0 %v431, 112
    %v702 = vpop.permute.xlu0 %701
    %v703 = vsel %vm170, %v700, 0
    %v705 = vsel %vm170, %v702, 0
    %707 = vmatprep.subr.mxu0 0.0
    %708 = vmatpush1.xpose.msra.mxu0 %v705
    %709 = vmatprep.subr.mxu0 0.0
    %710 = vmatpush1.xpose.msra.mxu0 0.0
    %711 = vmatprep.subr.mxu0 0.0
    %712 = vmatpush1.xpose.msra.mxu0 0.0
    %713 = vmatprep.subr.mxu0 0.0
    %714 = vmatpush1.xpose.msra.mxu0 0.0
    %715 = vmatprep.subr.mxu0 0.0
    %716 = vmatpush1.xpose.msra.mxu0 0.0
    %717 = vmatprep.subr.mxu0 0.0
    %718 = vmatpush1.xpose.msra.mxu0 0.0
    %719 = vmatprep.subr.mxu0 0.0
    %720 = vmatpush1.xpose.msra.mxu0 0.0
    %721 = vmatprep.subr.mxu0 0.0
    %722 = vmatpush1.xpose.msra.mxu0 0.0
    %723 = vmatprep.subr.mxu0 0.0
    %724 = vmatpush1.xpose.msra.mxu0 0.0
    %725 = vmatprep.subr.mxu0 0.0
    %726 = vmatpush1.xpose.msra.mxu0 0.0
    %727 = vmatprep.subr.mxu0 0.0
    %728 = vmatpush1.xpose.msra.mxu0 0.0
    %729 = vmatprep.subr.mxu0 0.0
    %730 = vmatpush1.xpose.msra.mxu0 0.0
    %731 = vmatprep.subr.mxu0 0.0
    %732 = vmatpush1.xpose.msra.mxu0 0.0
    %733 = vmatprep.subr.mxu0 0.0
    %734 = vmatpush1.xpose.msra.mxu0 0.0
    %735 = vmatprep.subr.mxu0 0.0
    %736 = vmatpush1.xpose.msra.mxu0 0.0
    %737 = vmatprep.subr.mxu0 0.0
    %738 = vmatpush1.xpose.msra.mxu0 0.0
    %739 = vmatprep.subr.mxu0 0.0
    %740 = vmatpush1.xpose.msra.mxu0 0.0
    %741 = vmatprep.subr.mxu0 0.0
    %742 = vmatpush1.xpose.msra.mxu0 0.0
    %743 = vmatprep.subr.mxu0 0.0
    %744 = vmatpush1.xpose.msra.mxu0 0.0
    %745 = vmatprep.subr.mxu0 0.0
    %746 = vmatpush1.xpose.msra.mxu0 0.0
    %747 = vmatprep.subr.mxu0 0.0
    %748 = vmatpush1.xpose.msra.mxu0 0.0
    %749 = vmatprep.subr.mxu0 0.0
    %750 = vmatpush1.xpose.msra.mxu0 0.0
    %751 = vmatprep.subr.mxu0 0.0
    %752 = vmatpush1.xpose.msra.mxu0 0.0
    %753 = vmatprep.subr.mxu0 0.0
    %754 = vmatpush1.xpose.msra.mxu0 0.0
    %755 = vmatprep.subr.mxu0 0.0
    %756 = vmatpush1.xpose.msra.mxu0 0.0
    %757 = vmatprep.subr.mxu0 0.0
    %758 = vmatpush1.xpose.msra.mxu0 0.0
    %759 = vmatprep.subr.mxu0 0.0
    %760 = vmatpush1.xpose.msra.mxu0 0.0
    %761 = vmatprep.subr.mxu0 0.0
    %762 = vmatpush1.xpose.msra.mxu0 0.0
    %763 = vmatprep.subr.mxu0 0.0
    %764 = vmatpush1.xpose.msra.mxu0 0.0
    %765 = vmatprep.subr.mxu0 0.0
    %766 = vmatpush1.xpose.msra.mxu0 0.0
    %767 = vmatprep.subr.mxu0 0.0
    %768 = vmatpush1.xpose.msra.mxu0 0.0
    %769 = vmatprep.subr.mxu0 0.0
    %770 = vmatpush1.xpose.msra.mxu0 0.0
    %771 = vmatprep.mubr.f32.mxu0 0.0
    %772 = vmatmul.mubr.f32.gmra.mrb[0].mxu0 %v703
    %v773 = vpop.f32.mrb[0].mxu0
    %v774 = vadd.f32 0.0, %v773
    %v775 = vpop.f32.mrb[0].mxu0
    %776 = vdwg.mxu0
    %v777 = vmul.f32 %v774, 0.25
    %v778 = vsel %vm614, %v777, -inf
    %779 = vmax.xlane.f32.xlu0 %v778
    %v780 = vpop.xlane.xlu0 %779
    %v781 = vsub.f32 %v777, %v780
    %v782 = vmul.f32 %v781, 1.442695
    %v783 = vpow.pop %v782
    %v784 = vsel %vm614, %v783, 0.0
    %785 = vadd.xlane.f32.xlu0 %v784
    %v786 = vpop.xlane.xlu0 %785
    %v787 = vrcp.pop %v786
    %v788 = vmul.f32 %v783, %v787
    %790 = vrot.lane.b32.xlu0 %v521, 112
    %v791 = vpop.permute.xlu0 %790
    %v794 = vsel %vm614, %v788, 0
    %796 = vmatprep.subr.mxu0 0.0
    %797 = vmatpush1.msra.mxu0 %v791
    %798 = vmatprep.subr.mxu0 0.0
    %799 = vmatpush1.msra.mxu0 0.0
    %800 = vmatprep.subr.mxu0 0.0
    %801 = vmatpush1.msra.mxu0 0.0
    %802 = vmatprep.subr.mxu0 0.0
    %803 = vmatpush1.msra.mxu0 0.0
    %804 = vmatprep.subr.mxu0 0.0
    %805 = vmatpush1.msra.mxu0 0.0
    %806 = vmatprep.subr.mxu0 0.0
    %807 = vmatpush1.msra.mxu0 0.0
    %808 = vmatprep.subr.mxu0 0.0
    %809 = vmatpush1.msra.mxu0 0.0
    %810 = vmatprep.subr.mxu0 0.0
    %811 = vmatpush1.msra.mxu0 0.0
    %812 = vmatprep.subr.mxu0 0.0
    %813 = vmatpush1.msra.mxu0 0.0
    %814 = vmatprep.subr.mxu0 0.0
    %815 = vmatpush1.msra.mxu0 0.0
    %816 = vmatprep.subr.mxu0 0.0
    %817 = vmatpush1.msra.mxu0 0.0
    %818 = vmatprep.subr.mxu0 0.0
    %819 = vmatpush1.msra.mxu0 0.0
    %820 = vmatprep.subr.mxu0 0.0
    %821 = vmatpush1.msra.mxu0 0.0
    %822 = vmatprep.subr.mxu0 0.0
    %823 = vmatpush1.msra.mxu0 0.0
    %824 = vmatprep.subr.mxu0 0.0
    %825 = vmatpush1.msra.mxu0 0.0
    %826 = vmatprep.subr.mxu0 0.0
    %827 = vmatpush1.msra.mxu0 0.0
    %828 = vmatprep.subr.mxu0 0.0
    %829 = vmatpush1.msra.mxu0 0.0
    %830 = vmatprep.subr.mxu0 0.0
    %831 = vmatpush1.msra.mxu0 0.0
    %832 = vmatprep.subr.mxu0 0.0
    %833 = vmatpush1.msra.mxu0 0.0
    %834 = vmatprep.subr.mxu0 0.0
    %835 = vmatpush1.msra.mxu0 0.0
    %836 = vmatprep.subr.mxu0 0.0
    %837 = vmatpush1.msra.mxu0 0.0
    %838 = vmatprep.subr.mxu0 0.0
    %839 = vmatpush1.msra.mxu0 0.0
    %840 = vmatprep.subr.mxu0 0.0
    %841 = vmatpush1.msra.mxu0 0.0
    %842 = vmatprep.subr.mxu0 0.0
    %843 = vmatpush1.msra.mxu0 0.0
    %844 = vmatprep.subr.mxu0 0.0
    %845 = vmatpush1.msra.mxu0 0.0
    %846 = vmatprep.subr.mxu0 0.0
    %847 = vmatpush1.msra.mxu0 0.0
    %848 = vmatprep.subr.mxu0 0.0
    %849 = vmatpush1.msra.mxu0 0.0
    %850 = vmatprep.subr.mxu0 0.0
    %851 = vmatpush1.msra.mxu0 0.0
    %852 = vmatprep.subr.mxu0 0.0
    %853 = vmatpush1.msra.mxu0 0.0
    %854 = vmatprep.subr.mxu0 0.0
    %855 = vmatpush1.msra.mxu0 0.0
    %856 = vmatprep.subr.mxu0 0.0
    %857 = vmatpush1.msra.mxu0 0.0
    %858 = vmatprep.subr.mxu0 0.0
    %859 = vmatpush1.msra.mxu0 0.0
    %860 = vmatprep.mubr.f32.mxu0 0.0
    %861 = vmatmul.mubr.f32.gmra.mrb[0].mxu0 %v794
    %v862 = vpop.f32.mrb[0].mxu0
    %v863 = vadd.f32 0.0, %v862
    %v864 = vpop.f32.mrb[0].mxu0
    %865 = vdwg.mxu0
    %v867 = vsel %vm170, %v863, 0
    %869 = vmatprep.subr.mxu0 0.0
    %870 = vmatpush1.msra.mxu0 %v531
    %871 = vmatprep.subr.mxu0 0.0
    %872 = vmatpush1.msra.mxu0 %v532
    %873 = vmatprep.subr.mxu0 0.0
    %874 = vmatpush1.msra.mxu0 0.0
    %875 = vmatprep.subr.mxu0 0.0
    %876 = vmatpush1.msra.mxu0 0.0
    %877 = vmatprep.subr.mxu0 0.0
    %878 = vmatpush1.msra.mxu0 0.0
    %879 = vmatprep.subr.mxu0 0.0
    %880 = vmatpush1.msra.mxu0 0.0
    %881 = vmatprep.subr.mxu0 0.0
    %882 = vmatpush1.msra.mxu0 0.0
    %883 = vmatprep.subr.mxu0 0.0
    %884 = vmatpush1.msra.mxu0 0.0
    %885 = vmatprep.subr.mxu0 0.0
    %886 = vmatpush1.msra.mxu0 0.0
    %887 = vmatprep.subr.mxu0 0.0
    %888 = vmatpush1.msra.mxu0 0.0
    %889 = vmatprep.subr.mxu0 0.0
    %890 = vmatpush1.msra.mxu0 0.0
    %891 = vmatprep.subr.mxu0 0.0
    %892 = vmatpush1.msra.mxu0 0.0
    %893 = vmatprep.subr.mxu0 0.0
    %894 = vmatpush1.msra.mxu0 0.0
    %895 = vmatprep.subr.mxu0 0.0
    %896 = vmatpush1.msra.mxu0 0.0
    %897 = vmatprep.subr.mxu0 0.0
    %898 = vmatpush1.msra.mxu0 0.0
    %899 = vmatprep.subr.mxu0 0.0
    %900 = vmatpush1.msra.mxu0 0.0
    %901 = vmatprep.subr.mxu0 0.0
    %902 = vmatpush1.msra.mxu0 0.0
    %903 = vmatprep.subr.mxu0 0.0
    %904 = vmatpush1.msra.mxu0 0.0
    %905 = vmatprep.subr.mxu0 0.0
    %906 = vmatpush1.msra.mxu0 0.0
    %907 = vmatprep.subr.mxu0 0.0
    %908 = vmatpush1.msra.mxu0 0.0
    %909 = vmatprep.subr.mxu0 0.0
    %910 = vmatpush1.msra.mxu0 0.0
    %911 = vmatprep.subr.mxu0 0.0
    %912 = vmatpush1.msra.mxu0 0.0
    %913 = vmatprep.subr.mxu0 0.0
    %914 = vmatpush1.msra.mxu0 0.0
    %915 = vmatprep.subr.mxu0 0.0
    %916 = vmatpush1.msra.mxu0 0.0
    %917 = vmatprep.subr.mxu0 0.0
    %918 = vmatpush1.msra.mxu0 0.0
    %919 = vmatprep.subr.mxu0 0.0
    %920 = vmatpush1.msra.mxu0 0.0
    %921 = vmatprep.subr.mxu0 0.0
    %922 = vmatpush1.msra.mxu0 0.0
    %923 = vmatprep.subr.mxu0 0.0
    %924 = vmatpush1.msra.mxu0 0.0
    %925 = vmatprep.subr.mxu0 0.0
    %926 = vmatpush1.msra.mxu0 0.0
    %927 = vmatprep.subr.mxu0 0.0
    %928 = vmatpush1.msra.mxu0 0.0
    %929 = vmatprep.subr.mxu0 0.0
    %930 = vmatpush1.msra.mxu0 0.0
    %931 = vmatprep.subr.mxu0 0.0
    %932 = vmatpush1.msra.mxu0 0.0
    %933 = vmatprep.mubr.f32.mxu0 0.0
    %934 = vmatmul.mubr.f32.gmra.mrb[0].mxu0 %v867
    %v935 = vpop.f32.mrb[0].mxu0
    %v936 = vadd.f32 0.0, %v935
    %v937 = vpop.f32.mrb[0].mxu0
    %938 = vdwg.mxu0
    %v940 = vsel %vm170, %v696, 0
    %942 = vmatprep.subr.mxu0 0.0
    %943 = vmatpush1.msra.mxu0 %v529
    %944 = vmatprep.subr.mxu0 0.0
    %945 = vmatpush1.msra.mxu0 %v530
    %946 = vmatprep.subr.mxu0 0.0
    %947 = vmatpush1.msra.mxu0 0.0
    %948 = vmatprep.subr.mxu0 0.0
    %949 = vmatpush1.msra.mxu0 0.0
    %950 = vmatprep.subr.mxu0 0.0
    %951 = vmatpush1.msra.mxu0 0.0
    %952 = vmatprep.subr.mxu0 0.0
    %953 = vmatpush1.msra.mxu0 0.0
    %954 = vmatprep.subr.mxu0 0.0
    %955 = vmatpush1.msra.mxu0 0.0
    %956 = vmatprep.subr.mxu0 0.0
    %957 = vmatpush1.msra.mxu0 0.0
    %958 = vmatprep.subr.mxu0 0.0
    %959 = vmatpush1.msra.mxu0 0.0
    %960 = vmatprep.subr.mxu0 0.0
    %961 = vmatpush1.msra.mxu0 0.0
    %962 = vmatprep.subr.mxu0 0.0
    %963 = vmatpush1.msra.mxu0 0.0
    %964 = vmatprep.subr.mxu0 0.0
    %965 = vmatpush1.msra.mxu0 0.0
    %966 = vmatprep.subr.mxu0 0.0
    %967 = vmatpush1.msra.mxu0 0.0
    %968 = vmatprep.subr.mxu0 0.0
    %969 = vmatpush1.msra.mxu0 0.0
    %970 = vmatprep.subr.mxu0 0.0
    %971 = vmatpush1.msra.mxu0 0.0
    %972 = vmatprep.subr.mxu0 0.0
    %973 = vmatpush1.msra.mxu0 0.0
    %974 = vmatprep.subr.mxu0 0.0
    %975 = vmatpush1.msra.mxu0 0.0
    %976 = vmatprep.subr.mxu0 0.0
    %977 = vmatpush1.msra.mxu0 0.0
    %978 = vmatprep.subr.mxu0 0.0
    %979 = vmatpush1.msra.mxu0 0.0
    %980 = vmatprep.subr.mxu0 0.0
    %981 = vmatpush1.msra.mxu0 0.0
    %982 = vmatprep.subr.mxu0 0.0
    %983 = vmatpush1.msra.mxu0 0.0
    %984 = vmatprep.subr.mxu0 0.0
    %985 = vmatpush1.msra.mxu0 0.0
    %986 = vmatprep.subr.mxu0 0.0
    %987 = vmatpush1.msra.mxu0 0.0
    %988 = vmatprep.subr.mxu0 0.0
    %989 = vmatpush1.msra.mxu0 0.0
    %990 = vmatprep.subr.mxu0 0.0
    %991 = vmatpush1.msra.mxu0 0.0
    %992 = vmatprep.subr.mxu0 0.0
    %993 = vmatpush1.msra.mxu0 0.0
    %994 = vmatprep.subr.mxu0 0.0
    %995 = vmatpush1.msra.mxu0 0.0
    %996 = vmatprep.subr.mxu0 0.0
    %997 = vmatpush1.msra.mxu0 0.0
    %998 = vmatprep.subr.mxu0 0.0
    %999 = vmatpush1.msra.mxu0 0.0
    %1000 = vmatprep.subr.mxu0 0.0
    %1001 = vmatpush1.msra.mxu0 0.0
    %1002 = vmatprep.subr.mxu0 0.0
    %1003 = vmatpush1.msra.mxu0 0.0
    %1004 = vmatprep.subr.mxu0 0.0
    %1005 = vmatpush1.msra.mxu0 0.0
    %1006 = vmatprep.mubr.f32.mxu0 0.0
    %1007 = vmatmul.mubr.f32.gmra.mrb[0].mxu0 %v940
    %v1008 = vpop.f32.mrb[0].mxu0
    %v1009 = vadd.f32 %v936, %v1008
    %v1010 = vpop.f32.mrb[0].mxu0
    %1011 = vdwg.mxu0
    %1012 = vrot.lane.b32.xlu0 %v341, 96
    %v1013 = vpop.permute.xlu0 %1012
    %1014 = vrot.lane.b32.xlu0 %v431, 96
    %v1015 = vpop.permute.xlu0 %1014
    %v1016 = vsel %vm170, %v1013, 0
    %v1018 = vsel %vm170, %v1015, 0
    %1020 = vmatprep.subr.mxu0 0.0
    %1021 = vmatpush1.xpose.msra.mxu0 %v1018
    %1022 = vmatprep.subr.mxu0 0.0
    %1023 = vmatpush1.xpose.msra.mxu0 0.0
    %1024 = vmatprep.subr.mxu0 0.0
    %1025 = vmatpush1.xpose.msra.mxu0 0.0
    %1026 = vmatprep.subr.mxu0 0.0
    %1027 = vmatpush1.xpose.msra.mxu0 0.0
    %1028 = vmatprep.subr.mxu0 0.0
    %1029 = vmatpush1.xpose.msra.mxu0 0.0
    %1030 = vmatprep.subr.mxu0 0.0
    %1031 = vmatpush1.xpose.msra.mxu0 0.0
    %1032 = vmatprep.subr.mxu0 0.0
    %1033 = vmatpush1.xpose.msra.mxu0 0.0
    %1034 = vmatprep.subr.mxu0 0.0
    %1035 = vmatpush1.xpose.msra.mxu0 0.0
    %1036 = vmatprep.subr.mxu0 0.0
    %1037 = vmatpush1.xpose.msra.mxu0 0.0
    %1038 = vmatprep.subr.mxu0 0.0
    %1039 = vmatpush1.xpose.msra.mxu0 0.0
    %1040 = vmatprep.subr.mxu0 0.0
    %1041 = vmatpush1.xpose.msra.mxu0 0.0
    %1042 = vmatprep.subr.mxu0 0.0
    %1043 = vmatpush1.xpose.msra.mxu0 0.0
    %1044 = vmatprep.subr.mxu0 0.0
    %1045 = vmatpush1.xpose.msra.mxu0 0.0
    %1046 = vmatprep.subr.mxu0 0.0
    %1047 = vmatpush1.xpose.msra.mxu0 0.0
    %1048 = vmatprep.subr.mxu0 0.0
    %1049 = vmatpush1.xpose.msra.mxu0 0.0
    %1050 = vmatprep.subr.mxu0 0.0
    %1051 = vmatpush1.xpose.msra.mxu0 0.0
    %1052 = vmatprep.subr.mxu0 0.0
    %1053 = vmatpush1.xpose.msra.mxu0 0.0
    %1054 = vmatprep.subr.mxu0 0.0
    %1055 = vmatpush1.xpose.msra.mxu0 0.0
    %1056 = vmatprep.subr.mxu0 0.0
    %1057 = vmatpush1.xpose.msra.mxu0 0.0
    %1058 = vmatprep.subr.mxu0 0.0
    %1059 = vmatpush1.xpose.msra.mxu0 0.0
    %1060 = vmatprep.subr.mxu0 0.0
    %1061 = vmatpush1.xpose.msra.mxu0 0.0
    %1062 = vmatprep.subr.mxu0 0.0
    %1063 = vmatpush1.xpose.msra.mxu0 0.0
    %1064 = vmatprep.subr.mxu0 0.0
    %1065 = vmatpush1.xpose.msra.mxu0 0.0
    %1066 = vmatprep.subr.mxu0 0.0
    %1067 = vmatpush1.xpose.msra.mxu0 0.0
    %1068 = vmatprep.subr.mxu0 0.0
    %1069 = vmatpush1.xpose.msra.mxu0 0.0
    %1070 = vmatprep.subr.mxu0 0.0
    %1071 = vmatpush1.xpose.msra.mxu0 0.0
    %1072 = vmatprep.subr.mxu0 0.0
    %1073 = vmatpush1.xpose.msra.mxu0 0.0
    %1074 = vmatprep.subr.mxu0 0.0
    %1075 = vmatpush1.xpose.msra.mxu0 0.0
    %1076 = vmatprep.subr.mxu0 0.0
    %1077 = vmatpush1.xpose.msra.mxu0 0.0
    %1078 = vmatprep.subr.mxu0 0.0
    %1079 = vmatpush1.xpose.msra.mxu0 0.0
    %1080 = vmatprep.subr.mxu0 0.0
    %1081 = vmatpush1.xpose.msra.mxu0 0.0
    %1082 = vmatprep.subr.mxu0 0.0
    %1083 = vmatpush1.xpose.msra.mxu0 0.0
    %1084 = vmatprep.mubr.f32.mxu0 0.0
    %1085 = vmatmul.mubr.f32.gmra.mrb[0].mxu0 %v1016
    %v1086 = vpop.f32.mrb[0].mxu0
    %v1087 = vadd.f32 0.0, %v1086
    %v1088 = vpop.f32.mrb[0].mxu0
    %1089 = vdwg.mxu0
    %v1090 = vmul.f32 %v1087, 0.25
    %v1091 = vsel %vm614, %v1090, -inf
    %1092 = vmax.xlane.f32.xlu0 %v1091
    %v1093 = vpop.xlane.xlu0 %1092
    %v1094 = vsub.f32 %v1090, %v1093
    %v1095 = vmul.f32 %v1094, 1.442695
    %v1096 = vpow.pop %v1095
    %v1097 = vsel %vm614, %v1096, 0.0
    %1098 = vadd.xlane.f32.xlu0 %v1097
    %v1099 = vpop.xlane.xlu0 %1098
    %v1100 = vrcp.pop %v1099
    %v1101 = vmul.f32 %v1096, %v1100
    %1102 = vrot.lane.b32.xlu0 %v521, 96
    %v1103 = vpop.permute.xlu0 %1102
    %v1106 = vsel %vm614, %v1101, 0
    %1108 = vmatprep.subr.mxu0 0.0
    %1109 = vmatpush1.msra.mxu0 %v1103
    %1110 = vmatprep.subr.mxu0 0.0
    %1111 = vmatpush1.msra.mxu0 0.0
    %1112 = vmatprep.subr.mxu0 0.0
    %1113 = vmatpush1.msra.mxu0 0.0
    %1114 = vmatprep.subr.mxu0 0.0
    %1115 = vmatpush1.msra.mxu0 0.0
    %1116 = vmatprep.subr.mxu0 0.0
    %1117 = vmatpush1.msra.mxu0 0.0
    %1118 = vmatprep.subr.mxu0 0.0
    %1119 = vmatpush1.msra.mxu0 0.0
    %1120 = vmatprep.subr.mxu0 0.0
    %1121 = vmatpush1.msra.mxu0 0.0
    %1122 = vmatprep.subr.mxu0 0.0
    %1123 = vmatpush1.msra.mxu0 0.0
    %1124 = vmatprep.subr.mxu0 0.0
    %1125 = vmatpush1.msra.mxu0 0.0
    %1126 = vmatprep.subr.mxu0 0.0
    %1127 = vmatpush1.msra.mxu0 0.0
    %1128 = vmatprep.subr.mxu0 0.0
    %1129 = vmatpush1.msra.mxu0 0.0
    %1130 = vmatprep.subr.mxu0 0.0
    %1131 = vmatpush1.msra.mxu0 0.0
    %1132 = vmatprep.subr.mxu0 0.0
    %1133 = vmatpush1.msra.mxu0 0.0
    %1134 = vmatprep.subr.mxu0 0.0
    %1135 = vmatpush1.msra.mxu0 0.0
    %1136 = vmatprep.subr.mxu0 0.0
    %1137 = vmatpush1.msra.mxu0 0.0
    %1138 = vmatprep.subr.mxu0 0.0
    %1139 = vmatpush1.msra.mxu0 0.0
    %1140 = vmatprep.subr.mxu0 0.0
    %1141 = vmatpush1.msra.mxu0 0.0
    %1142 = vmatprep.subr.mxu0 0.0
    %1143 = vmatpush1.msra.mxu0 0.0
    %1144 = vmatprep.subr.mxu0 0.0
    %1145 = vmatpush1.msra.mxu0 0.0
    %1146 = vmatprep.subr.mxu0 0.0
    %1147 = vmatpush1.msra.mxu0 0.0
    %1148 = vmatprep.subr.mxu0 0.0
    %1149 = vmatpush1.msra.mxu0 0.0
    %1150 = vmatprep.subr.mxu0 0.0
    %1151 = vmatpush1.msra.mxu0 0.0
    %1152 = vmatprep.subr.mxu0 0.0
    %1153 = vmatpush1.msra.mxu0 0.0
    %1154 = vmatprep.subr.mxu0 0.0
    %1155 = vmatpush1.msra.mxu0 0.0
    %1156 = vmatprep.subr.mxu0 0.0
    %1157 = vmatpush1.msra.mxu0 0.0
    %1158 = vmatprep.subr.mxu0 0.0
    %1159 = vmatpush1.msra.mxu0 0.0
    %1160 = vmatprep.subr.mxu0 0.0
    %1161 = vmatpush1.msra.mxu0 0.0
    %1162 = vmatprep.subr.mxu0 0.0
    %1163 = vmatpush1.msra.mxu0 0.0
    %1164 = vmatprep.subr.mxu0 0.0
    %1165 = vmatpush1.msra.mxu0 0.0
    %1166 = vmatprep.subr.mxu0 0.0
    %1167 = vmatpush1.msra.mxu0 0.0
    %1168 = vmatprep.subr.mxu0 0.0
    %1169 = vmatpush1.msra.mxu0 0.0
    %1170 = vmatprep.subr.mxu0 0.0
    %1171 = vmatpush1.msra.mxu0 0.0
    %1172 = vmatprep.mubr.f32.mxu0 0.0
    %1173 = vmatmul.mubr.f32.gmra.mrb[0].mxu0 %v1106
    %v1174 = vpop.f32.mrb[0].mxu0
    %v1175 = vadd.f32 0.0, %v1174
    %v1176 = vpop.f32.mrb[0].mxu0
    %1177 = vdwg.mxu0
    %v1179 = vsel %vm170, %v1175, 0
    %1181 = vmatprep.subr.mxu0 0.0
    %1182 = vmatpush1.msra.mxu0 %v533
    %1183 = vmatprep.subr.mxu0 0.0
    %1184 = vmatpush1.msra.mxu0 %v534
    %1185 = vmatprep.subr.mxu0 0.0
    %1186 = vmatpush1.msra.mxu0 0.0
    %1187 = vmatprep.subr.mxu0 0.0
    %1188 = vmatpush1.msra.mxu0 0.0
    %1189 = vmatprep.subr.mxu0 0.0
    %1190 = vmatpush1.msra.mxu0 0.0
    %1191 = vmatprep.subr.mxu0 0.0
    %1192 = vmatpush1.msra.mxu0 0.0
    %1193 = vmatprep.subr.mxu0 0.0
    %1194 = vmatpush1.msra.mxu0 0.0
    %1195 = vmatprep.subr.mxu0 0.0
    %1196 = vmatpush1.msra.mxu0 0.0
    %1197 = vmatprep.subr.mxu0 0.0
    %1198 = vmatpush1.msra.mxu0 0.0
    %1199 = vmatprep.subr.mxu0 0.0
    %1200 = vmatpush1.msra.mxu0 0.0
    %1201 = vmatprep.subr.mxu0 0.0
    %1202 = vmatpush1.msra.mxu0 0.0
    %1203 = vmatprep.subr.mxu0 0.0
    %1204 = vmatpush1.msra.mxu0 0.0
    %1205 = vmatprep.subr.mxu0 0.0
    %1206 = vmatpush1.msra.mxu0 0.0
    %1207 = vmatprep.subr.mxu0 0.0
    %1208 = vmatpush1.msra.mxu0 0.0
    %1209 = vmatprep.subr.mxu0 0.0
    %1210 = vmatpush1.msra.mxu0 0.0
    %1211 = vmatprep.subr.mxu0 0.0
    %1212 = vmatpush1.msra.mxu0 0.0
    %1213 = vmatprep.subr.mxu0 0.0
    %1214 = vmatpush1.msra.mxu0 0.0
    %1215 = vmatprep.subr.mxu0 0.0
    %1216 = vmatpush1.msra.mxu0 0.0
    %1217 = vmatprep.subr.mxu0 0.0
    %1218 = vmatpush1.msra.mxu0 0.0
    %1219 = vmatprep.subr.mxu0 0.0
    %1220 = vmatpush1.msra.mxu0 0.0
    %1221 = vmatprep.subr.mxu0 0.0
    %1222 = vmatpush1.msra.mxu0 0.0
    %1223 = vmatprep.subr.mxu0 0.0
    %1224 = vmatpush1.msra.mxu0 0.0
    %1225 = vmatprep.subr.mxu0 0.0
    %1226 = vmatpush1.msra.mxu0 0.0
    %1227 = vmatprep.subr.mxu0 0.0
    %1228 = vmatpush1.msra.mxu0 0.0
    %1229 = vmatprep.subr.mxu0 0.0
    %1230 = vmatpush1.msra.mxu0 0.0
    %1231 = vmatprep.subr.mxu0 0.0
    %1232 = vmatpush1.msra.mxu0 0.0
    %1233 = vmatprep.subr.mxu0 0.0
    %1234 = vmatpush1.msra.mxu0 0.0
    %1235 = vmatprep.subr.mxu0 0.0
    %1236 = vmatpush1.msra.mxu0 0.0
    %1237 = vmatprep.subr.mxu0 0.0
    %1238 = vmatpush1.msra.mxu0 0.0
    %1239 = vmatprep.subr.mxu0 0.0
    %1240 = vmatpush1.msra.mxu0 0.0
    %1241 = vmatprep.subr.mxu0 0.0
    %1242 = vmatpush1.msra.mxu0 0.0
    %1243 = vmatprep.subr.mxu0 0.0
    %1244 = vmatpush1.msra.mxu0 0.0
    %1245 = vmatprep.mubr.f32.mxu0 0.0
    %1246 = vmatmul.mubr.f32.gmra.mrb[0].mxu0 %v1179
    %v1247 = vpop.f32.mrb[0].mxu0
    %v1248 = vadd.f32 0.0, %v1247
    %v1249 = vpop.f32.mrb[0].mxu0
    %1250 = vdwg.mxu0
    %v1251 = vadd.f32 %v1009, %v1248
    %1252 = vrot.lane.b32.xlu0 %v341, 80
    %v1253 = vpop.permute.xlu0 %1252
    %1254 = vrot.lane.b32.xlu0 %v431, 80
    %v1255 = vpop.permute.xlu0 %1254
    %v1256 = vsel %vm170, %v1253, 0
    %v1258 = vsel %vm170, %v1255, 0
    %1260 = vmatprep.subr.mxu0 0.0
    %1261 = vmatpush1.xpose.msra.mxu0 %v1258
    %1262 = vmatprep.subr.mxu0 0.0
    %1263 = vmatpush1.xpose.msra.mxu0 0.0
    %1264 = vmatprep.subr.mxu0 0.0
    %1265 = vmatpush1.xpose.msra.mxu0 0.0
    %1266 = vmatprep.subr.mxu0 0.0
    %1267 = vmatpush1.xpose.msra.mxu0 0.0
    %1268 = vmatprep.subr.mxu0 0.0
    %1269 = vmatpush1.xpose.msra.mxu0 0.0
    %1270 = vmatprep.subr.mxu0 0.0
    %1271 = vmatpush1.xpose.msra.mxu0 0.0
    %1272 = vmatprep.subr.mxu0 0.0
    %1273 = vmatpush1.xpose.msra.mxu0 0.0
    %1274 = vmatprep.subr.mxu0 0.0
    %1275 = vmatpush1.xpose.msra.mxu0 0.0
    %1276 = vmatprep.subr.mxu0 0.0
    %1277 = vmatpush1.xpose.msra.mxu0 0.0
    %1278 = vmatprep.subr.mxu0 0.0
    %1279 = vmatpush1.xpose.msra.mxu0 0.0
    %1280 = vmatprep.subr.mxu0 0.0
    %1281 = vmatpush1.xpose.msra.mxu0 0.0
    %1282 = vmatprep.subr.mxu0 0.0
    %1283 = vmatpush1.xpose.msra.mxu0 0.0
    %1284 = vmatprep.subr.mxu0 0.0
    %1285 = vmatpush1.xpose.msra.mxu0 0.0
    %1286 = vmatprep.subr.mxu0 0.0
    %1287 = vmatpush1.xpose.msra.mxu0 0.0
    %1288 = vmatprep.subr.mxu0 0.0
    %1289 = vmatpush1.xpose.msra.mxu0 0.0
    %1290 = vmatprep.subr.mxu0 0.0
    %1291 = vmatpush1.xpose.msra.mxu0 0.0
    %1292 = vmatprep.subr.mxu0 0.0
    %1293 = vmatpush1.xpose.msra.mxu0 0.0
    %1294 = vmatprep.subr.mxu0 0.0
    %1295 = vmatpush1.xpose.msra.mxu0 0.0
    %1296 = vmatprep.subr.mxu0 0.0
    %1297 = vmatpush1.xpose.msra.mxu0 0.0
    %1298 = vmatprep.subr.mxu0 0.0
    %1299 = vmatpush1.xpose.msra.mxu0 0.0
    %1300 = vmatprep.subr.mxu0 0.0
    %1301 = vmatpush1.xpose.msra.mxu0 0.0
    %1302 = vmatprep.subr.mxu0 0.0
    %1303 = vmatpush1.xpose.msra.mxu0 0.0
    %1304 = vmatprep.subr.mxu0 0.0
    %1305 = vmatpush1.xpose.msra.mxu0 0.0
    %1306 = vmatprep.subr.mxu0 0.0
    %1307 = vmatpush1.xpose.msra.mxu0 0.0
    %1308 = vmatprep.subr.mxu0 0.0
    %1309 = vmatpush1.xpose.msra.mxu0 0.0
    %1310 = vmatprep.subr.mxu0 0.0
    %1311 = vmatpush1.xpose.msra.mxu0 0.0
    %1312 = vmatprep.subr.mxu0 0.0
    %1313 = vmatpush1.xpose.msra.mxu0 0.0
    %1314 = vmatprep.subr.mxu0 0.0
    %1315 = vmatpush1.xpose.msra.mxu0 0.0
    %1316 = vmatprep.subr.mxu0 0.0
    %1317 = vmatpush1.xpose.msra.mxu0 0.0
    %1318 = vmatprep.subr.mxu0 0.0
    %1319 = vmatpush1.xpose.msra.mxu0 0.0
    %1320 = vmatprep.subr.mxu0 0.0
    %1321 = vmatpush1.xpose.msra.mxu0 0.0
    %1322 = vmatprep.subr.mxu0 0.0
    %1323 = vmatpush1.xpose.msra.mxu0 0.0
    %1324 = vmatprep.mubr.f32.mxu0 0.0
    %1325 = vmatmul.mubr.f32.gmra.mrb[0].mxu0 %v1256
    %v1326 = vpop.f32.mrb[0].mxu0
    %v1327 = vadd.f32 0.0, %v1326
    %v1328 = vpop.f32.mrb[0].mxu0
    %1329 = vdwg.mxu0
    %v1330 = vmul.f32 %v1327, 0.25
    %v1331 = vsel %vm614, %v1330, -inf
    %1332 = vmax.xlane.f32.xlu0 %v1331
    %v1333 = vpop.xlane.xlu0 %1332
    %v1334 = vsub.f32 %v1330, %v1333
    %v1335 = vmul.f32 %v1334, 1.442695
    %v1336 = vpow.pop %v1335
    %v1337 = vsel %vm614, %v1336, 0.0
    %1338 = vadd.xlane.f32.xlu0 %v1337
    %v1339 = vpop.xlane.xlu0 %1338
    %v1340 = vrcp.pop %v1339
    %v1341 = vmul.f32 %v1336, %v1340
    %1342 = vrot.lane.b32.xlu0 %v521, 80
    %v1343 = vpop.permute.xlu0 %1342
    %v1346 = vsel %vm614, %v1341, 0
    %1348 = vmatprep.subr.mxu0 0.0
    %1349 = vmatpush1.msra.mxu0 %v1343
    %1350 = vmatprep.subr.mxu0 0.0
    %1351 = vmatpush1.msra.mxu0 0.0
    %1352 = vmatprep.subr.mxu0 0.0
    %1353 = vmatpush1.msra.mxu0 0.0
    %1354 = vmatprep.subr.mxu0 0.0
    %1355 = vmatpush1.msra.mxu0 0.0
    %1356 = vmatprep.subr.mxu0 0.0
    %1357 = vmatpush1.msra.mxu0 0.0
    %1358 = vmatprep.subr.mxu0 0.0
    %1359 = vmatpush1.msra.mxu0 0.0
    %1360 = vmatprep.subr.mxu0 0.0
    %1361 = vmatpush1.msra.mxu0 0.0
    %1362 = vmatprep.subr.mxu0 0.0
    %1363 = vmatpush1.msra.mxu0 0.0
    %1364 = vmatprep.subr.mxu0 0.0
    %1365 = vmatpush1.msra.mxu0 0.0
    %1366 = vmatprep.subr.mxu0 0.0
    %1367 = vmatpush1.msra.mxu0 0.0
    %1368 = vmatprep.subr.mxu0 0.0
    %1369 = vmatpush1.msra.mxu0 0.0
    %1370 = vmatprep.subr.mxu0 0.0
    %1371 = vmatpush1.msra.mxu0 0.0
    %1372 = vmatprep.subr.mxu0 0.0
    %1373 = vmatpush1.msra.mxu0 0.0
    %1374 = vmatprep.subr.mxu0 0.0
    %1375 = vmatpush1.msra.mxu0 0.0
    %1376 = vmatprep.subr.mxu0 0.0
    %1377 = vmatpush1.msra.mxu0 0.0
    %1378 = vmatprep.subr.mxu0 0.0
    %1379 = vmatpush1.msra.mxu0 0.0
    %1380 = vmatprep.subr.mxu0 0.0
    %1381 = vmatpush1.msra.mxu0 0.0
    %1382 = vmatprep.subr.mxu0 0.0
    %1383 = vmatpush1.msra.mxu0 0.0
    %1384 = vmatprep.subr.mxu0 0.0
    %1385 = vmatpush1.msra.mxu0 0.0
    %1386 = vmatprep.subr.mxu0 0.0
    %1387 = vmatpush1.msra.mxu0 0.0
    %1388 = vmatprep.subr.mxu0 0.0
    %1389 = vmatpush1.msra.mxu0 0.0
    %1390 = vmatprep.subr.mxu0 0.0
    %1391 = vmatpush1.msra.mxu0 0.0
    %1392 = vmatprep.subr.mxu0 0.0
    %1393 = vmatpush1.msra.mxu0 0.0
    %1394 = vmatprep.subr.mxu0 0.0
    %1395 = vmatpush1.msra.mxu0 0.0
    %1396 = vmatprep.subr.mxu0 0.0
    %1397 = vmatpush1.msra.mxu0 0.0
    %1398 = vmatprep.subr.mxu0 0.0
    %1399 = vmatpush1.msra.mxu0 0.0
    %1400 = vmatprep.subr.mxu0 0.0
    %1401 = vmatpush1.msra.mxu0 0.0
    %1402 = vmatprep.subr.mxu0 0.0
    %1403 = vmatpush1.msra.mxu0 0.0
    %1404 = vmatprep.subr.mxu0 0.0
    %1405 = vmatpush1.msra.mxu0 0.0
    %1406 = vmatprep.subr.mxu0 0.0
    %1407 = vmatpush1.msra.mxu0 0.0
    %1408 = vmatprep.subr.mxu0 0.0
    %1409 = vmatpush1.msra.mxu0 0.0
    %1410 = vmatprep.subr.mxu0 0.0
    %1411 = vmatpush1.msra.mxu0 0.0
    %1412 = vmatprep.mubr.f32.mxu0 0.0
    %1413 = vmatmul.mubr.f32.gmra.mrb[0].mxu0 %v1346
    %v1414 = vpop.f32.mrb[0].mxu0
    %v1415 = vadd.f32 0.0, %v1414
    %v1416 = vpop.f32.mrb[0].mxu0
    %1417 = vdwg.mxu0
    %v1419 = vsel %vm170, %v1415, 0
    %1421 = vmatprep.subr.mxu0 0.0
    %1422 = vmatpush1.msra.mxu0 %v535
    %1423 = vmatprep.subr.mxu0 0.0
    %1424 = vmatpush1.msra.mxu0 %v536
    %1425 = vmatprep.subr.mxu0 0.0
    %1426 = vmatpush1.msra.mxu0 0.0
    %1427 = vmatprep.subr.mxu0 0.0
    %1428 = vmatpush1.msra.mxu0 0.0
    %1429 = vmatprep.subr.mxu0 0.0
    %1430 = vmatpush1.msra.mxu0 0.0
    %1431 = vmatprep.subr.mxu0 0.0
    %1432 = vmatpush1.msra.mxu0 0.0
    %1433 = vmatprep.subr.mxu0 0.0
    %1434 = vmatpush1.msra.mxu0 0.0
    %1435 = vmatprep.subr.mxu0 0.0
    %1436 = vmatpush1.msra.mxu0 0.0
    %1437 = vmatprep.subr.mxu0 0.0
    %1438 = vmatpush1.msra.mxu0 0.0
    %1439 = vmatprep.subr.mxu0 0.0
    %1440 = vmatpush1.msra.mxu0 0.0
    %1441 = vmatprep.subr.mxu0 0.0
    %1442 = vmatpush1.msra.mxu0 0.0
    %1443 = vmatprep.subr.mxu0 0.0
    %1444 = vmatpush1.msra.mxu0 0.0
    %1445 = vmatprep.subr.mxu0 0.0
    %1446 = vmatpush1.msra.mxu0 0.0
    %1447 = vmatprep.subr.mxu0 0.0
    %1448 = vmatpush1.msra.mxu0 0.0
    %1449 = vmatprep.subr.mxu0 0.0
    %1450 = vmatpush1.msra.mxu0 0.0
    %1451 = vmatprep.subr.mxu0 0.0
    %1452 = vmatpush1.msra.mxu0 0.0
    %1453 = vmatprep.subr.mxu0 0.0
    %1454 = vmatpush1.msra.mxu0 0.0
    %1455 = vmatprep.subr.mxu0 0.0
    %1456 = vmatpush1.msra.mxu0 0.0
    %1457 = vmatprep.subr.mxu0 0.0
    %1458 = vmatpush1.msra.mxu0 0.0
    %1459 = vmatprep.subr.mxu0 0.0
    %1460 = vmatpush1.msra.mxu0 0.0
    %1461 = vmatprep.subr.mxu0 0.0
    %1462 = vmatpush1.msra.mxu0 0.0
    %1463 = vmatprep.subr.mxu0 0.0
    %1464 = vmatpush1.msra.mxu0 0.0
    %1465 = vmatprep.subr.mxu0 0.0
    %1466 = vmatpush1.msra.mxu0 0.0
    %1467 = vmatprep.subr.mxu0 0.0
    %1468 = vmatpush1.msra.mxu0 0.0
    %1469 = vmatprep.subr.mxu0 0.0
    %1470 = vmatpush1.msra.mxu0 0.0
    %1471 = vmatprep.subr.mxu0 0.0
    %1472 = vmatpush1.msra.mxu0 0.0
    %1473 = vmatprep.subr.mxu0 0.0
    %1474 = vmatpush1.msra.mxu0 0.0
    %1475 = vmatprep.subr.mxu0 0.0
    %1476 = vmatpush1.msra.mxu0 0.0
    %1477 = vmatprep.subr.mxu0 0.0
    %1478 = vmatpush1.msra.mxu0 0.0
    %1479 = vmatprep.subr.mxu0 0.0
    %1480 = vmatpush1.msra.mxu0 0.0
    %1481 = vmatprep.subr.mxu0 0.0
    %1482 = vmatpush1.msra.mxu0 0.0
    %1483 = vmatprep.subr.mxu0 0.0
    %1484 = vmatpush1.msra.mxu0 0.0
    %1485 = vmatprep.mubr.f32.mxu0 0.0
    %1486 = vmatmul.mubr.f32.gmra.mrb[0].mxu0 %v1419
    %v1487 = vpop.f32.mrb[0].mxu0
    %v1488 = vadd.f32 0.0, %v1487
    %v1489 = vpop.f32.mrb[0].mxu0
    %1490 = vdwg.mxu0
    %v1491 = vadd.f32 %v1251, %v1488
    %1492 = vst.msk [vmem:[#allocation2] sm:$0xff] %vm267, %v1491
    %v1494 = vsel %vm170, %v346, 0
    %v1497 = vsel %vm170, %v436, 0
    %1499 = vmatprep.subr.mxu0 0.0
    %1500 = vmatpush1.xpose.msra.mxu0 %v1497
    %1501 = vmatprep.subr.mxu0 0.0
    %1502 = vmatpush1.xpose.msra.mxu0 0.0
    %1503 = vmatprep.subr.mxu0 0.0
    %1504 = vmatpush1.xpose.msra.mxu0 0.0
    %1505 = vmatprep.subr.mxu0 0.0
    %1506 = vmatpush1.xpose.msra.mxu0 0.0
    %1507 = vmatprep.subr.mxu0 0.0
    %1508 = vmatpush1.xpose.msra.mxu0 0.0
    %1509 = vmatprep.subr.mxu0 0.0
    %1510 = vmatpush1.xpose.msra.mxu0 0.0
    %1511 = vmatprep.subr.mxu0 0.0
    %1512 = vmatpush1.xpose.msra.mxu0 0.0
    %1513 = vmatprep.subr.mxu0 0.0
    %1514 = vmatpush1.xpose.msra.mxu0 0.0
    %1515 = vmatprep.subr.mxu0 0.0
    %1516 = vmatpush1.xpose.msra.mxu0 0.0
    %1517 = vmatprep.subr.mxu0 0.0
    %1518 = vmatpush1.xpose.msra.mxu0 0.0
    %1519 = vmatprep.subr.mxu0 0.0
    %1520 = vmatpush1.xpose.msra.mxu0 0.0
    %1521 = vmatprep.subr.mxu0 0.0
    %1522 = vmatpush1.xpose.msra.mxu0 0.0
    %1523 = vmatprep.subr.mxu0 0.0
    %1524 = vmatpush1.xpose.msra.mxu0 0.0
    %1525 = vmatprep.subr.mxu0 0.0
    %1526 = vmatpush1.xpose.msra.mxu0 0.0
    %1527 = vmatprep.subr.mxu0 0.0
    %1528 = vmatpush1.xpose.msra.mxu0 0.0
    %1529 = vmatprep.subr.mxu0 0.0
    %1530 = vmatpush1.xpose.msra.mxu0 0.0
    %1531 = vmatprep.subr.mxu0 0.0
    %1532 = vmatpush1.xpose.msra.mxu0 0.0
    %1533 = vmatprep.subr.mxu0 0.0
    %1534 = vmatpush1.xpose.msra.mxu0 0.0
    %1535 = vmatprep.subr.mxu0 0.0
    %1536 = vmatpush1.xpose.msra.mxu0 0.0
    %1537 = vmatprep.subr.mxu0 0.0
    %1538 = vmatpush1.xpose.msra.mxu0 0.0
    %1539 = vmatprep.subr.mxu0 0.0
    %1540 = vmatpush1.xpose.msra.mxu0 0.0
    %1541 = vmatprep.subr.mxu0 0.0
    %1542 = vmatpush1.xpose.msra.mxu0 0.0
    %1543 = vmatprep.subr.mxu0 0.0
    %1544 = vmatpush1.xpose.msra.mxu0 0.0
    %1545 = vmatprep.subr.mxu0 0.0
    %1546 = vmatpush1.xpose.msra.mxu0 0.0
    %1547 = vmatprep.subr.mxu0 0.0
    %1548 = vmatpush1.xpose.msra.mxu0 0.0
    %1549 = vmatprep.subr.mxu0 0.0
    %1550 = vmatpush1.xpose.msra.mxu0 0.0
    %1551 = vmatprep.subr.mxu0 0.0
    %1552 = vmatpush1.xpose.msra.mxu0 0.0
    %1553 = vmatprep.subr.mxu0 0.0
    %1554 = vmatpush1.xpose.msra.mxu0 0.0
    %1555 = vmatprep.subr.mxu0 0.0
    %1556 = vmatpush1.xpose.msra.mxu0 0.0
    %1557 = vmatprep.subr.mxu0 0.0
    %1558 = vmatpush1.xpose.msra.mxu0 0.0
    %1559 = vmatprep.subr.mxu0 0.0
    %1560 = vmatpush1.xpose.msra.mxu0 0.0
    %1561 = vmatprep.subr.mxu0 0.0
    %1562 = vmatpush1.xpose.msra.mxu0 0.0
    %1563 = vmatprep.mubr.f32.mxu0 0.0
    %1564 = vmatmul.mubr.f32.gmra.mrb[0].mxu0 %v1494
    %v1565 = vpop.f32.mrb[0].mxu0
    %v1566 = vadd.f32 0.0, %v1565
    %v1567 = vpop.f32.mrb[0].mxu0
    %1568 = vdwg.mxu0
    %v1569 = vmul.f32 %v1566, 0.25
    %v1570 = vsel %vm614, %v1569, -inf
    %1571 = vmax.xlane.f32.xlu0 %v1570
    %v1572 = vpop.xlane.xlu0 %1571
    %v1573 = vsub.f32 %v1569, %v1572
    %v1574 = vmul.f32 %v1573, 1.442695
    %v1575 = vpow.pop %v1574
    %v1576 = vsel %vm614, %v1575, 0.0
    %1577 = vadd.xlane.f32.xlu0 %v1576
    %v1578 = vpop.xlane.xlu0 %1577
    %v1579 = vrcp.pop %v1578
    %v1580 = vmul.f32 %v1575, %v1579
    %v1582 = vsel %vm614, %v1580, 0
    %1584 = vmatprep.subr.mxu0 0.0
    %1585 = vmatpush1.msra.mxu0 %v526
    %1586 = vmatprep.subr.mxu0 0.0
    %1587 = vmatpush1.msra.mxu0 0.0
    %1588 = vmatprep.subr.mxu0 0.0
    %1589 = vmatpush1.msra.mxu0 0.0
    %1590 = vmatprep.subr.mxu0 0.0
    %1591 = vmatpush1.msra.mxu0 0.0
    %1592 = vmatprep.subr.mxu0 0.0
    %1593 = vmatpush1.msra.mxu0 0.0
    %1594 = vmatprep.subr.mxu0 0.0
    %1595 = vmatpush1.msra.mxu0 0.0
    %1596 = vmatprep.subr.mxu0 0.0
    %1597 = vmatpush1.msra.mxu0 0.0
    %1598 = vmatprep.subr.mxu0 0.0
    %1599 = vmatpush1.msra.mxu0 0.0
    %1600 = vmatprep.subr.mxu0 0.0
    %1601 = vmatpush1.msra.mxu0 0.0
    %1602 = vmatprep.subr.mxu0 0.0
    %1603 = vmatpush1.msra.mxu0 0.0
    %1604 = vmatprep.subr.mxu0 0.0
    %1605 = vmatpush1.msra.mxu0 0.0
    %1606 = vmatprep.subr.mxu0 0.0
    %1607 = vmatpush1.msra.mxu0 0.0
    %1608 = vmatprep.subr.mxu0 0.0
    %1609 = vmatpush1.msra.mxu0 0.0
    %1610 = vmatprep.subr.mxu0 0.0
    %1611 = vmatpush1.msra.mxu0 0.0
    %1612 = vmatprep.subr.mxu0 0.0
    %1613 = vmatpush1.msra.mxu0 0.0
    %1614 = vmatprep.subr.mxu0 0.0
    %1615 = vmatpush1.msra.mxu0 0.0
    %1616 = vmatprep.subr.mxu0 0.0
    %1617 = vmatpush1.msra.mxu0 0.0
    %1618 = vmatprep.subr.mxu0 0.0
    %1619 = vmatpush1.msra.mxu0 0.0
    %1620 = vmatprep.subr.mxu0 0.0
    %1621 = vmatpush1.msra.mxu0 0.0
    %1622 = vmatprep.subr.mxu0 0.0
    %1623 = vmatpush1.msra.mxu0 0.0
    %1624 = vmatprep.subr.mxu0 0.0
    %1625 = vmatpush1.msra.mxu0 0.0
    %1626 = vmatprep.subr.mxu0 0.0
    %1627 = vmatpush1.msra.mxu0 0.0
    %1628 = vmatprep.subr.mxu0 0.0
    %1629 = vmatpush1.msra.mxu0 0.0
    %1630 = vmatprep.subr.mxu0 0.0
    %1631 = vmatpush1.msra.mxu0 0.0
    %1632 = vmatprep.subr.mxu0 0.0
    %1633 = vmatpush1.msra.mxu0 0.0
    %1634 = vmatprep.subr.mxu0 0.0
    %1635 = vmatpush1.msra.mxu0 0.0
    %1636 = vmatprep.subr.mxu0 0.0
    %1637 = vmatpush1.msra.mxu0 0.0
    %1638 = vmatprep.subr.mxu0 0.0
    %1639 = vmatpush1.msra.mxu0 0.0
    %1640 = vmatprep.subr.mxu0 0.0
    %1641 = vmatpush1.msra.mxu0 0.0
    %1642 = vmatprep.subr.mxu0 0.0
    %1643 = vmatpush1.msra.mxu0 0.0
    %1644 = vmatprep.subr.mxu0 0.0
    %1645 = vmatpush1.msra.mxu0 0.0
    %1646 = vmatprep.subr.mxu0 0.0
    %1647 = vmatpush1.msra.mxu0 0.0
    %1648 = vmatprep.mubr.f32.mxu0 0.0
    %1649 = vmatmul.mubr.f32.gmra.mrb[0].mxu0 %v1582
    %v1650 = vpop.f32.mrb[0].mxu0
    %v1651 = vadd.f32 0.0, %v1650
    %v1652 = vpop.f32.mrb[0].mxu0
    %1653 = vdwg.mxu0
    %1654 = vrot.lane.b32.xlu0 %v346, 112
    %v1655 = vpop.permute.xlu0 %1654
    %1656 = vrot.lane.b32.xlu0 %v436, 112
    %v1657 = vpop.permute.xlu0 %1656
    %v1658 = vsel %vm170, %v1655, 0
    %v1660 = vsel %vm170, %v1657, 0
    %1662 = vmatprep.subr.mxu0 0.0
    %1663 = vmatpush1.xpose.msra.mxu0 %v1660
    %1664 = vmatprep.subr.mxu0 0.0
    %1665 = vmatpush1.xpose.msra.mxu0 0.0
    %1666 = vmatprep.subr.mxu0 0.0
    %1667 = vmatpush1.xpose.msra.mxu0 0.0
    %1668 = vmatprep.subr.mxu0 0.0
    %1669 = vmatpush1.xpose.msra.mxu0 0.0
    %1670 = vmatprep.subr.mxu0 0.0
    %1671 = vmatpush1.xpose.msra.mxu0 0.0
    %1672 = vmatprep.subr.mxu0 0.0
    %1673 = vmatpush1.xpose.msra.mxu0 0.0
    %1674 = vmatprep.subr.mxu0 0.0
    %1675 = vmatpush1.xpose.msra.mxu0 0.0
    %1676 = vmatprep.subr.mxu0 0.0
    %1677 = vmatpush1.xpose.msra.mxu0 0.0
    %1678 = vmatprep.subr.mxu0 0.0
    %1679 = vmatpush1.xpose.msra.mxu0 0.0
    %1680 = vmatprep.subr.mxu0 0.0
    %1681 = vmatpush1.xpose.msra.mxu0 0.0
    %1682 = vmatprep.subr.mxu0 0.0
    %1683 = vmatpush1.xpose.msra.mxu0 0.0
    %1684 = vmatprep.subr.mxu0 0.0
    %1685 = vmatpush1.xpose.msra.mxu0 0.0
    %1686 = vmatprep.subr.mxu0 0.0
    %1687 = vmatpush1.xpose.msra.mxu0 0.0
    %1688 = vmatprep.subr.mxu0 0.0
    %1689 = vmatpush1.xpose.msra.mxu0 0.0
    %1690 = vmatprep.subr.mxu0 0.0
    %1691 = vmatpush1.xpose.msra.mxu0 0.0
    %1692 = vmatprep.subr.mxu0 0.0
    %1693 = vmatpush1.xpose.msra.mxu0 0.0
    %1694 = vmatprep.subr.mxu0 0.0
    %1695 = vmatpush1.xpose.msra.mxu0 0.0
    %1696 = vmatprep.subr.mxu0 0.0
    %1697 = vmatpush1.xpose.msra.mxu0 0.0
    %1698 = vmatprep.subr.mxu0 0.0
    %1699 = vmatpush1.xpose.msra.mxu0 0.0
    %1700 = vmatprep.subr.mxu0 0.0
    %1701 = vmatpush1.xpose.msra.mxu0 0.0
    %1702 = vmatprep.subr.mxu0 0.0
    %1703 = vmatpush1.xpose.msra.mxu0 0.0
    %1704 = vmatprep.subr.mxu0 0.0
    %1705 = vmatpush1.xpose.msra.mxu0 0.0
    %1706 = vmatprep.subr.mxu0 0.0
    %1707 = vmatpush1.xpose.msra.mxu0 0.0
    %1708 = vmatprep.subr.mxu0 0.0
    %1709 = vmatpush1.xpose.msra.mxu0 0.0
    %1710 = vmatprep.subr.mxu0 0.0
    %1711 = vmatpush1.xpose.msra.mxu0 0.0
    %1712 = vmatprep.subr.mxu0 0.0
    %1713 = vmatpush1.xpose.msra.mxu0 0.0
    %1714 = vmatprep.subr.mxu0 0.0
    %1715 = vmatpush1.xpose.msra.mxu0 0.0
    %1716 = vmatprep.subr.mxu0 0.0
    %1717 = vmatpush1.xpose.msra.mxu0 0.0
    %1718 = vmatprep.subr.mxu0 0.0
    %1719 = vmatpush1.xpose.msra.mxu0 0.0
    %1720 = vmatprep.subr.mxu0 0.0
    %1721 = vmatpush1.xpose.msra.mxu0 0.0
    %1722 = vmatprep.subr.mxu0 0.0
    %1723 = vmatpush1.xpose.msra.mxu0 0.0
    %1724 = vmatprep.subr.mxu0 0.0
    %1725 = vmatpush1.xpose.msra.mxu0 0.0
    %1726 = vmatprep.mubr.f32.mxu0 0.0
    %1727 = vmatmul.mubr.f32.gmra.mrb[0].mxu0 %v1658
    %v1728 = vpop.f32.mrb[0].mxu0
    %v1729 = vadd.f32 0.0, %v1728
    %v1730 = vpop.f32.mrb[0].mxu0
    %1731 = vdwg.mxu0
    %v1732 = vmul.f32 %v1729, 0.25
    %v1733 = vsel %vm614, %v1732, -inf
    %1734 = vmax.xlane.f32.xlu0 %v1733
    %v1735 = vpop.xlane.xlu0 %1734
    %v1736 = vsub.f32 %v1732, %v1735
    %v1737 = vmul.f32 %v1736, 1.442695
    %v1738 = vpow.pop %v1737
    %v1739 = vsel %vm614, %v1738, 0.0
    %1740 = vadd.xlane.f32.xlu0 %v1739
    %v1741 = vpop.xlane.xlu0 %1740
    %v1742 = vrcp.pop %v1741
    %v1743 = vmul.f32 %v1738, %v1742
    %1745 = vrot.lane.b32.xlu0 %v526, 112
    %v1746 = vpop.permute.xlu0 %1745
    %v1749 = vsel %vm614, %v1743, 0
    %1751 = vmatprep.subr.mxu0 0.0
    %1752 = vmatpush1.msra.mxu0 %v1746
    %1753 = vmatprep.subr.mxu0 0.0
    %1754 = vmatpush1.msra.mxu0 0.0
    %1755 = vmatprep.subr.mxu0 0.0
    %1756 = vmatpush1.msra.mxu0 0.0
    %1757 = vmatprep.subr.mxu0 0.0
    %1758 = vmatpush1.msra.mxu0 0.0
    %1759 = vmatprep.subr.mxu0 0.0
    %1760 = vmatpush1.msra.mxu0 0.0
    %1761 = vmatprep.subr.mxu0 0.0
    %1762 = vmatpush1.msra.mxu0 0.0
    %1763 = vmatprep.subr.mxu0 0.0
    %1764 = vmatpush1.msra.mxu0 0.0
    %1765 = vmatprep.subr.mxu0 0.0
    %1766 = vmatpush1.msra.mxu0 0.0
    %1767 = vmatprep.subr.mxu0 0.0
    %1768 = vmatpush1.msra.mxu0 0.0
    %1769 = vmatprep.subr.mxu0 0.0
    %1770 = vmatpush1.msra.mxu0 0.0
    %1771 = vmatprep.subr.mxu0 0.0
    %1772 = vmatpush1.msra.mxu0 0.0
    %1773 = vmatprep.subr.mxu0 0.0
    %1774 = vmatpush1.msra.mxu0 0.0
    %1775 = vmatprep.subr.mxu0 0.0
    %1776 = vmatpush1.msra.mxu0 0.0
    %1777 = vmatprep.subr.mxu0 0.0
    %1778 = vmatpush1.msra.mxu0 0.0
    %1779 = vmatprep.subr.mxu0 0.0
    %1780 = vmatpush1.msra.mxu0 0.0
    %1781 = vmatprep.subr.mxu0 0.0
    %1782 = vmatpush1.msra.mxu0 0.0
    %1783 = vmatprep.subr.mxu0 0.0
    %1784 = vmatpush1.msra.mxu0 0.0
    %1785 = vmatprep.subr.mxu0 0.0
    %1786 = vmatpush1.msra.mxu0 0.0
    %1787 = vmatprep.subr.mxu0 0.0
    %1788 = vmatpush1.msra.mxu0 0.0
    %1789 = vmatprep.subr.mxu0 0.0
    %1790 = vmatpush1.msra.mxu0 0.0
    %1791 = vmatprep.subr.mxu0 0.0
    %1792 = vmatpush1.msra.mxu0 0.0
    %1793 = vmatprep.subr.mxu0 0.0
    %1794 = vmatpush1.msra.mxu0 0.0
    %1795 = vmatprep.subr.mxu0 0.0
    %1796 = vmatpush1.msra.mxu0 0.0
    %1797 = vmatprep.subr.mxu0 0.0
    %1798 = vmatpush1.msra.mxu0 0.0
    %1799 = vmatprep.subr.mxu0 0.0
    %1800 = vmatpush1.msra.mxu0 0.0
    %1801 = vmatprep.subr.mxu0 0.0
    %1802 = vmatpush1.msra.mxu0 0.0
    %1803 = vmatprep.subr.mxu0 0.0
    %1804 = vmatpush1.msra.mxu0 0.0
    %1805 = vmatprep.subr.mxu0 0.0
    %1806 = vmatpush1.msra.mxu0 0.0
    %1807 = vmatprep.subr.mxu0 0.0
    %1808 = vmatpush1.msra.mxu0 0.0
    %1809 = vmatprep.subr.mxu0 0.0
    %1810 = vmatpush1.msra.mxu0 0.0
    %1811 = vmatprep.subr.mxu0 0.0
    %1812 = vmatpush1.msra.mxu0 0.0
    %1813 = vmatprep.subr.mxu0 0.0
    %1814 = vmatpush1.msra.mxu0 0.0
    %1815 = vmatprep.mubr.f32.mxu0 0.0
    %1816 = vmatmul.mubr.f32.gmra.mrb[0].mxu0 %v1749
    %v1817 = vpop.f32.mrb[0].mxu0
    %v1818 = vadd.f32 0.0, %v1817
    %v1819 = vpop.f32.mrb[0].mxu0
    %1820 = vdwg.mxu0
    %v1822 = vsel %vm170, %v1818, 0
    %1824 = vmatprep.subr.mxu0 0.0
    %1825 = vmatpush1.msra.mxu0 %v531
    %1826 = vmatprep.subr.mxu0 0.0
    %1827 = vmatpush1.msra.mxu0 %v532
    %1828 = vmatprep.subr.mxu0 0.0
    %1829 = vmatpush1.msra.mxu0 0.0
    %1830 = vmatprep.subr.mxu0 0.0
    %1831 = vmatpush1.msra.mxu0 0.0
    %1832 = vmatprep.subr.mxu0 0.0
    %1833 = vmatpush1.msra.mxu0 0.0
    %1834 = vmatprep.subr.mxu0 0.0
    %1835 = vmatpush1.msra.mxu0 0.0
    %1836 = vmatprep.subr.mxu0 0.0
    %1837 = vmatpush1.msra.mxu0 0.0
    %1838 = vmatprep.subr.mxu0 0.0
    %1839 = vmatpush1.msra.mxu0 0.0
    %1840 = vmatprep.subr.mxu0 0.0
    %1841 = vmatpush1.msra.mxu0 0.0
    %1842 = vmatprep.subr.mxu0 0.0
    %1843 = vmatpush1.msra.mxu0 0.0
    %1844 = vmatprep.subr.mxu0 0.0
    %1845 = vmatpush1.msra.mxu0 0.0
    %1846 = vmatprep.subr.mxu0 0.0
    %1847 = vmatpush1.msra.mxu0 0.0
    %1848 = vmatprep.subr.mxu0 0.0
    %1849 = vmatpush1.msra.mxu0 0.0
    %1850 = vmatprep.subr.mxu0 0.0
    %1851 = vmatpush1.msra.mxu0 0.0
    %1852 = vmatprep.subr.mxu0 0.0
    %1853 = vmatpush1.msra.mxu0 0.0
    %1854 = vmatprep.subr.mxu0 0.0
    %1855 = vmatpush1.msra.mxu0 0.0
    %1856 = vmatprep.subr.mxu0 0.0
    %1857 = vmatpush1.msra.mxu0 0.0
    %1858 = vmatprep.subr.mxu0 0.0
    %1859 = vmatpush1.msra.mxu0 0.0
    %1860 = vmatprep.subr.mxu0 0.0
    %1861 = vmatpush1.msra.mxu0 0.0
    %1862 = vmatprep.subr.mxu0 0.0
    %1863 = vmatpush1.msra.mxu0 0.0
    %1864 = vmatprep.subr.mxu0 0.0
    %1865 = vmatpush1.msra.mxu0 0.0
    %1866 = vmatprep.subr.mxu0 0.0
    %1867 = vmatpush1.msra.mxu0 0.0
    %1868 = vmatprep.subr.mxu0 0.0
    %1869 = vmatpush1.msra.mxu0 0.0
    %1870 = vmatprep.subr.mxu0 0.0
    %1871 = vmatpush1.msra.mxu0 0.0
    %1872 = vmatprep.subr.mxu0 0.0
    %1873 = vmatpush1.msra.mxu0 0.0
    %1874 = vmatprep.subr.mxu0 0.0
    %1875 = vmatpush1.msra.mxu0 0.0
    %1876 = vmatprep.subr.mxu0 0.0
    %1877 = vmatpush1.msra.mxu0 0.0
    %1878 = vmatprep.subr.mxu0 0.0
    %1879 = vmatpush1.msra.mxu0 0.0
    %1880 = vmatprep.subr.mxu0 0.0
    %1881 = vmatpush1.msra.mxu0 0.0
    %1882 = vmatprep.subr.mxu0 0.0
    %1883 = vmatpush1.msra.mxu0 0.0
    %1884 = vmatprep.subr.mxu0 0.0
    %1885 = vmatpush1.msra.mxu0 0.0
    %1886 = vmatprep.subr.mxu0 0.0
    %1887 = vmatpush1.msra.mxu0 0.0
    %1888 = vmatprep.mubr.f32.mxu0 0.0
    %1889 = vmatmul.mubr.f32.gmra.mrb[0].mxu0 %v1822
    %v1890 = vpop.f32.mrb[0].mxu0
    %v1891 = vadd.f32 0.0, %v1890
    %v1892 = vpop.f32.mrb[0].mxu0
    %1893 = vdwg.mxu0
    %v1895 = vsel %vm170, %v1651, 0
    %1897 = vmatprep.subr.mxu0 0.0
    %1898 = vmatpush1.msra.mxu0 %v529
    %1899 = vmatprep.subr.mxu0 0.0
    %1900 = vmatpush1.msra.mxu0 %v530
    %1901 = vmatprep.subr.mxu0 0.0
    %1902 = vmatpush1.msra.mxu0 0.0
    %1903 = vmatprep.subr.mxu0 0.0
    %1904 = vmatpush1.msra.mxu0 0.0
    %1905 = vmatprep.subr.mxu0 0.0
    %1906 = vmatpush1.msra.mxu0 0.0
    %1907 = vmatprep.subr.mxu0 0.0
    %1908 = vmatpush1.msra.mxu0 0.0
    %1909 = vmatprep.subr.mxu0 0.0
    %1910 = vmatpush1.msra.mxu0 0.0
    %1911 = vmatprep.subr.mxu0 0.0
    %1912 = vmatpush1.msra.mxu0 0.0
    %1913 = vmatprep.subr.mxu0 0.0
    %1914 = vmatpush1.msra.mxu0 0.0
    %1915 = vmatprep.subr.mxu0 0.0
    %1916 = vmatpush1.msra.mxu0 0.0
    %1917 = vmatprep.subr.mxu0 0.0
    %1918 = vmatpush1.msra.mxu0 0.0
    %1919 = vmatprep.subr.mxu0 0.0
    %1920 = vmatpush1.msra.mxu0 0.0
    %1921 = vmatprep.subr.mxu0 0.0
    %1922 = vmatpush1.msra.mxu0 0.0
    %1923 = vmatprep.subr.mxu0 0.0
    %1924 = vmatpush1.msra.mxu0 0.0
    %1925 = vmatprep.subr.mxu0 0.0
    %1926 = vmatpush1.msra.mxu0 0.0
    %1927 = vmatprep.subr.mxu0 0.0
    %1928 = vmatpush1.msra.mxu0 0.0
    %1929 = vmatprep.subr.mxu0 0.0
    %1930 = vmatpush1.msra.mxu0 0.0
    %1931 = vmatprep.subr.mxu0 0.0
    %1932 = vmatpush1.msra.mxu0 0.0
    %1933 = vmatprep.subr.mxu0 0.0
    %1934 = vmatpush1.msra.mxu0 0.0
    %1935 = vmatprep.subr.mxu0 0.0
    %1936 = vmatpush1.msra.mxu0 0.0
    %1937 = vmatprep.subr.mxu0 0.0
    %1938 = vmatpush1.msra.mxu0 0.0
    %1939 = vmatprep.subr.mxu0 0.0
    %1940 = vmatpush1.msra.mxu0 0.0
    %1941 = vmatprep.subr.mxu0 0.0
    %1942 = vmatpush1.msra.mxu0 0.0
    %1943 = vmatprep.subr.mxu0 0.0
    %1944 = vmatpush1.msra.mxu0 0.0
    %1945 = vmatprep.subr.mxu0 0.0
    %1946 = vmatpush1.msra.mxu0 0.0
    %1947 = vmatprep.subr.mxu0 0.0
    %1948 = vmatpush1.msra.mxu0 0.0
    %1949 = vmatprep.subr.mxu0 0.0
    %1950 = vmatpush1.msra.mxu0 0.0
    %1951 = vmatprep.subr.mxu0 0.0
    %1952 = vmatpush1.msra.mxu0 0.0
    %1953 = vmatprep.subr.mxu0 0.0
    %1954 = vmatpush1.msra.mxu0 0.0
    %1955 = vmatprep.subr.mxu0 0.0
    %1956 = vmatpush1.msra.mxu0 0.0
    %1957 = vmatprep.subr.mxu0 0.0
    %1958 = vmatpush1.msra.mxu0 0.0
    %1959 = vmatprep.subr.mxu0 0.0
    %1960 = vmatpush1.msra.mxu0 0.0
    %1961 = vmatprep.mubr.f32.mxu0 0.0
    %1962 = vmatmul.mubr.f32.gmra.mrb[0].mxu0 %v1895
    %v1963 = vpop.f32.mrb[0].mxu0
    %v1964 = vadd.f32 %v1891, %v1963
    %v1965 = vpop.f32.mrb[0].mxu0
    %1966 = vdwg.mxu0
    %1967 = vrot.lane.b32.xlu0 %v346, 96
    %v1968 = vpop.permute.xlu0 %1967
    %1969 = vrot.lane.b32.xlu0 %v436, 96
    %v1970 = vpop.permute.xlu0 %1969
    %v1971 = vsel %vm170, %v1968, 0
    %v1973 = vsel %vm170, %v1970, 0
    %1975 = vmatprep.subr.mxu0 0.0
    %1976 = vmatpush1.xpose.msra.mxu0 %v1973
    %1977 = vmatprep.subr.mxu0 0.0
    %1978 = vmatpush1.xpose.msra.mxu0 0.0
    %1979 = vmatprep.subr.mxu0 0.0
    %1980 = vmatpush1.xpose.msra.mxu0 0.0
    %1981 = vmatprep.subr.mxu0 0.0
    %1982 = vmatpush1.xpose.msra.mxu0 0.0
    %1983 = vmatprep.subr.mxu0 0.0
    %1984 = vmatpush1.xpose.msra.mxu0 0.0
    %1985 = vmatprep.subr.mxu0 0.0
    %1986 = vmatpush1.xpose.msra.mxu0 0.0
    %1987 = vmatprep.subr.mxu0 0.0
    %1988 = vmatpush1.xpose.msra.mxu0 0.0
    %1989 = vmatprep.subr.mxu0 0.0
    %1990 = vmatpush1.xpose.msra.mxu0 0.0
    %1991 = vmatprep.subr.mxu0 0.0
    %1992 = vmatpush1.xpose.msra.mxu0 0.0
    %1993 = vmatprep.subr.mxu0 0.0
    %1994 = vmatpush1.xpose.msra.mxu0 0.0
    %1995 = vmatprep.subr.mxu0 0.0
    %1996 = vmatpush1.xpose.msra.mxu0 0.0
    %1997 = vmatprep.subr.mxu0 0.0
    %1998 = vmatpush1.xpose.msra.mxu0 0.0
    %1999 = vmatprep.subr.mxu0 0.0
    %2000 = vmatpush1.xpose.msra.mxu0 0.0
    %2001 = vmatprep.subr.mxu0 0.0
    %2002 = vmatpush1.xpose.msra.mxu0 0.0
    %2003 = vmatprep.subr.mxu0 0.0
    %2004 = vmatpush1.xpose.msra.mxu0 0.0
    %2005 = vmatprep.subr.mxu0 0.0
    %2006 = vmatpush1.xpose.msra.mxu0 0.0
    %2007 = vmatprep.subr.mxu0 0.0
    %2008 = vmatpush1.xpose.msra.mxu0 0.0
    %2009 = vmatprep.subr.mxu0 0.0
    %2010 = vmatpush1.xpose.msra.mxu0 0.0
    %2011 = vmatprep.subr.mxu0 0.0
    %2012 = vmatpush1.xpose.msra.mxu0 0.0
    %2013 = vmatprep.subr.mxu0 0.0
    %2014 = vmatpush1.xpose.msra.mxu0 0.0
    %2015 = vmatprep.subr.mxu0 0.0
    %2016 = vmatpush1.xpose.msra.mxu0 0.0
    %2017 = vmatprep.subr.mxu0 0.0
    %2018 = vmatpush1.xpose.msra.mxu0 0.0
    %2019 = vmatprep.subr.mxu0 0.0
    %2020 = vmatpush1.xpose.msra.mxu0 0.0
    %2021 = vmatprep.subr.mxu0 0.0
    %2022 = vmatpush1.xpose.msra.mxu0 0.0
    %2023 = vmatprep.subr.mxu0 0.0
    %2024 = vmatpush1.xpose.msra.mxu0 0.0
    %2025 = vmatprep.subr.mxu0 0.0
    %2026 = vmatpush1.xpose.msra.mxu0 0.0
    %2027 = vmatprep.subr.mxu0 0.0
    %2028 = vmatpush1.xpose.msra.mxu0 0.0
    %2029 = vmatprep.subr.mxu0 0.0
    %2030 = vmatpush1.xpose.msra.mxu0 0.0
    %2031 = vmatprep.subr.mxu0 0.0
    %2032 = vmatpush1.xpose.msra.mxu0 0.0
    %2033 = vmatprep.subr.mxu0 0.0
    %2034 = vmatpush1.xpose.msra.mxu0 0.0
    %2035 = vmatprep.subr.mxu0 0.0
    %2036 = vmatpush1.xpose.msra.mxu0 0.0
    %2037 = vmatprep.subr.mxu0 0.0
    %2038 = vmatpush1.xpose.msra.mxu0 0.0
    %2039 = vmatprep.mubr.f32.mxu0 0.0
    %2040 = vmatmul.mubr.f32.gmra.mrb[0].mxu0 %v1971
    %v2041 = vpop.f32.mrb[0].mxu0
    %v2042 = vadd.f32 0.0, %v2041
    %v2043 = vpop.f32.mrb[0].mxu0
    %2044 = vdwg.mxu0
    %v2045 = vmul.f32 %v2042, 0.25
    %v2046 = vsel %vm614, %v2045, -inf
    %2047 = vmax.xlane.f32.xlu0 %v2046
    %v2048 = vpop.xlane.xlu0 %2047
    %v2049 = vsub.f32 %v2045, %v2048
    %v2050 = vmul.f32 %v2049, 1.442695
    %v2051 = vpow.pop %v2050
    %v2052 = vsel %vm614, %v2051, 0.0
    %2053 = vadd.xlane.f32.xlu0 %v2052
    %v2054 = vpop.xlane.xlu0 %2053
    %v2055 = vrcp.pop %v2054
    %v2056 = vmul.f32 %v2051, %v2055
    %2057 = vrot.lane.b32.xlu0 %v526, 96
    %v2058 = vpop.permute.xlu0 %2057
    %v2061 = vsel %vm614, %v2056, 0
    %2063 = vmatprep.subr.mxu0 0.0
    %2064 = vmatpush1.msra.mxu0 %v2058
    %2065 = vmatprep.subr.mxu0 0.0
    %2066 = vmatpush1.msra.mxu0 0.0
    %2067 = vmatprep.subr.mxu0 0.0
    %2068 = vmatpush1.msra.mxu0 0.0
    %2069 = vmatprep.subr.mxu0 0.0
    %2070 = vmatpush1.msra.mxu0 0.0
    %2071 = vmatprep.subr.mxu0 0.0
    %2072 = vmatpush1.msra.mxu0 0.0
    %2073 = vmatprep.subr.mxu0 0.0
    %2074 = vmatpush1.msra.mxu0 0.0
    %2075 = vmatprep.subr.mxu0 0.0
    %2076 = vmatpush1.msra.mxu0 0.0
    %2077 = vmatprep.subr.mxu0 0.0
    %2078 = vmatpush1.msra.mxu0 0.0
    %2079 = vmatprep.subr.mxu0 0.0
    %2080 = vmatpush1.msra.mxu0 0.0
    %2081 = vmatprep.subr.mxu0 0.0
    %2082 = vmatpush1.msra.mxu0 0.0
    %2083 = vmatprep.subr.mxu0 0.0
    %2084 = vmatpush1.msra.mxu0 0.0
    %2085 = vmatprep.subr.mxu0 0.0
    %2086 = vmatpush1.msra.mxu0 0.0
    %2087 = vmatprep.subr.mxu0 0.0
    %2088 = vmatpush1.msra.mxu0 0.0
    %2089 = vmatprep.subr.mxu0 0.0
    %2090 = vmatpush1.msra.mxu0 0.0
    %2091 = vmatprep.subr.mxu0 0.0
    %2092 = vmatpush1.msra.mxu0 0.0
    %2093 = vmatprep.subr.mxu0 0.0
    %2094 = vmatpush1.msra.mxu0 0.0
    %2095 = vmatprep.subr.mxu0 0.0
    %2096 = vmatpush1.msra.mxu0 0.0
    %2097 = vmatprep.subr.mxu0 0.0
    %2098 = vmatpush1.msra.mxu0 0.0
    %2099 = vmatprep.subr.mxu0 0.0
    %2100 = vmatpush1.msra.mxu0 0.0
    %2101 = vmatprep.subr.mxu0 0.0
    %2102 = vmatpush1.msra.mxu0 0.0
    %2103 = vmatprep.subr.mxu0 0.0
    %2104 = vmatpush1.msra.mxu0 0.0
    %2105 = vmatprep.subr.mxu0 0.0
    %2106 = vmatpush1.msra.mxu0 0.0
    %2107 = vmatprep.subr.mxu0 0.0
    %2108 = vmatpush1.msra.mxu0 0.0
    %2109 = vmatprep.subr.mxu0 0.0
    %2110 = vmatpush1.msra.mxu0 0.0
    %2111 = vmatprep.subr.mxu0 0.0
    %2112 = vmatpush1.msra.mxu0 0.0
    %2113 = vmatprep.subr.mxu0 0.0
    %2114 = vmatpush1.msra.mxu0 0.0
    %2115 = vmatprep.subr.mxu0 0.0
    %2116 = vmatpush1.msra.mxu0 0.0
    %2117 = vmatprep.subr.mxu0 0.0
    %2118 = vmatpush1.msra.mxu0 0.0
    %2119 = vmatprep.subr.mxu0 0.0
    %2120 = vmatpush1.msra.mxu0 0.0
    %2121 = vmatprep.subr.mxu0 0.0
    %2122 = vmatpush1.msra.mxu0 0.0
    %2123 = vmatprep.subr.mxu0 0.0
    %2124 = vmatpush1.msra.mxu0 0.0
    %2125 = vmatprep.subr.mxu0 0.0
    %2126 = vmatpush1.msra.mxu0 0.0
    %2127 = vmatprep.mubr.f32.mxu0 0.0
    %2128 = vmatmul.mubr.f32.gmra.mrb[0].mxu0 %v2061
    %v2129 = vpop.f32.mrb[0].mxu0
    %v2130 = vadd.f32 0.0, %v2129
    %v2131 = vpop.f32.mrb[0].mxu0
    %2132 = vdwg.mxu0
    %v2134 = vsel %vm170, %v2130, 0
    %2136 = vmatprep.subr.mxu0 0.0
    %2137 = vmatpush1.msra.mxu0 %v533
    %2138 = vmatprep.subr.mxu0 0.0
    %2139 = vmatpush1.msra.mxu0 %v534
    %2140 = vmatprep.subr.mxu0 0.0
    %2141 = vmatpush1.msra.mxu0 0.0
    %2142 = vmatprep.subr.mxu0 0.0
    %2143 = vmatpush1.msra.mxu0 0.0
    %2144 = vmatprep.subr.mxu0 0.0
    %2145 = vmatpush1.msra.mxu0 0.0
    %2146 = vmatprep.subr.mxu0 0.0
    %2147 = vmatpush1.msra.mxu0 0.0
    %2148 = vmatprep.subr.mxu0 0.0
    %2149 = vmatpush1.msra.mxu0 0.0
    %2150 = vmatprep.subr.mxu0 0.0
    %2151 = vmatpush1.msra.mxu0 0.0
    %2152 = vmatprep.subr.mxu0 0.0
    %2153 = vmatpush1.msra.mxu0 0.0
    %2154 = vmatprep.subr.mxu0 0.0
    %2155 = vmatpush1.msra.mxu0 0.0
    %2156 = vmatprep.subr.mxu0 0.0
    %2157 = vmatpush1.msra.mxu0 0.0
    %2158 = vmatprep.subr.mxu0 0.0
    %2159 = vmatpush1.msra.mxu0 0.0
    %2160 = vmatprep.subr.mxu0 0.0
    %2161 = vmatpush1.msra.mxu0 0.0
    %2162 = vmatprep.subr.mxu0 0.0
    %2163 = vmatpush1.msra.mxu0 0.0
    %2164 = vmatprep.subr.mxu0 0.0
    %2165 = vmatpush1.msra.mxu0 0.0
    %2166 = vmatprep.subr.mxu0 0.0
    %2167 = vmatpush1.msra.mxu0 0.0
    %2168 = vmatprep.subr.mxu0 0.0
    %2169 = vmatpush1.msra.mxu0 0.0
    %2170 = vmatprep.subr.mxu0 0.0
    %2171 = vmatpush1.msra.mxu0 0.0
    %2172 = vmatprep.subr.mxu0 0.0
    %2173 = vmatpush1.msra.mxu0 0.0
    %2174 = vmatprep.subr.mxu0 0.0
    %2175 = vmatpush1.msra.mxu0 0.0
    %2176 = vmatprep.subr.mxu0 0.0
    %2177 = vmatpush1.msra.mxu0 0.0
    %2178 = vmatprep.subr.mxu0 0.0
    %2179 = vmatpush1.msra.mxu0 0.0
    %2180 = vmatprep.subr.mxu0 0.0
    %2181 = vmatpush1.msra.mxu0 0.0
    %2182 = vmatprep.subr.mxu0 0.0
    %2183 = vmatpush1.msra.mxu0 0.0
    %2184 = vmatprep.subr.mxu0 0.0
    %2185 = vmatpush1.msra.mxu0 0.0
    %2186 = vmatprep.subr.mxu0 0.0
    %2187 = vmatpush1.msra.mxu0 0.0
    %2188 = vmatprep.subr.mxu0 0.0
    %2189 = vmatpush1.msra.mxu0 0.0
    %2190 = vmatprep.subr.mxu0 0.0
    %2191 = vmatpush1.msra.mxu0 0.0
    %2192 = vmatprep.subr.mxu0 0.0
    %2193 = vmatpush1.msra.mxu0 0.0
    %2194 = vmatprep.subr.mxu0 0.0
    %2195 = vmatpush1.msra.mxu0 0.0
    %2196 = vmatprep.subr.mxu0 0.0
    %2197 = vmatpush1.msra.mxu0 0.0
    %2198 = vmatprep.subr.mxu0 0.0
    %2199 = vmatpush1.msra.mxu0 0.0
    %2200 = vmatprep.mubr.f32.mxu0 0.0
    %2201 = vmatmul.mubr.f32.gmra.mrb[0].mxu0 %v2134
    %v2202 = vpop.f32.mrb[0].mxu0
    %v2203 = vadd.f32 0.0, %v2202
    %v2204 = vpop.f32.mrb[0].mxu0
    %2205 = vdwg.mxu0
    %v2206 = vadd.f32 %v1964, %v2203
    %2207 = vrot.lane.b32.xlu0 %v346, 80
    %v2208 = vpop.permute.xlu0 %2207
    %2209 = vrot.lane.b32.xlu0 %v436, 80
    %v2210 = vpop.permute.xlu0 %2209
    %v2211 = vsel %vm170, %v2208, 0
    %v2213 = vsel %vm170, %v2210, 0
    %2215 = vmatprep.subr.mxu0 0.0
    %2216 = vmatpush1.xpose.msra.mxu0 %v2213
    %2217 = vmatprep.subr.mxu0 0.0
    %2218 = vmatpush1.xpose.msra.mxu0 0.0
    %2219 = vmatprep.subr.mxu0 0.0
    %2220 = vmatpush1.xpose.msra.mxu0 0.0
    %2221 = vmatprep.subr.mxu0 0.0
    %2222 = vmatpush1.xpose.msra.mxu0 0.0
    %2223 = vmatprep.subr.mxu0 0.0
    %2224 = vmatpush1.xpose.msra.mxu0 0.0
    %2225 = vmatprep.subr.mxu0 0.0
    %2226 = vmatpush1.xpose.msra.mxu0 0.0
    %2227 = vmatprep.subr.mxu0 0.0
    %2228 = vmatpush1.xpose.msra.mxu0 0.0
    %2229 = vmatprep.subr.mxu0 0.0
    %2230 = vmatpush1.xpose.msra.mxu0 0.0
    %2231 = vmatprep.subr.mxu0 0.0
    %2232 = vmatpush1.xpose.msra.mxu0 0.0
    %2233 = vmatprep.subr.mxu0 0.0
    %2234 = vmatpush1.xpose.msra.mxu0 0.0
    %2235 = vmatprep.subr.mxu0 0.0
    %2236 = vmatpush1.xpose.msra.mxu0 0.0
    %2237 = vmatprep.subr.mxu0 0.0
    %2238 = vmatpush1.xpose.msra.mxu0 0.0
    %2239 = vmatprep.subr.mxu0 0.0
    %2240 = vmatpush1.xpose.msra.mxu0 0.0
    %2241 = vmatprep.subr.mxu0 0.0
    %2242 = vmatpush1.xpose.msra.mxu0 0.0
    %2243 = vmatprep.subr.mxu0 0.0
    %2244 = vmatpush1.xpose.msra.mxu0 0.0
    %2245 = vmatprep.subr.mxu0 0.0
    %2246 = vmatpush1.xpose.msra.mxu0 0.0
    %2247 = vmatprep.subr.mxu0 0.0
    %2248 = vmatpush1.xpose.msra.mxu0 0.0
    %2249 = vmatprep.subr.mxu0 0.0
    %2250 = vmatpush1.xpose.msra.mxu0 0.0
    %2251 = vmatprep.subr.mxu0 0.0
    %2252 = vmatpush1.xpose.msra.mxu0 0.0
    %2253 = vmatprep.subr.mxu0 0.0
    %2254 = vmatpush1.xpose.msra.mxu0 0.0
    %2255 = vmatprep.subr.mxu0 0.0
    %2256 = vmatpush1.xpose.msra.mxu0 0.0
    %2257 = vmatprep.subr.mxu0 0.0
    %2258 = vmatpush1.xpose.msra.mxu0 0.0
    %2259 = vmatprep.subr.mxu0 0.0
    %2260 = vmatpush1.xpose.msra.mxu0 0.0
    %2261 = vmatprep.subr.mxu0 0.0
    %2262 = vmatpush1.xpose.msra.mxu0 0.0
    %2263 = vmatprep.subr.mxu0 0.0
    %2264 = vmatpush1.xpose.msra.mxu0 0.0
    %2265 = vmatprep.subr.mxu0 0.0
    %2266 = vmatpush1.xpose.msra.mxu0 0.0
    %2267 = vmatprep.subr.mxu0 0.0
    %2268 = vmatpush1.xpose.msra.mxu0 0.0
    %2269 = vmatprep.subr.mxu0 0.0
    %2270 = vmatpush1.xpose.msra.mxu0 0.0
    %2271 = vmatprep.subr.mxu0 0.0
    %2272 = vmatpush1.xpose.msra.mxu0 0.0
    %2273 = vmatprep.subr.mxu0 0.0
    %2274 = vmatpush1.xpose.msra.mxu0 0.0
    %2275 = vmatprep.subr.mxu0 0.0
    %2276 = vmatpush1.xpose.msra.mxu0 0.0
    %2277 = vmatprep.subr.mxu0 0.0
    %2278 = vmatpush1.xpose.msra.mxu0 0.0
    %2279 = vmatprep.mubr.f32.mxu0 0.0
    %2280 = vmatmul.mubr.f32.gmra.mrb[0].mxu0 %v2211
    %v2281 = vpop.f32.mrb[0].mxu0
    %v2282 = vadd.f32 0.0, %v2281
    %v2283 = vpop.f32.mrb[0].mxu0
    %2284 = vdwg.mxu0
    %v2285 = vmul.f32 %v2282, 0.25
    %v2286 = vsel %vm614, %v2285, -inf
    %2287 = vmax.xlane.f32.xlu0 %v2286
    %v2288 = vpop.xlane.xlu0 %2287
    %v2289 = vsub.f32 %v2285, %v2288
    %v2290 = vmul.f32 %v2289, 1.442695
    %v2291 = vpow.pop %v2290
    %v2292 = vsel %vm614, %v2291, 0.0
    %2293 = vadd.xlane.f32.xlu0 %v2292
    %v2294 = vpop.xlane.xlu0 %2293
    %v2295 = vrcp.pop %v2294
    %v2296 = vmul.f32 %v2291, %v2295
    %2297 = vrot.lane.b32.xlu0 %v526, 80
    %v2298 = vpop.permute.xlu0 %2297
    %v2301 = vsel %vm614, %v2296, 0
    %2303 = vmatprep.subr.mxu0 0.0
    %2304 = vmatpush1.msra.mxu0 %v2298
    %2305 = vmatprep.subr.mxu0 0.0
    %2306 = vmatpush1.msra.mxu0 0.0
    %2307 = vmatprep.subr.mxu0 0.0
    %2308 = vmatpush1.msra.mxu0 0.0
    %2309 = vmatprep.subr.mxu0 0.0
    %2310 = vmatpush1.msra.mxu0 0.0
    %2311 = vmatprep.subr.mxu0 0.0
    %2312 = vmatpush1.msra.mxu0 0.0
    %2313 = vmatprep.subr.mxu0 0.0
    %2314 = vmatpush1.msra.mxu0 0.0
    %2315 = vmatprep.subr.mxu0 0.0
    %2316 = vmatpush1.msra.mxu0 0.0
    %2317 = vmatprep.subr.mxu0 0.0
    %2318 = vmatpush1.msra.mxu0 0.0
    %2319 = vmatprep.subr.mxu0 0.0
    %2320 = vmatpush1.msra.mxu0 0.0
    %2321 = vmatprep.subr.mxu0 0.0
    %2322 = vmatpush1.msra.mxu0 0.0
    %2323 = vmatprep.subr.mxu0 0.0
    %2324 = vmatpush1.msra.mxu0 0.0
    %2325 = vmatprep.subr.mxu0 0.0
    %2326 = vmatpush1.msra.mxu0 0.0
    %2327 = vmatprep.subr.mxu0 0.0
    %2328 = vmatpush1.msra.mxu0 0.0
    %2329 = vmatprep.subr.mxu0 0.0
    %2330 = vmatpush1.msra.mxu0 0.0
    %2331 = vmatprep.subr.mxu0 0.0
    %2332 = vmatpush1.msra.mxu0 0.0
    %2333 = vmatprep.subr.mxu0 0.0
    %2334 = vmatpush1.msra.mxu0 0.0
    %2335 = vmatprep.subr.mxu0 0.0
    %2336 = vmatpush1.msra.mxu0 0.0
    %2337 = vmatprep.subr.mxu0 0.0
    %2338 = vmatpush1.msra.mxu0 0.0
    %2339 = vmatprep.subr.mxu0 0.0
    %2340 = vmatpush1.msra.mxu0 0.0
    %2341 = vmatprep.subr.mxu0 0.0
    %2342 = vmatpush1.msra.mxu0 0.0
    %2343 = vmatprep.subr.mxu0 0.0
    %2344 = vmatpush1.msra.mxu0 0.0
    %2345 = vmatprep.subr.mxu0 0.0
    %2346 = vmatpush1.msra.mxu0 0.0
    %2347 = vmatprep.subr.mxu0 0.0
    %2348 = vmatpush1.msra.mxu0 0.0
    %2349 = vmatprep.subr.mxu0 0.0
    %2350 = vmatpush1.msra.mxu0 0.0
    %2351 = vmatprep.subr.mxu0 0.0
    %2352 = vmatpush1.msra.mxu0 0.0
    %2353 = vmatprep.subr.mxu0 0.0
    %2354 = vmatpush1.msra.mxu0 0.0
    %2355 = vmatprep.subr.mxu0 0.0
    %2356 = vmatpush1.msra.mxu0 0.0
    %2357 = vmatprep.subr.mxu0 0.0
    %2358 = vmatpush1.msra.mxu0 0.0
    %2359 = vmatprep.subr.mxu0 0.0
    %2360 = vmatpush1.msra.mxu0 0.0
    %2361 = vmatprep.subr.mxu0 0.0
    %2362 = vmatpush1.msra.mxu0 0.0
    %2363 = vmatprep.subr.mxu0 0.0
    %2364 = vmatpush1.msra.mxu0 0.0
    %2365 = vmatprep.subr.mxu0 0.0
    %2366 = vmatpush1.msra.mxu0 0.0
    %2367 = vmatprep.mubr.f32.mxu0 0.0
    %2368 = vmatmul.mubr.f32.gmra.mrb[0].mxu0 %v2301
    %v2369 = vpop.f32.mrb[0].mxu0
    %v2370 = vadd.f32 0.0, %v2369
    %v2371 = vpop.f32.mrb[0].mxu0
    %2372 = vdwg.mxu0
    %v2374 = vsel %vm170, %v2370, 0
    %2376 = vmatprep.subr.mxu0 0.0
    %2377 = vmatpush1.msra.mxu0 %v535
    %2378 = vmatprep.subr.mxu0 0.0
    %2379 = vmatpush1.msra.mxu0 %v536
    %2380 = vmatprep.subr.mxu0 0.0
    %2381 = vmatpush1.msra.mxu0 0.0
    %2382 = vmatprep.subr.mxu0 0.0
    %2383 = vmatpush1.msra.mxu0 0.0
    %2384 = vmatprep.subr.mxu0 0.0
    %2385 = vmatpush1.msra.mxu0 0.0
    %2386 = vmatprep.subr.mxu0 0.0
    %2387 = vmatpush1.msra.mxu0 0.0
    %2388 = vmatprep.subr.mxu0 0.0
    %2389 = vmatpush1.msra.mxu0 0.0
    %2390 = vmatprep.subr.mxu0 0.0
    %2391 = vmatpush1.msra.mxu0 0.0
    %2392 = vmatprep.subr.mxu0 0.0
    %2393 = vmatpush1.msra.mxu0 0.0
    %2394 = vmatprep.subr.mxu0 0.0
    %2395 = vmatpush1.msra.mxu0 0.0
    %2396 = vmatprep.subr.mxu0 0.0
    %2397 = vmatpush1.msra.mxu0 0.0
    %2398 = vmatprep.subr.mxu0 0.0
    %2399 = vmatpush1.msra.mxu0 0.0
    %2400 = vmatprep.subr.mxu0 0.0
    %2401 = vmatpush1.msra.mxu0 0.0
    %2402 = vmatprep.subr.mxu0 0.0
    %2403 = vmatpush1.msra.mxu0 0.0
    %2404 = vmatprep.subr.mxu0 0.0
    %2405 = vmatpush1.msra.mxu0 0.0
    %2406 = vmatprep.subr.mxu0 0.0
    %2407 = vmatpush1.msra.mxu0 0.0
    %2408 = vmatprep.subr.mxu0 0.0
    %2409 = vmatpush1.msra.mxu0 0.0
    %2410 = vmatprep.subr.mxu0 0.0
    %2411 = vmatpush1.msra.mxu0 0.0
    %2412 = vmatprep.subr.mxu0 0.0
    %2413 = vmatpush1.msra.mxu0 0.0
    %2414 = vmatprep.subr.mxu0 0.0
    %2415 = vmatpush1.msra.mxu0 0.0
    %2416 = vmatprep.subr.mxu0 0.0
    %2417 = vmatpush1.msra.mxu0 0.0
    %2418 = vmatprep.subr.mxu0 0.0
    %2419 = vmatpush1.msra.mxu0 0.0
    %2420 = vmatprep.subr.mxu0 0.0
    %2421 = vmatpush1.msra.mxu0 0.0
    %2422 = vmatprep.subr.mxu0 0.0
    %2423 = vmatpush1.msra.mxu0 0.0
    %2424 = vmatprep.subr.mxu0 0.0
    %2425 = vmatpush1.msra.mxu0 0.0
    %2426 = vmatprep.subr.mxu0 0.0
    %2427 = vmatpush1.msra.mxu0 0.0
    %2428 = vmatprep.subr.mxu0 0.0
    %2429 = vmatpush1.msra.mxu0 0.0
    %2430 = vmatprep.subr.mxu0 0.0
    %2431 = vmatpush1.msra.mxu0 0.0
    %2432 = vmatprep.subr.mxu0 0.0
    %2433 = vmatpush1.msra.mxu0 0.0
    %2434 = vmatprep.subr.mxu0 0.0
    %2435 = vmatpush1.msra.mxu0 0.0
    %2436 = vmatprep.subr.mxu0 0.0
    %2437 = vmatpush1.msra.mxu0 0.0
    %2438 = vmatprep.subr.mxu0 0.0
    %2439 = vmatpush1.msra.mxu0 0.0
    %2440 = vmatprep.mubr.f32.mxu0 0.0
    %2441 = vmatmul.mubr.f32.gmra.mrb[0].mxu0 %v2374
    %v2442 = vpop.f32.mrb[0].mxu0
    %v2443 = vadd.f32 0.0, %v2442
    %v2444 = vpop.f32.mrb[0].mxu0
    %2445 = vdwg.mxu0
    %v2446 = vadd.f32 %v2206, %v2443
    %2447 = vst.msk [vmem:[#allocation2 + $0x8] sm:$0xff] %vm267, %v2446
    %v2448 = vld [vmem:[#allocation2] sm:$0xff]
    %v2449 = vld [vmem:[#allocation2 + $0x8] sm:$0xff]
    %v2450 = vld [vmem:[%s21] sm:$0x1]
    %v2452 = vlaneseq
    %v2453 = vshrl.u32 %v2452, 7
    %v2454 = vsub.s32 0, %v2453
    %v2455 = vrot.slane %v2450, %v2454
    %v2457 = vadd.f32 %v2448, %v2455
    %v2458 = vadd.f32 %v2449, %v2455
    %v2459 = vadd.f32 %v244, %v2457
    %v2460 = vadd.f32 %v249, %v2458
    %v2461 = vld [vmem:[%s23] sm:$0x1]
    %v2462 = vld [vmem:[%s25] sm:$0x1]
    %v2463 = vsel %vm267, %v2459, 0.0
    %2464 = vadd.xlane.f32.xlu0 %v2463
    %v2465 = vpop.xlane.xlu0 %2464
    %v2466 = vsel %vm267, %v2460, 0.0
    %2467 = vadd.xlane.f32.xlu0 %v2466
    %v2468 = vpop.xlane.xlu0 %2467
    %v2469 = vrcp.pop 64.0
    %v2470 = vmul.f32 %v2465, %v2469
    %v2471 = vmul.f32 %v2468, %v2469
    %v2472 = vsub.f32 %v2459, %v2470
    %v2473 = vsub.f32 %v2460, %v2471
    %v2474 = vmul.f32 %v2472, %v2472
    %v2475 = vmul.f32 %v2473, %v2473
    %v2476 = vsel %vm267, %v2474, 0.0
    %2477 = vadd.xlane.f32.xlu0 %v2476
    %v2478 = vpop.xlane.xlu0 %2477
    %v2479 = vsel %vm267, %v2475, 0.0
    %2480 = vadd.xlane.f32.xlu0 %v2479
    %v2481 = vpop.xlane.xlu0 %2480
    %v2482 = vmul.f32 %v2478, %v2469
    %v2483 = vmul.f32 %v2481, %v2469
    %v2484 = vadd.f32 %v2482, 1e-05
    %v2485 = vadd.f32 %v2483, 1e-05
    %v2486 = vrsqrt.pop %v2484
    %v2487 = vrsqrt.pop %v2485
    %v2488 = vmul.f32 %v2472, %v2486
    %v2489 = vmul.f32 %v2473, %v2487
    %v2491 = vlaneseq
    %v2492 = vshrl.u32 %v2491, 7
    %v2493 = vsub.s32 0, %v2492
    %v2494 = vrot.slane %v2461, %v2493
    %v2496 = vmul.f32 %v2488, %v2494
    %v2497 = vmul.f32 %v2489, %v2494
    %v2499 = vlaneseq
    %v2500 = vshrl.u32 %v2499, 7
    %v2501 = vsub.s32 0, %v2500
    %v2502 = vrot.slane %v2462, %v2501
    %v2504 = vadd.f32 %v2496, %v2502
    %v2505 = vadd.f32 %v2497, %v2502
    %v2506 = vld [vmem:[%s27] sm:$0xff]
    %v2507 = vld [vmem:[%s27 + $0x8] sm:$0xff]
    %v2508 = vld [vmem:[%s27 + $0x10] sm:$0xff]
    %v2509 = vld [vmem:[%s27 + $0x18] sm:$0xff]
    %v2510 = vld [vmem:[%s27 + $0x20] sm:$0xff]
    %v2511 = vld [vmem:[%s27 + $0x28] sm:$0xff]
    %v2512 = vld [vmem:[%s27 + $0x30] sm:$0xff]
    %v2513 = vld [vmem:[%s27 + $0x38] sm:$0xff]
    %v2514 = vld [vmem:[%s27 + $0x40] sm:$0xff]
    %v2515 = vld [vmem:[%s27 + $0x48] sm:$0xff]
    %v2516 = vld [vmem:[%s27 + $0x50] sm:$0xff]
    %v2517 = vld [vmem:[%s27 + $0x58] sm:$0xff]
    %v2518 = vld [vmem:[%s27 + $0x60] sm:$0xff]
    %v2519 = vld [vmem:[%s27 + $0x68] sm:$0xff]
    %v2520 = vld [vmem:[%s27 + $0x70] sm:$0xff]
    %v2521 = vld [vmem:[%s27 + $0x78] sm:$0xff]
    %v2522 = vld [vmem:[%s27 + $0x80] sm:$0xff]
    %v2523 = vld [vmem:[%s27 + $0x88] sm:$0xff]
    %v2524 = vld [vmem:[%s27 + $0x90] sm:$0xff]
    %v2525 = vld [vmem:[%s27 + $0x98] sm:$0xff]
    %v2526 = vld [vmem:[%s27 + $0xa0] sm:$0xff]
    %v2527 = vld [vmem:[%s27 + $0xa8] sm:$0xff]
    %v2528 = vld [vmem:[%s27 + $0xb0] sm:$0xff]
    %v2529 = vld [vmem:[%s27 + $0xb8] sm:$0xff]
    %v2530 = vld [vmem:[%s27 + $0xc0] sm:$0xff]
    %v2531 = vld [vmem:[%s27 + $0xc8] sm:$0xff]
    %v2532 = vld [vmem:[%s27 + $0xd0] sm:$0xff]
    %v2533 = vld [vmem:[%s27 + $0xd8] sm:$0xff]
    %v2534 = vld [vmem:[%s27 + $0xe0] sm:$0xff]
    %v2535 = vld [vmem:[%s27 + $0xe8] sm:$0xff]
    %v2536 = vld [vmem:[%s27 + $0xf0] sm:$0xff]
    %v2537 = vld [vmem:[%s27 + $0xf8] sm:$0xff]
    %v2538 = vld [vmem:[%s27 + $0x100] sm:$0xff]
    %v2539 = vld [vmem:[%s27 + $0x108] sm:$0xff]
    %v2540 = vld [vmem:[%s27 + $0x110] sm:$0xff]
    %v2541 = vld [vmem:[%s27 + $0x118] sm:$0xff]
    %v2542 = vld [vmem:[%s27 + $0x120] sm:$0xff]
    %v2543 = vld [vmem:[%s27 + $0x128] sm:$0xff]
    %v2544 = vld [vmem:[%s27 + $0x130] sm:$0xff]
    %v2545 = vld [vmem:[%s27 + $0x138] sm:$0xff]
    %v2546 = vld [vmem:[%s27 + $0x140] sm:$0xff]
    %v2547 = vld [vmem:[%s27 + $0x148] sm:$0xff]
    %v2548 = vld [vmem:[%s27 + $0x150] sm:$0xff]
    %v2549 = vld [vmem:[%s27 + $0x158] sm:$0xff]
    %v2550 = vld [vmem:[%s27 + $0x160] sm:$0xff]
    %v2551 = vld [vmem:[%s27 + $0x168] sm:$0xff]
    %v2552 = vld [vmem:[%s27 + $0x170] sm:$0xff]
    %v2553 = vld [vmem:[%s27 + $0x178] sm:$0xff]
    %v2554 = vld [vmem:[%s27 + $0x180] sm:$0xff]
    %v2555 = vld [vmem:[%s27 + $0x188] sm:$0xff]
    %v2556 = vld [vmem:[%s27 + $0x190] sm:$0xff]
    %v2557 = vld [vmem:[%s27 + $0x198] sm:$0xff]
    %v2558 = vld [vmem:[%s27 + $0x1a0] sm:$0xff]
    %v2559 = vld [vmem:[%s27 + $0x1a8] sm:$0xff]
    %v2560 = vld [vmem:[%s27 + $0x1b0] sm:$0xff]
    %v2561 = vld [vmem:[%s27 + $0x1b8] sm:$0xff]
    %v2562 = vld [vmem:[%s27 + $0x1c0] sm:$0xff]
    %v2563 = vld [vmem:[%s27 + $0x1c8] sm:$0xff]
    %v2564 = vld [vmem:[%s27 + $0x1d0] sm:$0xff]
    %v2565 = vld [vmem:[%s27 + $0x1d8] sm:$0xff]
    %v2566 = vld [vmem:[%s27 + $0x1e0] sm:$0xff]
    %v2567 = vld [vmem:[%s27 + $0x1e8] sm:$0xff]
    %v2568 = vld [vmem:[%s27 + $0x1f0] sm:$0xff]
    %v2569 = vld [vmem:[%s27 + $0x1f8] sm:$0xff]
    %v2570 = vld [vmem:[%s27 + $0x200] sm:$0xff]
    %v2571 = vld [vmem:[%s27 + $0x208] sm:$0xff]
    %v2572 = vld [vmem:[%s27 + $0x210] sm:$0xff]
    %v2573 = vld [vmem:[%s27 + $0x218] sm:$0xff]
    %v2574 = vld [vmem:[%s27 + $0x220] sm:$0xff]
    %v2575 = vld [vmem:[%s27 + $0x228] sm:$0xff]
    %v2576 = vld [vmem:[%s27 + $0x230] sm:$0xff]
    %v2577 = vld [vmem:[%s27 + $0x238] sm:$0xff]
    %v2578 = vld [vmem:[%s27 + $0x240] sm:$0xff]
    %v2579 = vld [vmem:[%s27 + $0x248] sm:$0xff]
    %v2580 = vld [vmem:[%s27 + $0x250] sm:$0xff]
    %v2581 = vld [vmem:[%s27 + $0x258] sm:$0xff]
    %v2582 = vld [vmem:[%s27 + $0x260] sm:$0xff]
    %v2583 = vld [vmem:[%s27 + $0x268] sm:$0xff]
    %v2584 = vld [vmem:[%s27 + $0x270] sm:$0xff]
    %v2585 = vld [vmem:[%s27 + $0x278] sm:$0xff]
    %v2586 = vld [vmem:[%s27 + $0x280] sm:$0xff]
    %v2587 = vld [vmem:[%s27 + $0x288] sm:$0xff]
    %v2588 = vld [vmem:[%s27 + $0x290] sm:$0xff]
    %v2589 = vld [vmem:[%s27 + $0x298] sm:$0xff]
    %v2590 = vld [vmem:[%s27 + $0x2a0] sm:$0xff]
    %v2591 = vld [vmem:[%s27 + $0x2a8] sm:$0xff]
    %v2592 = vld [vmem:[%s27 + $0x2b0] sm:$0xff]
    %v2593 = vld [vmem:[%s27 + $0x2b8] sm:$0xff]
    %v2594 = vld [vmem:[%s27 + $0x2c0] sm:$0xff]
    %v2595 = vld [vmem:[%s27 + $0x2c8] sm:$0xff]
    %v2596 = vld [vmem:[%s27 + $0x2d0] sm:$0xff]
    %v2597 = vld [vmem:[%s27 + $0x2d8] sm:$0xff]
    %v2598 = vld [vmem:[%s27 + $0x2e0] sm:$0xff]
    %v2599 = vld [vmem:[%s27 + $0x2e8] sm:$0xff]
    %v2600 = vld [vmem:[%s27 + $0x2f0] sm:$0xff]
    %v2601 = vld [vmem:[%s27 + $0x2f8] sm:$0xff]
    %v2602 = vld [vmem:[%s27 + $0x300] sm:$0xff]
    %v2603 = vld [vmem:[%s27 + $0x308] sm:$0xff]
    %v2604 = vld [vmem:[%s27 + $0x310] sm:$0xff]
    %v2605 = vld [vmem:[%s27 + $0x318] sm:$0xff]
    %v2606 = vld [vmem:[%s27 + $0x320] sm:$0xff]
    %v2607 = vld [vmem:[%s27 + $0x328] sm:$0xff]
    %v2608 = vld [vmem:[%s27 + $0x330] sm:$0xff]
    %v2609 = vld [vmem:[%s27 + $0x338] sm:$0xff]
    %v2610 = vld [vmem:[%s27 + $0x340] sm:$0xff]
    %v2611 = vld [vmem:[%s27 + $0x348] sm:$0xff]
    %v2612 = vld [vmem:[%s27 + $0x350] sm:$0xff]
    %v2613 = vld [vmem:[%s27 + $0x358] sm:$0xff]
    %v2614 = vld [vmem:[%s27 + $0x360] sm:$0xff]
    %v2615 = vld [vmem:[%s27 + $0x368] sm:$0xff]
    %v2616 = vld [vmem:[%s27 + $0x370] sm:$0xff]
    %v2617 = vld [vmem:[%s27 + $0x378] sm:$0xff]
    %v2618 = vld [vmem:[%s27 + $0x380] sm:$0xff]
    %v2619 = vld [vmem:[%s27 + $0x388] sm:$0xff]
    %v2620 = vld [vmem:[%s27 + $0x390] sm:$0xff]
    %v2621 = vld [vmem:[%s27 + $0x398] sm:$0xff]
    %v2622 = vld [vmem:[%s27 + $0x3a0] sm:$0xff]
    %v2623 = vld [vmem:[%s27 + $0x3a8] sm:$0xff]
    %v2624 = vld [vmem:[%s27 + $0x3b0] sm:$0xff]
    %v2625 = vld [vmem:[%s27 + $0x3b8] sm:$0xff]
    %v2626 = vld [vmem:[%s27 + $0x3c0] sm:$0xff]
    %v2627 = vld [vmem:[%s27 + $0x3c8] sm:$0xff]
    %v2628 = vld [vmem:[%s27 + $0x3d0] sm:$0xff]
    %v2629 = vld [vmem:[%s27 + $0x3d8] sm:$0xff]
    %v2630 = vld [vmem:[%s27 + $0x3e0] sm:$0xff]
    %v2631 = vld [vmem:[%s27 + $0x3e8] sm:$0xff]
    %v2632 = vld [vmem:[%s27 + $0x3f0] sm:$0xff]
    %v2633 = vld [vmem:[%s27 + $0x3f8] sm:$0xff]
    %v2634 = vld [vmem:[%s29] sm:$0xff]
    %v2635 = vld [vmem:[%s29 + $0x8] sm:$0xff]
    %v2638 = vlaneseq
    %v2639 = vshrl.u32 %v2638, 7
    %v2640 = vsub.s32 0, %v2639
    %v2641 = vrot.slane %v2634, %v2640
    %v2642 = vlaneseq
    %v2643 = vshrl.u32 %v2642, 7
    %v2644 = vsub.s32 1, %v2643
    %v2645 = vrot.slane %v2634, %v2644
    %v2646 = vlaneseq
    %v2647 = vshrl.u32 %v2646, 7
    %v2648 = vsub.s32 2, %v2647
    %v2649 = vrot.slane %v2634, %v2648
    %v2650 = vlaneseq
    %v2651 = vshrl.u32 %v2650, 7
    %v2652 = vsub.s32 3, %v2651
    %v2653 = vrot.slane %v2634, %v2652
    %v2654 = vlaneseq
    %v2655 = vshrl.u32 %v2654, 7
    %v2656 = vsub.s32 4, %v2655
    %v2657 = vrot.slane %v2634, %v2656
    %v2658 = vlaneseq
    %v2659 = vshrl.u32 %v2658, 7
    %v2660 = vsub.s32 5, %v2659
    %v2661 = vrot.slane %v2634, %v2660
    %v2662 = vlaneseq
    %v2663 = vshrl.u32 %v2662, 7
    %v2664 = vsub.s32 6, %v2663
    %v2665 = vrot.slane %v2634, %v2664
    %v2666 = vlaneseq
    %v2667 = vshrl.u32 %v2666, 7
    %v2668 = vsub.s32 7, %v2667
    %v2669 = vrot.slane %v2634, %v2668
    %v2670 = vlaneseq
    %v2671 = vshrl.u32 %v2670, 7
    %v2672 = vsub.s32 0, %v2671
    %v2673 = vrot.slane %v2635, %v2672
    %v2674 = vlaneseq
    %v2675 = vshrl.u32 %v2674, 7
    %v2676 = vsub.s32 1, %v2675
    %v2677 = vrot.slane %v2635, %v2676
    %v2678 = vlaneseq
    %v2679 = vshrl.u32 %v2678, 7
    %v2680 = vsub.s32 2, %v2679
    %v2681 = vrot.slane %v2635, %v2680
    %v2682 = vlaneseq
    %v2683 = vshrl.u32 %v2682, 7
    %v2684 = vsub.s32 3, %v2683
    %v2685 = vrot.slane %v2635, %v2684
    %v2686 = vlaneseq
    %v2687 = vshrl.u32 %v2686, 7
    %v2688 = vsub.s32 4, %v2687
    %v2689 = vrot.slane %v2635, %v2688
    %v2690 = vlaneseq
    %v2691 = vshrl.u32 %v2690, 7
    %v2692 = vsub.s32 5, %v2691
    %v2693 = vrot.slane %v2635, %v2692
    %v2694 = vlaneseq
    %v2695 = vshrl.u32 %v2694, 7
    %v2696 = vsub.s32 6, %v2695
    %v2697 = vrot.slane %v2635, %v2696
    %v2698 = vlaneseq
    %v2699 = vshrl.u32 %v2698, 7
    %v2700 = vsub.s32 7, %v2699
    %v2701 = vrot.slane %v2635, %v2700
    %v2719 = vsel %vm267, %v2504, 0
    %v2722 = vsel %vm267, %v2505, 0
    %2724 = vmatprep.subr.mxu0 %v2507
    %2725 = vmatpush1.msra.mxu0 %v2506
    %2726 = vmatprep.subr.mxu0 %v2523
    %2727 = vmatpush1.msra.mxu0 %v2522
    %2728 = vmatprep.subr.mxu0 %v2539
    %2729 = vmatpush1.msra.mxu0 %v2538
    %2730 = vmatprep.subr.mxu0 %v2555
    %2731 = vmatpush1.msra.mxu0 %v2554
    %2732 = vmatprep.subr.mxu0 %v2571
    %2733 = vmatpush1.msra.mxu0 %v2570
    %2734 = vmatprep.subr.mxu0 %v2587
    %2735 = vmatpush1.msra.mxu0 %v2586
    %2736 = vmatprep.subr.mxu0 %v2603
    %2737 = vmatpush1.msra.mxu0 %v2602
    %2738 = vmatprep.subr.mxu0 %v2619
    %2739 = vmatpush1.msra.mxu0 %v2618
    %2740 = vmatprep.subr.mxu0 0.0
    %2741 = vmatpush1.msra.mxu0 0.0
    %2742 = vmatprep.subr.mxu0 0.0
    %2743 = vmatpush1.msra.mxu0 0.0
    %2744 = vmatprep.subr.mxu0 0.0
    %2745 = vmatpush1.msra.mxu0 0.0
    %2746 = vmatprep.subr.mxu0 0.0
    %2747 = vmatpush1.msra.mxu0 0.0
    %2748 = vmatprep.subr.mxu0 0.0
    %2749 = vmatpush1.msra.mxu0 0.0
    %2750 = vmatprep.subr.mxu0 0.0
    %2751 = vmatpush1.msra.mxu0 0.0
    %2752 = vmatprep.subr.mxu0 0.0
    %2753 = vmatpush1.msra.mxu0 0.0
    %2754 = vmatprep.subr.mxu0 0.0
    %2755 = vmatpush1.msra.mxu0 0.0
    %2756 = vmatprep.subr.mxu0 0.0
    %2757 = vmatpush1.msra.mxu0 0.0
    %2758 = vmatprep.subr.mxu0 0.0
    %2759 = vmatpush1.msra.mxu0 0.0
    %2760 = vmatprep.subr.mxu0 0.0
    %2761 = vmatpush1.msra.mxu0 0.0
    %2762 = vmatprep.subr.mxu0 0.0
    %2763 = vmatpush1.msra.mxu0 0.0
    %2764 = vmatprep.subr.mxu0 0.0
    %2765 = vmatpush1.msra.mxu0 0.0
    %2766 = vmatprep.subr.mxu0 0.0
    %2767 = vmatpush1.msra.mxu0 0.0
    %2768 = vmatprep.subr.mxu0 0.0
    %2769 = vmatpush1.msra.mxu0 0.0
    %2770 = vmatprep.subr.mxu0 0.0
    %2771 = vmatpush1.msra.mxu0 0.0
    %2772 = vmatprep.subr.mxu0 0.0
    %2773 = vmatpush1.msra.mxu0 0.0
    %2774 = vmatprep.subr.mxu0 0.0
    %2775 = vmatpush1.msra.mxu0 0.0
    %2776 = vmatprep.subr.mxu0 0.0
    %2777 = vmatpush1.msra.mxu0 0.0
    %2778 = vmatprep.subr.mxu0 0.0
    %2779 = vmatpush1.msra.mxu0 0.0
    %2780 = vmatprep.subr.mxu0 0.0
    %2781 = vmatpush1.msra.mxu0 0.0
    %2782 = vmatprep.subr.mxu0 0.0
    %2783 = vmatpush1.msra.mxu0 0.0
    %2784 = vmatprep.subr.mxu0 0.0
    %2785 = vmatpush1.msra.mxu0 0.0
    %2786 = vmatprep.subr.mxu0 0.0
    %2787 = vmatpush1.msra.mxu0 0.0
    %2788 = vmatprep.mubr.f32.mxu0 0.0
    %2789 = vmatmul.mubr.f32.gmra.mrb[0].mxu0 %v2719
    %v2790 = vpop.f32.mrb[0].mxu0
    %v2791 = vadd.f32 %v2641, %v2790
    %v2792 = vpop.f32.mrb[0].mxu0
    %v2793 = vadd.f32 %v2645, %v2792
    %2794 = vmatprep.mubr.f32.mxu0 0.0
    %2795 = vmatmul.mubr.f32.gmra.mrb[0].mxu0 %v2722
    %v2796 = vpop.f32.mrb[0].mxu0
    %v2797 = vadd.f32 %v2641, %v2796
    %v2798 = vpop.f32.mrb[0].mxu0
    %v2799 = vadd.f32 %v2645, %v2798
    %2800 = vdwg.mxu0
    %2801 = vmatprep.subr.mxu0 %v2509
    %2802 = vmatpush1.msra.mxu0 %v2508
    %2803 = vmatprep.subr.mxu0 %v2525
    %2804 = vmatpush1.msra.mxu0 %v2524
    %2805 = vmatprep.subr.mxu0 %v2541
    %2806 = vmatpush1.msra.mxu0 %v2540
    %2807 = vmatprep.subr.mxu0 %v2557
    %2808 = vmatpush1.msra.mxu0 %v2556
    %2809 = vmatprep.subr.mxu0 %v2573
    %2810 = vmatpush1.msra.mxu0 %v2572
    %2811 = vmatprep.subr.mxu0 %v2589
    %2812 = vmatpush1.msra.mxu0 %v2588
    %2813 = vmatprep.subr.mxu0 %v2605
    %2814 = vmatpush1.msra.mxu0 %v2604
    %2815 = vmatprep.subr.mxu0 %v2621
    %2816 = vmatpush1.msra.mxu0 %v2620
    %2817 = vmatprep.subr.mxu0 0.0
    %2818 = vmatpush1.msra.mxu0 0.0
    %2819 = vmatprep.subr.mxu0 0.0
    %2820 = vmatpush1.msra.mxu0 0.0
    %2821 = vmatprep.subr.mxu0 0.0
    %2822 = vmatpush1.msra.mxu0 0.0
    %2823 = vmatprep.subr.mxu0 0.0
    %2824 = vmatpush1.msra.mxu0 0.0
    %2825 = vmatprep.subr.mxu0 0.0
    %2826 = vmatpush1.msra.mxu0 0.0
    %2827 = vmatprep.subr.mxu0 0.0
    %2828 = vmatpush1.msra.mxu0 0.0
    %2829 = vmatprep.subr.mxu0 0.0
    %2830 = vmatpush1.msra.mxu0 0.0
    %2831 = vmatprep.subr.mxu0 0.0
    %2832 = vmatpush1.msra.mxu0 0.0
    %2833 = vmatprep.subr.mxu0 0.0
    %2834 = vmatpush1.msra.mxu0 0.0
    %2835 = vmatprep.subr.mxu0 0.0
    %2836 = vmatpush1.msra.mxu0 0.0
    %2837 = vmatprep.subr.mxu0 0.0
    %2838 = vmatpush1.msra.mxu0 0.0
    %2839 = vmatprep.subr.mxu0 0.0
    %2840 = vmatpush1.msra.mxu0 0.0
    %2841 = vmatprep.subr.mxu0 0.0
    %2842 = vmatpush1.msra.mxu0 0.0
    %2843 = vmatprep.subr.mxu0 0.0
    %2844 = vmatpush1.msra.mxu0 0.0
    %2845 = vmatprep.subr.mxu0 0.0
    %2846 = vmatpush1.msra.mxu0 0.0
    %2847 = vmatprep.subr.mxu0 0.0
    %2848 = vmatpush1.msra.mxu0 0.0
    %2849 = vmatprep.subr.mxu0 0.0
    %2850 = vmatpush1.msra.mxu0 0.0
    %2851 = vmatprep.subr.mxu0 0.0
    %2852 = vmatpush1.msra.mxu0 0.0
    %2853 = vmatprep.subr.mxu0 0.0
    %2854 = vmatpush1.msra.mxu0 0.0
    %2855 = vmatprep.subr.mxu0 0.0
    %2856 = vmatpush1.msra.mxu0 0.0
    %2857 = vmatprep.subr.mxu0 0.0
    %2858 = vmatpush1.msra.mxu0 0.0
    %2859 = vmatprep.subr.mxu0 0.0
    %2860 = vmatpush1.msra.mxu0 0.0
    %2861 = vmatprep.subr.mxu0 0.0
    %2862 = vmatpush1.msra.mxu0 0.0
    %2863 = vmatprep.subr.mxu0 0.0
    %2864 = vmatpush1.msra.mxu0 0.0
    %2865 = vmatprep.mubr.f32.mxu0 0.0
    %2866 = vmatmul.mubr.f32.gmra.mrb[0].mxu0 %v2719
    %v2867 = vpop.f32.mrb[0].mxu0
    %v2868 = vadd.f32 %v2649, %v2867
    %v2869 = vpop.f32.mrb[0].mxu0
    %v2870 = vadd.f32 %v2653, %v2869
    %2871 = vmatprep.mubr.f32.mxu0 0.0
    %2872 = vmatmul.mubr.f32.gmra.mrb[0].mxu0 %v2722
    %v2873 = vpop.f32.mrb[0].mxu0
    %v2874 = vadd.f32 %v2649, %v2873
    %v2875 = vpop.f32.mrb[0].mxu0
    %v2876 = vadd.f32 %v2653, %v2875
    %2877 = vdwg.mxu0
    %2878 = vmatprep.subr.mxu0 %v2511
    %2879 = vmatpush1.msra.mxu0 %v2510
    %2880 = vmatprep.subr.mxu0 %v2527
    %2881 = vmatpush1.msra.mxu0 %v2526
    %2882 = vmatprep.subr.mxu0 %v2543
    %2883 = vmatpush1.msra.mxu0 %v2542
    %2884 = vmatprep.subr.mxu0 %v2559
    %2885 = vmatpush1.msra.mxu0 %v2558
    %2886 = vmatprep.subr.mxu0 %v2575
    %2887 = vmatpush1.msra.mxu0 %v2574
    %2888 = vmatprep.subr.mxu0 %v2591
    %2889 = vmatpush1.msra.mxu0 %v2590
    %2890 = vmatprep.subr.mxu0 %v2607
    %2891 = vmatpush1.msra.mxu0 %v2606
    %2892 = vmatprep.subr.mxu0 %v2623
    %2893 = vmatpush1.msra.mxu0 %v2622
    %2894 = vmatprep.subr.mxu0 0.0
    %2895 = vmatpush1.msra.mxu0 0.0
    %2896 = vmatprep.subr.mxu0 0.0
    %2897 = vmatpush1.msra.mxu0 0.0
    %2898 = vmatprep.subr.mxu0 0.0
    %2899 = vmatpush1.msra.mxu0 0.0
    %2900 = vmatprep.subr.mxu0 0.0
    %2901 = vmatpush1.msra.mxu0 0.0
    %2902 = vmatprep.subr.mxu0 0.0
    %2903 = vmatpush1.msra.mxu0 0.0
    %2904 = vmatprep.subr.mxu0 0.0
    %2905 = vmatpush1.msra.mxu0 0.0
    %2906 = vmatprep.subr.mxu0 0.0
    %2907 = vmatpush1.msra.mxu0 0.0
    %2908 = vmatprep.subr.mxu0 0.0
    %2909 = vmatpush1.msra.mxu0 0.0
    %2910 = vmatprep.subr.mxu0 0.0
    %2911 = vmatpush1.msra.mxu0 0.0
    %2912 = vmatprep.subr.mxu0 0.0
    %2913 = vmatpush1.msra.mxu0 0.0
    %2914 = vmatprep.subr.mxu0 0.0
    %2915 = vmatpush1.msra.mxu0 0.0
    %2916 = vmatprep.subr.mxu0 0.0
    %2917 = vmatpush1.msra.mxu0 0.0
    %2918 = vmatprep.subr.mxu0 0.0
    %2919 = vmatpush1.msra.mxu0 0.0
    %2920 = vmatprep.subr.mxu0 0.0
    %2921 = vmatpush1.msra.mxu0 0.0
    %2922 = vmatprep.subr.mxu0 0.0
    %2923 = vmatpush1.msra.mxu0 0.0
    %2924 = vmatprep.subr.mxu0 0.0
    %2925 = vmatpush1.msra.mxu0 0.0
    %2926 = vmatprep.subr.mxu0 0.0
    %2927 = vmatpush1.msra.mxu0 0.0
    %2928 = vmatprep.subr.mxu0 0.0
    %2929 = vmatpush1.msra.mxu0 0.0
    %2930 = vmatprep.subr.mxu0 0.0
    %2931 = vmatpush1.msra.mxu0 0.0
    %2932 = vmatprep.subr.mxu0 0.0
    %2933 = vmatpush1.msra.mxu0 0.0
    %2934 = vmatprep.subr.mxu0 0.0
    %2935 = vmatpush1.msra.mxu0 0.0
    %2936 = vmatprep.subr.mxu0 0.0
    %2937 = vmatpush1.msra.mxu0 0.0
    %2938 = vmatprep.subr.mxu0 0.0
    %2939 = vmatpush1.msra.mxu0 0.0
    %2940 = vmatprep.subr.mxu0 0.0
    %2941 = vmatpush1.msra.mxu0 0.0
    %2942 = vmatprep.mubr.f32.mxu0 0.0
    %2943 = vmatmul.mubr.f32.gmra.mrb[0].mxu0 %v2719
    %v2944 = vpop.f32.mrb[0].mxu0
    %v2945 = vadd.f32 %v2657, %v2944
    %v2946 = vpop.f32.mrb[0].mxu0
    %v2947 = vadd.f32 %v2661, %v2946
    %2948 = vmatprep.mubr.f32.mxu0 0.0
    %2949 = vmatmul.mubr.f32.gmra.mrb[0].mxu0 %v2722
    %v2950 = vpop.f32.mrb[0].mxu0
    %v2951 = vadd.f32 %v2657, %v2950
    %v2952 = vpop.f32.mrb[0].mxu0
    %v2953 = vadd.f32 %v2661, %v2952
    %2954 = vdwg.mxu0
    %2955 = vmatprep.subr.mxu0 %v2513
    %2956 = vmatpush1.msra.mxu0 %v2512
    %2957 = vmatprep.subr.mxu0 %v2529
    %2958 = vmatpush1.msra.mxu0 %v2528
    %2959 = vmatprep.subr.mxu0 %v2545
    %2960 = vmatpush1.msra.mxu0 %v2544
    %2961 = vmatprep.subr.mxu0 %v2561
    %2962 = vmatpush1.msra.mxu0 %v2560
    %2963 = vmatprep.subr.mxu0 %v2577
    %2964 = vmatpush1.msra.mxu0 %v2576
    %2965 = vmatprep.subr.mxu0 %v2593
    %2966 = vmatpush1.msra.mxu0 %v2592
    %2967 = vmatprep.subr.mxu0 %v2609
    %2968 = vmatpush1.msra.mxu0 %v2608
    %2969 = vmatprep.subr.mxu0 %v2625
    %2970 = vmatpush1.msra.mxu0 %v2624
    %2971 = vmatprep.subr.mxu0 0.0
    %2972 = vmatpush1.msra.mxu0 0.0
    %2973 = vmatprep.subr.mxu0 0.0
    %2974 = vmatpush1.msra.mxu0 0.0
    %2975 = vmatprep.subr.mxu0 0.0
    %2976 = vmatpush1.msra.mxu0 0.0
    %2977 = vmatprep.subr.mxu0 0.0
    %2978 = vmatpush1.msra.mxu0 0.0
    %2979 = vmatprep.subr.mxu0 0.0
    %2980 = vmatpush1.msra.mxu0 0.0
    %2981 = vmatprep.subr.mxu0 0.0
    %2982 = vmatpush1.msra.mxu0 0.0
    %2983 = vmatprep.subr.mxu0 0.0
    %2984 = vmatpush1.msra.mxu0 0.0
    %2985 = vmatprep.subr.mxu0 0.0
    %2986 = vmatpush1.msra.mxu0 0.0
    %2987 = vmatprep.subr.mxu0 0.0
    %2988 = vmatpush1.msra.mxu0 0.0
    %2989 = vmatprep.subr.mxu0 0.0
    %2990 = vmatpush1.msra.mxu0 0.0
    %2991 = vmatprep.subr.mxu0 0.0
    %2992 = vmatpush1.msra.mxu0 0.0
    %2993 = vmatprep.subr.mxu0 0.0
    %2994 = vmatpush1.msra.mxu0 0.0
    %2995 = vmatprep.subr.mxu0 0.0
    %2996 = vmatpush1.msra.mxu0 0.0
    %2997 = vmatprep.subr.mxu0 0.0
    %2998 = vmatpush1.msra.mxu0 0.0
    %2999 = vmatprep.subr.mxu0 0.0
    %3000 = vmatpush1.msra.mxu0 0.0
    %3001 = vmatprep.subr.mxu0 0.0
    %3002 = vmatpush1.msra.mxu0 0.0
    %3003 = vmatprep.subr.mxu0 0.0
    %3004 = vmatpush1.msra.mxu0 0.0
    %3005 = vmatprep.subr.mxu0 0.0
    %3006 = vmatpush1.msra.mxu0 0.0
    %3007 = vmatprep.subr.mxu0 0.0
    %3008 = vmatpush1.msra.mxu0 0.0
    %3009 = vmatprep.subr.mxu0 0.0
    %3010 = vmatpush1.msra.mxu0 0.0
    %3011 = vmatprep.subr.mxu0 0.0
    %3012 = vmatpush1.msra.mxu0 0.0
    %3013 = vmatprep.subr.mxu0 0.0
    %3014 = vmatpush1.msra.mxu0 0.0
    %3015 = vmatprep.subr.mxu0 0.0
    %3016 = vmatpush1.msra.mxu0 0.0
    %3017 = vmatprep.subr.mxu0 0.0
    %3018 = vmatpush1.msra.mxu0 0.0
    %3019 = vmatprep.mubr.f32.mxu0 0.0
    %3020 = vmatmul.mubr.f32.gmra.mrb[0].mxu0 %v2719
    %v3021 = vpop.f32.mrb[0].mxu0
    %v3022 = vadd.f32 %v2665, %v3021
    %v3023 = vpop.f32.mrb[0].mxu0
    %v3024 = vadd.f32 %v2669, %v3023
    %3025 = vmatprep.mubr.f32.mxu0 0.0
    %3026 = vmatmul.mubr.f32.gmra.mrb[0].mxu0 %v2722
    %v3027 = vpop.f32.mrb[0].mxu0
    %v3028 = vadd.f32 %v2665, %v3027
    %v3029 = vpop.f32.mrb[0].mxu0
    %v3030 = vadd.f32 %v2669, %v3029
    %3031 = vdwg.mxu0
    %3032 = vmatprep.subr.mxu0 %v2515
    %3033 = vmatpush1.msra.mxu0 %v2514
    %3034 = vmatprep.subr.mxu0 %v2531
    %3035 = vmatpush1.msra.mxu0 %v2530
    %3036 = vmatprep.subr.mxu0 %v2547
    %3037 = vmatpush1.msra.mxu0 %v2546
    %3038 = vmatprep.subr.mxu0 %v2563
    %3039 = vmatpush1.msra.mxu0 %v2562
    %3040 = vmatprep.subr.mxu0 %v2579
    %3041 = vmatpush1.msra.mxu0 %v2578
    %3042 = vmatprep.subr.mxu0 %v2595
    %3043 = vmatpush1.msra.mxu0 %v2594
    %3044 = vmatprep.subr.mxu0 %v2611
    %3045 = vmatpush1.msra.mxu0 %v2610
    %3046 = vmatprep.subr.mxu0 %v2627
    %3047 = vmatpush1.msra.mxu0 %v2626
    %3048 = vmatprep.subr.mxu0 0.0
    %3049 = vmatpush1.msra.mxu0 0.0
    %3050 = vmatprep.subr.mxu0 0.0
    %3051 = vmatpush1.msra.mxu0 0.0
    %3052 = vmatprep.subr.mxu0 0.0
    %3053 = vmatpush1.msra.mxu0 0.0
    %3054 = vmatprep.subr.mxu0 0.0
    %3055 = vmatpush1.msra.mxu0 0.0
    %3056 = vmatprep.subr.mxu0 0.0
    %3057 = vmatpush1.msra.mxu0 0.0
    %3058 = vmatprep.subr.mxu0 0.0
    %3059 = vmatpush1.msra.mxu0 0.0
    %3060 = vmatprep.subr.mxu0 0.0
    %3061 = vmatpush1.msra.mxu0 0.0
    %3062 = vmatprep.subr.mxu0 0.0
    %3063 = vmatpush1.msra.mxu0 0.0
    %3064 = vmatprep.subr.mxu0 0.0
    %3065 = vmatpush1.msra.mxu0 0.0
    %3066 = vmatprep.subr.mxu0 0.0
    %3067 = vmatpush1.msra.mxu0 0.0
    %3068 = vmatprep.subr.mxu0 0.0
    %3069 = vmatpush1.msra.mxu0 0.0
    %3070 = vmatprep.subr.mxu0 0.0
    %3071 = vmatpush1.msra.mxu0 0.0
    %3072 = vmatprep.subr.mxu0 0.0
    %3073 = vmatpush1.msra.mxu0 0.0
    %3074 = vmatprep.subr.mxu0 0.0
    %3075 = vmatpush1.msra.mxu0 0.0
    %3076 = vmatprep.subr.mxu0 0.0
    %3077 = vmatpush1.msra.mxu0 0.0
    %3078 = vmatprep.subr.mxu0 0.0
    %3079 = vmatpush1.msra.mxu0 0.0
    %3080 = vmatprep.subr.mxu0 0.0
    %3081 = vmatpush1.msra.mxu0 0.0
    %3082 = vmatprep.subr.mxu0 0.0
    %3083 = vmatpush1.msra.mxu0 0.0
    %3084 = vmatprep.subr.mxu0 0.0
    %3085 = vmatpush1.msra.mxu0 0.0
    %3086 = vmatprep.subr.mxu0 0.0
    %3087 = vmatpush1.msra.mxu0 0.0
    %3088 = vmatprep.subr.mxu0 0.0
    %3089 = vmatpush1.msra.mxu0 0.0
    %3090 = vmatprep.subr.mxu0 0.0
    %3091 = vmatpush1.msra.mxu0 0.0
    %3092 = vmatprep.subr.mxu0 0.0
    %3093 = vmatpush1.msra.mxu0 0.0
    %3094 = vmatprep.subr.mxu0 0.0
    %3095 = vmatpush1.msra.mxu0 0.0
    %3096 = vmatprep.mubr.f32.mxu0 0.0
    %3097 = vmatmul.mubr.f32.gmra.mrb[0].mxu0 %v2719
    %v3098 = vpop.f32.mrb[0].mxu0
    %v3099 = vadd.f32 %v2673, %v3098
    %v3100 = vpop.f32.mrb[0].mxu0
    %v3101 = vadd.f32 %v2677, %v3100
    %3102 = vmatprep.mubr.f32.mxu0 0.0
    %3103 = vmatmul.mubr.f32.gmra.mrb[0].mxu0 %v2722
    %v3104 = vpop.f32.mrb[0].mxu0
    %v3105 = vadd.f32 %v2673, %v3104
    %v3106 = vpop.f32.mrb[0].mxu0
    %v3107 = vadd.f32 %v2677, %v3106
    %3108 = vdwg.mxu0
    %3109 = vmatprep.subr.mxu0 %v2517
    %3110 = vmatpush1.msra.mxu0 %v2516
    %3111 = vmatprep.subr.mxu0 %v2533
    %3112 = vmatpush1.msra.mxu0 %v2532
    %3113 = vmatprep.subr.mxu0 %v2549
    %3114 = vmatpush1.msra.mxu0 %v2548
    %3115 = vmatprep.subr.mxu0 %v2565
    %3116 = vmatpush1.msra.mxu0 %v2564
    %3117 = vmatprep.subr.mxu0 %v2581
    %3118 = vmatpush1.msra.mxu0 %v2580
    %3119 = vmatprep.subr.mxu0 %v2597
    %3120 = vmatpush1.msra.mxu0 %v2596
    %3121 = vmatprep.subr.mxu0 %v2613
    %3122 = vmatpush1.msra.mxu0 %v2612
    %3123 = vmatprep.subr.mxu0 %v2629
    %3124 = vmatpush1.msra.mxu0 %v2628
    %3125 = vmatprep.subr.mxu0 0.0
    %3126 = vmatpush1.msra.mxu0 0.0
    %3127 = vmatprep.subr.mxu0 0.0
    %3128 = vmatpush1.msra.mxu0 0.0
    %3129 = vmatprep.subr.mxu0 0.0
    %3130 = vmatpush1.msra.mxu0 0.0
    %3131 = vmatprep.subr.mxu0 0.0
    %3132 = vmatpush1.msra.mxu0 0.0
    %3133 = vmatprep.subr.mxu0 0.0
    %3134 = vmatpush1.msra.mxu0 0.0
    %3135 = vmatprep.subr.mxu0 0.0
    %3136 = vmatpush1.msra.mxu0 0.0
    %3137 = vmatprep.subr.mxu0 0.0
    %3138 = vmatpush1.msra.mxu0 0.0
    %3139 = vmatprep.subr.mxu0 0.0
    %3140 = vmatpush1.msra.mxu0 0.0
    %3141 = vmatprep.subr.mxu0 0.0
    %3142 = vmatpush1.msra.mxu0 0.0
    %3143 = vmatprep.subr.mxu0 0.0
    %3144 = vmatpush1.msra.mxu0 0.0
    %3145 = vmatprep.subr.mxu0 0.0
    %3146 = vmatpush1.msra.mxu0 0.0
    %3147 = vmatprep.subr.mxu0 0.0
    %3148 = vmatpush1.msra.mxu0 0.0
    %3149 = vmatprep.subr.mxu0 0.0
    %3150 = vmatpush1.msra.mxu0 0.0
    %3151 = vmatprep.subr.mxu0 0.0
    %3152 = vmatpush1.msra.mxu0 0.0
    %3153 = vmatprep.subr.mxu0 0.0
    %3154 = vmatpush1.msra.mxu0 0.0
    %3155 = vmatprep.subr.mxu0 0.0
    %3156 = vmatpush1.msra.mxu0 0.0
    %3157 = vmatprep.subr.mxu0 0.0
    %3158 = vmatpush1.msra.mxu0 0.0
    %3159 = vmatprep.subr.mxu0 0.0
    %3160 = vmatpush1.msra.mxu0 0.0
    %3161 = vmatprep.subr.mxu0 0.0
    %3162 = vmatpush1.msra.mxu0 0.0
    %3163 = vmatprep.subr.mxu0 0.0
    %3164 = vmatpush1.msra.mxu0 0.0
    %3165 = vmatprep.subr.mxu0 0.0
    %3166 = vmatpush1.msra.mxu0 0.0
    %3167 = vmatprep.subr.mxu0 0.0
    %3168 = vmatpush1.msra.mxu0 0.0
    %3169 = vmatprep.subr.mxu0 0.0
    %3170 = vmatpush1.msra.mxu0 0.0
    %3171 = vmatprep.subr.mxu0 0.0
    %3172 = vmatpush1.msra.mxu0 0.0
    %3173 = vmatprep.mubr.f32.mxu0 0.0
    %3174 = vmatmul.mubr.f32.gmra.mrb[0].mxu0 %v2719
    %v3175 = vpop.f32.mrb[0].mxu0
    %v3176 = vadd.f32 %v2681, %v3175
    %v3177 = vpop.f32.mrb[0].mxu0
    %v3178 = vadd.f32 %v2685, %v3177
    %3179 = vmatprep.mubr.f32.mxu0 0.0
    %3180 = vmatmul.mubr.f32.gmra.mrb[0].mxu0 %v2722
    %v3181 = vpop.f32.mrb[0].mxu0
    %v3182 = vadd.f32 %v2681, %v3181
    %v3183 = vpop.f32.mrb[0].mxu0
    %v3184 = vadd.f32 %v2685, %v3183
    %3185 = vdwg.mxu0
    %3186 = vmatprep.subr.mxu0 %v2519
    %3187 = vmatpush1.msra.mxu0 %v2518
    %3188 = vmatprep.subr.mxu0 %v2535
    %3189 = vmatpush1.msra.mxu0 %v2534
    %3190 = vmatprep.subr.mxu0 %v2551
    %3191 = vmatpush1.msra.mxu0 %v2550
    %3192 = vmatprep.subr.mxu0 %v2567
    %3193 = vmatpush1.msra.mxu0 %v2566
    %3194 = vmatprep.subr.mxu0 %v2583
    %3195 = vmatpush1.msra.mxu0 %v2582
    %3196 = vmatprep.subr.mxu0 %v2599
    %3197 = vmatpush1.msra.mxu0 %v2598
    %3198 = vmatprep.subr.mxu0 %v2615
    %3199 = vmatpush1.msra.mxu0 %v2614
    %3200 = vmatprep.subr.mxu0 %v2631
    %3201 = vmatpush1.msra.mxu0 %v2630
    %3202 = vmatprep.subr.mxu0 0.0
    %3203 = vmatpush1.msra.mxu0 0.0
    %3204 = vmatprep.subr.mxu0 0.0
    %3205 = vmatpush1.msra.mxu0 0.0
    %3206 = vmatprep.subr.mxu0 0.0
    %3207 = vmatpush1.msra.mxu0 0.0
    %3208 = vmatprep.subr.mxu0 0.0
    %3209 = vmatpush1.msra.mxu0 0.0
    %3210 = vmatprep.subr.mxu0 0.0
    %3211 = vmatpush1.msra.mxu0 0.0
    %3212 = vmatprep.subr.mxu0 0.0
    %3213 = vmatpush1.msra.mxu0 0.0
    %3214 = vmatprep.subr.mxu0 0.0
    %3215 = vmatpush1.msra.mxu0 0.0
    %3216 = vmatprep.subr.mxu0 0.0
    %3217 = vmatpush1.msra.mxu0 0.0
    %3218 = vmatprep.subr.mxu0 0.0
    %3219 = vmatpush1.msra.mxu0 0.0
    %3220 = vmatprep.subr.mxu0 0.0
    %3221 = vmatpush1.msra.mxu0 0.0
    %3222 = vmatprep.subr.mxu0 0.0
    %3223 = vmatpush1.msra.mxu0 0.0
    %3224 = vmatprep.subr.mxu0 0.0
    %3225 = vmatpush1.msra.mxu0 0.0
    %3226 = vmatprep.subr.mxu0 0.0
    %3227 = vmatpush1.msra.mxu0 0.0
    %3228 = vmatprep.subr.mxu0 0.0
    %3229 = vmatpush1.msra.mxu0 0.0
    %3230 = vmatprep.subr.mxu0 0.0
    %3231 = vmatpush1.msra.mxu0 0.0
    %3232 = vmatprep.subr.mxu0 0.0
    %3233 = vmatpush1.msra.mxu0 0.0
    %3234 = vmatprep.subr.mxu0 0.0
    %3235 = vmatpush1.msra.mxu0 0.0
    %3236 = vmatprep.subr.mxu0 0.0
    %3237 = vmatpush1.msra.mxu0 0.0
    %3238 = vmatprep.subr.mxu0 0.0
    %3239 = vmatpush1.msra.mxu0 0.0
    %3240 = vmatprep.subr.mxu0 0.0
    %3241 = vmatpush1.msra.mxu0 0.0
    %3242 = vmatprep.subr.mxu0 0.0
    %3243 = vmatpush1.msra.mxu0 0.0
    %3244 = vmatprep.subr.mxu0 0.0
    %3245 = vmatpush1.msra.mxu0 0.0
    %3246 = vmatprep.subr.mxu0 0.0
    %3247 = vmatpush1.msra.mxu0 0.0
    %3248 = vmatprep.subr.mxu0 0.0
    %3249 = vmatpush1.msra.mxu0 0.0
    %3250 = vmatprep.mubr.f32.mxu0 0.0
    %3251 = vmatmul.mubr.f32.gmra.mrb[0].mxu0 %v2719
    %v3252 = vpop.f32.mrb[0].mxu0
    %v3253 = vadd.f32 %v2689, %v3252
    %v3254 = vpop.f32.mrb[0].mxu0
    %v3255 = vadd.f32 %v2693, %v3254
    %3256 = vmatprep.mubr.f32.mxu0 0.0
    %3257 = vmatmul.mubr.f32.gmra.mrb[0].mxu0 %v2722
    %v3258 = vpop.f32.mrb[0].mxu0
    %v3259 = vadd.f32 %v2689, %v3258
    %v3260 = vpop.f32.mrb[0].mxu0
    %v3261 = vadd.f32 %v2693, %v3260
    %3262 = vdwg.mxu0
    %3263 = vmatprep.subr.mxu0 %v2521
    %3264 = vmatpush1.msra.mxu0 %v2520
    %3265 = vmatprep.subr.mxu0 %v2537
    %3266 = vmatpush1.msra.mxu0 %v2536
    %3267 = vmatprep.subr.mxu0 %v2553
    %3268 = vmatpush1.msra.mxu0 %v2552
    %3269 = vmatprep.subr.mxu0 %v2569
    %3270 = vmatpush1.msra.mxu0 %v2568
    %3271 = vmatprep.subr.mxu0 %v2585
    %3272 = vmatpush1.msra.mxu0 %v2584
    %3273 = vmatprep.subr.mxu0 %v2601
    %3274 = vmatpush1.msra.mxu0 %v2600
    %3275 = vmatprep.subr.mxu0 %v2617
    %3276 = vmatpush1.msra.mxu0 %v2616
    %3277 = vmatprep.subr.mxu0 %v2633
    %3278 = vmatpush1.msra.mxu0 %v2632
    %3279 = vmatprep.subr.mxu0 0.0
    %3280 = vmatpush1.msra.mxu0 0.0
    %3281 = vmatprep.subr.mxu0 0.0
    %3282 = vmatpush1.msra.mxu0 0.0
    %3283 = vmatprep.subr.mxu0 0.0
    %3284 = vmatpush1.msra.mxu0 0.0
    %3285 = vmatprep.subr.mxu0 0.0
    %3286 = vmatpush1.msra.mxu0 0.0
    %3287 = vmatprep.subr.mxu0 0.0
    %3288 = vmatpush1.msra.mxu0 0.0
    %3289 = vmatprep.subr.mxu0 0.0
    %3290 = vmatpush1.msra.mxu0 0.0
    %3291 = vmatprep.subr.mxu0 0.0
    %3292 = vmatpush1.msra.mxu0 0.0
    %3293 = vmatprep.subr.mxu0 0.0
    %3294 = vmatpush1.msra.mxu0 0.0
    %3295 = vmatprep.subr.mxu0 0.0
    %3296 = vmatpush1.msra.mxu0 0.0
    %3297 = vmatprep.subr.mxu0 0.0
    %3298 = vmatpush1.msra.mxu0 0.0
    %3299 = vmatprep.subr.mxu0 0.0
    %3300 = vmatpush1.msra.mxu0 0.0
    %3301 = vmatprep.subr.mxu0 0.0
    %3302 = vmatpush1.msra.mxu0 0.0
    %3303 = vmatprep.subr.mxu0 0.0
    %3304 = vmatpush1.msra.mxu0 0.0
    %3305 = vmatprep.subr.mxu0 0.0
    %3306 = vmatpush1.msra.mxu0 0.0
    %3307 = vmatprep.subr.mxu0 0.0
    %3308 = vmatpush1.msra.mxu0 0.0
    %3309 = vmatprep.subr.mxu0 0.0
    %3310 = vmatpush1.msra.mxu0 0.0
    %3311 = vmatprep.subr.mxu0 0.0
    %3312 = vmatpush1.msra.mxu0 0.0
    %3313 = vmatprep.subr.mxu0 0.0
    %3314 = vmatpush1.msra.mxu0 0.0
    %3315 = vmatprep.subr.mxu0 0.0
    %3316 = vmatpush1.msra.mxu0 0.0
    %3317 = vmatprep.subr.mxu0 0.0
    %3318 = vmatpush1.msra.mxu0 0.0
    %3319 = vmatprep.subr.mxu0 0.0
    %3320 = vmatpush1.msra.mxu0 0.0
    %3321 = vmatprep.subr.mxu0 0.0
    %3322 = vmatpush1.msra.mxu0 0.0
    %3323 = vmatprep.subr.mxu0 0.0
    %3324 = vmatpush1.msra.mxu0 0.0
    %3325 = vmatprep.subr.mxu0 0.0
    %3326 = vmatpush1.msra.mxu0 0.0
    %3327 = vmatprep.mubr.f32.mxu0 0.0
    %3328 = vmatmul.mubr.f32.gmra.mrb[0].mxu0 %v2719
    %v3329 = vpop.f32.mrb[0].mxu0
    %v3330 = vadd.f32 %v2697, %v3329
    %v3331 = vpop.f32.mrb[0].mxu0
    %v3332 = vadd.f32 %v2701, %v3331
    %3333 = vmatprep.mubr.f32.mxu0 0.0
    %3334 = vmatmul.mubr.f32.gmra.mrb[0].mxu0 %v2722
    %v3335 = vpop.f32.mrb[0].mxu0
    %v3336 = vadd.f32 %v2697, %v3335
    %v3337 = vpop.f32.mrb[0].mxu0
    %v3338 = vadd.f32 %v2701, %v3337
    %3339 = vdwg.mxu0
    %v3340 = vmax.f32 %v2791, 0.0
    %v3341 = vmax.f32 %v2793, 0.0
    %v3342 = vmax.f32 %v2868, 0.0
    %v3343 = vmax.f32 %v2870, 0.0
    %v3344 = vmax.f32 %v2945, 0.0
    %v3345 = vmax.f32 %v2947, 0.0
    %v3346 = vmax.f32 %v3022, 0.0
    %v3347 = vmax.f32 %v3024, 0.0
    %v3348 = vmax.f32 %v3099, 0.0
    %v3349 = vmax.f32 %v3101, 0.0
    %v3350 = vmax.f32 %v3176, 0.0
    %v3351 = vmax.f32 %v3178, 0.0
    %v3352 = vmax.f32 %v3253, 0.0
    %v3353 = vmax.f32 %v3255, 0.0
    %v3354 = vmax.f32 %v3330, 0.0
    %v3355 = vmax.f32 %v3332, 0.0
    %v3356 = vmax.f32 %v2797, 0.0
    %v3357 = vmax.f32 %v2799, 0.0
    %v3358 = vmax.f32 %v2874, 0.0
    %v3359 = vmax.f32 %v2876, 0.0
    %v3360 = vmax.f32 %v2951, 0.0
    %v3361 = vmax.f32 %v2953, 0.0
    %v3362 = vmax.f32 %v3028, 0.0
    %v3363 = vmax.f32 %v3030, 0.0
    %v3364 = vmax.f32 %v3105, 0.0
    %v3365 = vmax.f32 %v3107, 0.0
    %v3366 = vmax.f32 %v3182, 0.0
    %v3367 = vmax.f32 %v3184, 0.0
    %v3368 = vmax.f32 %v3259, 0.0
    %v3369 = vmax.f32 %v3261, 0.0
    %v3370 = vmax.f32 %v3336, 0.0
    %v3371 = vmax.f32 %v3338, 0.0
    %v3372 = vld [vmem:[%s31] sm:$0xff]
    %v3373 = vld [vmem:[%s31 + $0x8] sm:$0xff]
    %v3374 = vld [vmem:[%s31 + $0x10] sm:$0xff]
    %v3375 = vld [vmem:[%s31 + $0x18] sm:$0xff]
    %v3376 = vld [vmem:[%s31 + $0x20] sm:$0xff]
    %v3377 = vld [vmem:[%s31 + $0x28] sm:$0xff]
    %v3378 = vld [vmem:[%s31 + $0x30] sm:$0xff]
    %v3379 = vld [vmem:[%s31 + $0x38] sm:$0xff]
    %v3380 = vld [vmem:[%s31 + $0x40] sm:$0xff]
    %v3381 = vld [vmem:[%s31 + $0x48] sm:$0xff]
    %v3382 = vld [vmem:[%s31 + $0x50] sm:$0xff]
    %v3383 = vld [vmem:[%s31 + $0x58] sm:$0xff]
    %v3384 = vld [vmem:[%s31 + $0x60] sm:$0xff]
    %v3385 = vld [vmem:[%s31 + $0x68] sm:$0xff]
    %v3386 = vld [vmem:[%s31 + $0x70] sm:$0xff]
    %v3387 = vld [vmem:[%s31 + $0x78] sm:$0xff]
    %v3388 = vld [vmem:[%s31 + $0x80] sm:$0xff]
    %v3389 = vld [vmem:[%s31 + $0x88] sm:$0xff]
    %v3390 = vld [vmem:[%s31 + $0x90] sm:$0xff]
    %v3391 = vld [vmem:[%s31 + $0x98] sm:$0xff]
    %v3392 = vld [vmem:[%s31 + $0xa0] sm:$0xff]
    %v3393 = vld [vmem:[%s31 + $0xa8] sm:$0xff]
    %v3394 = vld [vmem:[%s31 + $0xb0] sm:$0xff]
    %v3395 = vld [vmem:[%s31 + $0xb8] sm:$0xff]
    %v3396 = vld [vmem:[%s31 + $0xc0] sm:$0xff]
    %v3397 = vld [vmem:[%s31 + $0xc8] sm:$0xff]
    %v3398 = vld [vmem:[%s31 + $0xd0] sm:$0xff]
    %v3399 = vld [vmem:[%s31 + $0xd8] sm:$0xff]
    %v3400 = vld [vmem:[%s31 + $0xe0] sm:$0xff]
    %v3401 = vld [vmem:[%s31 + $0xe8] sm:$0xff]
    %v3402 = vld [vmem:[%s31 + $0xf0] sm:$0xff]
    %v3403 = vld [vmem:[%s31 + $0xf8] sm:$0xff]
    %v3404 = vld [vmem:[%s31 + $0x100] sm:$0xff]
    %v3405 = vld [vmem:[%s31 + $0x108] sm:$0xff]
    %v3406 = vld [vmem:[%s31 + $0x110] sm:$0xff]
    %v3407 = vld [vmem:[%s31 + $0x118] sm:$0xff]
    %v3408 = vld [vmem:[%s31 + $0x120] sm:$0xff]
    %v3409 = vld [vmem:[%s31 + $0x128] sm:$0xff]
    %v3410 = vld [vmem:[%s31 + $0x130] sm:$0xff]
    %v3411 = vld [vmem:[%s31 + $0x138] sm:$0xff]
    %v3412 = vld [vmem:[%s31 + $0x140] sm:$0xff]
    %v3413 = vld [vmem:[%s31 + $0x148] sm:$0xff]
    %v3414 = vld [vmem:[%s31 + $0x150] sm:$0xff]
    %v3415 = vld [vmem:[%s31 + $0x158] sm:$0xff]
    %v3416 = vld [vmem:[%s31 + $0x160] sm:$0xff]
    %v3417 = vld [vmem:[%s31 + $0x168] sm:$0xff]
    %v3418 = vld [vmem:[%s31 + $0x170] sm:$0xff]
    %v3419 = vld [vmem:[%s31 + $0x178] sm:$0xff]
    %v3420 = vld [vmem:[%s31 + $0x180] sm:$0xff]
    %v3421 = vld [vmem:[%s31 + $0x188] sm:$0xff]
    %v3422 = vld [vmem:[%s31 + $0x190] sm:$0xff]
    %v3423 = vld [vmem:[%s31 + $0x198] sm:$0xff]
    %v3424 = vld [vmem:[%s31 + $0x1a0] sm:$0xff]
    %v3425 = vld [vmem:[%s31 + $0x1a8] sm:$0xff]
    %v3426 = vld [vmem:[%s31 + $0x1b0] sm:$0xff]
    %v3427 = vld [vmem:[%s31 + $0x1b8] sm:$0xff]
    %v3428 = vld [vmem:[%s31 + $0x1c0] sm:$0xff]
    %v3429 = vld [vmem:[%s31 + $0x1c8] sm:$0xff]
    %v3430 = vld [vmem:[%s31 + $0x1d0] sm:$0xff]
    %v3431 = vld [vmem:[%s31 + $0x1d8] sm:$0xff]
    %v3432 = vld [vmem:[%s31 + $0x1e0] sm:$0xff]
    %v3433 = vld [vmem:[%s31 + $0x1e8] sm:$0xff]
    %v3434 = vld [vmem:[%s31 + $0x1f0] sm:$0xff]
    %v3435 = vld [vmem:[%s31 + $0x1f8] sm:$0xff]
    %v3436 = vld [vmem:[%s31 + $0x200] sm:$0xff]
    %v3437 = vld [vmem:[%s31 + $0x208] sm:$0xff]
    %v3438 = vld [vmem:[%s31 + $0x210] sm:$0xff]
    %v3439 = vld [vmem:[%s31 + $0x218] sm:$0xff]
    %v3440 = vld [vmem:[%s31 + $0x220] sm:$0xff]
    %v3441 = vld [vmem:[%s31 + $0x228] sm:$0xff]
    %v3442 = vld [vmem:[%s31 + $0x230] sm:$0xff]
    %v3443 = vld [vmem:[%s31 + $0x238] sm:$0xff]
    %v3444 = vld [vmem:[%s31 + $0x240] sm:$0xff]
    %v3445 = vld [vmem:[%s31 + $0x248] sm:$0xff]
    %v3446 = vld [vmem:[%s31 + $0x250] sm:$0xff]
    %v3447 = vld [vmem:[%s31 + $0x258] sm:$0xff]
    %v3448 = vld [vmem:[%s31 + $0x260] sm:$0xff]
    %v3449 = vld [vmem:[%s31 + $0x268] sm:$0xff]
    %v3450 = vld [vmem:[%s31 + $0x270] sm:$0xff]
    %v3451 = vld [vmem:[%s31 + $0x278] sm:$0xff]
    %v3452 = vld [vmem:[%s31 + $0x280] sm:$0xff]
    %v3453 = vld [vmem:[%s31 + $0x288] sm:$0xff]
    %v3454 = vld [vmem:[%s31 + $0x290] sm:$0xff]
    %v3455 = vld [vmem:[%s31 + $0x298] sm:$0xff]
    %v3456 = vld [vmem:[%s31 + $0x2a0] sm:$0xff]
    %v3457 = vld [vmem:[%s31 + $0x2a8] sm:$0xff]
    %v3458 = vld [vmem:[%s31 + $0x2b0] sm:$0xff]
    %v3459 = vld [vmem:[%s31 + $0x2b8] sm:$0xff]
    %v3460 = vld [vmem:[%s31 + $0x2c0] sm:$0xff]
    %v3461 = vld [vmem:[%s31 + $0x2c8] sm:$0xff]
    %v3462 = vld [vmem:[%s31 + $0x2d0] sm:$0xff]
    %v3463 = vld [vmem:[%s31 + $0x2d8] sm:$0xff]
    %v3464 = vld [vmem:[%s31 + $0x2e0] sm:$0xff]
    %v3465 = vld [vmem:[%s31 + $0x2e8] sm:$0xff]
    %v3466 = vld [vmem:[%s31 + $0x2f0] sm:$0xff]
    %v3467 = vld [vmem:[%s31 + $0x2f8] sm:$0xff]
    %v3468 = vld [vmem:[%s31 + $0x300] sm:$0xff]
    %v3469 = vld [vmem:[%s31 + $0x308] sm:$0xff]
    %v3470 = vld [vmem:[%s31 + $0x310] sm:$0xff]
    %v3471 = vld [vmem:[%s31 + $0x318] sm:$0xff]
    %v3472 = vld [vmem:[%s31 + $0x320] sm:$0xff]
    %v3473 = vld [vmem:[%s31 + $0x328] sm:$0xff]
    %v3474 = vld [vmem:[%s31 + $0x330] sm:$0xff]
    %v3475 = vld [vmem:[%s31 + $0x338] sm:$0xff]
    %v3476 = vld [vmem:[%s31 + $0x340] sm:$0xff]
    %v3477 = vld [vmem:[%s31 + $0x348] sm:$0xff]
    %v3478 = vld [vmem:[%s31 + $0x350] sm:$0xff]
    %v3479 = vld [vmem:[%s31 + $0x358] sm:$0xff]
    %v3480 = vld [vmem:[%s31 + $0x360] sm:$0xff]
    %v3481 = vld [vmem:[%s31 + $0x368] sm:$0xff]
    %v3482 = vld [vmem:[%s31 + $0x370] sm:$0xff]
    %v3483 = vld [vmem:[%s31 + $0x378] sm:$0xff]
    %v3484 = vld [vmem:[%s31 + $0x380] sm:$0xff]
    %v3485 = vld [vmem:[%s31 + $0x388] sm:$0xff]
    %v3486 = vld [vmem:[%s31 + $0x390] sm:$0xff]
    %v3487 = vld [vmem:[%s31 + $0x398] sm:$0xff]
    %v3488 = vld [vmem:[%s31 + $0x3a0] sm:$0xff]
    %v3489 = vld [vmem:[%s31 + $0x3a8] sm:$0xff]
    %v3490 = vld [vmem:[%s31 + $0x3b0] sm:$0xff]
    %v3491 = vld [vmem:[%s31 + $0x3b8] sm:$0xff]
    %v3492 = vld [vmem:[%s31 + $0x3c0] sm:$0xff]
    %v3493 = vld [vmem:[%s31 + $0x3c8] sm:$0xff]
    %v3494 = vld [vmem:[%s31 + $0x3d0] sm:$0xff]
    %v3495 = vld [vmem:[%s31 + $0x3d8] sm:$0xff]
    %v3496 = vld [vmem:[%s31 + $0x3e0] sm:$0xff]
    %v3497 = vld [vmem:[%s31 + $0x3e8] sm:$0xff]
    %v3498 = vld [vmem:[%s31 + $0x3f0] sm:$0xff]
    %v3499 = vld [vmem:[%s31 + $0x3f8] sm:$0xff]
    %v3500 = vld [vmem:[%s31 + $0x400] sm:$0xff]
    %v3501 = vld [vmem:[%s31 + $0x408] sm:$0xff]
    %v3502 = vld [vmem:[%s31 + $0x410] sm:$0xff]
    %v3503 = vld [vmem:[%s31 + $0x418] sm:$0xff]
    %v3504 = vld [vmem:[%s31 + $0x420] sm:$0xff]
    %v3505 = vld [vmem:[%s31 + $0x428] sm:$0xff]
    %v3506 = vld [vmem:[%s31 + $0x430] sm:$0xff]
    %v3507 = vld [vmem:[%s31 + $0x438] sm:$0xff]
    %v3508 = vld [vmem:[%s31 + $0x440] sm:$0xff]
    %v3509 = vld [vmem:[%s31 + $0x448] sm:$0xff]
    %v3510 = vld [vmem:[%s31 + $0x450] sm:$0xff]
    %v3511 = vld [vmem:[%s31 + $0x458] sm:$0xff]
    %v3512 = vld [vmem:[%s31 + $0x460] sm:$0xff]
    %v3513 = vld [vmem:[%s31 + $0x468] sm:$0xff]
    %v3514 = vld [vmem:[%s31 + $0x470] sm:$0xff]
    %v3515 = vld [vmem:[%s31 + $0x478] sm:$0xff]
    %v3516 = vld [vmem:[%s31 + $0x480] sm:$0xff]
    %v3517 = vld [vmem:[%s31 + $0x488] sm:$0xff]
    %v3518 = vld [vmem:[%s31 + $0x490] sm:$0xff]
    %v3519 = vld [vmem:[%s31 + $0x498] sm:$0xff]
    %v3520 = vld [vmem:[%s31 + $0x4a0] sm:$0xff]
    %v3521 = vld [vmem:[%s31 + $0x4a8] sm:$0xff]
    %v3522 = vld [vmem:[%s31 + $0x4b0] sm:$0xff]
    %v3523 = vld [vmem:[%s31 + $0x4b8] sm:$0xff]
    %v3524 = vld [vmem:[%s31 + $0x4c0] sm:$0xff]
    %v3525 = vld [vmem:[%s31 + $0x4c8] sm:$0xff]
    %v3526 = vld [vmem:[%s31 + $0x4d0] sm:$0xff]
    %v3527 = vld [vmem:[%s31 + $0x4d8] sm:$0xff]
    %v3528 = vld [vmem:[%s31 + $0x4e0] sm:$0xff]
    %v3529 = vld [vmem:[%s31 + $0x4e8] sm:$0xff]
    %v3530 = vld [vmem:[%s31 + $0x4f0] sm:$0xff]
    %v3531 = vld [vmem:[%s31 + $0x4f8] sm:$0xff]
    %v3532 = vld [vmem:[%s31 + $0x500] sm:$0xff]
    %v3533 = vld [vmem:[%s31 + $0x508] sm:$0xff]
    %v3534 = vld [vmem:[%s31 + $0x510] sm:$0xff]
    %v3535 = vld [vmem:[%s31 + $0x518] sm:$0xff]
    %v3536 = vld [vmem:[%s31 + $0x520] sm:$0xff]
    %v3537 = vld [vmem:[%s31 + $0x528] sm:$0xff]
    %v3538 = vld [vmem:[%s31 + $0x530] sm:$0xff]
    %v3539 = vld [vmem:[%s31 + $0x538] sm:$0xff]
    %v3540 = vld [vmem:[%s31 + $0x540] sm:$0xff]
    %v3541 = vld [vmem:[%s31 + $0x548] sm:$0xff]
    %v3542 = vld [vmem:[%s31 + $0x550] sm:$0xff]
    %v3543 = vld [vmem:[%s31 + $0x558] sm:$0xff]
    %v3544 = vld [vmem:[%s31 + $0x560] sm:$0xff]
    %v3545 = vld [vmem:[%s31 + $0x568] sm:$0xff]
    %v3546 = vld [vmem:[%s31 + $0x570] sm:$0xff]
    %v3547 = vld [vmem:[%s31 + $0x578] sm:$0xff]
    %v3548 = vld [vmem:[%s31 + $0x580] sm:$0xff]
    %v3549 = vld [vmem:[%s31 + $0x588] sm:$0xff]
    %v3550 = vld [vmem:[%s31 + $0x590] sm:$0xff]
    %v3551 = vld [vmem:[%s31 + $0x598] sm:$0xff]
    %v3552 = vld [vmem:[%s31 + $0x5a0] sm:$0xff]
    %v3553 = vld [vmem:[%s31 + $0x5a8] sm:$0xff]
    %v3554 = vld [vmem:[%s31 + $0x5b0] sm:$0xff]
    %v3555 = vld [vmem:[%s31 + $0x5b8] sm:$0xff]
    %v3556 = vld [vmem:[%s31 + $0x5c0] sm:$0xff]
    %v3557 = vld [vmem:[%s31 + $0x5c8] sm:$0xff]
    %v3558 = vld [vmem:[%s31 + $0x5d0] sm:$0xff]
    %v3559 = vld [vmem:[%s31 + $0x5d8] sm:$0xff]
    %v3560 = vld [vmem:[%s31 + $0x5e0] sm:$0xff]
    %v3561 = vld [vmem:[%s31 + $0x5e8] sm:$0xff]
    %v3562 = vld [vmem:[%s31 + $0x5f0] sm:$0xff]
    %v3563 = vld [vmem:[%s31 + $0x5f8] sm:$0xff]
    %v3564 = vld [vmem:[%s31 + $0x600] sm:$0xff]
    %v3565 = vld [vmem:[%s31 + $0x608] sm:$0xff]
    %v3566 = vld [vmem:[%s31 + $0x610] sm:$0xff]
    %v3567 = vld [vmem:[%s31 + $0x618] sm:$0xff]
    %v3568 = vld [vmem:[%s31 + $0x620] sm:$0xff]
    %v3569 = vld [vmem:[%s31 + $0x628] sm:$0xff]
    %v3570 = vld [vmem:[%s31 + $0x630] sm:$0xff]
    %v3571 = vld [vmem:[%s31 + $0x638] sm:$0xff]
    %v3572 = vld [vmem:[%s31 + $0x640] sm:$0xff]
    %v3573 = vld [vmem:[%s31 + $0x648] sm:$0xff]
    %v3574 = vld [vmem:[%s31 + $0x650] sm:$0xff]
    %v3575 = vld [vmem:[%s31 + $0x658] sm:$0xff]
    %v3576 = vld [vmem:[%s31 + $0x660] sm:$0xff]
    %v3577 = vld [vmem:[%s31 + $0x668] sm:$0xff]
    %v3578 = vld [vmem:[%s31 + $0x670] sm:$0xff]
    %v3579 = vld [vmem:[%s31 + $0x678] sm:$0xff]
    %v3580 = vld [vmem:[%s31 + $0x680] sm:$0xff]
    %v3581 = vld [vmem:[%s31 + $0x688] sm:$0xff]
    %v3582 = vld [vmem:[%s31 + $0x690] sm:$0xff]
    %v3583 = vld [vmem:[%s31 + $0x698] sm:$0xff]
    %v3584 = vld [vmem:[%s31 + $0x6a0] sm:$0xff]
    %v3585 = vld [vmem:[%s31 + $0x6a8] sm:$0xff]
    %v3586 = vld [vmem:[%s31 + $0x6b0] sm:$0xff]
    %v3587 = vld [vmem:[%s31 + $0x6b8] sm:$0xff]
    %v3588 = vld [vmem:[%s31 + $0x6c0] sm:$0xff]
    %v3589 = vld [vmem:[%s31 + $0x6c8] sm:$0xff]
    %v3590 = vld [vmem:[%s31 + $0x6d0] sm:$0xff]
    %v3591 = vld [vmem:[%s31 + $0x6d8] sm:$0xff]
    %v3592 = vld [vmem:[%s31 + $0x6e0] sm:$0xff]
    %v3593 = vld [vmem:[%s31 + $0x6e8] sm:$0xff]
    %v3594 = vld [vmem:[%s31 + $0x6f0] sm:$0xff]
    %v3595 = vld [vmem:[%s31 + $0x6f8] sm:$0xff]
    %v3596 = vld [vmem:[%s31 + $0x700] sm:$0xff]
    %v3597 = vld [vmem:[%s31 + $0x708] sm:$0xff]
    %v3598 = vld [vmem:[%s31 + $0x710] sm:$0xff]
    %v3599 = vld [vmem:[%s31 + $0x718] sm:$0xff]
    %v3600 = vld [vmem:[%s31 + $0x720] sm:$0xff]
    %v3601 = vld [vmem:[%s31 + $0x728] sm:$0xff]
    %v3602 = vld [vmem:[%s31 + $0x730] sm:$0xff]
    %v3603 = vld [vmem:[%s31 + $0x738] sm:$0xff]
    %v3604 = vld [vmem:[%s31 + $0x740] sm:$0xff]
    %v3605 = vld [vmem:[%s31 + $0x748] sm:$0xff]
    %v3606 = vld [vmem:[%s31 + $0x750] sm:$0xff]
    %v3607 = vld [vmem:[%s31 + $0x758] sm:$0xff]
    %v3608 = vld [vmem:[%s31 + $0x760] sm:$0xff]
    %v3609 = vld [vmem:[%s31 + $0x768] sm:$0xff]
    %v3610 = vld [vmem:[%s31 + $0x770] sm:$0xff]
    %v3611 = vld [vmem:[%s31 + $0x778] sm:$0xff]
    %v3612 = vld [vmem:[%s31 + $0x780] sm:$0xff]
    %v3613 = vld [vmem:[%s31 + $0x788] sm:$0xff]
    %v3614 = vld [vmem:[%s31 + $0x790] sm:$0xff]
    %v3615 = vld [vmem:[%s31 + $0x798] sm:$0xff]
    %v3616 = vld [vmem:[%s31 + $0x7a0] sm:$0xff]
    %v3617 = vld [vmem:[%s31 + $0x7a8] sm:$0xff]
    %v3618 = vld [vmem:[%s31 + $0x7b0] sm:$0xff]
    %v3619 = vld [vmem:[%s31 + $0x7b8] sm:$0xff]
    %v3620 = vld [vmem:[%s31 + $0x7c0] sm:$0xff]
    %v3621 = vld [vmem:[%s31 + $0x7c8] sm:$0xff]
    %v3622 = vld [vmem:[%s31 + $0x7d0] sm:$0xff]
    %v3623 = vld [vmem:[%s31 + $0x7d8] sm:$0xff]
    %v3624 = vld [vmem:[%s31 + $0x7e0] sm:$0xff]
    %v3625 = vld [vmem:[%s31 + $0x7e8] sm:$0xff]
    %v3626 = vld [vmem:[%s31 + $0x7f0] sm:$0xff]
    %v3627 = vld [vmem:[%s31 + $0x7f8] sm:$0xff]
    %v3628 = vld [vmem:[%s33] sm:$0x1]
    %v3630 = vlaneseq
    %v3631 = vshrl.u32 %v3630, 7
    %v3632 = vsub.s32 0, %v3631
    %v3633 = vrot.slane %v3628, %v3632
    %3635 = vmatprep.subr.mxu0 0.0
    %3636 = vmatpush1.msra.mxu0 %v3372
    %3637 = vmatprep.subr.mxu0 0.0
    %3638 = vmatpush1.msra.mxu0 %v3373
    %3639 = vmatprep.subr.mxu0 0.0
    %3640 = vmatpush1.msra.mxu0 %v3374
    %3641 = vmatprep.subr.mxu0 0.0
    %3642 = vmatpush1.msra.mxu0 %v3375
    %3643 = vmatprep.subr.mxu0 0.0
    %3644 = vmatpush1.msra.mxu0 %v3376
    %3645 = vmatprep.subr.mxu0 0.0
    %3646 = vmatpush1.msra.mxu0 %v3377
    %3647 = vmatprep.subr.mxu0 0.0
    %3648 = vmatpush1.msra.mxu0 %v3378
    %3649 = vmatprep.subr.mxu0 0.0
    %3650 = vmatpush1.msra.mxu0 %v3379
    %3651 = vmatprep.subr.mxu0 0.0
    %3652 = vmatpush1.msra.mxu0 %v3380
    %3653 = vmatprep.subr.mxu0 0.0
    %3654 = vmatpush1.msra.mxu0 %v3381
    %3655 = vmatprep.subr.mxu0 0.0
    %3656 = vmatpush1.msra.mxu0 %v3382
    %3657 = vmatprep.subr.mxu0 0.0
    %3658 = vmatpush1.msra.mxu0 %v3383
    %3659 = vmatprep.subr.mxu0 0.0
    %3660 = vmatpush1.msra.mxu0 %v3384
    %3661 = vmatprep.subr.mxu0 0.0
    %3662 = vmatpush1.msra.mxu0 %v3385
    %3663 = vmatprep.subr.mxu0 0.0
    %3664 = vmatpush1.msra.mxu0 %v3386
    %3665 = vmatprep.subr.mxu0 0.0
    %3666 = vmatpush1.msra.mxu0 %v3387
    %3667 = vmatprep.subr.mxu0 0.0
    %3668 = vmatpush1.msra.mxu0 %v3388
    %3669 = vmatprep.subr.mxu0 0.0
    %3670 = vmatpush1.msra.mxu0 %v3389
    %3671 = vmatprep.subr.mxu0 0.0
    %3672 = vmatpush1.msra.mxu0 %v3390
    %3673 = vmatprep.subr.mxu0 0.0
    %3674 = vmatpush1.msra.mxu0 %v3391
    %3675 = vmatprep.subr.mxu0 0.0
    %3676 = vmatpush1.msra.mxu0 %v3392
    %3677 = vmatprep.subr.mxu0 0.0
    %3678 = vmatpush1.msra.mxu0 %v3393
    %3679 = vmatprep.subr.mxu0 0.0
    %3680 = vmatpush1.msra.mxu0 %v3394
    %3681 = vmatprep.subr.mxu0 0.0
    %3682 = vmatpush1.msra.mxu0 %v3395
    %3683 = vmatprep.subr.mxu0 0.0
    %3684 = vmatpush1.msra.mxu0 %v3396
    %3685 = vmatprep.subr.mxu0 0.0
    %3686 = vmatpush1.msra.mxu0 %v3397
    %3687 = vmatprep.subr.mxu0 0.0
    %3688 = vmatpush1.msra.mxu0 %v3398
    %3689 = vmatprep.subr.mxu0 0.0
    %3690 = vmatpush1.msra.mxu0 %v3399
    %3691 = vmatprep.subr.mxu0 0.0
    %3692 = vmatpush1.msra.mxu0 %v3400
    %3693 = vmatprep.subr.mxu0 0.0
    %3694 = vmatpush1.msra.mxu0 %v3401
    %3695 = vmatprep.subr.mxu0 0.0
    %3696 = vmatpush1.msra.mxu0 %v3402
    %3697 = vmatprep.subr.mxu0 0.0
    %3698 = vmatpush1.msra.mxu0 %v3403
    %3699 = vmatprep.mubr.f32.mxu0 %v3341
    %3700 = vmatmul.mubr.f32.gmra.mrb[0].mxu0 %v3340
    %v3701 = vpop.f32.mrb[0].mxu0
    %v3702 = vadd.f32 %v3633, %v3701
    %v3703 = vpop.f32.mrb[0].mxu0
    %3704 = vmatprep.mubr.f32.mxu0 %v3357
    %3705 = vmatmul.mubr.f32.gmra.mrb[0].mxu0 %v3356
    %v3706 = vpop.f32.mrb[0].mxu0
    %v3707 = vadd.f32 %v3633, %v3706
    %v3708 = vpop.f32.mrb[0].mxu0
    %3709 = vdwg.mxu0
    %3710 = vmatprep.subr.mxu0 0.0
    %3711 = vmatpush1.msra.mxu0 %v3404
    %3712 = vmatprep.subr.mxu0 0.0
    %3713 = vmatpush1.msra.mxu0 %v3405
    %3714 = vmatprep.subr.mxu0 0.0
    %3715 = vmatpush1.msra.mxu0 %v3406
    %3716 = vmatprep.subr.mxu0 0.0
    %3717 = vmatpush1.msra.mxu0 %v3407
    %3718 = vmatprep.subr.mxu0 0.0
    %3719 = vmatpush1.msra.mxu0 %v3408
    %3720 = vmatprep.subr.mxu0 0.0
    %3721 = vmatpush1.msra.mxu0 %v3409
    %3722 = vmatprep.subr.mxu0 0.0
    %3723 = vmatpush1.msra.mxu0 %v3410
    %3724 = vmatprep.subr.mxu0 0.0
    %3725 = vmatpush1.msra.mxu0 %v3411
    %3726 = vmatprep.subr.mxu0 0.0
    %3727 = vmatpush1.msra.mxu0 %v3412
    %3728 = vmatprep.subr.mxu0 0.0
    %3729 = vmatpush1.msra.mxu0 %v3413
    %3730 = vmatprep.subr.mxu0 0.0
    %3731 = vmatpush1.msra.mxu0 %v3414
    %3732 = vmatprep.subr.mxu0 0.0
    %3733 = vmatpush1.msra.mxu0 %v3415
    %3734 = vmatprep.subr.mxu0 0.0
    %3735 = vmatpush1.msra.mxu0 %v3416
    %3736 = vmatprep.subr.mxu0 0.0
    %3737 = vmatpush1.msra.mxu0 %v3417
    %3738 = vmatprep.subr.mxu0 0.0
    %3739 = vmatpush1.msra.mxu0 %v3418
    %3740 = vmatprep.subr.mxu0 0.0
    %3741 = vmatpush1.msra.mxu0 %v3419
    %3742 = vmatprep.subr.mxu0 0.0
    %3743 = vmatpush1.msra.mxu0 %v3420
    %3744 = vmatprep.subr.mxu0 0.0
    %3745 = vmatpush1.msra.mxu0 %v3421
    %3746 = vmatprep.subr.mxu0 0.0
    %3747 = vmatpush1.msra.mxu0 %v3422
    %3748 = vmatprep.subr.mxu0 0.0
    %3749 = vmatpush1.msra.mxu0 %v3423
    %3750 = vmatprep.subr.mxu0 0.0
    %3751 = vmatpush1.msra.mxu0 %v3424
    %3752 = vmatprep.subr.mxu0 0.0
    %3753 = vmatpush1.msra.mxu0 %v3425
    %3754 = vmatprep.subr.mxu0 0.0
    %3755 = vmatpush1.msra.mxu0 %v3426
    %3756 = vmatprep.subr.mxu0 0.0
    %3757 = vmatpush1.msra.mxu0 %v3427
    %3758 = vmatprep.subr.mxu0 0.0
    %3759 = vmatpush1.msra.mxu0 %v3428
    %3760 = vmatprep.subr.mxu0 0.0
    %3761 = vmatpush1.msra.mxu0 %v3429
    %3762 = vmatprep.subr.mxu0 0.0
    %3763 = vmatpush1.msra.mxu0 %v3430
    %3764 = vmatprep.subr.mxu0 0.0
    %3765 = vmatpush1.msra.mxu0 %v3431
    %3766 = vmatprep.subr.mxu0 0.0
    %3767 = vmatpush1.msra.mxu0 %v3432
    %3768 = vmatprep.subr.mxu0 0.0
    %3769 = vmatpush1.msra.mxu0 %v3433
    %3770 = vmatprep.subr.mxu0 0.0
    %3771 = vmatpush1.msra.mxu0 %v3434
    %3772 = vmatprep.subr.mxu0 0.0
    %3773 = vmatpush1.msra.mxu0 %v3435
    %3774 = vmatprep.mubr.f32.mxu0 %v3343
    %3775 = vmatmul.mubr.f32.gmra.mrb[0].mxu0 %v3342
    %v3776 = vpop.f32.mrb[0].mxu0
    %v3777 = vadd.f32 %v3702, %v3776
    %v3778 = vpop.f32.mrb[0].mxu0
    %3779 = vmatprep.mubr.f32.mxu0 %v3359
    %3780 = vmatmul.mubr.f32.gmra.mrb[0].mxu0 %v3358
    %v3781 = vpop.f32.mrb[0].mxu0
    %v3782 = vadd.f32 %v3707, %v3781
    %v3783 = vpop.f32.mrb[0].mxu0
    %3784 = vdwg.mxu0
    %3785 = vmatprep.subr.mxu0 0.0
    %3786 = vmatpush1.msra.mxu0 %v3436
    %3787 = vmatprep.subr.mxu0 0.0
    %3788 = vmatpush1.msra.mxu0 %v3437
    %3789 = vmatprep.subr.mxu0 0.0
    %3790 = vmatpush1.msra.mxu0 %v3438
    %3791 = vmatprep.subr.mxu0 0.0
    %3792 = vmatpush1.msra.mxu0 %v3439
    %3793 = vmatprep.subr.mxu0 0.0
    %3794 = vmatpush1.msra.mxu0 %v3440
    %3795 = vmatprep.subr.mxu0 0.0
    %3796 = vmatpush1.msra.mxu0 %v3441
    %3797 = vmatprep.subr.mxu0 0.0
    %3798 = vmatpush1.msra.mxu0 %v3442
    %3799 = vmatprep.subr.mxu0 0.0
    %3800 = vmatpush1.msra.mxu0 %v3443
    %3801 = vmatprep.subr.mxu0 0.0
    %3802 = vmatpush1.msra.mxu0 %v3444
    %3803 = vmatprep.subr.mxu0 0.0
    %3804 = vmatpush1.msra.mxu0 %v3445
    %3805 = vmatprep.subr.mxu0 0.0
    %3806 = vmatpush1.msra.mxu0 %v3446
    %3807 = vmatprep.subr.mxu0 0.0
    %3808 = vmatpush1.msra.mxu0 %v3447
    %3809 = vmatprep.subr.mxu0 0.0
    %3810 = vmatpush1.msra.mxu0 %v3448
    %3811 = vmatprep.subr.mxu0 0.0
    %3812 = vmatpush1.msra.mxu0 %v3449
    %3813 = vmatprep.subr.mxu0 0.0
    %3814 = vmatpush1.msra.mxu0 %v3450
    %3815 = vmatprep.subr.mxu0 0.0
    %3816 = vmatpush1.msra.mxu0 %v3451
    %3817 = vmatprep.subr.mxu0 0.0
    %3818 = vmatpush1.msra.mxu0 %v3452
    %3819 = vmatprep.subr.mxu0 0.0
    %3820 = vmatpush1.msra.mxu0 %v3453
    %3821 = vmatprep.subr.mxu0 0.0
    %3822 = vmatpush1.msra.mxu0 %v3454
    %3823 = vmatprep.subr.mxu0 0.0
    %3824 = vmatpush1.msra.mxu0 %v3455
    %3825 = vmatprep.subr.mxu0 0.0
    %3826 = vmatpush1.msra.mxu0 %v3456
    %3827 = vmatprep.subr.mxu0 0.0
    %3828 = vmatpush1.msra.mxu0 %v3457
    %3829 = vmatprep.subr.mxu0 0.0
    %3830 = vmatpush1.msra.mxu0 %v3458
    %3831 = vmatprep.subr.mxu0 0.0
    %3832 = vmatpush1.msra.mxu0 %v3459
    %3833 = vmatprep.subr.mxu0 0.0
    %3834 = vmatpush1.msra.mxu0 %v3460
    %3835 = vmatprep.subr.mxu0 0.0
    %3836 = vmatpush1.msra.mxu0 %v3461
    %3837 = vmatprep.subr.mxu0 0.0
    %3838 = vmatpush1.msra.mxu0 %v3462
    %3839 = vmatprep.subr.mxu0 0.0
    %3840 = vmatpush1.msra.mxu0 %v3463
    %3841 = vmatprep.subr.mxu0 0.0
    %3842 = vmatpush1.msra.mxu0 %v3464
    %3843 = vmatprep.subr.mxu0 0.0
    %3844 = vmatpush1.msra.mxu0 %v3465
    %3845 = vmatprep.subr.mxu0 0.0
    %3846 = vmatpush1.msra.mxu0 %v3466
    %3847 = vmatprep.subr.mxu0 0.0
    %3848 = vmatpush1.msra.mxu0 %v3467
    %3849 = vmatprep.mubr.f32.mxu0 %v3345
    %3850 = vmatmul.mubr.f32.gmra.mrb[0].mxu0 %v3344
    %v3851 = vpop.f32.mrb[0].mxu0
    %v3852 = vadd.f32 %v3777, %v3851
    %v3853 = vpop.f32.mrb[0].mxu0
    %3854 = vmatprep.mubr.f32.mxu0 %v3361
    %3855 = vmatmul.mubr.f32.gmra.mrb[0].mxu0 %v3360
    %v3856 = vpop.f32.mrb[0].mxu0
    %v3857 = vadd.f32 %v3782, %v3856
    %v3858 = vpop.f32.mrb[0].mxu0
    %3859 = vdwg.mxu0
    %3860 = vmatprep.subr.mxu0 0.0
    %3861 = vmatpush1.msra.mxu0 %v3468
    %3862 = vmatprep.subr.mxu0 0.0
    %3863 = vmatpush1.msra.mxu0 %v3469
    %3864 = vmatprep.subr.mxu0 0.0
    %3865 = vmatpush1.msra.mxu0 %v3470
    %3866 = vmatprep.subr.mxu0 0.0
    %3867 = vmatpush1.msra.mxu0 %v3471
    %3868 = vmatprep.subr.mxu0 0.0
    %3869 = vmatpush1.msra.mxu0 %v3472
    %3870 = vmatprep.subr.mxu0 0.0
    %3871 = vmatpush1.msra.mxu0 %v3473
    %3872 = vmatprep.subr.mxu0 0.0
    %3873 = vmatpush1.msra.mxu0 %v3474
    %3874 = vmatprep.subr.mxu0 0.0
    %3875 = vmatpush1.msra.mxu0 %v3475
    %3876 = vmatprep.subr.mxu0 0.0
    %3877 = vmatpush1.msra.mxu0 %v3476
    %3878 = vmatprep.subr.mxu0 0.0
    %3879 = vmatpush1.msra.mxu0 %v3477
    %3880 = vmatprep.subr.mxu0 0.0
    %3881 = vmatpush1.msra.mxu0 %v3478
    %3882 = vmatprep.subr.mxu0 0.0
    %3883 = vmatpush1.msra.mxu0 %v3479
    %3884 = vmatprep.subr.mxu0 0.0
    %3885 = vmatpush1.msra.mxu0 %v3480
    %3886 = vmatprep.subr.mxu0 0.0
    %3887 = vmatpush1.msra.mxu0 %v3481
    %3888 = vmatprep.subr.mxu0 0.0
    %3889 = vmatpush1.msra.mxu0 %v3482
    %3890 = vmatprep.subr.mxu0 0.0
    %3891 = vmatpush1.msra.mxu0 %v3483
    %3892 = vmatprep.subr.mxu0 0.0
    %3893 = vmatpush1.msra.mxu0 %v3484
    %3894 = vmatprep.subr.mxu0 0.0
    %3895 = vmatpush1.msra.mxu0 %v3485
    %3896 = vmatprep.subr.mxu0 0.0
    %3897 = vmatpush1.msra.mxu0 %v3486
    %3898 = vmatprep.subr.mxu0 0.0
    %3899 = vmatpush1.msra.mxu0 %v3487
    %3900 = vmatprep.subr.mxu0 0.0
    %3901 = vmatpush1.msra.mxu0 %v3488
    %3902 = vmatprep.subr.mxu0 0.0
    %3903 = vmatpush1.msra.mxu0 %v3489
    %3904 = vmatprep.subr.mxu0 0.0
    %3905 = vmatpush1.msra.mxu0 %v3490
    %3906 = vmatprep.subr.mxu0 0.0
    %3907 = vmatpush1.msra.mxu0 %v3491
    %3908 = vmatprep.subr.mxu0 0.0
    %3909 = vmatpush1.msra.mxu0 %v3492
    %3910 = vmatprep.subr.mxu0 0.0
    %3911 = vmatpush1.msra.mxu0 %v3493
    %3912 = vmatprep.subr.mxu0 0.0
    %3913 = vmatpush1.msra.mxu0 %v3494
    %3914 = vmatprep.subr.mxu0 0.0
    %3915 = vmatpush1.msra.mxu0 %v3495
    %3916 = vmatprep.subr.mxu0 0.0
    %3917 = vmatpush1.msra.mxu0 %v3496
    %3918 = vmatprep.subr.mxu0 0.0
    %3919 = vmatpush1.msra.mxu0 %v3497
    %3920 = vmatprep.subr.mxu0 0.0
    %3921 = vmatpush1.msra.mxu0 %v3498
    %3922 = vmatprep.subr.mxu0 0.0
    %3923 = vmatpush1.msra.mxu0 %v3499
    %3924 = vmatprep.mubr.f32.mxu0 %v3347
    %3925 = vmatmul.mubr.f32.gmra.mrb[0].mxu0 %v3346
    %v3926 = vpop.f32.mrb[0].mxu0
    %v3927 = vadd.f32 %v3852, %v3926
    %v3928 = vpop.f32.mrb[0].mxu0
    %3929 = vmatprep.mubr.f32.mxu0 %v3363
    %3930 = vmatmul.mubr.f32.gmra.mrb[0].mxu0 %v3362
    %v3931 = vpop.f32.mrb[0].mxu0
    %v3932 = vadd.f32 %v3857, %v3931
    %v3933 = vpop.f32.mrb[0].mxu0
    %3934 = vdwg.mxu0
    %3935 = vmatprep.subr.mxu0 0.0
    %3936 = vmatpush1.msra.mxu0 %v3500
    %3937 = vmatprep.subr.mxu0 0.0
    %3938 = vmatpush1.msra.mxu0 %v3501
    %3939 = vmatprep.subr.mxu0 0.0
    %3940 = vmatpush1.msra.mxu0 %v3502
    %3941 = vmatprep.subr.mxu0 0.0
    %3942 = vmatpush1.msra.mxu0 %v3503
    %3943 = vmatprep.subr.mxu0 0.0
    %3944 = vmatpush1.msra.mxu0 %v3504
    %3945 = vmatprep.subr.mxu0 0.0
    %3946 = vmatpush1.msra.mxu0 %v3505
    %3947 = vmatprep.subr.mxu0 0.0
    %3948 = vmatpush1.msra.mxu0 %v3506
    %3949 = vmatprep.subr.mxu0 0.0
    %3950 = vmatpush1.msra.mxu0 %v3507
    %3951 = vmatprep.subr.mxu0 0.0
    %3952 = vmatpush1.msra.mxu0 %v3508
    %3953 = vmatprep.subr.mxu0 0.0
    %3954 = vmatpush1.msra.mxu0 %v3509
    %3955 = vmatprep.subr.mxu0 0.0
    %3956 = vmatpush1.msra.mxu0 %v3510
    %3957 = vmatprep.subr.mxu0 0.0
    %3958 = vmatpush1.msra.mxu0 %v3511
    %3959 = vmatprep.subr.mxu0 0.0
    %3960 = vmatpush1.msra.mxu0 %v3512
    %3961 = vmatprep.subr.mxu0 0.0
    %3962 = vmatpush1.msra.mxu0 %v3513
    %3963 = vmatprep.subr.mxu0 0.0
    %3964 = vmatpush1.msra.mxu0 %v3514
    %3965 = vmatprep.subr.mxu0 0.0
    %3966 = vmatpush1.msra.mxu0 %v3515
    %3967 = vmatprep.subr.mxu0 0.0
    %3968 = vmatpush1.msra.mxu0 %v3516
    %3969 = vmatprep.subr.mxu0 0.0
    %3970 = vmatpush1.msra.mxu0 %v3517
    %3971 = vmatprep.subr.mxu0 0.0
    %3972 = vmatpush1.msra.mxu0 %v3518
    %3973 = vmatprep.subr.mxu0 0.0
    %3974 = vmatpush1.msra.mxu0 %v3519
    %3975 = vmatprep.subr.mxu0 0.0
    %3976 = vmatpush1.msra.mxu0 %v3520
    %3977 = vmatprep.subr.mxu0 0.0
    %3978 = vmatpush1.msra.mxu0 %v3521
    %3979 = vmatprep.subr.mxu0 0.0
    %3980 = vmatpush1.msra.mxu0 %v3522
    %3981 = vmatprep.subr.mxu0 0.0
    %3982 = vmatpush1.msra.mxu0 %v3523
    %3983 = vmatprep.subr.mxu0 0.0
    %3984 = vmatpush1.msra.mxu0 %v3524
    %3985 = vmatprep.subr.mxu0 0.0
    %3986 = vmatpush1.msra.mxu0 %v3525
    %3987 = vmatprep.subr.mxu0 0.0
    %3988 = vmatpush1.msra.mxu0 %v3526
    %3989 = vmatprep.subr.mxu0 0.0
    %3990 = vmatpush1.msra.mxu0 %v3527
    %3991 = vmatprep.subr.mxu0 0.0
    %3992 = vmatpush1.msra.mxu0 %v3528
    %3993 = vmatprep.subr.mxu0 0.0
    %3994 = vmatpush1.msra.mxu0 %v3529
    %3995 = vmatprep.subr.mxu0 0.0
    %3996 = vmatpush1.msra.mxu0 %v3530
    %3997 = vmatprep.subr.mxu0 0.0
    %3998 = vmatpush1.msra.mxu0 %v3531
    %3999 = vmatprep.mubr.f32.mxu0 %v3349
    %4000 = vmatmul.mubr.f32.gmra.mrb[0].mxu0 %v3348
    %v4001 = vpop.f32.mrb[0].mxu0
    %v4002 = vadd.f32 %v3927, %v4001
    %v4003 = vpop.f32.mrb[0].mxu0
    %4004 = vmatprep.mubr.f32.mxu0 %v3365
    %4005 = vmatmul.mubr.f32.gmra.mrb[0].mxu0 %v3364
    %v4006 = vpop.f32.mrb[0].mxu0
    %v4007 = vadd.f32 %v3932, %v4006
    %v4008 = vpop.f32.mrb[0].mxu0
    %4009 = vdwg.mxu0
    %4010 = vmatprep.subr.mxu0 0.0
    %4011 = vmatpush1.msra.mxu0 %v3532
    %4012 = vmatprep.subr.mxu0 0.0
    %4013 = vmatpush1.msra.mxu0 %v3533
    %4014 = vmatprep.subr.mxu0 0.0
    %4015 = vmatpush1.msra.mxu0 %v3534
    %4016 = vmatprep.subr.mxu0 0.0
    %4017 = vmatpush1.msra.mxu0 %v3535
    %4018 = vmatprep.subr.mxu0 0.0
    %4019 = vmatpush1.msra.mxu0 %v3536
    %4020 = vmatprep.subr.mxu0 0.0
    %4021 = vmatpush1.msra.mxu0 %v3537
    %4022 = vmatprep.subr.mxu0 0.0
    %4023 = vmatpush1.msra.mxu0 %v3538
    %4024 = vmatprep.subr.mxu0 0.0
    %4025 = vmatpush1.msra.mxu0 %v3539
    %4026 = vmatprep.subr.mxu0 0.0
    %4027 = vmatpush1.msra.mxu0 %v3540
    %4028 = vmatprep.subr.mxu0 0.0
    %4029 = vmatpush1.msra.mxu0 %v3541
    %4030 = vmatprep.subr.mxu0 0.0
    %4031 = vmatpush1.msra.mxu0 %v3542
    %4032 = vmatprep.subr.mxu0 0.0
    %4033 = vmatpush1.msra.mxu0 %v3543
    %4034 = vmatprep.subr.mxu0 0.0
    %4035 = vmatpush1.msra.mxu0 %v3544
    %4036 = vmatprep.subr.mxu0 0.0
    %4037 = vmatpush1.msra.mxu0 %v3545
    %4038 = vmatprep.subr.mxu0 0.0
    %4039 = vmatpush1.msra.mxu0 %v3546
    %4040 = vmatprep.subr.mxu0 0.0
    %4041 = vmatpush1.msra.mxu0 %v3547
    %4042 = vmatprep.subr.mxu0 0.0
    %4043 = vmatpush1.msra.mxu0 %v3548
    %4044 = vmatprep.subr.mxu0 0.0
    %4045 = vmatpush1.msra.mxu0 %v3549
    %4046 = vmatprep.subr.mxu0 0.0
    %4047 = vmatpush1.msra.mxu0 %v3550
    %4048 = vmatprep.subr.mxu0 0.0
    %4049 = vmatpush1.msra.mxu0 %v3551
    %4050 = vmatprep.subr.mxu0 0.0
    %4051 = vmatpush1.msra.mxu0 %v3552
    %4052 = vmatprep.subr.mxu0 0.0
    %4053 = vmatpush1.msra.mxu0 %v3553
    %4054 = vmatprep.subr.mxu0 0.0
    %4055 = vmatpush1.msra.mxu0 %v3554
    %4056 = vmatprep.subr.mxu0 0.0
    %4057 = vmatpush1.msra.mxu0 %v3555
    %4058 = vmatprep.subr.mxu0 0.0
    %4059 = vmatpush1.msra.mxu0 %v3556
    %4060 = vmatprep.subr.mxu0 0.0
    %4061 = vmatpush1.msra.mxu0 %v3557
    %4062 = vmatprep.subr.mxu0 0.0
    %4063 = vmatpush1.msra.mxu0 %v3558
    %4064 = vmatprep.subr.mxu0 0.0
    %4065 = vmatpush1.msra.mxu0 %v3559
    %4066 = vmatprep.subr.mxu0 0.0
    %4067 = vmatpush1.msra.mxu0 %v3560
    %4068 = vmatprep.subr.mxu0 0.0
    %4069 = vmatpush1.msra.mxu0 %v3561
    %4070 = vmatprep.subr.mxu0 0.0
    %4071 = vmatpush1.msra.mxu0 %v3562
    %4072 = vmatprep.subr.mxu0 0.0
    %4073 = vmatpush1.msra.mxu0 %v3563
    %4074 = vmatprep.mubr.f32.mxu0 %v3351
    %4075 = vmatmul.mubr.f32.gmra.mrb[0].mxu0 %v3350
    %v4076 = vpop.f32.mrb[0].mxu0
    %v4077 = vadd.f32 %v4002, %v4076
    %v4078 = vpop.f32.mrb[0].mxu0
    %4079 = vmatprep.mubr.f32.mxu0 %v3367
    %4080 = vmatmul.mubr.f32.gmra.mrb[0].mxu0 %v3366
    %v4081 = vpop.f32.mrb[0].mxu0
    %v4082 = vadd.f32 %v4007, %v4081
    %v4083 = vpop.f32.mrb[0].mxu0
    %4084 = vdwg.mxu0
    %4085 = vmatprep.subr.mxu0 0.0
    %4086 = vmatpush1.msra.mxu0 %v3564
    %4087 = vmatprep.subr.mxu0 0.0
    %4088 = vmatpush1.msra.mxu0 %v3565
    %4089 = vmatprep.subr.mxu0 0.0
    %4090 = vmatpush1.msra.mxu0 %v3566
    %4091 = vmatprep.subr.mxu0 0.0
    %4092 = vmatpush1.msra.mxu0 %v3567
    %4093 = vmatprep.subr.mxu0 0.0
    %4094 = vmatpush1.msra.mxu0 %v3568
    %4095 = vmatprep.subr.mxu0 0.0
    %4096 = vmatpush1.msra.mxu0 %v3569
    %4097 = vmatprep.subr.mxu0 0.0
    %4098 = vmatpush1.msra.mxu0 %v3570
    %4099 = vmatprep.subr.mxu0 0.0
    %4100 = vmatpush1.msra.mxu0 %v3571
    %4101 = vmatprep.subr.mxu0 0.0
    %4102 = vmatpush1.msra.mxu0 %v3572
    %4103 = vmatprep.subr.mxu0 0.0
    %4104 = vmatpush1.msra.mxu0 %v3573
    %4105 = vmatprep.subr.mxu0 0.0
    %4106 = vmatpush1.msra.mxu0 %v3574
    %4107 = vmatprep.subr.mxu0 0.0
    %4108 = vmatpush1.msra.mxu0 %v3575
    %4109 = vmatprep.subr.mxu0 0.0
    %4110 = vmatpush1.msra.mxu0 %v3576
    %4111 = vmatprep.subr.mxu0 0.0
    %4112 = vmatpush1.msra.mxu0 %v3577
    %4113 = vmatprep.subr.mxu0 0.0
    %4114 = vmatpush1.msra.mxu0 %v3578
    %4115 = vmatprep.subr.mxu0 0.0
    %4116 = vmatpush1.msra.mxu0 %v3579
    %4117 = vmatprep.subr.mxu0 0.0
    %4118 = vmatpush1.msra.mxu0 %v3580
    %4119 = vmatprep.subr.mxu0 0.0
    %4120 = vmatpush1.msra.mxu0 %v3581
    %4121 = vmatprep.subr.mxu0 0.0
    %4122 = vmatpush1.msra.mxu0 %v3582
    %4123 = vmatprep.subr.mxu0 0.0
    %4124 = vmatpush1.msra.mxu0 %v3583
    %4125 = vmatprep.subr.mxu0 0.0
    %4126 = vmatpush1.msra.mxu0 %v3584
    %4127 = vmatprep.subr.mxu0 0.0
    %4128 = vmatpush1.msra.mxu0 %v3585
    %4129 = vmatprep.subr.mxu0 0.0
    %4130 = vmatpush1.msra.mxu0 %v3586
    %4131 = vmatprep.subr.mxu0 0.0
    %4132 = vmatpush1.msra.mxu0 %v3587
    %4133 = vmatprep.subr.mxu0 0.0
    %4134 = vmatpush1.msra.mxu0 %v3588
    %4135 = vmatprep.subr.mxu0 0.0
    %4136 = vmatpush1.msra.mxu0 %v3589
    %4137 = vmatprep.subr.mxu0 0.0
    %4138 = vmatpush1.msra.mxu0 %v3590
    %4139 = vmatprep.subr.mxu0 0.0
    %4140 = vmatpush1.msra.mxu0 %v3591
    %4141 = vmatprep.subr.mxu0 0.0
    %4142 = vmatpush1.msra.mxu0 %v3592
    %4143 = vmatprep.subr.mxu0 0.0
    %4144 = vmatpush1.msra.mxu0 %v3593
    %4145 = vmatprep.subr.mxu0 0.0
    %4146 = vmatpush1.msra.mxu0 %v3594
    %4147 = vmatprep.subr.mxu0 0.0
    %4148 = vmatpush1.msra.mxu0 %v3595
    %4149 = vmatprep.mubr.f32.mxu0 %v3353
    %4150 = vmatmul.mubr.f32.gmra.mrb[0].mxu0 %v3352
    %v4151 = vpop.f32.mrb[0].mxu0
    %v4152 = vadd.f32 %v4077, %v4151
    %v4153 = vpop.f32.mrb[0].mxu0
    %4154 = vmatprep.mubr.f32.mxu0 %v3369
    %4155 = vmatmul.mubr.f32.gmra.mrb[0].mxu0 %v3368
    %v4156 = vpop.f32.mrb[0].mxu0
    %v4157 = vadd.f32 %v4082, %v4156
    %v4158 = vpop.f32.mrb[0].mxu0
    %4159 = vdwg.mxu0
    %4160 = vmatprep.subr.mxu0 0.0
    %4161 = vmatpush1.msra.mxu0 %v3596
    %4162 = vmatprep.subr.mxu0 0.0
    %4163 = vmatpush1.msra.mxu0 %v3597
    %4164 = vmatprep.subr.mxu0 0.0
    %4165 = vmatpush1.msra.mxu0 %v3598
    %4166 = vmatprep.subr.mxu0 0.0
    %4167 = vmatpush1.msra.mxu0 %v3599
    %4168 = vmatprep.subr.mxu0 0.0
    %4169 = vmatpush1.msra.mxu0 %v3600
    %4170 = vmatprep.subr.mxu0 0.0
    %4171 = vmatpush1.msra.mxu0 %v3601
    %4172 = vmatprep.subr.mxu0 0.0
    %4173 = vmatpush1.msra.mxu0 %v3602
    %4174 = vmatprep.subr.mxu0 0.0
    %4175 = vmatpush1.msra.mxu0 %v3603
    %4176 = vmatprep.subr.mxu0 0.0
    %4177 = vmatpush1.msra.mxu0 %v3604
    %4178 = vmatprep.subr.mxu0 0.0
    %4179 = vmatpush1.msra.mxu0 %v3605
    %4180 = vmatprep.subr.mxu0 0.0
    %4181 = vmatpush1.msra.mxu0 %v3606
    %4182 = vmatprep.subr.mxu0 0.0
    %4183 = vmatpush1.msra.mxu0 %v3607
    %4184 = vmatprep.subr.mxu0 0.0
    %4185 = vmatpush1.msra.mxu0 %v3608
    %4186 = vmatprep.subr.mxu0 0.0
    %4187 = vmatpush1.msra.mxu0 %v3609
    %4188 = vmatprep.subr.mxu0 0.0
    %4189 = vmatpush1.msra.mxu0 %v3610
    %4190 = vmatprep.subr.mxu0 0.0
    %4191 = vmatpush1.msra.mxu0 %v3611
    %4192 = vmatprep.subr.mxu0 0.0
    %4193 = vmatpush1.msra.mxu0 %v3612
    %4194 = vmatprep.subr.mxu0 0.0
    %4195 = vmatpush1.msra.mxu0 %v3613
    %4196 = vmatprep.subr.mxu0 0.0
    %4197 = vmatpush1.msra.mxu0 %v3614
    %4198 = vmatprep.subr.mxu0 0.0
    %4199 = vmatpush1.msra.mxu0 %v3615
    %4200 = vmatprep.subr.mxu0 0.0
    %4201 = vmatpush1.msra.mxu0 %v3616
    %4202 = vmatprep.subr.mxu0 0.0
    %4203 = vmatpush1.msra.mxu0 %v3617
    %4204 = vmatprep.subr.mxu0 0.0
    %4205 = vmatpush1.msra.mxu0 %v3618
    %4206 = vmatprep.subr.mxu0 0.0
    %4207 = vmatpush1.msra.mxu0 %v3619
    %4208 = vmatprep.subr.mxu0 0.0
    %4209 = vmatpush1.msra.mxu0 %v3620
    %4210 = vmatprep.subr.mxu0 0.0
    %4211 = vmatpush1.msra.mxu0 %v3621
    %4212 = vmatprep.subr.mxu0 0.0
    %4213 = vmatpush1.msra.mxu0 %v3622
    %4214 = vmatprep.subr.mxu0 0.0
    %4215 = vmatpush1.msra.mxu0 %v3623
    %4216 = vmatprep.subr.mxu0 0.0
    %4217 = vmatpush1.msra.mxu0 %v3624
    %4218 = vmatprep.subr.mxu0 0.0
    %4219 = vmatpush1.msra.mxu0 %v3625
    %4220 = vmatprep.subr.mxu0 0.0
    %4221 = vmatpush1.msra.mxu0 %v3626
    %4222 = vmatprep.subr.mxu0 0.0
    %4223 = vmatpush1.msra.mxu0 %v3627
    %4224 = vmatprep.mubr.f32.mxu0 %v3355
    %4225 = vmatmul.mubr.f32.gmra.mrb[0].mxu0 %v3354
    %v4226 = vpop.f32.mrb[0].mxu0
    %v4227 = vadd.f32 %v4152, %v4226
    %v4228 = vpop.f32.mrb[0].mxu0
    %4229 = vmatprep.mubr.f32.mxu0 %v3371
    %4230 = vmatmul.mubr.f32.gmra.mrb[0].mxu0 %v3370
    %v4231 = vpop.f32.mrb[0].mxu0
    %v4232 = vadd.f32 %v4157, %v4231
    %v4233 = vpop.f32.mrb[0].mxu0
    %4234 = vdwg.mxu0
    %v4235 = vadd.f32 %v2504, %v4227
    %v4236 = vadd.f32 %v2505, %v4232
    %v4237 = vld [vmem:[%s35] sm:$0x1]
    %v4238 = vld [vmem:[%s37] sm:$0x1]
    %v4239 = vsel %vm267, %v4235, 0.0
    %4240 = vadd.xlane.f32.xlu0 %v4239
    %v4241 = vpop.xlane.xlu0 %4240
    %v4242 = vsel %vm267, %v4236, 0.0
    %4243 = vadd.xlane.f32.xlu0 %v4242
    %v4244 = vpop.xlane.xlu0 %4243
    %v4245 = vmul.f32 %v4241, %v2469
    %v4246 = vmul.f32 %v4244, %v2469
    %v4247 = vsub.f32 %v4235, %v4245
    %v4248 = vsub.f32 %v4236, %v4246
    %v4249 = vmul.f32 %v4247, %v4247
    %v4250 = vmul.f32 %v4248, %v4248
    %v4251 = vsel %vm267, %v4249, 0.0
    %4252 = vadd.xlane.f32.xlu0 %v4251
    %v4253 = vpop.xlane.xlu0 %4252
    %v4254 = vsel %vm267, %v4250, 0.0
    %4255 = vadd.xlane.f32.xlu0 %v4254
    %v4256 = vpop.xlane.xlu0 %4255
    %v4257 = vmul.f32 %v4253, %v2469
    %v4258 = vmul.f32 %v4256, %v2469
    %v4259 = vadd.f32 %v4257, 1e-05
    %v4260 = vadd.f32 %v4258, 1e-05
    %v4261 = vrsqrt.pop %v4259
    %v4262 = vrsqrt.pop %v4260
    %v4263 = vmul.f32 %v4247, %v4261
    %v4264 = vmul.f32 %v4248, %v4262
    %v4266 = vlaneseq
    %v4267 = vshrl.u32 %v4266, 7
    %v4268 = vsub.s32 0, %v4267
    %v4269 = vrot.slane %v4237, %v4268
    %v4271 = vmul.f32 %v4263, %v4269
    %v4272 = vmul.f32 %v4264, %v4269
    %v4274 = vlaneseq
    %v4275 = vshrl.u32 %v4274, 7
    %v4276 = vsub.s32 0, %v4275
    %v4277 = vrot.slane %v4238, %v4276
    %v4279 = vadd.f32 %v4271, %v4277
    %v4280 = vadd.f32 %v4272, %v4277
    %v4281 = vld [vmem:[%s39] sm:$0xff]
    %v4282 = vld [vmem:[%s39 + $0x8] sm:$0xff]
    %v4283 = vld [vmem:[%s39 + $0x10] sm:$0xff]
    %v4284 = vld [vmem:[%s39 + $0x18] sm:$0xff]
    %v4285 = vld [vmem:[%s39 + $0x20] sm:$0xff]
    %v4286 = vld [vmem:[%s39 + $0x28] sm:$0xff]
    %v4287 = vld [vmem:[%s39 + $0x30] sm:$0xff]
    %v4288 = vld [vmem:[%s39 + $0x38] sm:$0xff]
    %v4289 = vld [vmem:[%s41] sm:$0x1]
    %v4291 = vlaneseq
    %v4292 = vshrl.u32 %v4291, 7
    %v4293 = vsub.s32 0, %v4292
    %v4294 = vrot.slane %v4289, %v4293
    %v4297 = vsel %vm267, %v4279, 0
    %v4300 = vsel %vm267, %v4280, 0
    %4302 = vmatprep.subr.mxu0 0.0
    %4303 = vmatpush1.msra.mxu0 %v4281
    %4304 = vmatprep.subr.mxu0 0.0
    %4305 = vmatpush1.msra.mxu0 %v4282
    %4306 = vmatprep.subr.mxu0 0.0
    %4307 = vmatpush1.msra.mxu0 %v4283
    %4308 = vmatprep.subr.mxu0 0.0
    %4309 = vmatpush1.msra.mxu0 %v4284
    %4310 = vmatprep.subr.mxu0 0.0
    %4311 = vmatpush1.msra.mxu0 %v4285
    %4312 = vmatprep.subr.mxu0 0.0
    %4313 = vmatpush1.msra.mxu0 %v4286
    %4314 = vmatprep.subr.mxu0 0.0
    %4315 = vmatpush1.msra.mxu0 %v4287
    %4316 = vmatprep.subr.mxu0 0.0
    %4317 = vmatpush1.msra.mxu0 %v4288
    %4318 = vmatprep.subr.mxu0 0.0
    %4319 = vmatpush1.msra.mxu0 0.0
    %4320 = vmatprep.subr.mxu0 0.0
    %4321 = vmatpush1.msra.mxu0 0.0
    %4322 = vmatprep.subr.mxu0 0.0
    %4323 = vmatpush1.msra.mxu0 0.0
    %4324 = vmatprep.subr.mxu0 0.0
    %4325 = vmatpush1.msra.mxu0 0.0
    %4326 = vmatprep.subr.mxu0 0.0
    %4327 = vmatpush1.msra.mxu0 0.0
    %4328 = vmatprep.subr.mxu0 0.0
    %4329 = vmatpush1.msra.mxu0 0.0
    %4330 = vmatprep.subr.mxu0 0.0
    %4331 = vmatpush1.msra.mxu0 0.0
    %4332 = vmatprep.subr.mxu0 0.0
    %4333 = vmatpush1.msra.mxu0 0.0
    %4334 = vmatprep.subr.mxu0 0.0
    %4335 = vmatpush1.msra.mxu0 0.0
    %4336 = vmatprep.subr.mxu0 0.0
    %4337 = vmatpush1.msra.mxu0 0.0
    %4338 = vmatprep.subr.mxu0 0.0
    %4339 = vmatpush1.msra.mxu0 0.0
    %4340 = vmatprep.subr.mxu0 0.0
    %4341 = vmatpush1.msra.mxu0 0.0
    %4342 = vmatprep.subr.mxu0 0.0
    %4343 = vmatpush1.msra.mxu0 0.0
    %4344 = vmatprep.subr.mxu0 0.0
    %4345 = vmatpush1.msra.mxu0 0.0
    %4346 = vmatprep.subr.mxu0 0.0
    %4347 = vmatpush1.msra.mxu0 0.0
    %4348 = vmatprep.subr.mxu0 0.0
    %4349 = vmatpush1.msra.mxu0 0.0
    %4350 = vmatprep.subr.mxu0 0.0
    %4351 = vmatpush1.msra.mxu0 0.0
    %4352 = vmatprep.subr.mxu0 0.0
    %4353 = vmatpush1.msra.mxu0 0.0
    %4354 = vmatprep.subr.mxu0 0.0
    %4355 = vmatpush1.msra.mxu0 0.0
    %4356 = vmatprep.subr.mxu0 0.0
    %4357 = vmatpush1.msra.mxu0 0.0
    %4358 = vmatprep.subr.mxu0 0.0
    %4359 = vmatpush1.msra.mxu0 0.0
    %4360 = vmatprep.subr.mxu0 0.0
    %4361 = vmatpush1.msra.mxu0 0.0
    %4362 = vmatprep.subr.mxu0 0.0
    %4363 = vmatpush1.msra.mxu0 0.0
    %4364 = vmatprep.subr.mxu0 0.0
    %4365 = vmatpush1.msra.mxu0 0.0
    %4366 = vmatprep.mubr.f32.mxu0 0.0
    %4367 = vmatmul.mubr.f32.gmra.mrb[0].mxu0 %v4297
    %v4368 = vpop.f32.mrb[0].mxu0
    %v4369 = vadd.f32 %v4294, %v4368
    %v4370 = vpop.f32.mrb[0].mxu0
    %4371 = vmatprep.mubr.f32.mxu0 0.0
    %4372 = vmatmul.mubr.f32.gmra.mrb[0].mxu0 %v4300
    %v4373 = vpop.f32.mrb[0].mxu0
    %v4374 = vadd.f32 %v4294, %v4373
    %v4375 = vpop.f32.mrb[0].mxu0
    %4376 = vdwg.mxu0
    %v4377 = vld [vmem:[%s43] sm:$0xff]
    %v4378 = vld [vmem:[%s43 + $0x8] sm:$0xff]
    %v4379 = vld [vmem:[%s43 + $0x10] sm:$0xff]
    %v4380 = vld [vmem:[%s43 + $0x18] sm:$0xff]
    %v4381 = vld [vmem:[%s43 + $0x20] sm:$0xff]
    %v4382 = vld [vmem:[%s43 + $0x28] sm:$0xff]
    %v4383 = vld [vmem:[%s43 + $0x30] sm:$0xff]
    %v4384 = vld [vmem:[%s43 + $0x38] sm:$0xff]
    %v4385 = vld [vmem:[%s45] sm:$0x1]
    %v4387 = vlaneseq
    %v4388 = vshrl.u32 %v4387, 7
    %v4389 = vsub.s32 0, %v4388
    %v4390 = vrot.slane %v4385, %v4389
    %4392 = vmatprep.subr.mxu0 0.0
    %4393 = vmatpush1.msra.mxu0 %v4377
    %4394 = vmatprep.subr.mxu0 0.0
    %4395 = vmatpush1.msra.mxu0 %v4378
    %4396 = vmatprep.subr.mxu0 0.0
    %4397 = vmatpush1.msra.mxu0 %v4379
    %4398 = vmatprep.subr.mxu0 0.0
    %4399 = vmatpush1.msra.mxu0 %v4380
    %4400 = vmatprep.subr.mxu0 0.0
    %4401 = vmatpush1.msra.mxu0 %v4381
    %4402 = vmatprep.subr.mxu0 0.0
    %4403 = vmatpush1.msra.mxu0 %v4382
    %4404 = vmatprep.subr.mxu0 0.0
    %4405 = vmatpush1.msra.mxu0 %v4383
    %4406 = vmatprep.subr.mxu0 0.0
    %4407 = vmatpush1.msra.mxu0 %v4384
    %4408 = vmatprep.subr.mxu0 0.0
    %4409 = vmatpush1.msra.mxu0 0.0
    %4410 = vmatprep.subr.mxu0 0.0
    %4411 = vmatpush1.msra.mxu0 0.0
    %4412 = vmatprep.subr.mxu0 0.0
    %4413 = vmatpush1.msra.mxu0 0.0
    %4414 = vmatprep.subr.mxu0 0.0
    %4415 = vmatpush1.msra.mxu0 0.0
    %4416 = vmatprep.subr.mxu0 0.0
    %4417 = vmatpush1.msra.mxu0 0.0
    %4418 = vmatprep.subr.mxu0 0.0
    %4419 = vmatpush1.msra.mxu0 0.0
    %4420 = vmatprep.subr.mxu0 0.0
    %4421 = vmatpush1.msra.mxu0 0.0
    %4422 = vmatprep.subr.mxu0 0.0
    %4423 = vmatpush1.msra.mxu0 0.0
    %4424 = vmatprep.subr.mxu0 0.0
    %4425 = vmatpush1.msra.mxu0 0.0
    %4426 = vmatprep.subr.mxu0 0.0
    %4427 = vmatpush1.msra.mxu0 0.0
    %4428 = vmatprep.subr.mxu0 0.0
    %4429 = vmatpush1.msra.mxu0 0.0
    %4430 = vmatprep.subr.mxu0 0.0
    %4431 = vmatpush1.msra.mxu0 0.0
    %4432 = vmatprep.subr.mxu0 0.0
    %4433 = vmatpush1.msra.mxu0 0.0
    %4434 = vmatprep.subr.mxu0 0.0
    %4435 = vmatpush1.msra.mxu0 0.0
    %4436 = vmatprep.subr.mxu0 0.0
    %4437 = vmatpush1.msra.mxu0 0.0
    %4438 = vmatprep.subr.mxu0 0.0
    %4439 = vmatpush1.msra.mxu0 0.0
    %4440 = vmatprep.subr.mxu0 0.0
    %4441 = vmatpush1.msra.mxu0 0.0
    %4442 = vmatprep.subr.mxu0 0.0
    %4443 = vmatpush1.msra.mxu0 0.0
    %4444 = vmatprep.subr.mxu0 0.0
    %4445 = vmatpush1.msra.mxu0 0.0
    %4446 = vmatprep.subr.mxu0 0.0
    %4447 = vmatpush1.msra.mxu0 0.0
    %4448 = vmatprep.subr.mxu0 0.0
    %4449 = vmatpush1.msra.mxu0 0.0
    %4450 = vmatprep.subr.mxu0 0.0
    %4451 = vmatpush1.msra.mxu0 0.0
    %4452 = vmatprep.subr.mxu0 0.0
    %4453 = vmatpush1.msra.mxu0 0.0
    %4454 = vmatprep.subr.mxu0 0.0
    %4455 = vmatpush1.msra.mxu0 0.0
    %4456 = vmatprep.mubr.f32.mxu0 0.0
    %4457 = vmatmul.mubr.f32.gmra.mrb[0].mxu0 %v4297
    %v4458 = vpop.f32.mrb[0].mxu0
    %v4459 = vadd.f32 %v4390, %v4458
    %v4460 = vpop.f32.mrb[0].mxu0
    %4461 = vmatprep.mubr.f32.mxu0 0.0
    %4462 = vmatmul.mubr.f32.gmra.mrb[0].mxu0 %v4300
    %v4463 = vpop.f32.mrb[0].mxu0
    %v4464 = vadd.f32 %v4390, %v4463
    %v4465 = vpop.f32.mrb[0].mxu0
    %4466 = vdwg.mxu0
    %v4467 = vld [vmem:[%s47] sm:$0xff]
    %v4468 = vld [vmem:[%s47 + $0x8] sm:$0xff]
    %v4469 = vld [vmem:[%s47 + $0x10] sm:$0xff]
    %v4470 = vld [vmem:[%s47 + $0x18] sm:$0xff]
    %v4471 = vld [vmem:[%s47 + $0x20] sm:$0xff]
    %v4472 = vld [vmem:[%s47 + $0x28] sm:$0xff]
    %v4473 = vld [vmem:[%s47 + $0x30] sm:$0xff]
    %v4474 = vld [vmem:[%s47 + $0x38] sm:$0xff]
    %v4475 = vld [vmem:[%s49] sm:$0x1]
    %v4477 = vlaneseq
    %v4478 = vshrl.u32 %v4477, 7
    %v4479 = vsub.s32 0, %v4478
    %v4480 = vrot.slane %v4475, %v4479
    %4482 = vmatprep.subr.mxu0 0.0
    %4483 = vmatpush1.msra.mxu0 %v4467
    %4484 = vmatprep.subr.mxu0 0.0
    %4485 = vmatpush1.msra.mxu0 %v4468
    %4486 = vmatprep.subr.mxu0 0.0
    %4487 = vmatpush1.msra.mxu0 %v4469
    %4488 = vmatprep.subr.mxu0 0.0
    %4489 = vmatpush1.msra.mxu0 %v4470
    %4490 = vmatprep.subr.mxu0 0.0
    %4491 = vmatpush1.msra.mxu0 %v4471
    %4492 = vmatprep.subr.mxu0 0.0
    %4493 = vmatpush1.msra.mxu0 %v4472
    %4494 = vmatprep.subr.mxu0 0.0
    %4495 = vmatpush1.msra.mxu0 %v4473
    %4496 = vmatprep.subr.mxu0 0.0
    %4497 = vmatpush1.msra.mxu0 %v4474
    %4498 = vmatprep.subr.mxu0 0.0
    %4499 = vmatpush1.msra.mxu0 0.0
    %4500 = vmatprep.subr.mxu0 0.0
    %4501 = vmatpush1.msra.mxu0 0.0
    %4502 = vmatprep.subr.mxu0 0.0
    %4503 = vmatpush1.msra.mxu0 0.0
    %4504 = vmatprep.subr.mxu0 0.0
    %4505 = vmatpush1.msra.mxu0 0.0
    %4506 = vmatprep.subr.mxu0 0.0
    %4507 = vmatpush1.msra.mxu0 0.0
    %4508 = vmatprep.subr.mxu0 0.0
    %4509 = vmatpush1.msra.mxu0 0.0
    %4510 = vmatprep.subr.mxu0 0.0
    %4511 = vmatpush1.msra.mxu0 0.0
    %4512 = vmatprep.subr.mxu0 0.0
    %4513 = vmatpush1.msra.mxu0 0.0
    %4514 = vmatprep.subr.mxu0 0.0
    %4515 = vmatpush1.msra.mxu0 0.0
    %4516 = vmatprep.subr.mxu0 0.0
    %4517 = vmatpush1.msra.mxu0 0.0
    %4518 = vmatprep.subr.mxu0 0.0
    %4519 = vmatpush1.msra.mxu0 0.0
    %4520 = vmatprep.subr.mxu0 0.0
    %4521 = vmatpush1.msra.mxu0 0.0
    %4522 = vmatprep.subr.mxu0 0.0
    %4523 = vmatpush1.msra.mxu0 0.0
    %4524 = vmatprep.subr.mxu0 0.0
    %4525 = vmatpush1.msra.mxu0 0.0
    %4526 = vmatprep.subr.mxu0 0.0
    %4527 = vmatpush1.msra.mxu0 0.0
    %4528 = vmatprep.subr.mxu0 0.0
    %4529 = vmatpush1.msra.mxu0 0.0
    %4530 = vmatprep.subr.mxu0 0.0
    %4531 = vmatpush1.msra.mxu0 0.0
    %4532 = vmatprep.subr.mxu0 0.0
    %4533 = vmatpush1.msra.mxu0 0.0
    %4534 = vmatprep.subr.mxu0 0.0
    %4535 = vmatpush1.msra.mxu0 0.0
    %4536 = vmatprep.subr.mxu0 0.0
    %4537 = vmatpush1.msra.mxu0 0.0
    %4538 = vmatprep.subr.mxu0 0.0
    %4539 = vmatpush1.msra.mxu0 0.0
    %4540 = vmatprep.subr.mxu0 0.0
    %4541 = vmatpush1.msra.mxu0 0.0
    %4542 = vmatprep.subr.mxu0 0.0
    %4543 = vmatpush1.msra.mxu0 0.0
    %4544 = vmatprep.subr.mxu0 0.0
    %4545 = vmatpush1.msra.mxu0 0.0
    %4546 = vmatprep.mubr.f32.mxu0 0.0
    %4547 = vmatmul.mubr.f32.gmra.mrb[0].mxu0 %v4297
    %v4548 = vpop.f32.mrb[0].mxu0
    %v4549 = vadd.f32 %v4480, %v4548
    %v4550 = vpop.f32.mrb[0].mxu0
    %4551 = vmatprep.mubr.f32.mxu0 0.0
    %4552 = vmatmul.mubr.f32.gmra.mrb[0].mxu0 %v4300
    %v4553 = vpop.f32.mrb[0].mxu0
    %v4554 = vadd.f32 %v4480, %v4553
    %v4555 = vpop.f32.mrb[0].mxu0
    %4556 = vdwg.mxu0
    %v4557 = vld [vmem:[%s51] sm:$0xff]
    %v4558 = vld [vmem:[%s51 + $0x8] sm:$0xff]
    %v4559 = vld [vmem:[%s51 + $0x10] sm:$0xff]
    %v4560 = vld [vmem:[%s51 + $0x18] sm:$0xff]
    %v4561 = vld [vmem:[%s51 + $0x20] sm:$0xff]
    %v4562 = vld [vmem:[%s51 + $0x28] sm:$0xff]
    %v4563 = vld [vmem:[%s51 + $0x30] sm:$0xff]
    %v4564 = vld [vmem:[%s51 + $0x38] sm:$0xff]
    %v4566 = vsel %vm170, %v4369, 0
    %v4569 = vsel %vm170, %v4459, 0
    %4571 = vmatprep.subr.mxu0 0.0
    %4572 = vmatpush1.xpose.msra.mxu0 %v4569
    %4573 = vmatprep.subr.mxu0 0.0
    %4574 = vmatpush1.xpose.msra.mxu0 0.0
    %4575 = vmatprep.subr.mxu0 0.0
    %4576 = vmatpush1.xpose.msra.mxu0 0.0
    %4577 = vmatprep.subr.mxu0 0.0
    %4578 = vmatpush1.xpose.msra.mxu0 0.0
    %4579 = vmatprep.subr.mxu0 0.0
    %4580 = vmatpush1.xpose.msra.mxu0 0.0
    %4581 = vmatprep.subr.mxu0 0.0
    %4582 = vmatpush1.xpose.msra.mxu0 0.0
    %4583 = vmatprep.subr.mxu0 0.0
    %4584 = vmatpush1.xpose.msra.mxu0 0.0
    %4585 = vmatprep.subr.mxu0 0.0
    %4586 = vmatpush1.xpose.msra.mxu0 0.0
    %4587 = vmatprep.subr.mxu0 0.0
    %4588 = vmatpush1.xpose.msra.mxu0 0.0
    %4589 = vmatprep.subr.mxu0 0.0
    %4590 = vmatpush1.xpose.msra.mxu0 0.0
    %4591 = vmatprep.subr.mxu0 0.0
    %4592 = vmatpush1.xpose.msra.mxu0 0.0
    %4593 = vmatprep.subr.mxu0 0.0
    %4594 = vmatpush1.xpose.msra.mxu0 0.0
    %4595 = vmatprep.subr.mxu0 0.0
    %4596 = vmatpush1.xpose.msra.mxu0 0.0
    %4597 = vmatprep.subr.mxu0 0.0
    %4598 = vmatpush1.xpose.msra.mxu0 0.0
    %4599 = vmatprep.subr.mxu0 0.0
    %4600 = vmatpush1.xpose.msra.mxu0 0.0
    %4601 = vmatprep.subr.mxu0 0.0
    %4602 = vmatpush1.xpose.msra.mxu0 0.0
    %4603 = vmatprep.subr.mxu0 0.0
    %4604 = vmatpush1.xpose.msra.mxu0 0.0
    %4605 = vmatprep.subr.mxu0 0.0
    %4606 = vmatpush1.xpose.msra.mxu0 0.0
    %4607 = vmatprep.subr.mxu0 0.0
    %4608 = vmatpush1.xpose.msra.mxu0 0.0
    %4609 = vmatprep.subr.mxu0 0.0
    %4610 = vmatpush1.xpose.msra.mxu0 0.0
    %4611 = vmatprep.subr.mxu0 0.0
    %4612 = vmatpush1.xpose.msra.mxu0 0.0
    %4613 = vmatprep.subr.mxu0 0.0
    %4614 = vmatpush1.xpose.msra.mxu0 0.0
    %4615 = vmatprep.subr.mxu0 0.0
    %4616 = vmatpush1.xpose.msra.mxu0 0.0
    %4617 = vmatprep.subr.mxu0 0.0
    %4618 = vmatpush1.xpose.msra.mxu0 0.0
    %4619 = vmatprep.subr.mxu0 0.0
    %4620 = vmatpush1.xpose.msra.mxu0 0.0
    %4621 = vmatprep.subr.mxu0 0.0
    %4622 = vmatpush1.xpose.msra.mxu0 0.0
    %4623 = vmatprep.subr.mxu0 0.0
    %4624 = vmatpush1.xpose.msra.mxu0 0.0
    %4625 = vmatprep.subr.mxu0 0.0
    %4626 = vmatpush1.xpose.msra.mxu0 0.0
    %4627 = vmatprep.subr.mxu0 0.0
    %4628 = vmatpush1.xpose.msra.mxu0 0.0
    %4629 = vmatprep.subr.mxu0 0.0
    %4630 = vmatpush1.xpose.msra.mxu0 0.0
    %4631 = vmatprep.subr.mxu0 0.0
    %4632 = vmatpush1.xpose.msra.mxu0 0.0
    %4633 = vmatprep.subr.mxu0 0.0
    %4634 = vmatpush1.xpose.msra.mxu0 0.0
    %4635 = vmatprep.mubr.f32.mxu0 0.0
    %4636 = vmatmul.mubr.f32.gmra.mrb[0].mxu0 %v4566
    %v4637 = vpop.f32.mrb[0].mxu0
    %v4638 = vadd.f32 0.0, %v4637
    %v4639 = vpop.f32.mrb[0].mxu0
    %4640 = vdwg.mxu0
    %v4641 = vmul.f32 %v4638, 0.25
    %v4642 = vsel %vm614, %v4641, -inf
    %4643 = vmax.xlane.f32.xlu0 %v4642
    %v4644 = vpop.xlane.xlu0 %4643
    %v4645 = vsub.f32 %v4641, %v4644
    %v4646 = vmul.f32 %v4645, 1.442695
    %v4647 = vpow.pop %v4646
    %v4648 = vsel %vm614, %v4647, 0.0
    %4649 = vadd.xlane.f32.xlu0 %v4648
    %v4650 = vpop.xlane.xlu0 %4649
    %v4651 = vrcp.pop %v4650
    %v4652 = vmul.f32 %v4647, %v4651
    %v4654 = vsel %vm614, %v4652, 0
    %4656 = vmatprep.subr.mxu0 0.0
    %4657 = vmatpush1.msra.mxu0 %v4549
    %4658 = vmatprep.subr.mxu0 0.0
    %4659 = vmatpush1.msra.mxu0 0.0
    %4660 = vmatprep.subr.mxu0 0.0
    %4661 = vmatpush1.msra.mxu0 0.0
    %4662 = vmatprep.subr.mxu0 0.0
    %4663 = vmatpush1.msra.mxu0 0.0
    %4664 = vmatprep.subr.mxu0 0.0
    %4665 = vmatpush1.msra.mxu0 0.0
    %4666 = vmatprep.subr.mxu0 0.0
    %4667 = vmatpush1.msra.mxu0 0.0
    %4668 = vmatprep.subr.mxu0 0.0
    %4669 = vmatpush1.msra.mxu0 0.0
    %4670 = vmatprep.subr.mxu0 0.0
    %4671 = vmatpush1.msra.mxu0 0.0
    %4672 = vmatprep.subr.mxu0 0.0
    %4673 = vmatpush1.msra.mxu0 0.0
    %4674 = vmatprep.subr.mxu0 0.0
    %4675 = vmatpush1.msra.mxu0 0.0
    %4676 = vmatprep.subr.mxu0 0.0
    %4677 = vmatpush1.msra.mxu0 0.0
    %4678 = vmatprep.subr.mxu0 0.0
    %4679 = vmatpush1.msra.mxu0 0.0
    %4680 = vmatprep.subr.mxu0 0.0
    %4681 = vmatpush1.msra.mxu0 0.0
    %4682 = vmatprep.subr.mxu0 0.0
    %4683 = vmatpush1.msra.mxu0 0.0
    %4684 = vmatprep.subr.mxu0 0.0
    %4685 = vmatpush1.msra.mxu0 0.0
    %4686 = vmatprep.subr.mxu0 0.0
    %4687 = vmatpush1.msra.mxu0 0.0
    %4688 = vmatprep.subr.mxu0 0.0
    %4689 = vmatpush1.msra.mxu0 0.0
    %4690 = vmatprep.subr.mxu0 0.0
    %4691 = vmatpush1.msra.mxu0 0.0
    %4692 = vmatprep.subr.mxu0 0.0
    %4693 = vmatpush1.msra.mxu0 0.0
    %4694 = vmatprep.subr.mxu0 0.0
    %4695 = vmatpush1.msra.mxu0 0.0
    %4696 = vmatprep.subr.mxu0 0.0
    %4697 = vmatpush1.msra.mxu0 0.0
    %4698 = vmatprep.subr.mxu0 0.0
    %4699 = vmatpush1.msra.mxu0 0.0
    %4700 = vmatprep.subr.mxu0 0.0
    %4701 = vmatpush1.msra.mxu0 0.0
    %4702 = vmatprep.subr.mxu0 0.0
    %4703 = vmatpush1.msra.mxu0 0.0
    %4704 = vmatprep.subr.mxu0 0.0
    %4705 = vmatpush1.msra.mxu0 0.0
    %4706 = vmatprep.subr.mxu0 0.0
    %4707 = vmatpush1.msra.mxu0 0.0
    %4708 = vmatprep.subr.mxu0 0.0
    %4709 = vmatpush1.msra.mxu0 0.0
    %4710 = vmatprep.subr.mxu0 0.0
    %4711 = vmatpush1.msra.mxu0 0.0
    %4712 = vmatprep.subr.mxu0 0.0
    %4713 = vmatpush1.msra.mxu0 0.0
    %4714 = vmatprep.subr.mxu0 0.0
    %4715 = vmatpush1.msra.mxu0 0.0
    %4716 = vmatprep.subr.mxu0 0.0
    %4717 = vmatpush1.msra.mxu0 0.0
    %4718 = vmatprep.subr.mxu0 0.0
    %4719 = vmatpush1.msra.mxu0 0.0
    %4720 = vmatprep.mubr.f32.mxu0 0.0
    %4721 = vmatmul.mubr.f32.gmra.mrb[0].mxu0 %v4654
    %v4722 = vpop.f32.mrb[0].mxu0
    %v4723 = vadd.f32 0.0, %v4722
    %v4724 = vpop.f32.mrb[0].mxu0
    %4725 = vdwg.mxu0
    %4726 = vrot.lane.b32.xlu0 %v4369, 112
    %v4727 = vpop.permute.xlu0 %4726
    %4728 = vrot.lane.b32.xlu0 %v4459, 112
    %v4729 = vpop.permute.xlu0 %4728
    %v4730 = vsel %vm170, %v4727, 0
    %v4732 = vsel %vm170, %v4729, 0
    %4734 = vmatprep.subr.mxu0 0.0
    %4735 = vmatpush1.xpose.msra.mxu0 %v4732
    %4736 = vmatprep.subr.mxu0 0.0
    %4737 = vmatpush1.xpose.msra.mxu0 0.0
    %4738 = vmatprep.subr.mxu0 0.0
    %4739 = vmatpush1.xpose.msra.mxu0 0.0
    %4740 = vmatprep.subr.mxu0 0.0
    %4741 = vmatpush1.xpose.msra.mxu0 0.0
    %4742 = vmatprep.subr.mxu0 0.0
    %4743 = vmatpush1.xpose.msra.mxu0 0.0
    %4744 = vmatprep.subr.mxu0 0.0
    %4745 = vmatpush1.xpose.msra.mxu0 0.0
    %4746 = vmatprep.subr.mxu0 0.0
    %4747 = vmatpush1.xpose.msra.mxu0 0.0
    %4748 = vmatprep.subr.mxu0 0.0
    %4749 = vmatpush1.xpose.msra.mxu0 0.0
    %4750 = vmatprep.subr.mxu0 0.0
    %4751 = vmatpush1.xpose.msra.mxu0 0.0
    %4752 = vmatprep.subr.mxu0 0.0
    %4753 = vmatpush1.xpose.msra.mxu0 0.0
    %4754 = vmatprep.subr.mxu0 0.0
    %4755 = vmatpush1.xpose.msra.mxu0 0.0
    %4756 = vmatprep.subr.mxu0 0.0
    %4757 = vmatpush1.xpose.msra.mxu0 0.0
    %4758 = vmatprep.subr.mxu0 0.0
    %4759 = vmatpush1.xpose.msra.mxu0 0.0
    %4760 = vmatprep.subr.mxu0 0.0
    %4761 = vmatpush1.xpose.msra.mxu0 0.0
    %4762 = vmatprep.subr.mxu0 0.0
    %4763 = vmatpush1.xpose.msra.mxu0 0.0
    %4764 = vmatprep.subr.mxu0 0.0
    %4765 = vmatpush1.xpose.msra.mxu0 0.0
    %4766 = vmatprep.subr.mxu0 0.0
    %4767 = vmatpush1.xpose.msra.mxu0 0.0
    %4768 = vmatprep.subr.mxu0 0.0
    %4769 = vmatpush1.xpose.msra.mxu0 0.0
    %4770 = vmatprep.subr.mxu0 0.0
    %4771 = vmatpush1.xpose.msra.mxu0 0.0
    %4772 = vmatprep.subr.mxu0 0.0
    %4773 = vmatpush1.xpose.msra.mxu0 0.0
    %4774 = vmatprep.subr.mxu0 0.0
    %4775 = vmatpush1.xpose.msra.mxu0 0.0
    %4776 = vmatprep.subr.mxu0 0.0
    %4777 = vmatpush1.xpose.msra.mxu0 0.0
    %4778 = vmatprep.subr.mxu0 0.0
    %4779 = vmatpush1.xpose.msra.mxu0 0.0
    %4780 = vmatprep.subr.mxu0 0.0
    %4781 = vmatpush1.xpose.msra.mxu0 0.0
    %4782 = vmatprep.subr.mxu0 0.0
    %4783 = vmatpush1.xpose.msra.mxu0 0.0
    %4784 = vmatprep.subr.mxu0 0.0
    %4785 = vmatpush1.xpose.msra.mxu0 0.0
    %4786 = vmatprep.subr.mxu0 0.0
    %4787 = vmatpush1.xpose.msra.mxu0 0.0
    %4788 = vmatprep.subr.mxu0 0.0
    %4789 = vmatpush1.xpose.msra.mxu0 0.0
    %4790 = vmatprep.subr.mxu0 0.0
    %4791 = vmatpush1.xpose.msra.mxu0 0.0
    %4792 = vmatprep.subr.mxu0 0.0
    %4793 = vmatpush1.xpose.msra.mxu0 0.0
    %4794 = vmatprep.subr.mxu0 0.0
    %4795 = vmatpush1.xpose.msra.mxu0 0.0
    %4796 = vmatprep.subr.mxu0 0.0
    %4797 = vmatpush1.xpose.msra.mxu0 0.0
    %4798 = vmatprep.mubr.f32.mxu0 0.0
    %4799 = vmatmul.mubr.f32.gmra.mrb[0].mxu0 %v4730
    %v4800 = vpop.f32.mrb[0].mxu0
    %v4801 = vadd.f32 0.0, %v4800
    %v4802 = vpop.f32.mrb[0].mxu0
    %4803 = vdwg.mxu0
    %v4804 = vmul.f32 %v4801, 0.25
    %v4805 = vsel %vm614, %v4804, -inf
    %4806 = vmax.xlane.f32.xlu0 %v4805
    %v4807 = vpop.xlane.xlu0 %4806
    %v4808 = vsub.f32 %v4804, %v4807
    %v4809 = vmul.f32 %v4808, 1.442695
    %v4810 = vpow.pop %v4809
    %v4811 = vsel %vm614, %v4810, 0.0
    %4812 = vadd.xlane.f32.xlu0 %v4811
    %v4813 = vpop.xlane.xlu0 %4812
    %v4814 = vrcp.pop %v4813
    %v4815 = vmul.f32 %v4810, %v4814
    %4817 = vrot.lane.b32.xlu0 %v4549, 112
    %v4818 = vpop.permute.xlu0 %4817
    %v4821 = vsel %vm614, %v4815, 0
    %4823 = vmatprep.subr.mxu0 0.0
    %4824 = vmatpush1.msra.mxu0 %v4818
    %4825 = vmatprep.subr.mxu0 0.0
    %4826 = vmatpush1.msra.mxu0 0.0
    %4827 = vmatprep.subr.mxu0 0.0
    %4828 = vmatpush1.msra.mxu0 0.0
    %4829 = vmatprep.subr.mxu0 0.0
    %4830 = vmatpush1.msra.mxu0 0.0
    %4831 = vmatprep.subr.mxu0 0.0
    %4832 = vmatpush1.msra.mxu0 0.0
    %4833 = vmatprep.subr.mxu0 0.0
    %4834 = vmatpush1.msra.mxu0 0.0
    %4835 = vmatprep.subr.mxu0 0.0
    %4836 = vmatpush1.msra.mxu0 0.0
    %4837 = vmatprep.subr.mxu0 0.0
    %4838 = vmatpush1.msra.mxu0 0.0
    %4839 = vmatprep.subr.mxu0 0.0
    %4840 = vmatpush1.msra.mxu0 0.0
    %4841 = vmatprep.subr.mxu0 0.0
    %4842 = vmatpush1.msra.mxu0 0.0
    %4843 = vmatprep.subr.mxu0 0.0
    %4844 = vmatpush1.msra.mxu0 0.0
    %4845 = vmatprep.subr.mxu0 0.0
    %4846 = vmatpush1.msra.mxu0 0.0
    %4847 = vmatprep.subr.mxu0 0.0
    %4848 = vmatpush1.msra.mxu0 0.0
    %4849 = vmatprep.subr.mxu0 0.0
    %4850 = vmatpush1.msra.mxu0 0.0
    %4851 = vmatprep.subr.mxu0 0.0
    %4852 = vmatpush1.msra.mxu0 0.0
    %4853 = vmatprep.subr.mxu0 0.0
    %4854 = vmatpush1.msra.mxu0 0.0
    %4855 = vmatprep.subr.mxu0 0.0
    %4856 = vmatpush1.msra.mxu0 0.0
    %4857 = vmatprep.subr.mxu0 0.0
    %4858 = vmatpush1.msra.mxu0 0.0
    %4859 = vmatprep.subr.mxu0 0.0
    %4860 = vmatpush1.msra.mxu0 0.0
    %4861 = vmatprep.subr.mxu0 0.0
    %4862 = vmatpush1.msra.mxu0 0.0
    %4863 = vmatprep.subr.mxu0 0.0
    %4864 = vmatpush1.msra.mxu0 0.0
    %4865 = vmatprep.subr.mxu0 0.0
    %4866 = vmatpush1.msra.mxu0 0.0
    %4867 = vmatprep.subr.mxu0 0.0
    %4868 = vmatpush1.msra.mxu0 0.0
    %4869 = vmatprep.subr.mxu0 0.0
    %4870 = vmatpush1.msra.mxu0 0.0
    %4871 = vmatprep.subr.mxu0 0.0
    %4872 = vmatpush1.msra.mxu0 0.0
    %4873 = vmatprep.subr.mxu0 0.0
    %4874 = vmatpush1.msra.mxu0 0.0
    %4875 = vmatprep.subr.mxu0 0.0
    %4876 = vmatpush1.msra.mxu0 0.0
    %4877 = vmatprep.subr.mxu0 0.0
    %4878 = vmatpush1.msra.mxu0 0.0
    %4879 = vmatprep.subr.mxu0 0.0
    %4880 = vmatpush1.msra.mxu0 0.0
    %4881 = vmatprep.subr.mxu0 0.0
    %4882 = vmatpush1.msra.mxu0 0.0
    %4883 = vmatprep.subr.mxu0 0.0
    %4884 = vmatpush1.msra.mxu0 0.0
    %4885 = vmatprep.subr.mxu0 0.0
    %4886 = vmatpush1.msra.mxu0 0.0
    %4887 = vmatprep.mubr.f32.mxu0 0.0
    %4888 = vmatmul.mubr.f32.gmra.mrb[0].mxu0 %v4821
    %v4889 = vpop.f32.mrb[0].mxu0
    %v4890 = vadd.f32 0.0, %v4889
    %v4891 = vpop.f32.mrb[0].mxu0
    %4892 = vdwg.mxu0
    %v4894 = vsel %vm170, %v4890, 0
    %4896 = vmatprep.subr.mxu0 0.0
    %4897 = vmatpush1.msra.mxu0 %v4559
    %4898 = vmatprep.subr.mxu0 0.0
    %4899 = vmatpush1.msra.mxu0 %v4560
    %4900 = vmatprep.subr.mxu0 0.0
    %4901 = vmatpush1.msra.mxu0 0.0
    %4902 = vmatprep.subr.mxu0 0.0
    %4903 = vmatpush1.msra.mxu0 0.0
    %4904 = vmatprep.subr.mxu0 0.0
    %4905 = vmatpush1.msra.mxu0 0.0
    %4906 = vmatprep.subr.mxu0 0.0
    %4907 = vmatpush1.msra.mxu0 0.0
    %4908 = vmatprep.subr.mxu0 0.0
    %4909 = vmatpush1.msra.mxu0 0.0
    %4910 = vmatprep.subr.mxu0 0.0
    %4911 = vmatpush1.msra.mxu0 0.0
    %4912 = vmatprep.subr.mxu0 0.0
    %4913 = vmatpush1.msra.mxu0 0.0
    %4914 = vmatprep.subr.mxu0 0.0
    %4915 = vmatpush1.msra.mxu0 0.0
    %4916 = vmatprep.subr.mxu0 0.0
    %4917 = vmatpush1.msra.mxu0 0.0
    %4918 = vmatprep.subr.mxu0 0.0
    %4919 = vmatpush1.msra.mxu0 0.0
    %4920 = vmatprep.subr.mxu0 0.0
    %4921 = vmatpush1.msra.mxu0 0.0
    %4922 = vmatprep.subr.mxu0 0.0
    %4923 = vmatpush1.msra.mxu0 0.0
    %4924 = vmatprep.subr.mxu0 0.0
    %4925 = vmatpush1.msra.mxu0 0.0
    %4926 = vmatprep.subr.mxu0 0.0
    %4927 = vmatpush1.msra.mxu0 0.0
    %4928 = vmatprep.subr.mxu0 0.0
    %4929 = vmatpush1.msra.mxu0 0.0
    %4930 = vmatprep.subr.mxu0 0.0
    %4931 = vmatpush1.msra.mxu0 0.0
    %4932 = vmatprep.subr.mxu0 0.0
    %4933 = vmatpush1.msra.mxu0 0.0
    %4934 = vmatprep.subr.mxu0 0.0
    %4935 = vmatpush1.msra.mxu0 0.0
    %4936 = vmatprep.subr.mxu0 0.0
    %4937 = vmatpush1.msra.mxu0 0.0
    %4938 = vmatprep.subr.mxu0 0.0
    %4939 = vmatpush1.msra.mxu0 0.0
    %4940 = vmatprep.subr.mxu0 0.0
    %4941 = vmatpush1.msra.mxu0 0.0
    %4942 = vmatprep.subr.mxu0 0.0
    %4943 = vmatpush1.msra.mxu0 0.0
    %4944 = vmatprep.subr.mxu0 0.0
    %4945 = vmatpush1.msra.mxu0 0.0
    %4946 = vmatprep.subr.mxu0 0.0
    %4947 = vmatpush1.msra.mxu0 0.0
    %4948 = vmatprep.subr.mxu0 0.0
    %4949 = vmatpush1.msra.mxu0 0.0
    %4950 = vmatprep.subr.mxu0 0.0
    %4951 = vmatpush1.msra.mxu0 0.0
    %4952 = vmatprep.subr.mxu0 0.0
    %4953 = vmatpush1.msra.mxu0 0.0
    %4954 = vmatprep.subr.mxu0 0.0
    %4955 = vmatpush1.msra.mxu0 0.0
    %4956 = vmatprep.subr.mxu0 0.0
    %4957 = vmatpush1.msra.mxu0 0.0
    %4958 = vmatprep.subr.mxu0 0.0
    %4959 = vmatpush1.msra.mxu0 0.0
    %4960 = vmatprep.mubr.f32.mxu0 0.0
    %4961 = vmatmul.mubr.f32.gmra.mrb[0].mxu0 %v4894
    %v4962 = vpop.f32.mrb[0].mxu0
    %v4963 = vadd.f32 0.0, %v4962
    %v4964 = vpop.f32.mrb[0].mxu0
    %4965 = vdwg.mxu0
    %v4967 = vsel %vm170, %v4723, 0
    %4969 = vmatprep.subr.mxu0 0.0
    %4970 = vmatpush1.msra.mxu0 %v4557
    %4971 = vmatprep.subr.mxu0 0.0
    %4972 = vmatpush1.msra.mxu0 %v4558
    %4973 = vmatprep.subr.mxu0 0.0
    %4974 = vmatpush1.msra.mxu0 0.0
    %4975 = vmatprep.subr.mxu0 0.0
    %4976 = vmatpush1.msra.mxu0 0.0
    %4977 = vmatprep.subr.mxu0 0.0
    %4978 = vmatpush1.msra.mxu0 0.0
    %4979 = vmatprep.subr.mxu0 0.0
    %4980 = vmatpush1.msra.mxu0 0.0
    %4981 = vmatprep.subr.mxu0 0.0
    %4982 = vmatpush1.msra.mxu0 0.0
    %4983 = vmatprep.subr.mxu0 0.0
    %4984 = vmatpush1.msra.mxu0 0.0
    %4985 = vmatprep.subr.mxu0 0.0
    %4986 = vmatpush1.msra.mxu0 0.0
    %4987 = vmatprep.subr.mxu0 0.0
    %4988 = vmatpush1.msra.mxu0 0.0
    %4989 = vmatprep.subr.mxu0 0.0
    %4990 = vmatpush1.msra.mxu0 0.0
    %4991 = vmatprep.subr.mxu0 0.0
    %4992 = vmatpush1.msra.mxu0 0.0
    %4993 = vmatprep.subr.mxu0 0.0
    %4994 = vmatpush1.msra.mxu0 0.0
    %4995 = vmatprep.subr.mxu0 0.0
    %4996 = vmatpush1.msra.mxu0 0.0
    %4997 = vmatprep.subr.mxu0 0.0
    %4998 = vmatpush1.msra.mxu0 0.0
    %4999 = vmatprep.subr.mxu0 0.0
    %5000 = vmatpush1.msra.mxu0 0.0
    %5001 = vmatprep.subr.mxu0 0.0
    %5002 = vmatpush1.msra.mxu0 0.0
    %5003 = vmatprep.subr.mxu0 0.0
    %5004 = vmatpush1.msra.mxu0 0.0
    %5005 = vmatprep.subr.mxu0 0.0
    %5006 = vmatpush1.msra.mxu0 0.0
    %5007 = vmatprep.subr.mxu0 0.0
    %5008 = vmatpush1.msra.mxu0 0.0
    %5009 = vmatprep.subr.mxu0 0.0
    %5010 = vmatpush1.msra.mxu0 0.0
    %5011 = vmatprep.subr.mxu0 0.0
    %5012 = vmatpush1.msra.mxu0 0.0
    %5013 = vmatprep.subr.mxu0 0.0
    %5014 = vmatpush1.msra.mxu0 0.0
    %5015 = vmatprep.subr.mxu0 0.0
    %5016 = vmatpush1.msra.mxu0 0.0
    %5017 = vmatprep.subr.mxu0 0.0
    %5018 = vmatpush1.msra.mxu0 0.0
    %5019 = vmatprep.subr.mxu0 0.0
    %5020 = vmatpush1.msra.mxu0 0.0
    %5021 = vmatprep.subr.mxu0 0.0
    %5022 = vmatpush1.msra.mxu0 0.0
    %5023 = vmatprep.subr.mxu0 0.0
    %5024 = vmatpush1.msra.mxu0 0.0
    %5025 = vmatprep.subr.mxu0 0.0
    %5026 = vmatpush1.msra.mxu0 0.0
    %5027 = vmatprep.subr.mxu0 0.0
    %5028 = vmatpush1.msra.mxu0 0.0
    %5029 = vmatprep.subr.mxu0 0.0
    %5030 = vmatpush1.msra.mxu0 0.0
    %5031 = vmatprep.subr.mxu0 0.0
    %5032 = vmatpush1.msra.mxu0 0.0
    %5033 = vmatprep.mubr.f32.mxu0 0.0
    %5034 = vmatmul.mubr.f32.gmra.mrb[0].mxu0 %v4967
    %v5035 = vpop.f32.mrb[0].mxu0
    %v5036 = vadd.f32 %v4963, %v5035
    %v5037 = vpop.f32.mrb[0].mxu0
    %5038 = vdwg.mxu0
    %5039 = vrot.lane.b32.xlu0 %v4369, 96
    %v5040 = vpop.permute.xlu0 %5039
    %5041 = vrot.lane.b32.xlu0 %v4459, 96
    %v5042 = vpop.permute.xlu0 %5041
    %v5043 = vsel %vm170, %v5040, 0
    %v5045 = vsel %vm170, %v5042, 0
    %5047 = vmatprep.subr.mxu0 0.0
    %5048 = vmatpush1.xpose.msra.mxu0 %v5045
    %5049 = vmatprep.subr.mxu0 0.0
    %5050 = vmatpush1.xpose.msra.mxu0 0.0
    %5051 = vmatprep.subr.mxu0 0.0
    %5052 = vmatpush1.xpose.msra.mxu0 0.0
    %5053 = vmatprep.subr.mxu0 0.0
    %5054 = vmatpush1.xpose.msra.mxu0 0.0
    %5055 = vmatprep.subr.mxu0 0.0
    %5056 = vmatpush1.xpose.msra.mxu0 0.0
    %5057 = vmatprep.subr.mxu0 0.0
    %5058 = vmatpush1.xpose.msra.mxu0 0.0
    %5059 = vmatprep.subr.mxu0 0.0
    %5060 = vmatpush1.xpose.msra.mxu0 0.0
    %5061 = vmatprep.subr.mxu0 0.0
    %5062 = vmatpush1.xpose.msra.mxu0 0.0
    %5063 = vmatprep.subr.mxu0 0.0
    %5064 = vmatpush1.xpose.msra.mxu0 0.0
    %5065 = vmatprep.subr.mxu0 0.0
    %5066 = vmatpush1.xpose.msra.mxu0 0.0
    %5067 = vmatprep.subr.mxu0 0.0
    %5068 = vmatpush1.xpose.msra.mxu0 0.0
    %5069 = vmatprep.subr.mxu0 0.0
    %5070 = vmatpush1.xpose.msra.mxu0 0.0
    %5071 = vmatprep.subr.mxu0 0.0
    %5072 = vmatpush1.xpose.msra.mxu0 0.0
    %5073 = vmatprep.subr.mxu0 0.0
    %5074 = vmatpush1.xpose.msra.mxu0 0.0
    %5075 = vmatprep.subr.mxu0 0.0
    %5076 = vmatpush1.xpose.msra.mxu0 0.0
    %5077 = vmatprep.subr.mxu0 0.0
    %5078 = vmatpush1.xpose.msra.mxu0 0.0
    %5079 = vmatprep.subr.mxu0 0.0
    %5080 = vmatpush1.xpose.msra.mxu0 0.0
    %5081 = vmatprep.subr.mxu0 0.0
    %5082 = vmatpush1.xpose.msra.mxu0 0.0
    %5083 = vmatprep.subr.mxu0 0.0
    %5084 = vmatpush1.xpose.msra.mxu0 0.0
    %5085 = vmatprep.subr.mxu0 0.0
    %5086 = vmatpush1.xpose.msra.mxu0 0.0
    %5087 = vmatprep.subr.mxu0 0.0
    %5088 = vmatpush1.xpose.msra.mxu0 0.0
    %5089 = vmatprep.subr.mxu0 0.0
    %5090 = vmatpush1.xpose.msra.mxu0 0.0
    %5091 = vmatprep.subr.mxu0 0.0
    %5092 = vmatpush1.xpose.msra.mxu0 0.0
    %5093 = vmatprep.subr.mxu0 0.0
    %5094 = vmatpush1.xpose.msra.mxu0 0.0
    %5095 = vmatprep.subr.mxu0 0.0
    %5096 = vmatpush1.xpose.msra.mxu0 0.0
    %5097 = vmatprep.subr.mxu0 0.0
    %5098 = vmatpush1.xpose.msra.mxu0 0.0
    %5099 = vmatprep.subr.mxu0 0.0
    %5100 = vmatpush1.xpose.msra.mxu0 0.0
    %5101 = vmatprep.subr.mxu0 0.0
    %5102 = vmatpush1.xpose.msra.mxu0 0.0
    %5103 = vmatprep.subr.mxu0 0.0
    %5104 = vmatpush1.xpose.msra.mxu0 0.0
    %5105 = vmatprep.subr.mxu0 0.0
    %5106 = vmatpush1.xpose.msra.mxu0 0.0
    %5107 = vmatprep.subr.mxu0 0.0
    %5108 = vmatpush1.xpose.msra.mxu0 0.0
    %5109 = vmatprep.subr.mxu0 0.0
    %5110 = vmatpush1.xpose.msra.mxu0 0.0
    %5111 = vmatprep.mubr.f32.mxu0 0.0
    %5112 = vmatmul.mubr.f32.gmra.mrb[0].mxu0 %v5043
    %v5113 = vpop.f32.mrb[0].mxu0
    %v5114 = vadd.f32 0.0, %v5113
    %v5115 = vpop.f32.mrb[0].mxu0
    %5116 = vdwg.mxu0
    %v5117 = vmul.f32 %v5114, 0.25
    %v5118 = vsel %vm614, %v5117, -inf
    %5119 = vmax.xlane.f32.xlu0 %v5118
    %v5120 = vpop.xlane.xlu0 %5119
    %v5121 = vsub.f32 %v5117, %v5120
    %v5122 = vmul.f32 %v5121, 1.442695
    %v5123 = vpow.pop %v5122
    %v5124 = vsel %vm614, %v5123, 0.0
    %5125 = vadd.xlane.f32.xlu0 %v5124
    %v5126 = vpop.xlane.xlu0 %5125
    %v5127 = vrcp.pop %v5126
    %v5128 = vmul.f32 %v5123, %v5127
    %5129 = vrot.lane.b32.xlu0 %v4549, 96
    %v5130 = vpop.permute.xlu0 %5129
    %v5133 = vsel %vm614, %v5128, 0
    %5135 = vmatprep.subr.mxu0 0.0
    %5136 = vmatpush1.msra.mxu0 %v5130
    %5137 = vmatprep.subr.mxu0 0.0
    %5138 = vmatpush1.msra.mxu0 0.0
    %5139 = vmatprep.subr.mxu0 0.0
    %5140 = vmatpush1.msra.mxu0 0.0
    %5141 = vmatprep.subr.mxu0 0.0
    %5142 = vmatpush1.msra.mxu0 0.0
    %5143 = vmatprep.subr.mxu0 0.0
    %5144 = vmatpush1.msra.mxu0 0.0
    %5145 = vmatprep.subr.mxu0 0.0
    %5146 = vmatpush1.msra.mxu0 0.0
    %5147 = vmatprep.subr.mxu0 0.0
    %5148 = vmatpush1.msra.mxu0 0.0
    %5149 = vmatprep.subr.mxu0 0.0
    %5150 = vmatpush1.msra.mxu0 0.0
    %5151 = vmatprep.subr.mxu0 0.0
    %5152 = vmatpush1.msra.mxu0 0.0
    %5153 = vmatprep.subr.mxu0 0.0
    %5154 = vmatpush1.msra.mxu0 0.0
    %5155 = vmatprep.subr.mxu0 0.0
    %5156 = vmatpush1.msra.mxu0 0.0
    %5157 = vmatprep.subr.mxu0 0.0
    %5158 = vmatpush1.msra.mxu0 0.0
    %5159 = vmatprep.subr.mxu0 0.0
    %5160 = vmatpush1.msra.mxu0 0.0
    %5161 = vmatprep.subr.mxu0 0.0
    %5162 = vmatpush1.msra.mxu0 0.0
    %5163 = vmatprep.subr.mxu0 0.0
    %5164 = vmatpush1.msra.mxu0 0.0
    %5165 = vmatprep.subr.mxu0 0.0
    %5166 = vmatpush1.msra.mxu0 0.0
    %5167 = vmatprep.subr.mxu0 0.0
    %5168 = vmatpush1.msra.mxu0 0.0
    %5169 = vmatprep.subr.mxu0 0.0
    %5170 = vmatpush1.msra.mxu0 0.0
    %5171 = vmatprep.subr.mxu0 0.0
    %5172 = vmatpush1.msra.mxu0 0.0
    %5173 = vmatprep.subr.mxu0 0.0
    %5174 = vmatpush1.msra.mxu0 0.0
    %5175 = vmatprep.subr.mxu0 0.0
    %5176 = vmatpush1.msra.mxu0 0.0
    %5177 = vmatprep.subr.mxu0 0.0
    %5178 = vmatpush1.msra.mxu0 0.0
    %5179 = vmatprep.subr.mxu0 0.0
    %5180 = vmatpush1.msra.mxu0 0.0
    %5181 = vmatprep.subr.mxu0 0.0
    %5182 = vmatpush1.msra.mxu0 0.0
    %5183 = vmatprep.subr.mxu0 0.0
    %5184 = vmatpush1.msra.mxu0 0.0
    %5185 = vmatprep.subr.mxu0 0.0
    %5186 = vmatpush1.msra.mxu0 0.0
    %5187 = vmatprep.subr.mxu0 0.0
    %5188 = vmatpush1.msra.mxu0 0.0
    %5189 = vmatprep.subr.mxu0 0.0
    %5190 = vmatpush1.msra.mxu0 0.0
    %5191 = vmatprep.subr.mxu0 0.0
    %5192 = vmatpush1.msra.mxu0 0.0
    %5193 = vmatprep.subr.mxu0 0.0
    %5194 = vmatpush1.msra.mxu0 0.0
    %5195 = vmatprep.subr.mxu0 0.0
    %5196 = vmatpush1.msra.mxu0 0.0
    %5197 = vmatprep.subr.mxu0 0.0
    %5198 = vmatpush1.msra.mxu0 0.0
    %5199 = vmatprep.mubr.f32.mxu0 0.0
    %5200 = vmatmul.mubr.f32.gmra.mrb[0].mxu0 %v5133
    %v5201 = vpop.f32.mrb[0].mxu0
    %v5202 = vadd.f32 0.0, %v5201
    %v5203 = vpop.f32.mrb[0].mxu0
    %5204 = vdwg.mxu0
    %v5206 = vsel %vm170, %v5202, 0
    %5208 = vmatprep.subr.mxu0 0.0
    %5209 = vmatpush1.msra.mxu0 %v4561
    %5210 = vmatprep.subr.mxu0 0.0
    %5211 = vmatpush1.msra.mxu0 %v4562
    %5212 = vmatprep.subr.mxu0 0.0
    %5213 = vmatpush1.msra.mxu0 0.0
    %5214 = vmatprep.subr.mxu0 0.0
    %5215 = vmatpush1.msra.mxu0 0.0
    %5216 = vmatprep.subr.mxu0 0.0
    %5217 = vmatpush1.msra.mxu0 0.0
    %5218 = vmatprep.subr.mxu0 0.0
    %5219 = vmatpush1.msra.mxu0 0.0
    %5220 = vmatprep.subr.mxu0 0.0
    %5221 = vmatpush1.msra.mxu0 0.0
    %5222 = vmatprep.subr.mxu0 0.0
    %5223 = vmatpush1.msra.mxu0 0.0
    %5224 = vmatprep.subr.mxu0 0.0
    %5225 = vmatpush1.msra.mxu0 0.0
    %5226 = vmatprep.subr.mxu0 0.0
    %5227 = vmatpush1.msra.mxu0 0.0
    %5228 = vmatprep.subr.mxu0 0.0
    %5229 = vmatpush1.msra.mxu0 0.0
    %5230 = vmatprep.subr.mxu0 0.0
    %5231 = vmatpush1.msra.mxu0 0.0
    %5232 = vmatprep.subr.mxu0 0.0
    %5233 = vmatpush1.msra.mxu0 0.0
    %5234 = vmatprep.subr.mxu0 0.0
    %5235 = vmatpush1.msra.mxu0 0.0
    %5236 = vmatprep.subr.mxu0 0.0
    %5237 = vmatpush1.msra.mxu0 0.0
    %5238 = vmatprep.subr.mxu0 0.0
    %5239 = vmatpush1.msra.mxu0 0.0
    %5240 = vmatprep.subr.mxu0 0.0
    %5241 = vmatpush1.msra.mxu0 0.0
    %5242 = vmatprep.subr.mxu0 0.0
    %5243 = vmatpush1.msra.mxu0 0.0
    %5244 = vmatprep.subr.mxu0 0.0
    %5245 = vmatpush1.msra.mxu0 0.0
    %5246 = vmatprep.subr.mxu0 0.0
    %5247 = vmatpush1.msra.mxu0 0.0
    %5248 = vmatprep.subr.mxu0 0.0
    %5249 = vmatpush1.msra.mxu0 0.0
    %5250 = vmatprep.subr.mxu0 0.0
    %5251 = vmatpush1.msra.mxu0 0.0
    %5252 = vmatprep.subr.mxu0 0.0
    %5253 = vmatpush1.msra.mxu0 0.0
    %5254 = vmatprep.subr.mxu0 0.0
    %5255 = vmatpush1.msra.mxu0 0.0
    %5256 = vmatprep.subr.mxu0 0.0
    %5257 = vmatpush1.msra.mxu0 0.0
    %5258 = vmatprep.subr.mxu0 0.0
    %5259 = vmatpush1.msra.mxu0 0.0
    %5260 = vmatprep.subr.mxu0 0.0
    %5261 = vmatpush1.msra.mxu0 0.0
    %5262 = vmatprep.subr.mxu0 0.0
    %5263 = vmatpush1.msra.mxu0 0.0
    %5264 = vmatprep.subr.mxu0 0.0
    %5265 = vmatpush1.msra.mxu0 0.0
    %5266 = vmatprep.subr.mxu0 0.0
    %5267 = vmatpush1.msra.mxu0 0.0
    %5268 = vmatprep.subr.mxu0 0.0
    %5269 = vmatpush1.msra.mxu0 0.0
    %5270 = vmatprep.subr.mxu0 0.0
    %5271 = vmatpush1.msra.mxu0 0.0
    %5272 = vmatprep.mubr.f32.mxu0 0.0
    %5273 = vmatmul.mubr.f32.gmra.mrb[0].mxu0 %v5206
    %v5274 = vpop.f32.mrb[0].mxu0
    %v5275 = vadd.f32 0.0, %v5274
    %v5276 = vpop.f32.mrb[0].mxu0
    %5277 = vdwg.mxu0
    %v5278 = vadd.f32 %v5036, %v5275
    %5279 = vrot.lane.b32.xlu0 %v4369, 80
    %v5280 = vpop.permute.xlu0 %5279
    %5281 = vrot.lane.b32.xlu0 %v4459, 80
    %v5282 = vpop.permute.xlu0 %5281
    %v5283 = vsel %vm170, %v5280, 0
    %v5285 = vsel %vm170, %v5282, 0
    %5287 = vmatprep.subr.mxu0 0.0
    %5288 = vmatpush1.xpose.msra.mxu0 %v5285
    %5289 = vmatprep.subr.mxu0 0.0
    %5290 = vmatpush1.xpose.msra.mxu0 0.0
    %5291 = vmatprep.subr.mxu0 0.0
    %5292 = vmatpush1.xpose.msra.mxu0 0.0
    %5293 = vmatprep.subr.mxu0 0.0
    %5294 = vmatpush1.xpose.msra.mxu0 0.0
    %5295 = vmatprep.subr.mxu0 0.0
    %5296 = vmatpush1.xpose.msra.mxu0 0.0
    %5297 = vmatprep.subr.mxu0 0.0
    %5298 = vmatpush1.xpose.msra.mxu0 0.0
    %5299 = vmatprep.subr.mxu0 0.0
    %5300 = vmatpush1.xpose.msra.mxu0 0.0
    %5301 = vmatprep.subr.mxu0 0.0
    %5302 = vmatpush1.xpose.msra.mxu0 0.0
    %5303 = vmatprep.subr.mxu0 0.0
    %5304 = vmatpush1.xpose.msra.mxu0 0.0
    %5305 = vmatprep.subr.mxu0 0.0
    %5306 = vmatpush1.xpose.msra.mxu0 0.0
    %5307 = vmatprep.subr.mxu0 0.0
    %5308 = vmatpush1.xpose.msra.mxu0 0.0
    %5309 = vmatprep.subr.mxu0 0.0
    %5310 = vmatpush1.xpose.msra.mxu0 0.0
    %5311 = vmatprep.subr.mxu0 0.0
    %5312 = vmatpush1.xpose.msra.mxu0 0.0
    %5313 = vmatprep.subr.mxu0 0.0
    %5314 = vmatpush1.xpose.msra.mxu0 0.0
    %5315 = vmatprep.subr.mxu0 0.0
    %5316 = vmatpush1.xpose.msra.mxu0 0.0
    %5317 = vmatprep.subr.mxu0 0.0
    %5318 = vmatpush1.xpose.msra.mxu0 0.0
    %5319 = vmatprep.subr.mxu0 0.0
    %5320 = vmatpush1.xpose.msra.mxu0 0.0
    %5321 = vmatprep.subr.mxu0 0.0
    %5322 = vmatpush1.xpose.msra.mxu0 0.0
    %5323 = vmatprep.subr.mxu0 0.0
    %5324 = vmatpush1.xpose.msra.mxu0 0.0
    %5325 = vmatprep.subr.mxu0 0.0
    %5326 = vmatpush1.xpose.msra.mxu0 0.0
    %5327 = vmatprep.subr.mxu0 0.0
    %5328 = vmatpush1.xpose.msra.mxu0 0.0
    %5329 = vmatprep.subr.mxu0 0.0
    %5330 = vmatpush1.xpose.msra.mxu0 0.0
    %5331 = vmatprep.subr.mxu0 0.0
    %5332 = vmatpush1.xpose.msra.mxu0 0.0
    %5333 = vmatprep.subr.mxu0 0.0
    %5334 = vmatpush1.xpose.msra.mxu0 0.0
    %5335 = vmatprep.subr.mxu0 0.0
    %5336 = vmatpush1.xpose.msra.mxu0 0.0
    %5337 = vmatprep.subr.mxu0 0.0
    %5338 = vmatpush1.xpose.msra.mxu0 0.0
    %5339 = vmatprep.subr.mxu0 0.0
    %5340 = vmatpush1.xpose.msra.mxu0 0.0
    %5341 = vmatprep.subr.mxu0 0.0
    %5342 = vmatpush1.xpose.msra.mxu0 0.0
    %5343 = vmatprep.subr.mxu0 0.0
    %5344 = vmatpush1.xpose.msra.mxu0 0.0
    %5345 = vmatprep.subr.mxu0 0.0
    %5346 = vmatpush1.xpose.msra.mxu0 0.0
    %5347 = vmatprep.subr.mxu0 0.0
    %5348 = vmatpush1.xpose.msra.mxu0 0.0
    %5349 = vmatprep.subr.mxu0 0.0
    %5350 = vmatpush1.xpose.msra.mxu0 0.0
    %5351 = vmatprep.mubr.f32.mxu0 0.0
    %5352 = vmatmul.mubr.f32.gmra.mrb[0].mxu0 %v5283
    %v5353 = vpop.f32.mrb[0].mxu0
    %v5354 = vadd.f32 0.0, %v5353
    %v5355 = vpop.f32.mrb[0].mxu0
    %5356 = vdwg.mxu0
    %v5357 = vmul.f32 %v5354, 0.25
    %v5358 = vsel %vm614, %v5357, -inf
    %5359 = vmax.xlane.f32.xlu0 %v5358
    %v5360 = vpop.xlane.xlu0 %5359
    %v5361 = vsub.f32 %v5357, %v5360
    %v5362 = vmul.f32 %v5361, 1.442695
    %v5363 = vpow.pop %v5362
    %v5364 = vsel %vm614, %v5363, 0.0
    %5365 = vadd.xlane.f32.xlu0 %v5364
    %v5366 = vpop.xlane.xlu0 %5365
    %v5367 = vrcp.pop %v5366
    %v5368 = vmul.f32 %v5363, %v5367
    %5369 = vrot.lane.b32.xlu0 %v4549, 80
    %v5370 = vpop.permute.xlu0 %5369
    %v5373 = vsel %vm614, %v5368, 0
    %5375 = vmatprep.subr.mxu0 0.0
    %5376 = vmatpush1.msra.mxu0 %v5370
    %5377 = vmatprep.subr.mxu0 0.0
    %5378 = vmatpush1.msra.mxu0 0.0
    %5379 = vmatprep.subr.mxu0 0.0
    %5380 = vmatpush1.msra.mxu0 0.0
    %5381 = vmatprep.subr.mxu0 0.0
    %5382 = vmatpush1.msra.mxu0 0.0
    %5383 = vmatprep.subr.mxu0 0.0
    %5384 = vmatpush1.msra.mxu0 0.0
    %5385 = vmatprep.subr.mxu0 0.0
    %5386 = vmatpush1.msra.mxu0 0.0
    %5387 = vmatprep.subr.mxu0 0.0
    %5388 = vmatpush1.msra.mxu0 0.0
    %5389 = vmatprep.subr.mxu0 0.0
    %5390 = vmatpush1.msra.mxu0 0.0
    %5391 = vmatprep.subr.mxu0 0.0
    %5392 = vmatpush1.msra.mxu0 0.0
    %5393 = vmatprep.subr.mxu0 0.0
    %5394 = vmatpush1.msra.mxu0 0.0
    %5395 = vmatprep.subr.mxu0 0.0
    %5396 = vmatpush1.msra.mxu0 0.0
    %5397 = vmatprep.subr.mxu0 0.0
    %5398 = vmatpush1.msra.mxu0 0.0
    %5399 = vmatprep.subr.mxu0 0.0
    %5400 = vmatpush1.msra.mxu0 0.0
    %5401 = vmatprep.subr.mxu0 0.0
    %5402 = vmatpush1.msra.mxu0 0.0
    %5403 = vmatprep.subr.mxu0 0.0
    %5404 = vmatpush1.msra.mxu0 0.0
    %5405 = vmatprep.subr.mxu0 0.0
    %5406 = vmatpush1.msra.mxu0 0.0
    %5407 = vmatprep.subr.mxu0 0.0
    %5408 = vmatpush1.msra.mxu0 0.0
    %5409 = vmatprep.subr.mxu0 0.0
    %5410 = vmatpush1.msra.mxu0 0.0
    %5411 = vmatprep.subr.mxu0 0.0
    %5412 = vmatpush1.msra.mxu0 0.0
    %5413 = vmatprep.subr.mxu0 0.0
    %5414 = vmatpush1.msra.mxu0 0.0
    %5415 = vmatprep.subr.mxu0 0.0
    %5416 = vmatpush1.msra.mxu0 0.0
    %5417 = vmatprep.subr.mxu0 0.0
    %5418 = vmatpush1.msra.mxu0 0.0
    %5419 = vmatprep.subr.mxu0 0.0
    %5420 = vmatpush1.msra.mxu0 0.0
    %5421 = vmatprep.subr.mxu0 0.0
    %5422 = vmatpush1.msra.mxu0 0.0
    %5423 = vmatprep.subr.mxu0 0.0
    %5424 = vmatpush1.msra.mxu0 0.0
    %5425 = vmatprep.subr.mxu0 0.0
    %5426 = vmatpush1.msra.mxu0 0.0
    %5427 = vmatprep.subr.mxu0 0.0
    %5428 = vmatpush1.msra.mxu0 0.0
    %5429 = vmatprep.subr.mxu0 0.0
    %5430 = vmatpush1.msra.mxu0 0.0
    %5431 = vmatprep.subr.mxu0 0.0
    %5432 = vmatpush1.msra.mxu0 0.0
    %5433 = vmatprep.subr.mxu0 0.0
    %5434 = vmatpush1.msra.mxu0 0.0
    %5435 = vmatprep.subr.mxu0 0.0
    %5436 = vmatpush1.msra.mxu0 0.0
    %5437 = vmatprep.subr.mxu0 0.0
    %5438 = vmatpush1.msra.mxu0 0.0
    %5439 = vmatprep.mubr.f32.mxu0 0.0
    %5440 = vmatmul.mubr.f32.gmra.mrb[0].mxu0 %v5373
    %v5441 = vpop.f32.mrb[0].mxu0
    %v5442 = vadd.f32 0.0, %v5441
    %v5443 = vpop.f32.mrb[0].mxu0
    %5444 = vdwg.mxu0
    %v5446 = vsel %vm170, %v5442, 0
    %5448 = vmatprep.subr.mxu0 0.0
    %5449 = vmatpush1.msra.mxu0 %v4563
    %5450 = vmatprep.subr.mxu0 0.0
    %5451 = vmatpush1.msra.mxu0 %v4564
    %5452 = vmatprep.subr.mxu0 0.0
    %5453 = vmatpush1.msra.mxu0 0.0
    %5454 = vmatprep.subr.mxu0 0.0
    %5455 = vmatpush1.msra.mxu0 0.0
    %5456 = vmatprep.subr.mxu0 0.0
    %5457 = vmatpush1.msra.mxu0 0.0
    %5458 = vmatprep.subr.mxu0 0.0
    %5459 = vmatpush1.msra.mxu0 0.0
    %5460 = vmatprep.subr.mxu0 0.0
    %5461 = vmatpush1.msra.mxu0 0.0
    %5462 = vmatprep.subr.mxu0 0.0
    %5463 = vmatpush1.msra.mxu0 0.0
    %5464 = vmatprep.subr.mxu0 0.0
    %5465 = vmatpush1.msra.mxu0 0.0
    %5466 = vmatprep.subr.mxu0 0.0
    %5467 = vmatpush1.msra.mxu0 0.0
    %5468 = vmatprep.subr.mxu0 0.0
    %5469 = vmatpush1.msra.mxu0 0.0
    %5470 = vmatprep.subr.mxu0 0.0
    %5471 = vmatpush1.msra.mxu0 0.0
    %5472 = vmatprep.subr.mxu0 0.0
    %5473 = vmatpush1.msra.mxu0 0.0
    %5474 = vmatprep.subr.mxu0 0.0
    %5475 = vmatpush1.msra.mxu0 0.0
    %5476 = vmatprep.subr.mxu0 0.0
    %5477 = vmatpush1.msra.mxu0 0.0
    %5478 = vmatprep.subr.mxu0 0.0
    %5479 = vmatpush1.msra.mxu0 0.0
    %5480 = vmatprep.subr.mxu0 0.0
    %5481 = vmatpush1.msra.mxu0 0.0
    %5482 = vmatprep.subr.mxu0 0.0
    %5483 = vmatpush1.msra.mxu0 0.0
    %5484 = vmatprep.subr.mxu0 0.0
    %5485 = vmatpush1.msra.mxu0 0.0
    %5486 = vmatprep.subr.mxu0 0.0
    %5487 = vmatpush1.msra.mxu0 0.0
    %5488 = vmatprep.subr.mxu0 0.0
    %5489 = vmatpush1.msra.mxu0 0.0
    %5490 = vmatprep.subr.mxu0 0.0
    %5491 = vmatpush1.msra.mxu0 0.0
    %5492 = vmatprep.subr.mxu0 0.0
    %5493 = vmatpush1.msra.mxu0 0.0
    %5494 = vmatprep.subr.mxu0 0.0
    %5495 = vmatpush1.msra.mxu0 0.0
    %5496 = vmatprep.subr.mxu0 0.0
    %5497 = vmatpush1.msra.mxu0 0.0
    %5498 = vmatprep.subr.mxu0 0.0
    %5499 = vmatpush1.msra.mxu0 0.0
    %5500 = vmatprep.subr.mxu0 0.0
    %5501 = vmatpush1.msra.mxu0 0.0
    %5502 = vmatprep.subr.mxu0 0.0
    %5503 = vmatpush1.msra.mxu0 0.0
    %5504 = vmatprep.subr.mxu0 0.0
    %5505 = vmatpush1.msra.mxu0 0.0
    %5506 = vmatprep.subr.mxu0 0.0
    %5507 = vmatpush1.msra.mxu0 0.0
    %5508 = vmatprep.subr.mxu0 0.0
    %5509 = vmatpush1.msra.mxu0 0.0
    %5510 = vmatprep.subr.mxu0 0.0
    %5511 = vmatpush1.msra.mxu0 0.0
    %5512 = vmatprep.mubr.f32.mxu0 0.0
    %5513 = vmatmul.mubr.f32.gmra.mrb[0].mxu0 %v5446
    %v5514 = vpop.f32.mrb[0].mxu0
    %v5515 = vadd.f32 0.0, %v5514
    %v5516 = vpop.f32.mrb[0].mxu0
    %5517 = vdwg.mxu0
    %v5518 = vadd.f32 %v5278, %v5515
    %5519 = vst.msk [vmem:[#allocation2] sm:$0xff] %vm267, %v5518
    %v5521 = vsel %vm170, %v4374, 0
    %v5524 = vsel %vm170, %v4464, 0
    %5526 = vmatprep.subr.mxu0 0.0
    %5527 = vmatpush1.xpose.msra.mxu0 %v5524
    %5528 = vmatprep.subr.mxu0 0.0
    %5529 = vmatpush1.xpose.msra.mxu0 0.0
    %5530 = vmatprep.subr.mxu0 0.0
    %5531 = vmatpush1.xpose.msra.mxu0 0.0
    %5532 = vmatprep.subr.mxu0 0.0
    %5533 = vmatpush1.xpose.msra.mxu0 0.0
    %5534 = vmatprep.subr.mxu0 0.0
    %5535 = vmatpush1.xpose.msra.mxu0 0.0
    %5536 = vmatprep.subr.mxu0 0.0
    %5537 = vmatpush1.xpose.msra.mxu0 0.0
    %5538 = vmatprep.subr.mxu0 0.0
    %5539 = vmatpush1.xpose.msra.mxu0 0.0
    %5540 = vmatprep.subr.mxu0 0.0
    %5541 = vmatpush1.xpose.msra.mxu0 0.0
    %5542 = vmatprep.subr.mxu0 0.0
    %5543 = vmatpush1.xpose.msra.mxu0 0.0
    %5544 = vmatprep.subr.mxu0 0.0
    %5545 = vmatpush1.xpose.msra.mxu0 0.0
    %5546 = vmatprep.subr.mxu0 0.0
    %5547 = vmatpush1.xpose.msra.mxu0 0.0
    %5548 = vmatprep.subr.mxu0 0.0
    %5549 = vmatpush1.xpose.msra.mxu0 0.0
    %5550 = vmatprep.subr.mxu0 0.0
    %5551 = vmatpush1.xpose.msra.mxu0 0.0
    %5552 = vmatprep.subr.mxu0 0.0
    %5553 = vmatpush1.xpose.msra.mxu0 0.0
    %5554 = vmatprep.subr.mxu0 0.0
    %5555 = vmatpush1.xpose.msra.mxu0 0.0
    %5556 = vmatprep.subr.mxu0 0.0
    %5557 = vmatpush1.xpose.msra.mxu0 0.0
    %5558 = vmatprep.subr.mxu0 0.0
    %5559 = vmatpush1.xpose.msra.mxu0 0.0
    %5560 = vmatprep.subr.mxu0 0.0
    %5561 = vmatpush1.xpose.msra.mxu0 0.0
    %5562 = vmatprep.subr.mxu0 0.0
    %5563 = vmatpush1.xpose.msra.mxu0 0.0
    %5564 = vmatprep.subr.mxu0 0.0
    %5565 = vmatpush1.xpose.msra.mxu0 0.0
    %5566 = vmatprep.subr.mxu0 0.0
    %5567 = vmatpush1.xpose.msra.mxu0 0.0
    %5568 = vmatprep.subr.mxu0 0.0
    %5569 = vmatpush1.xpose.msra.mxu0 0.0
    %5570 = vmatprep.subr.mxu0 0.0
    %5571 = vmatpush1.xpose.msra.mxu0 0.0
    %5572 = vmatprep.subr.mxu0 0.0
    %5573 = vmatpush1.xpose.msra.mxu0 0.0
    %5574 = vmatprep.subr.mxu0 0.0
    %5575 = vmatpush1.xpose.msra.mxu0 0.0
    %5576 = vmatprep.subr.mxu0 0.0
    %5577 = vmatpush1.xpose.msra.mxu0 0.0
    %5578 = vmatprep.subr.mxu0 0.0
    %5579 = vmatpush1.xpose.msra.mxu0 0.0
    %5580 = vmatprep.subr.mxu0 0.0
    %5581 = vmatpush1.xpose.msra.mxu0 0.0
    %5582 = vmatprep.subr.mxu0 0.0
    %5583 = vmatpush1.xpose.msra.mxu0 0.0
    %5584 = vmatprep.subr.mxu0 0.0
    %5585 = vmatpush1.xpose.msra.mxu0 0.0
    %5586 = vmatprep.subr.mxu0 0.0
    %5587 = vmatpush1.xpose.msra.mxu0 0.0
    %5588 = vmatprep.subr.mxu0 0.0
    %5589 = vmatpush1.xpose.msra.mxu0 0.0
    %5590 = vmatprep.mubr.f32.mxu0 0.0
    %5591 = vmatmul.mubr.f32.gmra.mrb[0].mxu0 %v5521
    %v5592 = vpop.f32.mrb[0].mxu0
    %v5593 = vadd.f32 0.0, %v5592
    %v5594 = vpop.f32.mrb[0].mxu0
    %5595 = vdwg.mxu0
    %v5596 = vmul.f32 %v5593, 0.25
    %v5597 = vsel %vm614, %v5596, -inf
    %5598 = vmax.xlane.f32.xlu0 %v5597
    %v5599 = vpop.xlane.xlu0 %5598
    %v5600 = vsub.f32 %v5596, %v5599
    %v5601 = vmul.f32 %v5600, 1.442695
    %v5602 = vpow.pop %v5601
    %v5603 = vsel %vm614, %v5602, 0.0
    %5604 = vadd.xlane.f32.xlu0 %v5603
    %v5605 = vpop.xlane.xlu0 %5604
    %v5606 = vrcp.pop %v5605
    %v5607 = vmul.f32 %v5602, %v5606
    %v5609 = vsel %vm614, %v5607, 0
    %5611 = vmatprep.subr.mxu0 0.0
    %5612 = vmatpush1.msra.mxu0 %v4554
    %5613 = vmatprep.subr.mxu0 0.0
    %5614 = vmatpush1.msra.mxu0 0.0
    %5615 = vmatprep.subr.mxu0 0.0
    %5616 = vmatpush1.msra.mxu0 0.0
    %5617 = vmatprep.subr.mxu0 0.0
    %5618 = vmatpush1.msra.mxu0 0.0
    %5619 = vmatprep.subr.mxu0 0.0
    %5620 = vmatpush1.msra.mxu0 0.0
    %5621 = vmatprep.subr.mxu0 0.0
    %5622 = vmatpush1.msra.mxu0 0.0
    %5623 = vmatprep.subr.mxu0 0.0
    %5624 = vmatpush1.msra.mxu0 0.0
    %5625 = vmatprep.subr.mxu0 0.0
    %5626 = vmatpush1.msra.mxu0 0.0
    %5627 = vmatprep.subr.mxu0 0.0
    %5628 = vmatpush1.msra.mxu0 0.0
    %5629 = vmatprep.subr.mxu0 0.0
    %5630 = vmatpush1.msra.mxu0 0.0
    %5631 = vmatprep.subr.mxu0 0.0
    %5632 = vmatpush1.msra.mxu0 0.0
    %5633 = vmatprep.subr.mxu0 0.0
    %5634 = vmatpush1.msra.mxu0 0.0
    %5635 = vmatprep.subr.mxu0 0.0
    %5636 = vmatpush1.msra.mxu0 0.0
    %5637 = vmatprep.subr.mxu0 0.0
    %5638 = vmatpush1.msra.mxu0 0.0
    %5639 = vmatprep.subr.mxu0 0.0
    %5640 = vmatpush1.msra.mxu0 0.0
    %5641 = vmatprep.subr.mxu0 0.0
    %5642 = vmatpush1.msra.mxu0 0.0
    %5643 = vmatprep.subr.mxu0 0.0
    %5644 = vmatpush1.msra.mxu0 0.0
    %5645 = vmatprep.subr.mxu0 0.0
    %5646 = vmatpush1.msra.mxu0 0.0
    %5647 = vmatprep.subr.mxu0 0.0
    %5648 = vmatpush1.msra.mxu0 0.0
    %5649 = vmatprep.subr.mxu0 0.0
    %5650 = vmatpush1.msra.mxu0 0.0
    %5651 = vmatprep.subr.mxu0 0.0
    %5652 = vmatpush1.msra.mxu0 0.0
    %5653 = vmatprep.subr.mxu0 0.0
    %5654 = vmatpush1.msra.mxu0 0.0
    %5655 = vmatprep.subr.mxu0 0.0
    %5656 = vmatpush1.msra.mxu0 0.0
    %5657 = vmatprep.subr.mxu0 0.0
    %5658 = vmatpush1.msra.mxu0 0.0
    %5659 = vmatprep.subr.mxu0 0.0
    %5660 = vmatpush1.msra.mxu0 0.0
    %5661 = vmatprep.subr.mxu0 0.0
    %5662 = vmatpush1.msra.mxu0 0.0
    %5663 = vmatprep.subr.mxu0 0.0
    %5664 = vmatpush1.msra.mxu0 0.0
    %5665 = vmatprep.subr.mxu0 0.0
    %5666 = vmatpush1.msra.mxu0 0.0
    %5667 = vmatprep.subr.mxu0 0.0
    %5668 = vmatpush1.msra.mxu0 0.0
    %5669 = vmatprep.subr.mxu0 0.0
    %5670 = vmatpush1.msra.mxu0 0.0
    %5671 = vmatprep.subr.mxu0 0.0
    %5672 = vmatpush1.msra.mxu0 0.0
    %5673 = vmatprep.subr.mxu0 0.0
    %5674 = vmatpush1.msra.mxu0 0.0
    %5675 = vmatprep.mubr.f32.mxu0 0.0
    %5676 = vmatmul.mubr.f32.gmra.mrb[0].mxu0 %v5609
    %v5677 = vpop.f32.mrb[0].mxu0
    %v5678 = vadd.f32 0.0, %v5677
    %v5679 = vpop.f32.mrb[0].mxu0
    %5680 = vdwg.mxu0
    %5681 = vrot.lane.b32.xlu0 %v4374, 112
    %v5682 = vpop.permute.xlu0 %5681
    %5683 = vrot.lane.b32.xlu0 %v4464, 112
    %v5684 = vpop.permute.xlu0 %5683
    %v5685 = vsel %vm170, %v5682, 0
    %v5687 = vsel %vm170, %v5684, 0
    %5689 = vmatprep.subr.mxu0 0.0
    %5690 = vmatpush1.xpose.msra.mxu0 %v5687
    %5691 = vmatprep.subr.mxu0 0.0
    %5692 = vmatpush1.xpose.msra.mxu0 0.0
    %5693 = vmatprep.subr.mxu0 0.0
    %5694 = vmatpush1.xpose.msra.mxu0 0.0
    %5695 = vmatprep.subr.mxu0 0.0
    %5696 = vmatpush1.xpose.msra.mxu0 0.0
    %5697 = vmatprep.subr.mxu0 0.0
    %5698 = vmatpush1.xpose.msra.mxu0 0.0
    %5699 = vmatprep.subr.mxu0 0.0
    %5700 = vmatpush1.xpose.msra.mxu0 0.0
    %5701 = vmatprep.subr.mxu0 0.0
    %5702 = vmatpush1.xpose.msra.mxu0 0.0
    %5703 = vmatprep.subr.mxu0 0.0
    %5704 = vmatpush1.xpose.msra.mxu0 0.0
    %5705 = vmatprep.subr.mxu0 0.0
    %5706 = vmatpush1.xpose.msra.mxu0 0.0
    %5707 = vmatprep.subr.mxu0 0.0
    %5708 = vmatpush1.xpose.msra.mxu0 0.0
    %5709 = vmatprep.subr.mxu0 0.0
    %5710 = vmatpush1.xpose.msra.mxu0 0.0
    %5711 = vmatprep.subr.mxu0 0.0
    %5712 = vmatpush1.xpose.msra.mxu0 0.0
    %5713 = vmatprep.subr.mxu0 0.0
    %5714 = vmatpush1.xpose.msra.mxu0 0.0
    %5715 = vmatprep.subr.mxu0 0.0
    %5716 = vmatpush1.xpose.msra.mxu0 0.0
    %5717 = vmatprep.subr.mxu0 0.0
    %5718 = vmatpush1.xpose.msra.mxu0 0.0
    %5719 = vmatprep.subr.mxu0 0.0
    %5720 = vmatpush1.xpose.msra.mxu0 0.0
    %5721 = vmatprep.subr.mxu0 0.0
    %5722 = vmatpush1.xpose.msra.mxu0 0.0
    %5723 = vmatprep.subr.mxu0 0.0
    %5724 = vmatpush1.xpose.msra.mxu0 0.0
    %5725 = vmatprep.subr.mxu0 0.0
    %5726 = vmatpush1.xpose.msra.mxu0 0.0
    %5727 = vmatprep.subr.mxu0 0.0
    %5728 = vmatpush1.xpose.msra.mxu0 0.0
    %5729 = vmatprep.subr.mxu0 0.0
    %5730 = vmatpush1.xpose.msra.mxu0 0.0
    %5731 = vmatprep.subr.mxu0 0.0
    %5732 = vmatpush1.xpose.msra.mxu0 0.0
    %5733 = vmatprep.subr.mxu0 0.0
    %5734 = vmatpush1.xpose.msra.mxu0 0.0
    %5735 = vmatprep.subr.mxu0 0.0
    %5736 = vmatpush1.xpose.msra.mxu0 0.0
    %5737 = vmatprep.subr.mxu0 0.0
    %5738 = vmatpush1.xpose.msra.mxu0 0.0
    %5739 = vmatprep.subr.mxu0 0.0
    %5740 = vmatpush1.xpose.msra.mxu0 0.0
    %5741 = vmatprep.subr.mxu0 0.0
    %5742 = vmatpush1.xpose.msra.mxu0 0.0
    %5743 = vmatprep.subr.mxu0 0.0
    %5744 = vmatpush1.xpose.msra.mxu0 0.0
    %5745 = vmatprep.subr.mxu0 0.0
    %5746 = vmatpush1.xpose.msra.mxu0 0.0
    %5747 = vmatprep.subr.mxu0 0.0
    %5748 = vmatpush1.xpose.msra.mxu0 0.0
    %5749 = vmatprep.subr.mxu0 0.0
    %5750 = vmatpush1.xpose.msra.mxu0 0.0
    %5751 = vmatprep.subr.mxu0 0.0
    %5752 = vmatpush1.xpose.msra.mxu0 0.0
    %5753 = vmatprep.mubr.f32.mxu0 0.0
    %5754 = vmatmul.mubr.f32.gmra.mrb[0].mxu0 %v5685
    %v5755 = vpop.f32.mrb[0].mxu0
    %v5756 = vadd.f32 0.0, %v5755
    %v5757 = vpop.f32.mrb[0].mxu0
    %5758 = vdwg.mxu0
    %v5759 = vmul.f32 %v5756, 0.25
    %v5760 = vsel %vm614, %v5759, -inf
    %5761 = vmax.xlane.f32.xlu0 %v5760
    %v5762 = vpop.xlane.xlu0 %5761
    %v5763 = vsub.f32 %v5759, %v5762
    %v5764 = vmul.f32 %v5763, 1.442695
    %v5765 = vpow.pop %v5764
    %v5766 = vsel %vm614, %v5765, 0.0
    %5767 = vadd.xlane.f32.xlu0 %v5766
    %v5768 = vpop.xlane.xlu0 %5767
    %v5769 = vrcp.pop %v5768
    %v5770 = vmul.f32 %v5765, %v5769
    %5772 = vrot.lane.b32.xlu0 %v4554, 112
    %v5773 = vpop.permute.xlu0 %5772
    %v5776 = vsel %vm614, %v5770, 0
    %5778 = vmatprep.subr.mxu0 0.0
    %5779 = vmatpush1.msra.mxu0 %v5773
    %5780 = vmatprep.subr.mxu0 0.0
    %5781 = vmatpush1.msra.mxu0 0.0
    %5782 = vmatprep.subr.mxu0 0.0
    %5783 = vmatpush1.msra.mxu0 0.0
    %5784 = vmatprep.subr.mxu0 0.0
    %5785 = vmatpush1.msra.mxu0 0.0
    %5786 = vmatprep.subr.mxu0 0.0
    %5787 = vmatpush1.msra.mxu0 0.0
    %5788 = vmatprep.subr.mxu0 0.0
    %5789 = vmatpush1.msra.mxu0 0.0
    %5790 = vmatprep.subr.mxu0 0.0
    %5791 = vmatpush1.msra.mxu0 0.0
    %5792 = vmatprep.subr.mxu0 0.0
    %5793 = vmatpush1.msra.mxu0 0.0
    %5794 = vmatprep.subr.mxu0 0.0
    %5795 = vmatpush1.msra.mxu0 0.0
    %5796 = vmatprep.subr.mxu0 0.0
    %5797 = vmatpush1.msra.mxu0 0.0
    %5798 = vmatprep.subr.mxu0 0.0
    %5799 = vmatpush1.msra.mxu0 0.0
    %5800 = vmatprep.subr.mxu0 0.0
    %5801 = vmatpush1.msra.mxu0 0.0
    %5802 = vmatprep.subr.mxu0 0.0
    %5803 = vmatpush1.msra.mxu0 0.0
    %5804 = vmatprep.subr.mxu0 0.0
    %5805 = vmatpush1.msra.mxu0 0.0
    %5806 = vmatprep.subr.mxu0 0.0
    %5807 = vmatpush1.msra.mxu0 0.0
    %5808 = vmatprep.subr.mxu0 0.0
    %5809 = vmatpush1.msra.mxu0 0.0
    %5810 = vmatprep.subr.mxu0 0.0
    %5811 = vmatpush1.msra.mxu0 0.0
    %5812 = vmatprep.subr.mxu0 0.0
    %5813 = vmatpush1.msra.mxu0 0.0
    %5814 = vmatprep.subr.mxu0 0.0
    %5815 = vmatpush1.msra.mxu0 0.0
    %5816 = vmatprep.subr.mxu0 0.0
    %5817 = vmatpush1.msra.mxu0 0.0
    %5818 = vmatprep.subr.mxu0 0.0
    %5819 = vmatpush1.msra.mxu0 0.0
    %5820 = vmatprep.subr.mxu0 0.0
    %5821 = vmatpush1.msra.mxu0 0.0
    %5822 = vmatprep.subr.mxu0 0.0
    %5823 = vmatpush1.msra.mxu0 0.0
    %5824 = vmatprep.subr.mxu0 0.0
    %5825 = vmatpush1.msra.mxu0 0.0
    %5826 = vmatprep.subr.mxu0 0.0
    %5827 = vmatpush1.msra.mxu0 0.0
    %5828 = vmatprep.subr.mxu0 0.0
    %5829 = vmatpush1.msra.mxu0 0.0
    %5830 = vmatprep.subr.mxu0 0.0
    %5831 = vmatpush1.msra.mxu0 0.0
    %5832 = vmatprep.subr.mxu0 0.0
    %5833 = vmatpush1.msra.mxu0 0.0
    %5834 = vmatprep.subr.mxu0 0.0
    %5835 = vmatpush1.msra.mxu0 0.0
    %5836 = vmatprep.subr.mxu0 0.0
    %5837 = vmatpush1.msra.mxu0 0.0
    %5838 = vmatprep.subr.mxu0 0.0
    %5839 = vmatpush1.msra.mxu0 0.0
    %5840 = vmatprep.subr.mxu0 0.0
    %5841 = vmatpush1.msra.mxu0 0.0
    %5842 = vmatprep.mubr.f32.mxu0 0.0
    %5843 = vmatmul.mubr.f32.gmra.mrb[0].mxu0 %v5776
    %v5844 = vpop.f32.mrb[0].mxu0
    %v5845 = vadd.f32 0.0, %v5844
    %v5846 = vpop.f32.mrb[0].mxu0
    %5847 = vdwg.mxu0
    %v5849 = vsel %vm170, %v5845, 0
    %5851 = vmatprep.subr.mxu0 0.0
    %5852 = vmatpush1.msra.mxu0 %v4559
    %5853 = vmatprep.subr.mxu0 0.0
    %5854 = vmatpush1.msra.mxu0 %v4560
    %5855 = vmatprep.subr.mxu0 0.0
    %5856 = vmatpush1.msra.mxu0 0.0
    %5857 = vmatprep.subr.mxu0 0.0
    %5858 = vmatpush1.msra.mxu0 0.0
    %5859 = vmatprep.subr.mxu0 0.0
    %5860 = vmatpush1.msra.mxu0 0.0
    %5861 = vmatprep.subr.mxu0 0.0
    %5862 = vmatpush1.msra.mxu0 0.0
    %5863 = vmatprep.subr.mxu0 0.0
    %5864 = vmatpush1.msra.mxu0 0.0
    %5865 = vmatprep.subr.mxu0 0.0
    %5866 = vmatpush1.msra.mxu0 0.0
    %5867 = vmatprep.subr.mxu0 0.0
    %5868 = vmatpush1.msra.mxu0 0.0
    %5869 = vmatprep.subr.mxu0 0.0
    %5870 = vmatpush1.msra.mxu0 0.0
    %5871 = vmatprep.subr.mxu0 0.0
    %5872 = vmatpush1.msra.mxu0 0.0
    %5873 = vmatprep.subr.mxu0 0.0
    %5874 = vmatpush1.msra.mxu0 0.0
    %5875 = vmatprep.subr.mxu0 0.0
    %5876 = vmatpush1.msra.mxu0 0.0
    %5877 = vmatprep.subr.mxu0 0.0
    %5878 = vmatpush1.msra.mxu0 0.0
    %5879 = vmatprep.subr.mxu0 0.0
    %5880 = vmatpush1.msra.mxu0 0.0
    %5881 = vmatprep.subr.mxu0 0.0
    %5882 = vmatpush1.msra.mxu0 0.0
    %5883 = vmatprep.subr.mxu0 0.0
    %5884 = vmatpush1.msra.mxu0 0.0
    %5885 = vmatprep.subr.mxu0 0.0
    %5886 = vmatpush1.msra.mxu0 0.0
    %5887 = vmatprep.subr.mxu0 0.0
    %5888 = vmatpush1.msra.mxu0 0.0
    %5889 = vmatprep.subr.mxu0 0.0
    %5890 = vmatpush1.msra.mxu0 0.0
    %5891 = vmatprep.subr.mxu0 0.0
    %5892 = vmatpush1.msra.mxu0 0.0
    %5893 = vmatprep.subr.mxu0 0.0
    %5894 = vmatpush1.msra.mxu0 0.0
    %5895 = vmatprep.subr.mxu0 0.0
    %5896 = vmatpush1.msra.mxu0 0.0
    %5897 = vmatprep.subr.mxu0 0.0
    %5898 = vmatpush1.msra.mxu0 0.0
    %5899 = vmatprep.subr.mxu0 0.0
    %5900 = vmatpush1.msra.mxu0 0.0
    %5901 = vmatprep.subr.mxu0 0.0
    %5902 = vmatpush1.msra.mxu0 0.0
    %5903 = vmatprep.subr.mxu0 0.0
    %5904 = vmatpush1.msra.mxu0 0.0
    %5905 = vmatprep.subr.mxu0 0.0
    %5906 = vmatpush1.msra.mxu0 0.0
    %5907 = vmatprep.subr.mxu0 0.0
    %5908 = vmatpush1.msra.mxu0 0.0
    %5909 = vmatprep.subr.mxu0 0.0
    %5910 = vmatpush1.msra.mxu0 0.0
    %5911 = vmatprep.subr.mxu0 0.0
    %5912 = vmatpush1.msra.mxu0 0.0
    %5913 = vmatprep.subr.mxu0 0.0
    %5914 = vmatpush1.msra.mxu0 0.0
    %5915 = vmatprep.mubr.f32.mxu0 0.0
    %5916 = vmatmul.mubr.f32.gmra.mrb[0].mxu0 %v5849
    %v5917 = vpop.f32.mrb[0].mxu0
    %v5918 = vadd.f32 0.0, %v5917
    %v5919 = vpop.f32.mrb[0].mxu0
    %5920 = vdwg.mxu0
    %v5922 = vsel %vm170, %v5678, 0
    %5924 = vmatprep.subr.mxu0 0.0
    %5925 = vmatpush1.msra.mxu0 %v4557
    %5926 = vmatprep.subr.mxu0 0.0
    %5927 = vmatpush1.msra.mxu0 %v4558
    %5928 = vmatprep.subr.mxu0 0.0
    %5929 = vmatpush1.msra.mxu0 0.0
    %5930 = vmatprep.subr.mxu0 0.0
    %5931 = vmatpush1.msra.mxu0 0.0
    %5932 = vmatprep.subr.mxu0 0.0
    %5933 = vmatpush1.msra.mxu0 0.0
    %5934 = vmatprep.subr.mxu0 0.0
    %5935 = vmatpush1.msra.mxu0 0.0
    %5936 = vmatprep.subr.mxu0 0.0
    %5937 = vmatpush1.msra.mxu0 0.0
    %5938 = vmatprep.subr.mxu0 0.0
    %5939 = vmatpush1.msra.mxu0 0.0
    %5940 = vmatprep.subr.mxu0 0.0
    %5941 = vmatpush1.msra.mxu0 0.0
    %5942 = vmatprep.subr.mxu0 0.0
    %5943 = vmatpush1.msra.mxu0 0.0
    %5944 = vmatprep.subr.mxu0 0.0
    %5945 = vmatpush1.msra.mxu0 0.0
    %5946 = vmatprep.subr.mxu0 0.0
    %5947 = vmatpush1.msra.mxu0 0.0
    %5948 = vmatprep.subr.mxu0 0.0
    %5949 = vmatpush1.msra.mxu0 0.0
    %5950 = vmatprep.subr.mxu0 0.0
    %5951 = vmatpush1.msra.mxu0 0.0
    %5952 = vmatprep.subr.mxu0 0.0
    %5953 = vmatpush1.msra.mxu0 0.0
    %5954 = vmatprep.subr.mxu0 0.0
    %5955 = vmatpush1.msra.mxu0 0.0
    %5956 = vmatprep.subr.mxu0 0.0
    %5957 = vmatpush1.msra.mxu0 0.0
    %5958 = vmatprep.subr.mxu0 0.0
    %5959 = vmatpush1.msra.mxu0 0.0
    %5960 = vmatprep.subr.mxu0 0.0
    %5961 = vmatpush1.msra.mxu0 0.0
    %5962 = vmatprep.subr.mxu0 0.0
    %5963 = vmatpush1.msra.mxu0 0.0
    %5964 = vmatprep.subr.mxu0 0.0
    %5965 = vmatpush1.msra.mxu0 0.0
    %5966 = vmatprep.subr.mxu0 0.0
    %5967 = vmatpush1.msra.mxu0 0.0
    %5968 = vmatprep.subr.mxu0 0.0
    %5969 = vmatpush1.msra.mxu0 0.0
    %5970 = vmatprep.subr.mxu0 0.0
    %5971 = vmatpush1.msra.mxu0 0.0
    %5972 = vmatprep.subr.mxu0 0.0
    %5973 = vmatpush1.msra.mxu0 0.0
    %5974 = vmatprep.subr.mxu0 0.0
    %5975 = vmatpush1.msra.mxu0 0.0
    %5976 = vmatprep.subr.mxu0 0.0
    %5977 = vmatpush1.msra.mxu0 0.0
    %5978 = vmatprep.subr.mxu0 0.0
    %5979 = vmatpush1.msra.mxu0 0.0
    %5980 = vmatprep.subr.mxu0 0.0
    %5981 = vmatpush1.msra.mxu0 0.0
    %5982 = vmatprep.subr.mxu0 0.0
    %5983 = vmatpush1.msra.mxu0 0.0
    %5984 = vmatprep.subr.mxu0 0.0
    %5985 = vmatpush1.msra.mxu0 0.0
    %5986 = vmatprep.subr.mxu0 0.0
    %5987 = vmatpush1.msra.mxu0 0.0
    %5988 = vmatprep.mubr.f32.mxu0 0.0
    %5989 = vmatmul.mubr.f32.gmra.mrb[0].mxu0 %v5922
    %v5990 = vpop.f32.mrb[0].mxu0
    %v5991 = vadd.f32 %v5918, %v5990
    %v5992 = vpop.f32.mrb[0].mxu0
    %5993 = vdwg.mxu0
    %5994 = vrot.lane.b32.xlu0 %v4374, 96
    %v5995 = vpop.permute.xlu0 %5994
    %5996 = vrot.lane.b32.xlu0 %v4464, 96
    %v5997 = vpop.permute.xlu0 %5996
    %v5998 = vsel %vm170, %v5995, 0
    %v6000 = vsel %vm170, %v5997, 0
    %6002 = vmatprep.subr.mxu0 0.0
    %6003 = vmatpush1.xpose.msra.mxu0 %v6000
    %6004 = vmatprep.subr.mxu0 0.0
    %6005 = vmatpush1.xpose.msra.mxu0 0.0
    %6006 = vmatprep.subr.mxu0 0.0
    %6007 = vmatpush1.xpose.msra.mxu0 0.0
    %6008 = vmatprep.subr.mxu0 0.0
    %6009 = vmatpush1.xpose.msra.mxu0 0.0
    %6010 = vmatprep.subr.mxu0 0.0
    %6011 = vmatpush1.xpose.msra.mxu0 0.0
    %6012 = vmatprep.subr.mxu0 0.0
    %6013 = vmatpush1.xpose.msra.mxu0 0.0
    %6014 = vmatprep.subr.mxu0 0.0
    %6015 = vmatpush1.xpose.msra.mxu0 0.0
    %6016 = vmatprep.subr.mxu0 0.0
    %6017 = vmatpush1.xpose.msra.mxu0 0.0
    %6018 = vmatprep.subr.mxu0 0.0
    %6019 = vmatpush1.xpose.msra.mxu0 0.0
    %6020 = vmatprep.subr.mxu0 0.0
    %6021 = vmatpush1.xpose.msra.mxu0 0.0
    %6022 = vmatprep.subr.mxu0 0.0
    %6023 = vmatpush1.xpose.msra.mxu0 0.0
    %6024 = vmatprep.subr.mxu0 0.0
    %6025 = vmatpush1.xpose.msra.mxu0 0.0
    %6026 = vmatprep.subr.mxu0 0.0
    %6027 = vmatpush1.xpose.msra.mxu0 0.0
    %6028 = vmatprep.subr.mxu0 0.0
    %6029 = vmatpush1.xpose.msra.mxu0 0.0
    %6030 = vmatprep.subr.mxu0 0.0
    %6031 = vmatpush1.xpose.msra.mxu0 0.0
    %6032 = vmatprep.subr.mxu0 0.0
    %6033 = vmatpush1.xpose.msra.mxu0 0.0
    %6034 = vmatprep.subr.mxu0 0.0
    %6035 = vmatpush1.xpose.msra.mxu0 0.0
    %6036 = vmatprep.subr.mxu0 0.0
    %6037 = vmatpush1.xpose.msra.mxu0 0.0
    %6038 = vmatprep.subr.mxu0 0.0
    %6039 = vmatpush1.xpose.msra.mxu0 0.0
    %6040 = vmatprep.subr.mxu0 0.0
    %6041 = vmatpush1.xpose.msra.mxu0 0.0
    %6042 = vmatprep.subr.mxu0 0.0
    %6043 = vmatpush1.xpose.msra.mxu0 0.0
    %6044 = vmatprep.subr.mxu0 0.0
    %6045 = vmatpush1.xpose.msra.mxu0 0.0
    %6046 = vmatprep.subr.mxu0 0.0
    %6047 = vmatpush1.xpose.msra.mxu0 0.0
    %6048 = vmatprep.subr.mxu0 0.0
    %6049 = vmatpush1.xpose.msra.mxu0 0.0
    %6050 = vmatprep.subr.mxu0 0.0
    %6051 = vmatpush1.xpose.msra.mxu0 0.0
    %6052 = vmatprep.subr.mxu0 0.0
    %6053 = vmatpush1.xpose.msra.mxu0 0.0
    %6054 = vmatprep.subr.mxu0 0.0
    %6055 = vmatpush1.xpose.msra.mxu0 0.0
    %6056 = vmatprep.subr.mxu0 0.0
    %6057 = vmatpush1.xpose.msra.mxu0 0.0
    %6058 = vmatprep.subr.mxu0 0.0
    %6059 = vmatpush1.xpose.msra.mxu0 0.0
    %6060 = vmatprep.subr.mxu0 0.0
    %6061 = vmatpush1.xpose.msra.mxu0 0.0
    %6062 = vmatprep.subr.mxu0 0.0
    %6063 = vmatpush1.xpose.msra.mxu0 0.0
    %6064 = vmatprep.subr.mxu0 0.0
    %6065 = vmatpush1.xpose.msra.mxu0 0.0
    %6066 = vmatprep.mubr.f32.mxu0 0.0
    %6067 = vmatmul.mubr.f32.gmra.mrb[0].mxu0 %v5998
    %v6068 = vpop.f32.mrb[0].mxu0
    %v6069 = vadd.f32 0.0, %v6068
    %v6070 = vpop.f32.mrb[0].mxu0
    %6071 = vdwg.mxu0
    %v6072 = vmul.f32 %v6069, 0.25
    %v6073 = vsel %vm614, %v6072, -inf
    %6074 = vmax.xlane.f32.xlu0 %v6073
    %v6075 = vpop.xlane.xlu0 %6074
    %v6076 = vsub.f32 %v6072, %v6075
    %v6077 = vmul.f32 %v6076, 1.442695
    %v6078 = vpow.pop %v6077
    %v6079 = vsel %vm614, %v6078, 0.0
    %6080 = vadd.xlane.f32.xlu0 %v6079
    %v6081 = vpop.xlane.xlu0 %6080
    %v6082 = vrcp.pop %v6081
    %v6083 = vmul.f32 %v6078, %v6082
    %6084 = vrot.lane.b32.xlu0 %v4554, 96
    %v6085 = vpop.permute.xlu0 %6084
    %v6088 = vsel %vm614, %v6083, 0
    %6090 = vmatprep.subr.mxu0 0.0
    %6091 = vmatpush1.msra.mxu0 %v6085
    %6092 = vmatprep.subr.mxu0 0.0
    %6093 = vmatpush1.msra.mxu0 0.0
    %6094 = vmatprep.subr.mxu0 0.0
    %6095 = vmatpush1.msra.mxu0 0.0
    %6096 = vmatprep.subr.mxu0 0.0
    %6097 = vmatpush1.msra.mxu0 0.0
    %6098 = vmatprep.subr.mxu0 0.0
    %6099 = vmatpush1.msra.mxu0 0.0
    %6100 = vmatprep.subr.mxu0 0.0
    %6101 = vmatpush1.msra.mxu0 0.0
    %6102 = vmatprep.subr.mxu0 0.0
    %6103 = vmatpush1.msra.mxu0 0.0
    %6104 = vmatprep.subr.mxu0 0.0
    %6105 = vmatpush1.msra.mxu0 0.0
    %6106 = vmatprep.subr.mxu0 0.0
    %6107 = vmatpush1.msra.mxu0 0.0
    %6108 = vmatprep.subr.mxu0 0.0
    %6109 = vmatpush1.msra.mxu0 0.0
    %6110 = vmatprep.subr.mxu0 0.0
    %6111 = vmatpush1.msra.mxu0 0.0
    %6112 = vmatprep.subr.mxu0 0.0
    %6113 = vmatpush1.msra.mxu0 0.0
    %6114 = vmatprep.subr.mxu0 0.0
    %6115 = vmatpush1.msra.mxu0 0.0
    %6116 = vmatprep.subr.mxu0 0.0
    %6117 = vmatpush1.msra.mxu0 0.0
    %6118 = vmatprep.subr.mxu0 0.0
    %6119 = vmatpush1.msra.mxu0 0.0
    %6120 = vmatprep.subr.mxu0 0.0
    %6121 = vmatpush1.msra.mxu0 0.0
    %6122 = vmatprep.subr.mxu0 0.0
    %6123 = vmatpush1.msra.mxu0 0.0
    %6124 = vmatprep.subr.mxu0 0.0
    %6125 = vmatpush1.msra.mxu0 0.0
    %6126 = vmatprep.subr.mxu0 0.0
    %6127 = vmatpush1.msra.mxu0 0.0
    %6128 = vmatprep.subr.mxu0 0.0
    %6129 = vmatpush1.msra.mxu0 0.0
    %6130 = vmatprep.subr.mxu0 0.0
    %6131 = vmatpush1.msra.mxu0 0.0
    %6132 = vmatprep.subr.mxu0 0.0
    %6133 = vmatpush1.msra.mxu0 0.0
    %6134 = vmatprep.subr.mxu0 0.0
    %6135 = vmatpush1.msra.mxu0 0.0
    %6136 = vmatprep.subr.mxu0 0.0
    %6137 = vmatpush1.msra.mxu0 0.0
    %6138 = vmatprep.subr.mxu0 0.0
    %6139 = vmatpush1.msra.mxu0 0.0
    %6140 = vmatprep.subr.mxu0 0.0
    %6141 = vmatpush1.msra.mxu0 0.0
    %6142 = vmatprep.subr.mxu0 0.0
    %6143 = vmatpush1.msra.mxu0 0.0
    %6144 = vmatprep.subr.mxu0 0.0
    %6145 = vmatpush1.msra.mxu0 0.0
    %6146 = vmatprep.subr.mxu0 0.0
    %6147 = vmatpush1.msra.mxu0 0.0
    %6148 = vmatprep.subr.mxu0 0.0
    %6149 = vmatpush1.msra.mxu0 0.0
    %6150 = vmatprep.subr.mxu0 0.0
    %6151 = vmatpush1.msra.mxu0 0.0
    %6152 = vmatprep.subr.mxu0 0.0
    %6153 = vmatpush1.msra.mxu0 0.0
    %6154 = vmatprep.mubr.f32.mxu0 0.0
    %6155 = vmatmul.mubr.f32.gmra.mrb[0].mxu0 %v6088
    %v6156 = vpop.f32.mrb[0].mxu0
    %v6157 = vadd.f32 0.0, %v6156
    %v6158 = vpop.f32.mrb[0].mxu0
    %6159 = vdwg.mxu0
    %v6161 = vsel %vm170, %v6157, 0
    %6163 = vmatprep.subr.mxu0 0.0
    %6164 = vmatpush1.msra.mxu0 %v4561
    %6165 = vmatprep.subr.mxu0 0.0
    %6166 = vmatpush1.msra.mxu0 %v4562
    %6167 = vmatprep.subr.mxu0 0.0
    %6168 = vmatpush1.msra.mxu0 0.0
    %6169 = vmatprep.subr.mxu0 0.0
    %6170 = vmatpush1.msra.mxu0 0.0
    %6171 = vmatprep.subr.mxu0 0.0
    %6172 = vmatpush1.msra.mxu0 0.0
    %6173 = vmatprep.subr.mxu0 0.0
    %6174 = vmatpush1.msra.mxu0 0.0
    %6175 = vmatprep.subr.mxu0 0.0
    %6176 = vmatpush1.msra.mxu0 0.0
    %6177 = vmatprep.subr.mxu0 0.0
    %6178 = vmatpush1.msra.mxu0 0.0
    %6179 = vmatprep.subr.mxu0 0.0
    %6180 = vmatpush1.msra.mxu0 0.0
    %6181 = vmatprep.subr.mxu0 0.0
    %6182 = vmatpush1.msra.mxu0 0.0
    %6183 = vmatprep.subr.mxu0 0.0
    %6184 = vmatpush1.msra.mxu0 0.0
    %6185 = vmatprep.subr.mxu0 0.0
    %6186 = vmatpush1.msra.mxu0 0.0
    %6187 = vmatprep.subr.mxu0 0.0
    %6188 = vmatpush1.msra.mxu0 0.0
    %6189 = vmatprep.subr.mxu0 0.0
    %6190 = vmatpush1.msra.mxu0 0.0
    %6191 = vmatprep.subr.mxu0 0.0
    %6192 = vmatpush1.msra.mxu0 0.0
    %6193 = vmatprep.subr.mxu0 0.0
    %6194 = vmatpush1.msra.mxu0 0.0
    %6195 = vmatprep.subr.mxu0 0.0
    %6196 = vmatpush1.msra.mxu0 0.0
    %6197 = vmatprep.subr.mxu0 0.0
    %6198 = vmatpush1.msra.mxu0 0.0
    %6199 = vmatprep.subr.mxu0 0.0
    %6200 = vmatpush1.msra.mxu0 0.0
    %6201 = vmatprep.subr.mxu0 0.0
    %6202 = vmatpush1.msra.mxu0 0.0
    %6203 = vmatprep.subr.mxu0 0.0
    %6204 = vmatpush1.msra.mxu0 0.0
    %6205 = vmatprep.subr.mxu0 0.0
    %6206 = vmatpush1.msra.mxu0 0.0
    %6207 = vmatprep.subr.mxu0 0.0
    %6208 = vmatpush1.msra.mxu0 0.0
    %6209 = vmatprep.subr.mxu0 0.0
    %6210 = vmatpush1.msra.mxu0 0.0
    %6211 = vmatprep.subr.mxu0 0.0
    %6212 = vmatpush1.msra.mxu0 0.0
    %6213 = vmatprep.subr.mxu0 0.0
    %6214 = vmatpush1.msra.mxu0 0.0
    %6215 = vmatprep.subr.mxu0 0.0
    %6216 = vmatpush1.msra.mxu0 0.0
    %6217 = vmatprep.subr.mxu0 0.0
    %6218 = vmatpush1.msra.mxu0 0.0
    %6219 = vmatprep.subr.mxu0 0.0
    %6220 = vmatpush1.msra.mxu0 0.0
    %6221 = vmatprep.subr.mxu0 0.0
    %6222 = vmatpush1.msra.mxu0 0.0
    %6223 = vmatprep.subr.mxu0 0.0
    %6224 = vmatpush1.msra.mxu0 0.0
    %6225 = vmatprep.subr.mxu0 0.0
    %6226 = vmatpush1.msra.mxu0 0.0
    %6227 = vmatprep.mubr.f32.mxu0 0.0
    %6228 = vmatmul.mubr.f32.gmra.mrb[0].mxu0 %v6161
    %v6229 = vpop.f32.mrb[0].mxu0
    %v6230 = vadd.f32 0.0, %v6229
    %v6231 = vpop.f32.mrb[0].mxu0
    %6232 = vdwg.mxu0
    %v6233 = vadd.f32 %v5991, %v6230
    %6234 = vrot.lane.b32.xlu0 %v4374, 80
    %v6235 = vpop.permute.xlu0 %6234
    %6236 = vrot.lane.b32.xlu0 %v4464, 80
    %v6237 = vpop.permute.xlu0 %6236
    %v6238 = vsel %vm170, %v6235, 0
    %v6240 = vsel %vm170, %v6237, 0
    %6242 = vmatprep.subr.mxu0 0.0
    %6243 = vmatpush1.xpose.msra.mxu0 %v6240
    %6244 = vmatprep.subr.mxu0 0.0
    %6245 = vmatpush1.xpose.msra.mxu0 0.0
    %6246 = vmatprep.subr.mxu0 0.0
    %6247 = vmatpush1.xpose.msra.mxu0 0.0
    %6248 = vmatprep.subr.mxu0 0.0
    %6249 = vmatpush1.xpose.msra.mxu0 0.0
    %6250 = vmatprep.subr.mxu0 0.0
    %6251 = vmatpush1.xpose.msra.mxu0 0.0
    %6252 = vmatprep.subr.mxu0 0.0
    %6253 = vmatpush1.xpose.msra.mxu0 0.0
    %6254 = vmatprep.subr.mxu0 0.0
    %6255 = vmatpush1.xpose.msra.mxu0 0.0
    %6256 = vmatprep.subr.mxu0 0.0
    %6257 = vmatpush1.xpose.msra.mxu0 0.0
    %6258 = vmatprep.subr.mxu0 0.0
    %6259 = vmatpush1.xpose.msra.mxu0 0.0
    %6260 = vmatprep.subr.mxu0 0.0
    %6261 = vmatpush1.xpose.msra.mxu0 0.0
    %6262 = vmatprep.subr.mxu0 0.0
    %6263 = vmatpush1.xpose.msra.mxu0 0.0
    %6264 = vmatprep.subr.mxu0 0.0
    %6265 = vmatpush1.xpose.msra.mxu0 0.0
    %6266 = vmatprep.subr.mxu0 0.0
    %6267 = vmatpush1.xpose.msra.mxu0 0.0
    %6268 = vmatprep.subr.mxu0 0.0
    %6269 = vmatpush1.xpose.msra.mxu0 0.0
    %6270 = vmatprep.subr.mxu0 0.0
    %6271 = vmatpush1.xpose.msra.mxu0 0.0
    %6272 = vmatprep.subr.mxu0 0.0
    %6273 = vmatpush1.xpose.msra.mxu0 0.0
    %6274 = vmatprep.subr.mxu0 0.0
    %6275 = vmatpush1.xpose.msra.mxu0 0.0
    %6276 = vmatprep.subr.mxu0 0.0
    %6277 = vmatpush1.xpose.msra.mxu0 0.0
    %6278 = vmatprep.subr.mxu0 0.0
    %6279 = vmatpush1.xpose.msra.mxu0 0.0
    %6280 = vmatprep.subr.mxu0 0.0
    %6281 = vmatpush1.xpose.msra.mxu0 0.0
    %6282 = vmatprep.subr.mxu0 0.0
    %6283 = vmatpush1.xpose.msra.mxu0 0.0
    %6284 = vmatprep.subr.mxu0 0.0
    %6285 = vmatpush1.xpose.msra.mxu0 0.0
    %6286 = vmatprep.subr.mxu0 0.0
    %6287 = vmatpush1.xpose.msra.mxu0 0.0
    %6288 = vmatprep.subr.mxu0 0.0
    %6289 = vmatpush1.xpose.msra.mxu0 0.0
    %6290 = vmatprep.subr.mxu0 0.0
    %6291 = vmatpush1.xpose.msra.mxu0 0.0
    %6292 = vmatprep.subr.mxu0 0.0
    %6293 = vmatpush1.xpose.msra.mxu0 0.0
    %6294 = vmatprep.subr.mxu0 0.0
    %6295 = vmatpush1.xpose.msra.mxu0 0.0
    %6296 = vmatprep.subr.mxu0 0.0
    %6297 = vmatpush1.xpose.msra.mxu0 0.0
    %6298 = vmatprep.subr.mxu0 0.0
    %6299 = vmatpush1.xpose.msra.mxu0 0.0
    %6300 = vmatprep.subr.mxu0 0.0
    %6301 = vmatpush1.xpose.msra.mxu0 0.0
    %6302 = vmatprep.subr.mxu0 0.0
    %6303 = vmatpush1.xpose.msra.mxu0 0.0
    %6304 = vmatprep.subr.mxu0 0.0
    %6305 = vmatpush1.xpose.msra.mxu0 0.0
    %6306 = vmatprep.mubr.f32.mxu0 0.0
    %6307 = vmatmul.mubr.f32.gmra.mrb[0].mxu0 %v6238
    %v6308 = vpop.f32.mrb[0].mxu0
    %v6309 = vadd.f32 0.0, %v6308
    %v6310 = vpop.f32.mrb[0].mxu0
    %6311 = vdwg.mxu0
    %v6312 = vmul.f32 %v6309, 0.25
    %v6313 = vsel %vm614, %v6312, -inf
    %6314 = vmax.xlane.f32.xlu0 %v6313
    %v6315 = vpop.xlane.xlu0 %6314
    %v6316 = vsub.f32 %v6312, %v6315
    %v6317 = vmul.f32 %v6316, 1.442695
    %v6318 = vpow.pop %v6317
    %v6319 = vsel %vm614, %v6318, 0.0
    %6320 = vadd.xlane.f32.xlu0 %v6319
    %v6321 = vpop.xlane.xlu0 %6320
    %v6322 = vrcp.pop %v6321
    %v6323 = vmul.f32 %v6318, %v6322
    %6324 = vrot.lane.b32.xlu0 %v4554, 80
    %v6325 = vpop.permute.xlu0 %6324
    %v6328 = vsel %vm614, %v6323, 0
    %6330 = vmatprep.subr.mxu0 0.0
    %6331 = vmatpush1.msra.mxu0 %v6325
    %6332 = vmatprep.subr.mxu0 0.0
    %6333 = vmatpush1.msra.mxu0 0.0
    %6334 = vmatprep.subr.mxu0 0.0
    %6335 = vmatpush1.msra.mxu0 0.0
    %6336 = vmatprep.subr.mxu0 0.0
    %6337 = vmatpush1.msra.mxu0 0.0
    %6338 = vmatprep.subr.mxu0 0.0
    %6339 = vmatpush1.msra.mxu0 0.0
    %6340 = vmatprep.subr.mxu0 0.0
    %6341 = vmatpush1.msra.mxu0 0.0
    %6342 = vmatprep.subr.mxu0 0.0
    %6343 = vmatpush1.msra.mxu0 0.0
    %6344 = vmatprep.subr.mxu0 0.0
    %6345 = vmatpush1.msra.mxu0 0.0
    %6346 = vmatprep.subr.mxu0 0.0
    %6347 = vmatpush1.msra.mxu0 0.0
    %6348 = vmatprep.subr.mxu0 0.0
    %6349 = vmatpush1.msra.mxu0 0.0
    %6350 = vmatprep.subr.mxu0 0.0
    %6351 = vmatpush1.msra.mxu0 0.0
    %6352 = vmatprep.subr.mxu0 0.0
    %6353 = vmatpush1.msra.mxu0 0.0
    %6354 = vmatprep.subr.mxu0 0.0
    %6355 = vmatpush1.msra.mxu0 0.0
    %6356 = vmatprep.subr.mxu0 0.0
    %6357 = vmatpush1.msra.mxu0 0.0
    %6358 = vmatprep.subr.mxu0 0.0
    %6359 = vmatpush1.msra.mxu0 0.0
    %6360 = vmatprep.subr.mxu0 0.0
    %6361 = vmatpush1.msra.mxu0 0.0
    %6362 = vmatprep.subr.mxu0 0.0
    %6363 = vmatpush1.msra.mxu0 0.0
    %6364 = vmatprep.subr.mxu0 0.0
    %6365 = vmatpush1.msra.mxu0 0.0
    %6366 = vmatprep.subr.mxu0 0.0
    %6367 = vmatpush1.msra.mxu0 0.0
    %6368 = vmatprep.subr.mxu0 0.0
    %6369 = vmatpush1.msra.mxu0 0.0
    %6370 = vmatprep.subr.mxu0 0.0
    %6371 = vmatpush1.msra.mxu0 0.0
    %6372 = vmatprep.subr.mxu0 0.0
    %6373 = vmatpush1.msra.mxu0 0.0
    %6374 = vmatprep.subr.mxu0 0.0
    %6375 = vmatpush1.msra.mxu0 0.0
    %6376 = vmatprep.subr.mxu0 0.0
    %6377 = vmatpush1.msra.mxu0 0.0
    %6378 = vmatprep.subr.mxu0 0.0
    %6379 = vmatpush1.msra.mxu0 0.0
    %6380 = vmatprep.subr.mxu0 0.0
    %6381 = vmatpush1.msra.mxu0 0.0
    %6382 = vmatprep.subr.mxu0 0.0
    %6383 = vmatpush1.msra.mxu0 0.0
    %6384 = vmatprep.subr.mxu0 0.0
    %6385 = vmatpush1.msra.mxu0 0.0
    %6386 = vmatprep.subr.mxu0 0.0
    %6387 = vmatpush1.msra.mxu0 0.0
    %6388 = vmatprep.subr.mxu0 0.0
    %6389 = vmatpush1.msra.mxu0 0.0
    %6390 = vmatprep.subr.mxu0 0.0
    %6391 = vmatpush1.msra.mxu0 0.0
    %6392 = vmatprep.subr.mxu0 0.0
    %6393 = vmatpush1.msra.mxu0 0.0
    %6394 = vmatprep.mubr.f32.mxu0 0.0
    %6395 = vmatmul.mubr.f32.gmra.mrb[0].mxu0 %v6328
    %v6396 = vpop.f32.mrb[0].mxu0
    %v6397 = vadd.f32 0.0, %v6396
    %v6398 = vpop.f32.mrb[0].mxu0
    %6399 = vdwg.mxu0
    %v6401 = vsel %vm170, %v6397, 0
    %6403 = vmatprep.subr.mxu0 0.0
    %6404 = vmatpush1.msra.mxu0 %v4563
    %6405 = vmatprep.subr.mxu0 0.0
    %6406 = vmatpush1.msra.mxu0 %v4564
    %6407 = vmatprep.subr.mxu0 0.0
    %6408 = vmatpush1.msra.mxu0 0.0
    %6409 = vmatprep.subr.mxu0 0.0
    %6410 = vmatpush1.msra.mxu0 0.0
    %6411 = vmatprep.subr.mxu0 0.0
    %6412 = vmatpush1.msra.mxu0 0.0
    %6413 = vmatprep.subr.mxu0 0.0
    %6414 = vmatpush1.msra.mxu0 0.0
    %6415 = vmatprep.subr.mxu0 0.0
    %6416 = vmatpush1.msra.mxu0 0.0
    %6417 = vmatprep.subr.mxu0 0.0
    %6418 = vmatpush1.msra.mxu0 0.0
    %6419 = vmatprep.subr.mxu0 0.0
    %6420 = vmatpush1.msra.mxu0 0.0
    %6421 = vmatprep.subr.mxu0 0.0
    %6422 = vmatpush1.msra.mxu0 0.0
    %6423 = vmatprep.subr.mxu0 0.0
    %6424 = vmatpush1.msra.mxu0 0.0
    %6425 = vmatprep.subr.mxu0 0.0
    %6426 = vmatpush1.msra.mxu0 0.0
    %6427 = vmatprep.subr.mxu0 0.0
    %6428 = vmatpush1.msra.mxu0 0.0
    %6429 = vmatprep.subr.mxu0 0.0
    %6430 = vmatpush1.msra.mxu0 0.0
    %6431 = vmatprep.subr.mxu0 0.0
    %6432 = vmatpush1.msra.mxu0 0.0
    %6433 = vmatprep.subr.mxu0 0.0
    %6434 = vmatpush1.msra.mxu0 0.0
    %6435 = vmatprep.subr.mxu0 0.0
    %6436 = vmatpush1.msra.mxu0 0.0
    %6437 = vmatprep.subr.mxu0 0.0
    %6438 = vmatpush1.msra.mxu0 0.0
    %6439 = vmatprep.subr.mxu0 0.0
    %6440 = vmatpush1.msra.mxu0 0.0
    %6441 = vmatprep.subr.mxu0 0.0
    %6442 = vmatpush1.msra.mxu0 0.0
    %6443 = vmatprep.subr.mxu0 0.0
    %6444 = vmatpush1.msra.mxu0 0.0
    %6445 = vmatprep.subr.mxu0 0.0
    %6446 = vmatpush1.msra.mxu0 0.0
    %6447 = vmatprep.subr.mxu0 0.0
    %6448 = vmatpush1.msra.mxu0 0.0
    %6449 = vmatprep.subr.mxu0 0.0
    %6450 = vmatpush1.msra.mxu0 0.0
    %6451 = vmatprep.subr.mxu0 0.0
    %6452 = vmatpush1.msra.mxu0 0.0
    %6453 = vmatprep.subr.mxu0 0.0
    %6454 = vmatpush1.msra.mxu0 0.0
    %6455 = vmatprep.subr.mxu0 0.0
    %6456 = vmatpush1.msra.mxu0 0.0
    %6457 = vmatprep.subr.mxu0 0.0
    %6458 = vmatpush1.msra.mxu0 0.0
    %6459 = vmatprep.subr.mxu0 0.0
    %6460 = vmatpush1.msra.mxu0 0.0
    %6461 = vmatprep.subr.mxu0 0.0
    %6462 = vmatpush1.msra.mxu0 0.0
    %6463 = vmatprep.subr.mxu0 0.0
    %6464 = vmatpush1.msra.mxu0 0.0
    %6465 = vmatprep.subr.mxu0 0.0
    %6466 = vmatpush1.msra.mxu0 0.0
    %6467 = vmatprep.mubr.f32.mxu0 0.0
    %6468 = vmatmul.mubr.f32.gmra.mrb[0].mxu0 %v6401
    %v6469 = vpop.f32.mrb[0].mxu0
    %v6470 = vadd.f32 0.0, %v6469
    %v6471 = vpop.f32.mrb[0].mxu0
    %6472 = vdwg.mxu0
    %v6473 = vadd.f32 %v6233, %v6470
    %6474 = vst.msk [vmem:[#allocation2 + $0x8] sm:$0xff] %vm267, %v6473
    %v6475 = vld [vmem:[#allocation2] sm:$0xff]
    %v6476 = vld [vmem:[#allocation2 + $0x8] sm:$0xff]
    %v6477 = vld [vmem:[%s53] sm:$0x1]
    %v6479 = vlaneseq
    %v6480 = vshrl.u32 %v6479, 7
    %v6481 = vsub.s32 0, %v6480
    %v6482 = vrot.slane %v6477, %v6481
    %v6484 = vadd.f32 %v6475, %v6482
    %v6485 = vadd.f32 %v6476, %v6482
    %v6486 = vadd.f32 %v4279, %v6484
    %v6487 = vadd.f32 %v4280, %v6485
    %v6488 = vld [vmem:[%s55] sm:$0x1]
    %v6489 = vld [vmem:[%s57] sm:$0x1]
    %v6490 = vsel %vm267, %v6486, 0.0
    %6491 = vadd.xlane.f32.xlu0 %v6490
    %v6492 = vpop.xlane.xlu0 %6491
    %v6493 = vsel %vm267, %v6487, 0.0
    %6494 = vadd.xlane.f32.xlu0 %v6493
    %v6495 = vpop.xlane.xlu0 %6494
    %v6496 = vmul.f32 %v6492, %v2469
    %v6497 = vmul.f32 %v6495, %v2469
    %v6498 = vsub.f32 %v6486, %v6496
    %v6499 = vsub.f32 %v6487, %v6497
    %v6500 = vmul.f32 %v6498, %v6498
    %v6501 = vmul.f32 %v6499, %v6499
    %v6502 = vsel %vm267, %v6500, 0.0
    %6503 = vadd.xlane.f32.xlu0 %v6502
    %v6504 = vpop.xlane.xlu0 %6503
    %v6505 = vsel %vm267, %v6501, 0.0
    %6506 = vadd.xlane.f32.xlu0 %v6505
    %v6507 = vpop.xlane.xlu0 %6506
    %v6508 = vmul.f32 %v6504, %v2469
    %v6509 = vmul.f32 %v6507, %v2469
    %v6510 = vadd.f32 %v6508, 1e-05
    %v6511 = vadd.f32 %v6509, 1e-05
    %v6512 = vrsqrt.pop %v6510
    %v6513 = vrsqrt.pop %v6511
    %v6514 = vmul.f32 %v6498, %v6512
    %v6515 = vmul.f32 %v6499, %v6513
    %v6517 = vlaneseq
    %v6518 = vshrl.u32 %v6517, 7
    %v6519 = vsub.s32 0, %v6518
    %v6520 = vrot.slane %v6488, %v6519
    %v6522 = vmul.f32 %v6514, %v6520
    %v6523 = vmul.f32 %v6515, %v6520
    %v6525 = vlaneseq
    %v6526 = vshrl.u32 %v6525, 7
    %v6527 = vsub.s32 0, %v6526
    %v6528 = vrot.slane %v6489, %v6527
    %v6530 = vadd.f32 %v6522, %v6528
    %v6531 = vadd.f32 %v6523, %v6528
    %v6532 = vld [vmem:[%s59] sm:$0xff]
    %v6533 = vld [vmem:[%s59 + $0x8] sm:$0xff]
    %v6534 = vld [vmem:[%s59 + $0x10] sm:$0xff]
    %v6535 = vld [vmem:[%s59 + $0x18] sm:$0xff]
    %v6536 = vld [vmem:[%s59 + $0x20] sm:$0xff]
    %v6537 = vld [vmem:[%s59 + $0x28] sm:$0xff]
    %v6538 = vld [vmem:[%s59 + $0x30] sm:$0xff]
    %v6539 = vld [vmem:[%s59 + $0x38] sm:$0xff]
    %v6540 = vld [vmem:[%s59 + $0x40] sm:$0xff]
    %v6541 = vld [vmem:[%s59 + $0x48] sm:$0xff]
    %v6542 = vld [vmem:[%s59 + $0x50] sm:$0xff]
    %v6543 = vld [vmem:[%s59 + $0x58] sm:$0xff]
    %v6544 = vld [vmem:[%s59 + $0x60] sm:$0xff]
    %v6545 = vld [vmem:[%s59 + $0x68] sm:$0xff]
    %v6546 = vld [vmem:[%s59 + $0x70] sm:$0xff]
    %v6547 = vld [vmem:[%s59 + $0x78] sm:$0xff]
    %v6548 = vld [vmem:[%s59 + $0x80] sm:$0xff]
    %v6549 = vld [vmem:[%s59 + $0x88] sm:$0xff]
    %v6550 = vld [vmem:[%s59 + $0x90] sm:$0xff]
    %v6551 = vld [vmem:[%s59 + $0x98] sm:$0xff]
    %v6552 = vld [vmem:[%s59 + $0xa0] sm:$0xff]
    %v6553 = vld [vmem:[%s59 + $0xa8] sm:$0xff]
    %v6554 = vld [vmem:[%s59 + $0xb0] sm:$0xff]
    %v6555 = vld [vmem:[%s59 + $0xb8] sm:$0xff]
    %v6556 = vld [vmem:[%s59 + $0xc0] sm:$0xff]
    %v6557 = vld [vmem:[%s59 + $0xc8] sm:$0xff]
    %v6558 = vld [vmem:[%s59 + $0xd0] sm:$0xff]
    %v6559 = vld [vmem:[%s59 + $0xd8] sm:$0xff]
    %v6560 = vld [vmem:[%s59 + $0xe0] sm:$0xff]
    %v6561 = vld [vmem:[%s59 + $0xe8] sm:$0xff]
    %v6562 = vld [vmem:[%s59 + $0xf0] sm:$0xff]
    %v6563 = vld [vmem:[%s59 + $0xf8] sm:$0xff]
    %v6564 = vld [vmem:[%s59 + $0x100] sm:$0xff]
    %v6565 = vld [vmem:[%s59 + $0x108] sm:$0xff]
    %v6566 = vld [vmem:[%s59 + $0x110] sm:$0xff]
    %v6567 = vld [vmem:[%s59 + $0x118] sm:$0xff]
    %v6568 = vld [vmem:[%s59 + $0x120] sm:$0xff]
    %v6569 = vld [vmem:[%s59 + $0x128] sm:$0xff]
    %v6570 = vld [vmem:[%s59 + $0x130] sm:$0xff]
    %v6571 = vld [vmem:[%s59 + $0x138] sm:$0xff]
    %v6572 = vld [vmem:[%s59 + $0x140] sm:$0xff]
    %v6573 = vld [vmem:[%s59 + $0x148] sm:$0xff]
    %v6574 = vld [vmem:[%s59 + $0x150] sm:$0xff]
    %v6575 = vld [vmem:[%s59 + $0x158] sm:$0xff]
    %v6576 = vld [vmem:[%s59 + $0x160] sm:$0xff]
    %v6577 = vld [vmem:[%s59 + $0x168] sm:$0xff]
    %v6578 = vld [vmem:[%s59 + $0x170] sm:$0xff]
    %v6579 = vld [vmem:[%s59 + $0x178] sm:$0xff]
    %v6580 = vld [vmem:[%s59 + $0x180] sm:$0xff]
    %v6581 = vld [vmem:[%s59 + $0x188] sm:$0xff]
    %v6582 = vld [vmem:[%s59 + $0x190] sm:$0xff]
    %v6583 = vld [vmem:[%s59 + $0x198] sm:$0xff]
    %v6584 = vld [vmem:[%s59 + $0x1a0] sm:$0xff]
    %v6585 = vld [vmem:[%s59 + $0x1a8] sm:$0xff]
    %v6586 = vld [vmem:[%s59 + $0x1b0] sm:$0xff]
    %v6587 = vld [vmem:[%s59 + $0x1b8] sm:$0xff]
    %v6588 = vld [vmem:[%s59 + $0x1c0] sm:$0xff]
    %v6589 = vld [vmem:[%s59 + $0x1c8] sm:$0xff]
    %v6590 = vld [vmem:[%s59 + $0x1d0] sm:$0xff]
    %v6591 = vld [vmem:[%s59 + $0x1d8] sm:$0xff]
    %v6592 = vld [vmem:[%s59 + $0x1e0] sm:$0xff]
    %v6593 = vld [vmem:[%s59 + $0x1e8] sm:$0xff]
    %v6594 = vld [vmem:[%s59 + $0x1f0] sm:$0xff]
    %v6595 = vld [vmem:[%s59 + $0x1f8] sm:$0xff]
    %v6596 = vld [vmem:[%s59 + $0x200] sm:$0xff]
    %v6597 = vld [vmem:[%s59 + $0x208] sm:$0xff]
    %v6598 = vld [vmem:[%s59 + $0x210] sm:$0xff]
    %v6599 = vld [vmem:[%s59 + $0x218] sm:$0xff]
    %v6600 = vld [vmem:[%s59 + $0x220] sm:$0xff]
    %v6601 = vld [vmem:[%s59 + $0x228] sm:$0xff]
    %v6602 = vld [vmem:[%s59 + $0x230] sm:$0xff]
    %v6603 = vld [vmem:[%s59 + $0x238] sm:$0xff]
    %v6604 = vld [vmem:[%s59 + $0x240] sm:$0xff]
    %v6605 = vld [vmem:[%s59 + $0x248] sm:$0xff]
    %v6606 = vld [vmem:[%s59 + $0x250] sm:$0xff]
    %v6607 = vld [vmem:[%s59 + $0x258] sm:$0xff]
    %v6608 = vld [vmem:[%s59 + $0x260] sm:$0xff]
    %v6609 = vld [vmem:[%s59 + $0x268] sm:$0xff]
    %v6610 = vld [vmem:[%s59 + $0x270] sm:$0xff]
    %v6611 = vld [vmem:[%s59 + $0x278] sm:$0xff]
    %v6612 = vld [vmem:[%s59 + $0x280] sm:$0xff]
    %v6613 = vld [vmem:[%s59 + $0x288] sm:$0xff]
    %v6614 = vld [vmem:[%s59 + $0x290] sm:$0xff]
    %v6615 = vld [vmem:[%s59 + $0x298] sm:$0xff]
    %v6616 = vld [vmem:[%s59 + $0x2a0] sm:$0xff]
    %v6617 = vld [vmem:[%s59 + $0x2a8] sm:$0xff]
    %v6618 = vld [vmem:[%s59 + $0x2b0] sm:$0xff]
    %v6619 = vld [vmem:[%s59 + $0x2b8] sm:$0xff]
    %v6620 = vld [vmem:[%s59 + $0x2c0] sm:$0xff]
    %v6621 = vld [vmem:[%s59 + $0x2c8] sm:$0xff]
    %v6622 = vld [vmem:[%s59 + $0x2d0] sm:$0xff]
    %v6623 = vld [vmem:[%s59 + $0x2d8] sm:$0xff]
    %v6624 = vld [vmem:[%s59 + $0x2e0] sm:$0xff]
    %v6625 = vld [vmem:[%s59 + $0x2e8] sm:$0xff]
    %v6626 = vld [vmem:[%s59 + $0x2f0] sm:$0xff]
    %v6627 = vld [vmem:[%s59 + $0x2f8] sm:$0xff]
    %v6628 = vld [vmem:[%s59 + $0x300] sm:$0xff]
    %v6629 = vld [vmem:[%s59 + $0x308] sm:$0xff]
    %v6630 = vld [vmem:[%s59 + $0x310] sm:$0xff]
    %v6631 = vld [vmem:[%s59 + $0x318] sm:$0xff]
    %v6632 = vld [vmem:[%s59 + $0x320] sm:$0xff]
    %v6633 = vld [vmem:[%s59 + $0x328] sm:$0xff]
    %v6634 = vld [vmem:[%s59 + $0x330] sm:$0xff]
    %v6635 = vld [vmem:[%s59 + $0x338] sm:$0xff]
    %v6636 = vld [vmem:[%s59 + $0x340] sm:$0xff]
    %v6637 = vld [vmem:[%s59 + $0x348] sm:$0xff]
    %v6638 = vld [vmem:[%s59 + $0x350] sm:$0xff]
    %v6639 = vld [vmem:[%s59 + $0x358] sm:$0xff]
    %v6640 = vld [vmem:[%s59 + $0x360] sm:$0xff]
    %v6641 = vld [vmem:[%s59 + $0x368] sm:$0xff]
    %v6642 = vld [vmem:[%s59 + $0x370] sm:$0xff]
    %v6643 = vld [vmem:[%s59 + $0x378] sm:$0xff]
    %v6644 = vld [vmem:[%s59 + $0x380] sm:$0xff]
    %v6645 = vld [vmem:[%s59 + $0x388] sm:$0xff]
    %v6646 = vld [vmem:[%s59 + $0x390] sm:$0xff]
    %v6647 = vld [vmem:[%s59 + $0x398] sm:$0xff]
    %v6648 = vld [vmem:[%s59 + $0x3a0] sm:$0xff]
    %v6649 = vld [vmem:[%s59 + $0x3a8] sm:$0xff]
    %v6650 = vld [vmem:[%s59 + $0x3b0] sm:$0xff]
    %v6651 = vld [vmem:[%s59 + $0x3b8] sm:$0xff]
    %v6652 = vld [vmem:[%s59 + $0x3c0] sm:$0xff]
    %v6653 = vld [vmem:[%s59 + $0x3c8] sm:$0xff]
    %v6654 = vld [vmem:[%s59 + $0x3d0] sm:$0xff]
    %v6655 = vld [vmem:[%s59 + $0x3d8] sm:$0xff]
    %v6656 = vld [vmem:[%s59 + $0x3e0] sm:$0xff]
    %v6657 = vld [vmem:[%s59 + $0x3e8] sm:$0xff]
    %v6658 = vld [vmem:[%s59 + $0x3f0] sm:$0xff]
    %v6659 = vld [vmem:[%s59 + $0x3f8] sm:$0xff]
    %v6660 = vld [vmem:[%s61] sm:$0xff]
    %v6661 = vld [vmem:[%s61 + $0x8] sm:$0xff]
    %v6664 = vlaneseq
    %v6665 = vshrl.u32 %v6664, 7
    %v6666 = vsub.s32 0, %v6665
    %v6667 = vrot.slane %v6660, %v6666
    %v6668 = vlaneseq
    %v6669 = vshrl.u32 %v6668, 7
    %v6670 = vsub.s32 1, %v6669
    %v6671 = vrot.slane %v6660, %v6670
    %v6672 = vlaneseq
    %v6673 = vshrl.u32 %v6672, 7
    %v6674 = vsub.s32 2, %v6673
    %v6675 = vrot.slane %v6660, %v6674
    %v6676 = vlaneseq
    %v6677 = vshrl.u32 %v6676, 7
    %v6678 = vsub.s32 3, %v6677
    %v6679 = vrot.slane %v6660, %v6678
    %v6680 = vlaneseq
    %v6681 = vshrl.u32 %v6680, 7
    %v6682 = vsub.s32 4, %v6681
    %v6683 = vrot.slane %v6660, %v6682
    %v6684 = vlaneseq
    %v6685 = vshrl.u32 %v6684, 7
    %v6686 = vsub.s32 5, %v6685
    %v6687 = vrot.slane %v6660, %v6686
    %v6688 = vlaneseq
    %v6689 = vshrl.u32 %v6688, 7
    %v6690 = vsub.s32 6, %v6689
    %v6691 = vrot.slane %v6660, %v6690
    %v6692 = vlaneseq
    %v6693 = vshrl.u32 %v6692, 7
    %v6694 = vsub.s32 7, %v6693
    %v6695 = vrot.slane %v6660, %v6694
    %v6696 = vlaneseq
    %v6697 = vshrl.u32 %v6696, 7
    %v6698 = vsub.s32 0, %v6697
    %v6699 = vrot.slane %v6661, %v6698
    %v6700 = vlaneseq
    %v6701 = vshrl.u32 %v6700, 7
    %v6702 = vsub.s32 1, %v6701
    %v6703 = vrot.slane %v6661, %v6702
    %v6704 = vlaneseq
    %v6705 = vshrl.u32 %v6704, 7
    %v6706 = vsub.s32 2, %v6705
    %v6707 = vrot.slane %v6661, %v6706
    %v6708 = vlaneseq
    %v6709 = vshrl.u32 %v6708, 7
    %v6710 = vsub.s32 3, %v6709
    %v6711 = vrot.slane %v6661, %v6710
    %v6712 = vlaneseq
    %v6713 = vshrl.u32 %v6712, 7
    %v6714 = vsub.s32 4, %v6713
    %v6715 = vrot.slane %v6661, %v6714
    %v6716 = vlaneseq
    %v6717 = vshrl.u32 %v6716, 7
    %v6718 = vsub.s32 5, %v6717
    %v6719 = vrot.slane %v6661, %v6718
    %v6720 = vlaneseq
    %v6721 = vshrl.u32 %v6720, 7
    %v6722 = vsub.s32 6, %v6721
    %v6723 = vrot.slane %v6661, %v6722
    %v6724 = vlaneseq
    %v6725 = vshrl.u32 %v6724, 7
    %v6726 = vsub.s32 7, %v6725
    %v6727 = vrot.slane %v6661, %v6726
    %v6745 = vsel %vm267, %v6530, 0
    %v6748 = vsel %vm267, %v6531, 0
    %6750 = vmatprep.subr.mxu0 %v6533
    %6751 = vmatpush1.msra.mxu0 %v6532
    %6752 = vmatprep.subr.mxu0 %v6549
    %6753 = vmatpush1.msra.mxu0 %v6548
    %6754 = vmatprep.subr.mxu0 %v6565
    %6755 = vmatpush1.msra.mxu0 %v6564
    %6756 = vmatprep.subr.mxu0 %v6581
    %6757 = vmatpush1.msra.mxu0 %v6580
    %6758 = vmatprep.subr.mxu0 %v6597
    %6759 = vmatpush1.msra.mxu0 %v6596
    %6760 = vmatprep.subr.mxu0 %v6613
    %6761 = vmatpush1.msra.mxu0 %v6612
    %6762 = vmatprep.subr.mxu0 %v6629
    %6763 = vmatpush1.msra.mxu0 %v6628
    %6764 = vmatprep.subr.mxu0 %v6645
    %6765 = vmatpush1.msra.mxu0 %v6644
    %6766 = vmatprep.subr.mxu0 0.0
    %6767 = vmatpush1.msra.mxu0 0.0
    %6768 = vmatprep.subr.mxu0 0.0
    %6769 = vmatpush1.msra.mxu0 0.0
    %6770 = vmatprep.subr.mxu0 0.0
    %6771 = vmatpush1.msra.mxu0 0.0
    %6772 = vmatprep.subr.mxu0 0.0
    %6773 = vmatpush1.msra.mxu0 0.0
    %6774 = vmatprep.subr.mxu0 0.0
    %6775 = vmatpush1.msra.mxu0 0.0
    %6776 = vmatprep.subr.mxu0 0.0
    %6777 = vmatpush1.msra.mxu0 0.0
    %6778 = vmatprep.subr.mxu0 0.0
    %6779 = vmatpush1.msra.mxu0 0.0
    %6780 = vmatprep.subr.mxu0 0.0
    %6781 = vmatpush1.msra.mxu0 0.0
    %6782 = vmatprep.subr.mxu0 0.0
    %6783 = vmatpush1.msra.mxu0 0.0
    %6784 = vmatprep.subr.mxu0 0.0
    %6785 = vmatpush1.msra.mxu0 0.0
    %6786 = vmatprep.subr.mxu0 0.0
    %6787 = vmatpush1.msra.mxu0 0.0
    %6788 = vmatprep.subr.mxu0 0.0
    %6789 = vmatpush1.msra.mxu0 0.0
    %6790 = vmatprep.subr.mxu0 0.0
    %6791 = vmatpush1.msra.mxu0 0.0
    %6792 = vmatprep.subr.mxu0 0.0
    %6793 = vmatpush1.msra.mxu0 0.0
    %6794 = vmatprep.subr.mxu0 0.0
    %6795 = vmatpush1.msra.mxu0 0.0
    %6796 = vmatprep.subr.mxu0 0.0
    %6797 = vmatpush1.msra.mxu0 0.0
    %6798 = vmatprep.subr.mxu0 0.0
    %6799 = vmatpush1.msra.mxu0 0.0
    %6800 = vmatprep.subr.mxu0 0.0
    %6801 = vmatpush1.msra.mxu0 0.0
    %6802 = vmatprep.subr.mxu0 0.0
    %6803 = vmatpush1.msra.mxu0 0.0
    %6804 = vmatprep.subr.mxu0 0.0
    %6805 = vmatpush1.msra.mxu0 0.0
    %6806 = vmatprep.subr.mxu0 0.0
    %6807 = vmatpush1.msra.mxu0 0.0
    %6808 = vmatprep.subr.mxu0 0.0
    %6809 = vmatpush1.msra.mxu0 0.0
    %6810 = vmatprep.subr.mxu0 0.0
    %6811 = vmatpush1.msra.mxu0 0.0
    %6812 = vmatprep.subr.mxu0 0.0
    %6813 = vmatpush1.msra.mxu0 0.0
    %6814 = vmatprep.mubr.f32.mxu0 0.0
    %6815 = vmatmul.mubr.f32.gmra.mrb[0].mxu0 %v6745
    %v6816 = vpop.f32.mrb[0].mxu0
    %v6817 = vadd.f32 %v6667, %v6816
    %v6818 = vpop.f32.mrb[0].mxu0
    %v6819 = vadd.f32 %v6671, %v6818
    %6820 = vmatprep.mubr.f32.mxu0 0.0
    %6821 = vmatmul.mubr.f32.gmra.mrb[0].mxu0 %v6748
    %v6822 = vpop.f32.mrb[0].mxu0
    %v6823 = vadd.f32 %v6667, %v6822
    %v6824 = vpop.f32.mrb[0].mxu0
    %v6825 = vadd.f32 %v6671, %v6824
    %6826 = vdwg.mxu0
    %6827 = vmatprep.subr.mxu0 %v6535
    %6828 = vmatpush1.msra.mxu0 %v6534
    %6829 = vmatprep.subr.mxu0 %v6551
    %6830 = vmatpush1.msra.mxu0 %v6550
    %6831 = vmatprep.subr.mxu0 %v6567
    %6832 = vmatpush1.msra.mxu0 %v6566
    %6833 = vmatprep.subr.mxu0 %v6583
    %6834 = vmatpush1.msra.mxu0 %v6582
    %6835 = vmatprep.subr.mxu0 %v6599
    %6836 = vmatpush1.msra.mxu0 %v6598
    %6837 = vmatprep.subr.mxu0 %v6615
    %6838 = vmatpush1.msra.mxu0 %v6614
    %6839 = vmatprep.subr.mxu0 %v6631
    %6840 = vmatpush1.msra.mxu0 %v6630
    %6841 = vmatprep.subr.mxu0 %v6647
    %6842 = vmatpush1.msra.mxu0 %v6646
    %6843 = vmatprep.subr.mxu0 0.0
    %6844 = vmatpush1.msra.mxu0 0.0
    %6845 = vmatprep.subr.mxu0 0.0
    %6846 = vmatpush1.msra.mxu0 0.0
    %6847 = vmatprep.subr.mxu0 0.0
    %6848 = vmatpush1.msra.mxu0 0.0
    %6849 = vmatprep.subr.mxu0 0.0
    %6850 = vmatpush1.msra.mxu0 0.0
    %6851 = vmatprep.subr.mxu0 0.0
    %6852 = vmatpush1.msra.mxu0 0.0
    %6853 = vmatprep.subr.mxu0 0.0
    %6854 = vmatpush1.msra.mxu0 0.0
    %6855 = vmatprep.subr.mxu0 0.0
    %6856 = vmatpush1.msra.mxu0 0.0
    %6857 = vmatprep.subr.mxu0 0.0
    %6858 = vmatpush1.msra.mxu0 0.0
    %6859 = vmatprep.subr.mxu0 0.0
    %6860 = vmatpush1.msra.mxu0 0.0
    %6861 = vmatprep.subr.mxu0 0.0
    %6862 = vmatpush1.msra.mxu0 0.0
    %6863 = vmatprep.subr.mxu0 0.0
    %6864 = vmatpush1.msra.mxu0 0.0
    %6865 = vmatprep.subr.mxu0 0.0
    %6866 = vmatpush1.msra.mxu0 0.0
    %6867 = vmatprep.subr.mxu0 0.0
    %6868 = vmatpush1.msra.mxu0 0.0
    %6869 = vmatprep.subr.mxu0 0.0
    %6870 = vmatpush1.msra.mxu0 0.0
    %6871 = vmatprep.subr.mxu0 0.0
    %6872 = vmatpush1.msra.mxu0 0.0
    %6873 = vmatprep.subr.mxu0 0.0
    %6874 = vmatpush1.msra.mxu0 0.0
    %6875 = vmatprep.subr.mxu0 0.0
    %6876 = vmatpush1.msra.mxu0 0.0
    %6877 = vmatprep.subr.mxu0 0.0
    %6878 = vmatpush1.msra.mxu0 0.0
    %6879 = vmatprep.subr.mxu0 0.0
    %6880 = vmatpush1.msra.mxu0 0.0
    %6881 = vmatprep.subr.mxu0 0.0
    %6882 = vmatpush1.msra.mxu0 0.0
    %6883 = vmatprep.subr.mxu0 0.0
    %6884 = vmatpush1.msra.mxu0 0.0
    %6885 = vmatprep.subr.mxu0 0.0
    %6886 = vmatpush1.msra.mxu0 0.0
    %6887 = vmatprep.subr.mxu0 0.0
    %6888 = vmatpush1.msra.mxu0 0.0
    %6889 = vmatprep.subr.mxu0 0.0
    %6890 = vmatpush1.msra.mxu0 0.0
    %6891 = vmatprep.mubr.f32.mxu0 0.0
    %6892 = vmatmul.mubr.f32.gmra.mrb[0].mxu0 %v6745
    %v6893 = vpop.f32.mrb[0].mxu0
    %v6894 = vadd.f32 %v6675, %v6893
    %v6895 = vpop.f32.mrb[0].mxu0
    %v6896 = vadd.f32 %v6679, %v6895
    %6897 = vmatprep.mubr.f32.mxu0 0.0
    %6898 = vmatmul.mubr.f32.gmra.mrb[0].mxu0 %v6748
    %v6899 = vpop.f32.mrb[0].mxu0
    %v6900 = vadd.f32 %v6675, %v6899
    %v6901 = vpop.f32.mrb[0].mxu0
    %v6902 = vadd.f32 %v6679, %v6901
    %6903 = vdwg.mxu0
    %6904 = vmatprep.subr.mxu0 %v6537
    %6905 = vmatpush1.msra.mxu0 %v6536
    %6906 = vmatprep.subr.mxu0 %v6553
    %6907 = vmatpush1.msra.mxu0 %v6552
    %6908 = vmatprep.subr.mxu0 %v6569
    %6909 = vmatpush1.msra.mxu0 %v6568
    %6910 = vmatprep.subr.mxu0 %v6585
    %6911 = vmatpush1.msra.mxu0 %v6584
    %6912 = vmatprep.subr.mxu0 %v6601
    %6913 = vmatpush1.msra.mxu0 %v6600
    %6914 = vmatprep.subr.mxu0 %v6617
    %6915 = vmatpush1.msra.mxu0 %v6616
    %6916 = vmatprep.subr.mxu0 %v6633
    %6917 = vmatpush1.msra.mxu0 %v6632
    %6918 = vmatprep.subr.mxu0 %v6649
    %6919 = vmatpush1.msra.mxu0 %v6648
    %6920 = vmatprep.subr.mxu0 0.0
    %6921 = vmatpush1.msra.mxu0 0.0
    %6922 = vmatprep.subr.mxu0 0.0
    %6923 = vmatpush1.msra.mxu0 0.0
    %6924 = vmatprep.subr.mxu0 0.0
    %6925 = vmatpush1.msra.mxu0 0.0
    %6926 = vmatprep.subr.mxu0 0.0
    %6927 = vmatpush1.msra.mxu0 0.0
    %6928 = vmatprep.subr.mxu0 0.0
    %6929 = vmatpush1.msra.mxu0 0.0
    %6930 = vmatprep.subr.mxu0 0.0
    %6931 = vmatpush1.msra.mxu0 0.0
    %6932 = vmatprep.subr.mxu0 0.0
    %6933 = vmatpush1.msra.mxu0 0.0
    %6934 = vmatprep.subr.mxu0 0.0
    %6935 = vmatpush1.msra.mxu0 0.0
    %6936 = vmatprep.subr.mxu0 0.0
    %6937 = vmatpush1.msra.mxu0 0.0
    %6938 = vmatprep.subr.mxu0 0.0
    %6939 = vmatpush1.msra.mxu0 0.0
    %6940 = vmatprep.subr.mxu0 0.0
    %6941 = vmatpush1.msra.mxu0 0.0
    %6942 = vmatprep.subr.mxu0 0.0
    %6943 = vmatpush1.msra.mxu0 0.0
    %6944 = vmatprep.subr.mxu0 0.0
    %6945 = vmatpush1.msra.mxu0 0.0
    %6946 = vmatprep.subr.mxu0 0.0
    %6947 = vmatpush1.msra.mxu0 0.0
    %6948 = vmatprep.subr.mxu0 0.0
    %6949 = vmatpush1.msra.mxu0 0.0
    %6950 = vmatprep.subr.mxu0 0.0
    %6951 = vmatpush1.msra.mxu0 0.0
    %6952 = vmatprep.subr.mxu0 0.0
    %6953 = vmatpush1.msra.mxu0 0.0
    %6954 = vmatprep.subr.mxu0 0.0
    %6955 = vmatpush1.msra.mxu0 0.0
    %6956 = vmatprep.subr.mxu0 0.0
    %6957 = vmatpush1.msra.mxu0 0.0
    %6958 = vmatprep.subr.mxu0 0.0
    %6959 = vmatpush1.msra.mxu0 0.0
    %6960 = vmatprep.subr.mxu0 0.0
    %6961 = vmatpush1.msra.mxu0 0.0
    %6962 = vmatprep.subr.mxu0 0.0
    %6963 = vmatpush1.msra.mxu0 0.0
    %6964 = vmatprep.subr.mxu0 0.0
    %6965 = vmatpush1.msra.mxu0 0.0
    %6966 = vmatprep.subr.mxu0 0.0
    %6967 = vmatpush1.msra.mxu0 0.0
    %6968 = vmatprep.mubr.f32.mxu0 0.0
    %6969 = vmatmul.mubr.f32.gmra.mrb[0].mxu0 %v6745
    %v6970 = vpop.f32.mrb[0].mxu0
    %v6971 = vadd.f32 %v6683, %v6970
    %v6972 = vpop.f32.mrb[0].mxu0
    %v6973 = vadd.f32 %v6687, %v6972
    %6974 = vmatprep.mubr.f32.mxu0 0.0
    %6975 = vmatmul.mubr.f32.gmra.mrb[0].mxu0 %v6748
    %v6976 = vpop.f32.mrb[0].mxu0
    %v6977 = vadd.f32 %v6683, %v6976
    %v6978 = vpop.f32.mrb[0].mxu0
    %v6979 = vadd.f32 %v6687, %v6978
    %6980 = vdwg.mxu0
    %6981 = vmatprep.subr.mxu0 %v6539
    %6982 = vmatpush1.msra.mxu0 %v6538
    %6983 = vmatprep.subr.mxu0 %v6555
    %6984 = vmatpush1.msra.mxu0 %v6554
    %6985 = vmatprep.subr.mxu0 %v6571
    %6986 = vmatpush1.msra.mxu0 %v6570
    %6987 = vmatprep.subr.mxu0 %v6587
    %6988 = vmatpush1.msra.mxu0 %v6586
    %6989 = vmatprep.subr.mxu0 %v6603
    %6990 = vmatpush1.msra.mxu0 %v6602
    %6991 = vmatprep.subr.mxu0 %v6619
    %6992 = vmatpush1.msra.mxu0 %v6618
    %6993 = vmatprep.subr.mxu0 %v6635
    %6994 = vmatpush1.msra.mxu0 %v6634
    %6995 = vmatprep.subr.mxu0 %v6651
    %6996 = vmatpush1.msra.mxu0 %v6650
    %6997 = vmatprep.subr.mxu0 0.0
    %6998 = vmatpush1.msra.mxu0 0.0
    %6999 = vmatprep.subr.mxu0 0.0
    %7000 = vmatpush1.msra.mxu0 0.0
    %7001 = vmatprep.subr.mxu0 0.0
    %7002 = vmatpush1.msra.mxu0 0.0
    %7003 = vmatprep.subr.mxu0 0.0
    %7004 = vmatpush1.msra.mxu0 0.0
    %7005 = vmatprep.subr.mxu0 0.0
    %7006 = vmatpush1.msra.mxu0 0.0
    %7007 = vmatprep.subr.mxu0 0.0
    %7008 = vmatpush1.msra.mxu0 0.0
    %7009 = vmatprep.subr.mxu0 0.0
    %7010 = vmatpush1.msra.mxu0 0.0
    %7011 = vmatprep.subr.mxu0 0.0
    %7012 = vmatpush1.msra.mxu0 0.0
    %7013 = vmatprep.subr.mxu0 0.0
    %7014 = vmatpush1.msra.mxu0 0.0
    %7015 = vmatprep.subr.mxu0 0.0
    %7016 = vmatpush1.msra.mxu0 0.0
    %7017 = vmatprep.subr.mxu0 0.0
    %7018 = vmatpush1.msra.mxu0 0.0
    %7019 = vmatprep.subr.mxu0 0.0
    %7020 = vmatpush1.msra.mxu0 0.0
    %7021 = vmatprep.subr.mxu0 0.0
    %7022 = vmatpush1.msra.mxu0 0.0
    %7023 = vmatprep.subr.mxu0 0.0
    %7024 = vmatpush1.msra.mxu0 0.0
    %7025 = vmatprep.subr.mxu0 0.0
    %7026 = vmatpush1.msra.mxu0 0.0
    %7027 = vmatprep.subr.mxu0 0.0
    %7028 = vmatpush1.msra.mxu0 0.0
    %7029 = vmatprep.subr.mxu0 0.0
    %7030 = vmatpush1.msra.mxu0 0.0
    %7031 = vmatprep.subr.mxu0 0.0
    %7032 = vmatpush1.msra.mxu0 0.0
    %7033 = vmatprep.subr.mxu0 0.0
    %7034 = vmatpush1.msra.mxu0 0.0
    %7035 = vmatprep.subr.mxu0 0.0
    %7036 = vmatpush1.msra.mxu0 0.0
    %7037 = vmatprep.subr.mxu0 0.0
    %7038 = vmatpush1.msra.mxu0 0.0
    %7039 = vmatprep.subr.mxu0 0.0
    %7040 = vmatpush1.msra.mxu0 0.0
    %7041 = vmatprep.subr.mxu0 0.0
    %7042 = vmatpush1.msra.mxu0 0.0
    %7043 = vmatprep.subr.mxu0 0.0
    %7044 = vmatpush1.msra.mxu0 0.0
    %7045 = vmatprep.mubr.f32.mxu0 0.0
    %7046 = vmatmul.mubr.f32.gmra.mrb[0].mxu0 %v6745
    %v7047 = vpop.f32.mrb[0].mxu0
    %v7048 = vadd.f32 %v6691, %v7047
    %v7049 = vpop.f32.mrb[0].mxu0
    %v7050 = vadd.f32 %v6695, %v7049
    %7051 = vmatprep.mubr.f32.mxu0 0.0
    %7052 = vmatmul.mubr.f32.gmra.mrb[0].mxu0 %v6748
    %v7053 = vpop.f32.mrb[0].mxu0
    %v7054 = vadd.f32 %v6691, %v7053
    %v7055 = vpop.f32.mrb[0].mxu0
    %v7056 = vadd.f32 %v6695, %v7055
    %7057 = vdwg.mxu0
    %7058 = vmatprep.subr.mxu0 %v6541
    %7059 = vmatpush1.msra.mxu0 %v6540
    %7060 = vmatprep.subr.mxu0 %v6557
    %7061 = vmatpush1.msra.mxu0 %v6556
    %7062 = vmatprep.subr.mxu0 %v6573
    %7063 = vmatpush1.msra.mxu0 %v6572
    %7064 = vmatprep.subr.mxu0 %v6589
    %7065 = vmatpush1.msra.mxu0 %v6588
    %7066 = vmatprep.subr.mxu0 %v6605
    %7067 = vmatpush1.msra.mxu0 %v6604
    %7068 = vmatprep.subr.mxu0 %v6621
    %7069 = vmatpush1.msra.mxu0 %v6620
    %7070 = vmatprep.subr.mxu0 %v6637
    %7071 = vmatpush1.msra.mxu0 %v6636
    %7072 = vmatprep.subr.mxu0 %v6653
    %7073 = vmatpush1.msra.mxu0 %v6652
    %7074 = vmatprep.subr.mxu0 0.0
    %7075 = vmatpush1.msra.mxu0 0.0
    %7076 = vmatprep.subr.mxu0 0.0
    %7077 = vmatpush1.msra.mxu0 0.0
    %7078 = vmatprep.subr.mxu0 0.0
    %7079 = vmatpush1.msra.mxu0 0.0
    %7080 = vmatprep.subr.mxu0 0.0
    %7081 = vmatpush1.msra.mxu0 0.0
    %7082 = vmatprep.subr.mxu0 0.0
    %7083 = vmatpush1.msra.mxu0 0.0
    %7084 = vmatprep.subr.mxu0 0.0
    %7085 = vmatpush1.msra.mxu0 0.0
    %7086 = vmatprep.subr.mxu0 0.0
    %7087 = vmatpush1.msra.mxu0 0.0
    %7088 = vmatprep.subr.mxu0 0.0
    %7089 = vmatpush1.msra.mxu0 0.0
    %7090 = vmatprep.subr.mxu0 0.0
    %7091 = vmatpush1.msra.mxu0 0.0
    %7092 = vmatprep.subr.mxu0 0.0
    %7093 = vmatpush1.msra.mxu0 0.0
    %7094 = vmatprep.subr.mxu0 0.0
    %7095 = vmatpush1.msra.mxu0 0.0
    %7096 = vmatprep.subr.mxu0 0.0
    %7097 = vmatpush1.msra.mxu0 0.0
    %7098 = vmatprep.subr.mxu0 0.0
    %7099 = vmatpush1.msra.mxu0 0.0
    %7100 = vmatprep.subr.mxu0 0.0
    %7101 = vmatpush1.msra.mxu0 0.0
    %7102 = vmatprep.subr.mxu0 0.0
    %7103 = vmatpush1.msra.mxu0 0.0
    %7104 = vmatprep.subr.mxu0 0.0
    %7105 = vmatpush1.msra.mxu0 0.0
    %7106 = vmatprep.subr.mxu0 0.0
    %7107 = vmatpush1.msra.mxu0 0.0
    %7108 = vmatprep.subr.mxu0 0.0
    %7109 = vmatpush1.msra.mxu0 0.0
    %7110 = vmatprep.subr.mxu0 0.0
    %7111 = vmatpush1.msra.mxu0 0.0
    %7112 = vmatprep.subr.mxu0 0.0
    %7113 = vmatpush1.msra.mxu0 0.0
    %7114 = vmatprep.subr.mxu0 0.0
    %7115 = vmatpush1.msra.mxu0 0.0
    %7116 = vmatprep.subr.mxu0 0.0
    %7117 = vmatpush1.msra.mxu0 0.0
    %7118 = vmatprep.subr.mxu0 0.0
    %7119 = vmatpush1.msra.mxu0 0.0
    %7120 = vmatprep.subr.mxu0 0.0
    %7121 = vmatpush1.msra.mxu0 0.0
    %7122 = vmatprep.mubr.f32.mxu0 0.0
    %7123 = vmatmul.mubr.f32.gmra.mrb[0].mxu0 %v6745
    %v7124 = vpop.f32.mrb[0].mxu0
    %v7125 = vadd.f32 %v6699, %v7124
    %v7126 = vpop.f32.mrb[0].mxu0
    %v7127 = vadd.f32 %v6703, %v7126
    %7128 = vmatprep.mubr.f32.mxu0 0.0
    %7129 = vmatmul.mubr.f32.gmra.mrb[0].mxu0 %v6748
    %v7130 = vpop.f32.mrb[0].mxu0
    %v7131 = vadd.f32 %v6699, %v7130
    %v7132 = vpop.f32.mrb[0].mxu0
    %v7133 = vadd.f32 %v6703, %v7132
    %7134 = vdwg.mxu0
    %7135 = vmatprep.subr.mxu0 %v6543
    %7136 = vmatpush1.msra.mxu0 %v6542
    %7137 = vmatprep.subr.mxu0 %v6559
    %7138 = vmatpush1.msra.mxu0 %v6558
    %7139 = vmatprep.subr.mxu0 %v6575
    %7140 = vmatpush1.msra.mxu0 %v6574
    %7141 = vmatprep.subr.mxu0 %v6591
    %7142 = vmatpush1.msra.mxu0 %v6590
    %7143 = vmatprep.subr.mxu0 %v6607
    %7144 = vmatpush1.msra.mxu0 %v6606
    %7145 = vmatprep.subr.mxu0 %v6623
    %7146 = vmatpush1.msra.mxu0 %v6622
    %7147 = vmatprep.subr.mxu0 %v6639
    %7148 = vmatpush1.msra.mxu0 %v6638
    %7149 = vmatprep.subr.mxu0 %v6655
    %7150 = vmatpush1.msra.mxu0 %v6654
    %7151 = vmatprep.subr.mxu0 0.0
    %7152 = vmatpush1.msra.mxu0 0.0
    %7153 = vmatprep.subr.mxu0 0.0
    %7154 = vmatpush1.msra.mxu0 0.0
    %7155 = vmatprep.subr.mxu0 0.0
    %7156 = vmatpush1.msra.mxu0 0.0
    %7157 = vmatprep.subr.mxu0 0.0
    %7158 = vmatpush1.msra.mxu0 0.0
    %7159 = vmatprep.subr.mxu0 0.0
    %7160 = vmatpush1.msra.mxu0 0.0
    %7161 = vmatprep.subr.mxu0 0.0
    %7162 = vmatpush1.msra.mxu0 0.0
    %7163 = vmatprep.subr.mxu0 0.0
    %7164 = vmatpush1.msra.mxu0 0.0
    %7165 = vmatprep.subr.mxu0 0.0
    %7166 = vmatpush1.msra.mxu0 0.0
    %7167 = vmatprep.subr.mxu0 0.0
    %7168 = vmatpush1.msra.mxu0 0.0
    %7169 = vmatprep.subr.mxu0 0.0
    %7170 = vmatpush1.msra.mxu0 0.0
    %7171 = vmatprep.subr.mxu0 0.0
    %7172 = vmatpush1.msra.mxu0 0.0
    %7173 = vmatprep.subr.mxu0 0.0
    %7174 = vmatpush1.msra.mxu0 0.0
    %7175 = vmatprep.subr.mxu0 0.0
    %7176 = vmatpush1.msra.mxu0 0.0
    %7177 = vmatprep.subr.mxu0 0.0
    %7178 = vmatpush1.msra.mxu0 0.0
    %7179 = vmatprep.subr.mxu0 0.0
    %7180 = vmatpush1.msra.mxu0 0.0
    %7181 = vmatprep.subr.mxu0 0.0
    %7182 = vmatpush1.msra.mxu0 0.0
    %7183 = vmatprep.subr.mxu0 0.0
    %7184 = vmatpush1.msra.mxu0 0.0
    %7185 = vmatprep.subr.mxu0 0.0
    %7186 = vmatpush1.msra.mxu0 0.0
    %7187 = vmatprep.subr.mxu0 0.0
    %7188 = vmatpush1.msra.mxu0 0.0
    %7189 = vmatprep.subr.mxu0 0.0
    %7190 = vmatpush1.msra.mxu0 0.0
    %7191 = vmatprep.subr.mxu0 0.0
    %7192 = vmatpush1.msra.mxu0 0.0
    %7193 = vmatprep.subr.mxu0 0.0
    %7194 = vmatpush1.msra.mxu0 0.0
    %7195 = vmatprep.subr.mxu0 0.0
    %7196 = vmatpush1.msra.mxu0 0.0
    %7197 = vmatprep.subr.mxu0 0.0
    %7198 = vmatpush1.msra.mxu0 0.0
    %7199 = vmatprep.mubr.f32.mxu0 0.0
    %7200 = vmatmul.mubr.f32.gmra.mrb[0].mxu0 %v6745
    %v7201 = vpop.f32.mrb[0].mxu0
    %v7202 = vadd.f32 %v6707, %v7201
    %v7203 = vpop.f32.mrb[0].mxu0
    %v7204 = vadd.f32 %v6711, %v7203
    %7205 = vmatprep.mubr.f32.mxu0 0.0
    %7206 = vmatmul.mubr.f32.gmra.mrb[0].mxu0 %v6748
    %v7207 = vpop.f32.mrb[0].mxu0
    %v7208 = vadd.f32 %v6707, %v7207
    %v7209 = vpop.f32.mrb[0].mxu0
    %v7210 = vadd.f32 %v6711, %v7209
    %7211 = vdwg.mxu0
    %7212 = vmatprep.subr.mxu0 %v6545
    %7213 = vmatpush1.msra.mxu0 %v6544
    %7214 = vmatprep.subr.mxu0 %v6561
    %7215 = vmatpush1.msra.mxu0 %v6560
    %7216 = vmatprep.subr.mxu0 %v6577
    %7217 = vmatpush1.msra.mxu0 %v6576
    %7218 = vmatprep.subr.mxu0 %v6593
    %7219 = vmatpush1.msra.mxu0 %v6592
    %7220 = vmatprep.subr.mxu0 %v6609
    %7221 = vmatpush1.msra.mxu0 %v6608
    %7222 = vmatprep.subr.mxu0 %v6625
    %7223 = vmatpush1.msra.mxu0 %v6624
    %7224 = vmatprep.subr.mxu0 %v6641
    %7225 = vmatpush1.msra.mxu0 %v6640
    %7226 = vmatprep.subr.mxu0 %v6657
    %7227 = vmatpush1.msra.mxu0 %v6656
    %7228 = vmatprep.subr.mxu0 0.0
    %7229 = vmatpush1.msra.mxu0 0.0
    %7230 = vmatprep.subr.mxu0 0.0
    %7231 = vmatpush1.msra.mxu0 0.0
    %7232 = vmatprep.subr.mxu0 0.0
    %7233 = vmatpush1.msra.mxu0 0.0
    %7234 = vmatprep.subr.mxu0 0.0
    %7235 = vmatpush1.msra.mxu0 0.0
    %7236 = vmatprep.subr.mxu0 0.0
    %7237 = vmatpush1.msra.mxu0 0.0
    %7238 = vmatprep.subr.mxu0 0.0
    %7239 = vmatpush1.msra.mxu0 0.0
    %7240 = vmatprep.subr.mxu0 0.0
    %7241 = vmatpush1.msra.mxu0 0.0
    %7242 = vmatprep.subr.mxu0 0.0
    %7243 = vmatpush1.msra.mxu0 0.0
    %7244 = vmatprep.subr.mxu0 0.0
    %7245 = vmatpush1.msra.mxu0 0.0
    %7246 = vmatprep.subr.mxu0 0.0
    %7247 = vmatpush1.msra.mxu0 0.0
    %7248 = vmatprep.subr.mxu0 0.0
    %7249 = vmatpush1.msra.mxu0 0.0
    %7250 = vmatprep.subr.mxu0 0.0
    %7251 = vmatpush1.msra.mxu0 0.0
    %7252 = vmatprep.subr.mxu0 0.0
    %7253 = vmatpush1.msra.mxu0 0.0
    %7254 = vmatprep.subr.mxu0 0.0
    %7255 = vmatpush1.msra.mxu0 0.0
    %7256 = vmatprep.subr.mxu0 0.0
    %7257 = vmatpush1.msra.mxu0 0.0
    %7258 = vmatprep.subr.mxu0 0.0
    %7259 = vmatpush1.msra.mxu0 0.0
    %7260 = vmatprep.subr.mxu0 0.0
    %7261 = vmatpush1.msra.mxu0 0.0
    %7262 = vmatprep.subr.mxu0 0.0
    %7263 = vmatpush1.msra.mxu0 0.0
    %7264 = vmatprep.subr.mxu0 0.0
    %7265 = vmatpush1.msra.mxu0 0.0
    %7266 = vmatprep.subr.mxu0 0.0
    %7267 = vmatpush1.msra.mxu0 0.0
    %7268 = vmatprep.subr.mxu0 0.0
    %7269 = vmatpush1.msra.mxu0 0.0
    %7270 = vmatprep.subr.mxu0 0.0
    %7271 = vmatpush1.msra.mxu0 0.0
    %7272 = vmatprep.subr.mxu0 0.0
    %7273 = vmatpush1.msra.mxu0 0.0
    %7274 = vmatprep.subr.mxu0 0.0
    %7275 = vmatpush1.msra.mxu0 0.0
    %7276 = vmatprep.mubr.f32.mxu0 0.0
    %7277 = vmatmul.mubr.f32.gmra.mrb[0].mxu0 %v6745
    %v7278 = vpop.f32.mrb[0].mxu0
    %v7279 = vadd.f32 %v6715, %v7278
    %v7280 = vpop.f32.mrb[0].mxu0
    %v7281 = vadd.f32 %v6719, %v7280
    %7282 = vmatprep.mubr.f32.mxu0 0.0
    %7283 = vmatmul.mubr.f32.gmra.mrb[0].mxu0 %v6748
    %v7284 = vpop.f32.mrb[0].mxu0
    %v7285 = vadd.f32 %v6715, %v7284
    %v7286 = vpop.f32.mrb[0].mxu0
    %v7287 = vadd.f32 %v6719, %v7286
    %7288 = vdwg.mxu0
    %7289 = vmatprep.subr.mxu0 %v6547
    %7290 = vmatpush1.msra.mxu0 %v6546
    %7291 = vmatprep.subr.mxu0 %v6563
    %7292 = vmatpush1.msra.mxu0 %v6562
    %7293 = vmatprep.subr.mxu0 %v6579
    %7294 = vmatpush1.msra.mxu0 %v6578
    %7295 = vmatprep.subr.mxu0 %v6595
    %7296 = vmatpush1.msra.mxu0 %v6594
    %7297 = vmatprep.subr.mxu0 %v6611
    %7298 = vmatpush1.msra.mxu0 %v6610
    %7299 = vmatprep.subr.mxu0 %v6627
    %7300 = vmatpush1.msra.mxu0 %v6626
    %7301 = vmatprep.subr.mxu0 %v6643
    %7302 = vmatpush1.msra.mxu0 %v6642
    %7303 = vmatprep.subr.mxu0 %v6659
    %7304 = vmatpush1.msra.mxu0 %v6658
    %7305 = vmatprep.subr.mxu0 0.0
    %7306 = vmatpush1.msra.mxu0 0.0
    %7307 = vmatprep.subr.mxu0 0.0
    %7308 = vmatpush1.msra.mxu0 0.0
    %7309 = vmatprep.subr.mxu0 0.0
    %7310 = vmatpush1.msra.mxu0 0.0
    %7311 = vmatprep.subr.mxu0 0.0
    %7312 = vmatpush1.msra.mxu0 0.0
    %7313 = vmatprep.subr.mxu0 0.0
    %7314 = vmatpush1.msra.mxu0 0.0
    %7315 = vmatprep.subr.mxu0 0.0
    %7316 = vmatpush1.msra.mxu0 0.0
    %7317 = vmatprep.subr.mxu0 0.0
    %7318 = vmatpush1.msra.mxu0 0.0
    %7319 = vmatprep.subr.mxu0 0.0
    %7320 = vmatpush1.msra.mxu0 0.0
    %7321 = vmatprep.subr.mxu0 0.0
    %7322 = vmatpush1.msra.mxu0 0.0
    %7323 = vmatprep.subr.mxu0 0.0
    %7324 = vmatpush1.msra.mxu0 0.0
    %7325 = vmatprep.subr.mxu0 0.0
    %7326 = vmatpush1.msra.mxu0 0.0
    %7327 = vmatprep.subr.mxu0 0.0
    %7328 = vmatpush1.msra.mxu0 0.0
    %7329 = vmatprep.subr.mxu0 0.0
    %7330 = vmatpush1.msra.mxu0 0.0
    %7331 = vmatprep.subr.mxu0 0.0
    %7332 = vmatpush1.msra.mxu0 0.0
    %7333 = vmatprep.subr.mxu0 0.0
    %7334 = vmatpush1.msra.mxu0 0.0
    %7335 = vmatprep.subr.mxu0 0.0
    %7336 = vmatpush1.msra.mxu0 0.0
    %7337 = vmatprep.subr.mxu0 0.0
    %7338 = vmatpush1.msra.mxu0 0.0
    %7339 = vmatprep.subr.mxu0 0.0
    %7340 = vmatpush1.msra.mxu0 0.0
    %7341 = vmatprep.subr.mxu0 0.0
    %7342 = vmatpush1.msra.mxu0 0.0
    %7343 = vmatprep.subr.mxu0 0.0
    %7344 = vmatpush1.msra.mxu0 0.0
    %7345 = vmatprep.subr.mxu0 0.0
    %7346 = vmatpush1.msra.mxu0 0.0
    %7347 = vmatprep.subr.mxu0 0.0
    %7348 = vmatpush1.msra.mxu0 0.0
    %7349 = vmatprep.subr.mxu0 0.0
    %7350 = vmatpush1.msra.mxu0 0.0
    %7351 = vmatprep.subr.mxu0 0.0
    %7352 = vmatpush1.msra.mxu0 0.0
    %7353 = vmatprep.mubr.f32.mxu0 0.0
    %7354 = vmatmul.mubr.f32.gmra.mrb[0].mxu0 %v6745
    %v7355 = vpop.f32.mrb[0].mxu0
    %v7356 = vadd.f32 %v6723, %v7355
    %v7357 = vpop.f32.mrb[0].mxu0
    %v7358 = vadd.f32 %v6727, %v7357
    %7359 = vmatprep.mubr.f32.mxu0 0.0
    %7360 = vmatmul.mubr.f32.gmra.mrb[0].mxu0 %v6748
    %v7361 = vpop.f32.mrb[0].mxu0
    %v7362 = vadd.f32 %v6723, %v7361
    %v7363 = vpop.f32.mrb[0].mxu0
    %v7364 = vadd.f32 %v6727, %v7363
    %7365 = vdwg.mxu0
    %v7366 = vmax.f32 %v6817, 0.0
    %v7367 = vmax.f32 %v6819, 0.0
    %v7368 = vmax.f32 %v6894, 0.0
    %v7369 = vmax.f32 %v6896, 0.0
    %v7370 = vmax.f32 %v6971, 0.0
    %v7371 = vmax.f32 %v6973, 0.0
    %v7372 = vmax.f32 %v7048, 0.0
    %v7373 = vmax.f32 %v7050, 0.0
    %v7374 = vmax.f32 %v7125, 0.0
    %v7375 = vmax.f32 %v7127, 0.0
    %v7376 = vmax.f32 %v7202, 0.0
    %v7377 = vmax.f32 %v7204, 0.0
    %v7378 = vmax.f32 %v7279, 0.0
    %v7379 = vmax.f32 %v7281, 0.0
    %v7380 = vmax.f32 %v7356, 0.0
    %v7381 = vmax.f32 %v7358, 0.0
    %v7382 = vmax.f32 %v6823, 0.0
    %v7383 = vmax.f32 %v6825, 0.0
    %v7384 = vmax.f32 %v6900, 0.0
    %v7385 = vmax.f32 %v6902, 0.0
    %v7386 = vmax.f32 %v6977, 0.0
    %v7387 = vmax.f32 %v6979, 0.0
    %v7388 = vmax.f32 %v7054, 0.0
    %v7389 = vmax.f32 %v7056, 0.0
    %v7390 = vmax.f32 %v7131, 0.0
    %v7391 = vmax.f32 %v7133, 0.0
    %v7392 = vmax.f32 %v7208, 0.0
    %v7393 = vmax.f32 %v7210, 0.0
    %v7394 = vmax.f32 %v7285, 0.0
    %v7395 = vmax.f32 %v7287, 0.0
    %v7396 = vmax.f32 %v7362, 0.0
    %v7397 = vmax.f32 %v7364, 0.0
    %v7398 = vld [vmem:[%s63] sm:$0xff]
    %v7399 = vld [vmem:[%s63 + $0x8] sm:$0xff]
    %v7400 = vld [vmem:[%s63 + $0x10] sm:$0xff]
    %v7401 = vld [vmem:[%s63 + $0x18] sm:$0xff]
    %v7402 = vld [vmem:[%s63 + $0x20] sm:$0xff]
    %v7403 = vld [vmem:[%s63 + $0x28] sm:$0xff]
    %v7404 = vld [vmem:[%s63 + $0x30] sm:$0xff]
    %v7405 = vld [vmem:[%s63 + $0x38] sm:$0xff]
    %v7406 = vld [vmem:[%s63 + $0x40] sm:$0xff]
    %v7407 = vld [vmem:[%s63 + $0x48] sm:$0xff]
    %v7408 = vld [vmem:[%s63 + $0x50] sm:$0xff]
    %v7409 = vld [vmem:[%s63 + $0x58] sm:$0xff]
    %v7410 = vld [vmem:[%s63 + $0x60] sm:$0xff]
    %v7411 = vld [vmem:[%s63 + $0x68] sm:$0xff]
    %v7412 = vld [vmem:[%s63 + $0x70] sm:$0xff]
    %v7413 = vld [vmem:[%s63 + $0x78] sm:$0xff]
    %v7414 = vld [vmem:[%s63 + $0x80] sm:$0xff]
    %v7415 = vld [vmem:[%s63 + $0x88] sm:$0xff]
    %v7416 = vld [vmem:[%s63 + $0x90] sm:$0xff]
    %v7417 = vld [vmem:[%s63 + $0x98] sm:$0xff]
    %v7418 = vld [vmem:[%s63 + $0xa0] sm:$0xff]
    %v7419 = vld [vmem:[%s63 + $0xa8] sm:$0xff]
    %v7420 = vld [vmem:[%s63 + $0xb0] sm:$0xff]
    %v7421 = vld [vmem:[%s63 + $0xb8] sm:$0xff]
    %v7422 = vld [vmem:[%s63 + $0xc0] sm:$0xff]
    %v7423 = vld [vmem:[%s63 + $0xc8] sm:$0xff]
    %v7424 = vld [vmem:[%s63 + $0xd0] sm:$0xff]
    %v7425 = vld [vmem:[%s63 + $0xd8] sm:$0xff]
    %v7426 = vld [vmem:[%s63 + $0xe0] sm:$0xff]
    %v7427 = vld [vmem:[%s63 + $0xe8] sm:$0xff]
    %v7428 = vld [vmem:[%s63 + $0xf0] sm:$0xff]
    %v7429 = vld [vmem:[%s63 + $0xf8] sm:$0xff]
    %v7430 = vld [vmem:[%s63 + $0x100] sm:$0xff]
    %v7431 = vld [vmem:[%s63 + $0x108] sm:$0xff]
    %v7432 = vld [vmem:[%s63 + $0x110] sm:$0xff]
    %v7433 = vld [vmem:[%s63 + $0x118] sm:$0xff]
    %v7434 = vld [vmem:[%s63 + $0x120] sm:$0xff]
    %v7435 = vld [vmem:[%s63 + $0x128] sm:$0xff]
    %v7436 = vld [vmem:[%s63 + $0x130] sm:$0xff]
    %v7437 = vld [vmem:[%s63 + $0x138] sm:$0xff]
    %v7438 = vld [vmem:[%s63 + $0x140] sm:$0xff]
    %v7439 = vld [vmem:[%s63 + $0x148] sm:$0xff]
    %v7440 = vld [vmem:[%s63 + $0x150] sm:$0xff]
    %v7441 = vld [vmem:[%s63 + $0x158] sm:$0xff]
    %v7442 = vld [vmem:[%s63 + $0x160] sm:$0xff]
    %v7443 = vld [vmem:[%s63 + $0x168] sm:$0xff]
    %v7444 = vld [vmem:[%s63 + $0x170] sm:$0xff]
    %v7445 = vld [vmem:[%s63 + $0x178] sm:$0xff]
    %v7446 = vld [vmem:[%s63 + $0x180] sm:$0xff]
    %v7447 = vld [vmem:[%s63 + $0x188] sm:$0xff]
    %v7448 = vld [vmem:[%s63 + $0x190] sm:$0xff]
    %v7449 = vld [vmem:[%s63 + $0x198] sm:$0xff]
    %v7450 = vld [vmem:[%s63 + $0x1a0] sm:$0xff]
    %v7451 = vld [vmem:[%s63 + $0x1a8] sm:$0xff]
    %v7452 = vld [vmem:[%s63 + $0x1b0] sm:$0xff]
    %v7453 = vld [vmem:[%s63 + $0x1b8] sm:$0xff]
    %v7454 = vld [vmem:[%s63 + $0x1c0] sm:$0xff]
    %v7455 = vld [vmem:[%s63 + $0x1c8] sm:$0xff]
    %v7456 = vld [vmem:[%s63 + $0x1d0] sm:$0xff]
    %v7457 = vld [vmem:[%s63 + $0x1d8] sm:$0xff]
    %v7458 = vld [vmem:[%s63 + $0x1e0] sm:$0xff]
    %v7459 = vld [vmem:[%s63 + $0x1e8] sm:$0xff]
    %v7460 = vld [vmem:[%s63 + $0x1f0] sm:$0xff]
    %v7461 = vld [vmem:[%s63 + $0x1f8] sm:$0xff]
    %v7462 = vld [vmem:[%s63 + $0x200] sm:$0xff]
    %v7463 = vld [vmem:[%s63 + $0x208] sm:$0xff]
    %v7464 = vld [vmem:[%s63 + $0x210] sm:$0xff]
    %v7465 = vld [vmem:[%s63 + $0x218] sm:$0xff]
    %v7466 = vld [vmem:[%s63 + $0x220] sm:$0xff]
    %v7467 = vld [vmem:[%s63 + $0x228] sm:$0xff]
    %v7468 = vld [vmem:[%s63 + $0x230] sm:$0xff]
    %v7469 = vld [vmem:[%s63 + $0x238] sm:$0xff]
    %v7470 = vld [vmem:[%s63 + $0x240] sm:$0xff]
    %v7471 = vld [vmem:[%s63 + $0x248] sm:$0xff]
    %v7472 = vld [vmem:[%s63 + $0x250] sm:$0xff]
    %v7473 = vld [vmem:[%s63 + $0x258] sm:$0xff]
    %v7474 = vld [vmem:[%s63 + $0x260] sm:$0xff]
    %v7475 = vld [vmem:[%s63 + $0x268] sm:$0xff]
    %v7476 = vld [vmem:[%s63 + $0x270] sm:$0xff]
    %v7477 = vld [vmem:[%s63 + $0x278] sm:$0xff]
    %v7478 = vld [vmem:[%s63 + $0x280] sm:$0xff]
    %v7479 = vld [vmem:[%s63 + $0x288] sm:$0xff]
    %v7480 = vld [vmem:[%s63 + $0x290] sm:$0xff]
    %v7481 = vld [vmem:[%s63 + $0x298] sm:$0xff]
    %v7482 = vld [vmem:[%s63 + $0x2a0] sm:$0xff]
    %v7483 = vld [vmem:[%s63 + $0x2a8] sm:$0xff]
    %v7484 = vld [vmem:[%s63 + $0x2b0] sm:$0xff]
    %v7485 = vld [vmem:[%s63 + $0x2b8] sm:$0xff]
    %v7486 = vld [vmem:[%s63 + $0x2c0] sm:$0xff]
    %v7487 = vld [vmem:[%s63 + $0x2c8] sm:$0xff]
    %v7488 = vld [vmem:[%s63 + $0x2d0] sm:$0xff]
    %v7489 = vld [vmem:[%s63 + $0x2d8] sm:$0xff]
    %v7490 = vld [vmem:[%s63 + $0x2e0] sm:$0xff]
    %v7491 = vld [vmem:[%s63 + $0x2e8] sm:$0xff]
    %v7492 = vld [vmem:[%s63 + $0x2f0] sm:$0xff]
    %v7493 = vld [vmem:[%s63 + $0x2f8] sm:$0xff]
    %v7494 = vld [vmem:[%s63 + $0x300] sm:$0xff]
    %v7495 = vld [vmem:[%s63 + $0x308] sm:$0xff]
    %v7496 = vld [vmem:[%s63 + $0x310] sm:$0xff]
    %v7497 = vld [vmem:[%s63 + $0x318] sm:$0xff]
    %v7498 = vld [vmem:[%s63 + $0x320] sm:$0xff]
    %v7499 = vld [vmem:[%s63 + $0x328] sm:$0xff]
    %v7500 = vld [vmem:[%s63 + $0x330] sm:$0xff]
    %v7501 = vld [vmem:[%s63 + $0x338] sm:$0xff]
    %v7502 = vld [vmem:[%s63 + $0x340] sm:$0xff]
    %v7503 = vld [vmem:[%s63 + $0x348] sm:$0xff]
    %v7504 = vld [vmem:[%s63 + $0x350] sm:$0xff]
    %v7505 = vld [vmem:[%s63 + $0x358] sm:$0xff]
    %v7506 = vld [vmem:[%s63 + $0x360] sm:$0xff]
    %v7507 = vld [vmem:[%s63 + $0x368] sm:$0xff]
    %v7508 = vld [vmem:[%s63 + $0x370] sm:$0xff]
    %v7509 = vld [vmem:[%s63 + $0x378] sm:$0xff]
    %v7510 = vld [vmem:[%s63 + $0x380] sm:$0xff]
    %v7511 = vld [vmem:[%s63 + $0x388] sm:$0xff]
    %v7512 = vld [vmem:[%s63 + $0x390] sm:$0xff]
    %v7513 = vld [vmem:[%s63 + $0x398] sm:$0xff]
    %v7514 = vld [vmem:[%s63 + $0x3a0] sm:$0xff]
    %v7515 = vld [vmem:[%s63 + $0x3a8] sm:$0xff]
    %v7516 = vld [vmem:[%s63 + $0x3b0] sm:$0xff]
    %v7517 = vld [vmem:[%s63 + $0x3b8] sm:$0xff]
    %v7518 = vld [vmem:[%s63 + $0x3c0] sm:$0xff]
    %v7519 = vld [vmem:[%s63 + $0x3c8] sm:$0xff]
    %v7520 = vld [vmem:[%s63 + $0x3d0] sm:$0xff]
    %v7521 = vld [vmem:[%s63 + $0x3d8] sm:$0xff]
    %v7522 = vld [vmem:[%s63 + $0x3e0] sm:$0xff]
    %v7523 = vld [vmem:[%s63 + $0x3e8] sm:$0xff]
    %v7524 = vld [vmem:[%s63 + $0x3f0] sm:$0xff]
    %v7525 = vld [vmem:[%s63 + $0x3f8] sm:$0xff]
    %v7526 = vld [vmem:[%s63 + $0x400] sm:$0xff]
    %v7527 = vld [vmem:[%s63 + $0x408] sm:$0xff]
    %v7528 = vld [vmem:[%s63 + $0x410] sm:$0xff]
    %v7529 = vld [vmem:[%s63 + $0x418] sm:$0xff]
    %v7530 = vld [vmem:[%s63 + $0x420] sm:$0xff]
    %v7531 = vld [vmem:[%s63 + $0x428] sm:$0xff]
    %v7532 = vld [vmem:[%s63 + $0x430] sm:$0xff]
    %v7533 = vld [vmem:[%s63 + $0x438] sm:$0xff]
    %v7534 = vld [vmem:[%s63 + $0x440] sm:$0xff]
    %v7535 = vld [vmem:[%s63 + $0x448] sm:$0xff]
    %v7536 = vld [vmem:[%s63 + $0x450] sm:$0xff]
    %v7537 = vld [vmem:[%s63 + $0x458] sm:$0xff]
    %v7538 = vld [vmem:[%s63 + $0x460] sm:$0xff]
    %v7539 = vld [vmem:[%s63 + $0x468] sm:$0xff]
    %v7540 = vld [vmem:[%s63 + $0x470] sm:$0xff]
    %v7541 = vld [vmem:[%s63 + $0x478] sm:$0xff]
    %v7542 = vld [vmem:[%s63 + $0x480] sm:$0xff]
    %v7543 = vld [vmem:[%s63 + $0x488] sm:$0xff]
    %v7544 = vld [vmem:[%s63 + $0x490] sm:$0xff]
    %v7545 = vld [vmem:[%s63 + $0x498] sm:$0xff]
    %v7546 = vld [vmem:[%s63 + $0x4a0] sm:$0xff]
    %v7547 = vld [vmem:[%s63 + $0x4a8] sm:$0xff]
    %v7548 = vld [vmem:[%s63 + $0x4b0] sm:$0xff]
    %v7549 = vld [vmem:[%s63 + $0x4b8] sm:$0xff]
    %v7550 = vld [vmem:[%s63 + $0x4c0] sm:$0xff]
    %v7551 = vld [vmem:[%s63 + $0x4c8] sm:$0xff]
    %v7552 = vld [vmem:[%s63 + $0x4d0] sm:$0xff]
    %v7553 = vld [vmem:[%s63 + $0x4d8] sm:$0xff]
    %v7554 = vld [vmem:[%s63 + $0x4e0] sm:$0xff]
    %v7555 = vld [vmem:[%s63 + $0x4e8] sm:$0xff]
    %v7556 = vld [vmem:[%s63 + $0x4f0] sm:$0xff]
    %v7557 = vld [vmem:[%s63 + $0x4f8] sm:$0xff]
    %v7558 = vld [vmem:[%s63 + $0x500] sm:$0xff]
    %v7559 = vld [vmem:[%s63 + $0x508] sm:$0xff]
    %v7560 = vld [vmem:[%s63 + $0x510] sm:$0xff]
    %v7561 = vld [vmem:[%s63 + $0x518] sm:$0xff]
    %v7562 = vld [vmem:[%s63 + $0x520] sm:$0xff]
    %v7563 = vld [vmem:[%s63 + $0x528] sm:$0xff]
    %v7564 = vld [vmem:[%s63 + $0x530] sm:$0xff]
    %v7565 = vld [vmem:[%s63 + $0x538] sm:$0xff]
    %v7566 = vld [vmem:[%s63 + $0x540] sm:$0xff]
    %v7567 = vld [vmem:[%s63 + $0x548] sm:$0xff]
    %v7568 = vld [vmem:[%s63 + $0x550] sm:$0xff]
    %v7569 = vld [vmem:[%s63 + $0x558] sm:$0xff]
    %v7570 = vld [vmem:[%s63 + $0x560] sm:$0xff]
    %v7571 = vld [vmem:[%s63 + $0x568] sm:$0xff]
    %v7572 = vld [vmem:[%s63 + $0x570] sm:$0xff]
    %v7573 = vld [vmem:[%s63 + $0x578] sm:$0xff]
    %v7574 = vld [vmem:[%s63 + $0x580] sm:$0xff]
    %v7575 = vld [vmem:[%s63 + $0x588] sm:$0xff]
    %v7576 = vld [vmem:[%s63 + $0x590] sm:$0xff]
    %v7577 = vld [vmem:[%s63 + $0x598] sm:$0xff]
    %v7578 = vld [vmem:[%s63 + $0x5a0] sm:$0xff]
    %v7579 = vld [vmem:[%s63 + $0x5a8] sm:$0xff]
    %v7580 = vld [vmem:[%s63 + $0x5b0] sm:$0xff]
    %v7581 = vld [vmem:[%s63 + $0x5b8] sm:$0xff]
    %v7582 = vld [vmem:[%s63 + $0x5c0] sm:$0xff]
    %v7583 = vld [vmem:[%s63 + $0x5c8] sm:$0xff]
    %v7584 = vld [vmem:[%s63 + $0x5d0] sm:$0xff]
    %v7585 = vld [vmem:[%s63 + $0x5d8] sm:$0xff]
    %v7586 = vld [vmem:[%s63 + $0x5e0] sm:$0xff]
    %v7587 = vld [vmem:[%s63 + $0x5e8] sm:$0xff]
    %v7588 = vld [vmem:[%s63 + $0x5f0] sm:$0xff]
    %v7589 = vld [vmem:[%s63 + $0x5f8] sm:$0xff]
    %v7590 = vld [vmem:[%s63 + $0x600] sm:$0xff]
    %v7591 = vld [vmem:[%s63 + $0x608] sm:$0xff]
    %v7592 = vld [vmem:[%s63 + $0x610] sm:$0xff]
    %v7593 = vld [vmem:[%s63 + $0x618] sm:$0xff]
    %v7594 = vld [vmem:[%s63 + $0x620] sm:$0xff]
    %v7595 = vld [vmem:[%s63 + $0x628] sm:$0xff]
    %v7596 = vld [vmem:[%s63 + $0x630] sm:$0xff]
    %v7597 = vld [vmem:[%s63 + $0x638] sm:$0xff]
    %v7598 = vld [vmem:[%s63 + $0x640] sm:$0xff]
    %v7599 = vld [vmem:[%s63 + $0x648] sm:$0xff]
    %v7600 = vld [vmem:[%s63 + $0x650] sm:$0xff]
    %v7601 = vld [vmem:[%s63 + $0x658] sm:$0xff]
    %v7602 = vld [vmem:[%s63 + $0x660] sm:$0xff]
    %v7603 = vld [vmem:[%s63 + $0x668] sm:$0xff]
    %v7604 = vld [vmem:[%s63 + $0x670] sm:$0xff]
    %v7605 = vld [vmem:[%s63 + $0x678] sm:$0xff]
    %v7606 = vld [vmem:[%s63 + $0x680] sm:$0xff]
    %v7607 = vld [vmem:[%s63 + $0x688] sm:$0xff]
    %v7608 = vld [vmem:[%s63 + $0x690] sm:$0xff]
    %v7609 = vld [vmem:[%s63 + $0x698] sm:$0xff]
    %v7610 = vld [vmem:[%s63 + $0x6a0] sm:$0xff]
    %v7611 = vld [vmem:[%s63 + $0x6a8] sm:$0xff]
    %v7612 = vld [vmem:[%s63 + $0x6b0] sm:$0xff]
    %v7613 = vld [vmem:[%s63 + $0x6b8] sm:$0xff]
    %v7614 = vld [vmem:[%s63 + $0x6c0] sm:$0xff]
    %v7615 = vld [vmem:[%s63 + $0x6c8] sm:$0xff]
    %v7616 = vld [vmem:[%s63 + $0x6d0] sm:$0xff]
    %v7617 = vld [vmem:[%s63 + $0x6d8] sm:$0xff]
    %v7618 = vld [vmem:[%s63 + $0x6e0] sm:$0xff]
    %v7619 = vld [vmem:[%s63 + $0x6e8] sm:$0xff]
    %v7620 = vld [vmem:[%s63 + $0x6f0] sm:$0xff]
    %v7621 = vld [vmem:[%s63 + $0x6f8] sm:$0xff]
    %v7622 = vld [vmem:[%s63 + $0x700] sm:$0xff]
    %v7623 = vld [vmem:[%s63 + $0x708] sm:$0xff]
    %v7624 = vld [vmem:[%s63 + $0x710] sm:$0xff]
    %v7625 = vld [vmem:[%s63 + $0x718] sm:$0xff]
    %v7626 = vld [vmem:[%s63 + $0x720] sm:$0xff]
    %v7627 = vld [vmem:[%s63 + $0x728] sm:$0xff]
    %v7628 = vld [vmem:[%s63 + $0x730] sm:$0xff]
    %v7629 = vld [vmem:[%s63 + $0x738] sm:$0xff]
    %v7630 = vld [vmem:[%s63 + $0x740] sm:$0xff]
    %v7631 = vld [vmem:[%s63 + $0x748] sm:$0xff]
    %v7632 = vld [vmem:[%s63 + $0x750] sm:$0xff]
    %v7633 = vld [vmem:[%s63 + $0x758] sm:$0xff]
    %v7634 = vld [vmem:[%s63 + $0x760] sm:$0xff]
    %v7635 = vld [vmem:[%s63 + $0x768] sm:$0xff]
    %v7636 = vld [vmem:[%s63 + $0x770] sm:$0xff]
    %v7637 = vld [vmem:[%s63 + $0x778] sm:$0xff]
    %v7638 = vld [vmem:[%s63 + $0x780] sm:$0xff]
    %v7639 = vld [vmem:[%s63 + $0x788] sm:$0xff]
    %v7640 = vld [vmem:[%s63 + $0x790] sm:$0xff]
    %v7641 = vld [vmem:[%s63 + $0x798] sm:$0xff]
    %v7642 = vld [vmem:[%s63 + $0x7a0] sm:$0xff]
    %v7643 = vld [vmem:[%s63 + $0x7a8] sm:$0xff]
    %v7644 = vld [vmem:[%s63 + $0x7b0] sm:$0xff]
    %v7645 = vld [vmem:[%s63 + $0x7b8] sm:$0xff]
    %v7646 = vld [vmem:[%s63 + $0x7c0] sm:$0xff]
    %v7647 = vld [vmem:[%s63 + $0x7c8] sm:$0xff]
    %v7648 = vld [vmem:[%s63 + $0x7d0] sm:$0xff]
    %v7649 = vld [vmem:[%s63 + $0x7d8] sm:$0xff]
    %v7650 = vld [vmem:[%s63 + $0x7e0] sm:$0xff]
    %v7651 = vld [vmem:[%s63 + $0x7e8] sm:$0xff]
    %v7652 = vld [vmem:[%s63 + $0x7f0] sm:$0xff]
    %v7653 = vld [vmem:[%s63 + $0x7f8] sm:$0xff]
    %v7654 = vld [vmem:[%s65] sm:$0x1]
    %v7656 = vlaneseq
    %v7657 = vshrl.u32 %v7656, 7
    %v7658 = vsub.s32 0, %v7657
    %v7659 = vrot.slane %v7654, %v7658
    %7661 = vmatprep.subr.mxu0 0.0
    %7662 = vmatpush1.msra.mxu0 %v7398
    %7663 = vmatprep.subr.mxu0 0.0
    %7664 = vmatpush1.msra.mxu0 %v7399
    %7665 = vmatprep.subr.mxu0 0.0
    %7666 = vmatpush1.msra.mxu0 %v7400
    %7667 = vmatprep.subr.mxu0 0.0
    %7668 = vmatpush1.msra.mxu0 %v7401
    %7669 = vmatprep.subr.mxu0 0.0
    %7670 = vmatpush1.msra.mxu0 %v7402
    %7671 = vmatprep.subr.mxu0 0.0
    %7672 = vmatpush1.msra.mxu0 %v7403
    %7673 = vmatprep.subr.mxu0 0.0
    %7674 = vmatpush1.msra.mxu0 %v7404
    %7675 = vmatprep.subr.mxu0 0.0
    %7676 = vmatpush1.msra.mxu0 %v7405
    %7677 = vmatprep.subr.mxu0 0.0
    %7678 = vmatpush1.msra.mxu0 %v7406
    %7679 = vmatprep.subr.mxu0 0.0
    %7680 = vmatpush1.msra.mxu0 %v7407
    %7681 = vmatprep.subr.mxu0 0.0
    %7682 = vmatpush1.msra.mxu0 %v7408
    %7683 = vmatprep.subr.mxu0 0.0
    %7684 = vmatpush1.msra.mxu0 %v7409
    %7685 = vmatprep.subr.mxu0 0.0
    %7686 = vmatpush1.msra.mxu0 %v7410
    %7687 = vmatprep.subr.mxu0 0.0
    %7688 = vmatpush1.msra.mxu0 %v7411
    %7689 = vmatprep.subr.mxu0 0.0
    %7690 = vmatpush1.msra.mxu0 %v7412
    %7691 = vmatprep.subr.mxu0 0.0
    %7692 = vmatpush1.msra.mxu0 %v7413
    %7693 = vmatprep.subr.mxu0 0.0
    %7694 = vmatpush1.msra.mxu0 %v7414
    %7695 = vmatprep.subr.mxu0 0.0
    %7696 = vmatpush1.msra.mxu0 %v7415
    %7697 = vmatprep.subr.mxu0 0.0
    %7698 = vmatpush1.msra.mxu0 %v7416
    %7699 = vmatprep.subr.mxu0 0.0
    %7700 = vmatpush1.msra.mxu0 %v7417
    %7701 = vmatprep.subr.mxu0 0.0
    %7702 = vmatpush1.msra.mxu0 %v7418
    %7703 = vmatprep.subr.mxu0 0.0
    %7704 = vmatpush1.msra.mxu0 %v7419
    %7705 = vmatprep.subr.mxu0 0.0
    %7706 = vmatpush1.msra.mxu0 %v7420
    %7707 = vmatprep.subr.mxu0 0.0
    %7708 = vmatpush1.msra.mxu0 %v7421
    %7709 = vmatprep.subr.mxu0 0.0
    %7710 = vmatpush1.msra.mxu0 %v7422
    %7711 = vmatprep.subr.mxu0 0.0
    %7712 = vmatpush1.msra.mxu0 %v7423
    %7713 = vmatprep.subr.mxu0 0.0
    %7714 = vmatpush1.msra.mxu0 %v7424
    %7715 = vmatprep.subr.mxu0 0.0
    %7716 = vmatpush1.msra.mxu0 %v7425
    %7717 = vmatprep.subr.mxu0 0.0
    %7718 = vmatpush1.msra.mxu0 %v7426
    %7719 = vmatprep.subr.mxu0 0.0
    %7720 = vmatpush1.msra.mxu0 %v7427
    %7721 = vmatprep.subr.mxu0 0.0
    %7722 = vmatpush1.msra.mxu0 %v7428
    %7723 = vmatprep.subr.mxu0 0.0
    %7724 = vmatpush1.msra.mxu0 %v7429
    %7725 = vmatprep.mubr.f32.mxu0 %v7367
    %7726 = vmatmul.mubr.f32.gmra.mrb[0].mxu0 %v7366
    %v7727 = vpop.f32.mrb[0].mxu0
    %v7728 = vadd.f32 %v7659, %v7727
    %v7729 = vpop.f32.mrb[0].mxu0
    %7730 = vmatprep.mubr.f32.mxu0 %v7383
    %7731 = vmatmul.mubr.f32.gmra.mrb[0].mxu0 %v7382
    %v7732 = vpop.f32.mrb[0].mxu0
    %v7733 = vadd.f32 %v7659, %v7732
    %v7734 = vpop.f32.mrb[0].mxu0
    %7735 = vdwg.mxu0
    %7736 = vmatprep.subr.mxu0 0.0
    %7737 = vmatpush1.msra.mxu0 %v7430
    %7738 = vmatprep.subr.mxu0 0.0
    %7739 = vmatpush1.msra.mxu0 %v7431
    %7740 = vmatprep.subr.mxu0 0.0
    %7741 = vmatpush1.msra.mxu0 %v7432
    %7742 = vmatprep.subr.mxu0 0.0
    %7743 = vmatpush1.msra.mxu0 %v7433
    %7744 = vmatprep.subr.mxu0 0.0
    %7745 = vmatpush1.msra.mxu0 %v7434
    %7746 = vmatprep.subr.mxu0 0.0
    %7747 = vmatpush1.msra.mxu0 %v7435
    %7748 = vmatprep.subr.mxu0 0.0
    %7749 = vmatpush1.msra.mxu0 %v7436
    %7750 = vmatprep.subr.mxu0 0.0
    %7751 = vmatpush1.msra.mxu0 %v7437
    %7752 = vmatprep.subr.mxu0 0.0
    %7753 = vmatpush1.msra.mxu0 %v7438
    %7754 = vmatprep.subr.mxu0 0.0
    %7755 = vmatpush1.msra.mxu0 %v7439
    %7756 = vmatprep.subr.mxu0 0.0
    %7757 = vmatpush1.msra.mxu0 %v7440
    %7758 = vmatprep.subr.mxu0 0.0
    %7759 = vmatpush1.msra.mxu0 %v7441
    %7760 = vmatprep.subr.mxu0 0.0
    %7761 = vmatpush1.msra.mxu0 %v7442
    %7762 = vmatprep.subr.mxu0 0.0
    %7763 = vmatpush1.msra.mxu0 %v7443
    %7764 = vmatprep.subr.mxu0 0.0
    %7765 = vmatpush1.msra.mxu0 %v7444
    %7766 = vmatprep.subr.mxu0 0.0
    %7767 = vmatpush1.msra.mxu0 %v7445
    %7768 = vmatprep.subr.mxu0 0.0
    %7769 = vmatpush1.msra.mxu0 %v7446
    %7770 = vmatprep.subr.mxu0 0.0
    %7771 = vmatpush1.msra.mxu0 %v7447
    %7772 = vmatprep.subr.mxu0 0.0
    %7773 = vmatpush1.msra.mxu0 %v7448
    %7774 = vmatprep.subr.mxu0 0.0
    %7775 = vmatpush1.msra.mxu0 %v7449
    %7776 = vmatprep.subr.mxu0 0.0
    %7777 = vmatpush1.msra.mxu0 %v7450
    %7778 = vmatprep.subr.mxu0 0.0
    %7779 = vmatpush1.msra.mxu0 %v7451
    %7780 = vmatprep.subr.mxu0 0.0
    %7781 = vmatpush1.msra.mxu0 %v7452
    %7782 = vmatprep.subr.mxu0 0.0
    %7783 = vmatpush1.msra.mxu0 %v7453
    %7784 = vmatprep.subr.mxu0 0.0
    %7785 = vmatpush1.msra.mxu0 %v7454
    %7786 = vmatprep.subr.mxu0 0.0
    %7787 = vmatpush1.msra.mxu0 %v7455
    %7788 = vmatprep.subr.mxu0 0.0
    %7789 = vmatpush1.msra.mxu0 %v7456
    %7790 = vmatprep.subr.mxu0 0.0
    %7791 = vmatpush1.msra.mxu0 %v7457
    %7792 = vmatprep.subr.mxu0 0.0
    %7793 = vmatpush1.msra.mxu0 %v7458
    %7794 = vmatprep.subr.mxu0 0.0
    %7795 = vmatpush1.msra.mxu0 %v7459
    %7796 = vmatprep.subr.mxu0 0.0
    %7797 = vmatpush1.msra.mxu0 %v7460
    %7798 = vmatprep.subr.mxu0 0.0
    %7799 = vmatpush1.msra.mxu0 %v7461
    %7800 = vmatprep.mubr.f32.mxu0 %v7369
    %7801 = vmatmul.mubr.f32.gmra.mrb[0].mxu0 %v7368
    %v7802 = vpop.f32.mrb[0].mxu0
    %v7803 = vadd.f32 %v7728, %v7802
    %v7804 = vpop.f32.mrb[0].mxu0
    %7805 = vmatprep.mubr.f32.mxu0 %v7385
    %7806 = vmatmul.mubr.f32.gmra.mrb[0].mxu0 %v7384
    %v7807 = vpop.f32.mrb[0].mxu0
    %v7808 = vadd.f32 %v7733, %v7807
    %v7809 = vpop.f32.mrb[0].mxu0
    %7810 = vdwg.mxu0
    %7811 = vmatprep.subr.mxu0 0.0
    %7812 = vmatpush1.msra.mxu0 %v7462
    %7813 = vmatprep.subr.mxu0 0.0
    %7814 = vmatpush1.msra.mxu0 %v7463
    %7815 = vmatprep.subr.mxu0 0.0
    %7816 = vmatpush1.msra.mxu0 %v7464
    %7817 = vmatprep.subr.mxu0 0.0
    %7818 = vmatpush1.msra.mxu0 %v7465
    %7819 = vmatprep.subr.mxu0 0.0
    %7820 = vmatpush1.msra.mxu0 %v7466
    %7821 = vmatprep.subr.mxu0 0.0
    %7822 = vmatpush1.msra.mxu0 %v7467
    %7823 = vmatprep.subr.mxu0 0.0
    %7824 = vmatpush1.msra.mxu0 %v7468
    %7825 = vmatprep.subr.mxu0 0.0
    %7826 = vmatpush1.msra.mxu0 %v7469
    %7827 = vmatprep.subr.mxu0 0.0
    %7828 = vmatpush1.msra.mxu0 %v7470
    %7829 = vmatprep.subr.mxu0 0.0
    %7830 = vmatpush1.msra.mxu0 %v7471
    %7831 = vmatprep.subr.mxu0 0.0
    %7832 = vmatpush1.msra.mxu0 %v7472
    %7833 = vmatprep.subr.mxu0 0.0
    %7834 = vmatpush1.msra.mxu0 %v7473
    %7835 = vmatprep.subr.mxu0 0.0
    %7836 = vmatpush1.msra.mxu0 %v7474
    %7837 = vmatprep.subr.mxu0 0.0
    %7838 = vmatpush1.msra.mxu0 %v7475
    %7839 = vmatprep.subr.mxu0 0.0
    %7840 = vmatpush1.msra.mxu0 %v7476
    %7841 = vmatprep.subr.mxu0 0.0
    %7842 = vmatpush1.msra.mxu0 %v7477
    %7843 = vmatprep.subr.mxu0 0.0
    %7844 = vmatpush1.msra.mxu0 %v7478
    %7845 = vmatprep.subr.mxu0 0.0
    %7846 = vmatpush1.msra.mxu0 %v7479
    %7847 = vmatprep.subr.mxu0 0.0
    %7848 = vmatpush1.msra.mxu0 %v7480
    %7849 = vmatprep.subr.mxu0 0.0
    %7850 = vmatpush1.msra.mxu0 %v7481
    %7851 = vmatprep.subr.mxu0 0.0
    %7852 = vmatpush1.msra.mxu0 %v7482
    %7853 = vmatprep.subr.mxu0 0.0
    %7854 = vmatpush1.msra.mxu0 %v7483
    %7855 = vmatprep.subr.mxu0 0.0
    %7856 = vmatpush1.msra.mxu0 %v7484
    %7857 = vmatprep.subr.mxu0 0.0
    %7858 = vmatpush1.msra.mxu0 %v7485
    %7859 = vmatprep.subr.mxu0 0.0
    %7860 = vmatpush1.msra.mxu0 %v7486
    %7861 = vmatprep.subr.mxu0 0.0
    %7862 = vmatpush1.msra.mxu0 %v7487
    %7863 = vmatprep.subr.mxu0 0.0
    %7864 = vmatpush1.msra.mxu0 %v7488
    %7865 = vmatprep.subr.mxu0 0.0
    %7866 = vmatpush1.msra.mxu0 %v7489
    %7867 = vmatprep.subr.mxu0 0.0
    %7868 = vmatpush1.msra.mxu0 %v7490
    %7869 = vmatprep.subr.mxu0 0.0
    %7870 = vmatpush1.msra.mxu0 %v7491
    %7871 = vmatprep.subr.mxu0 0.0
    %7872 = vmatpush1.msra.mxu0 %v7492
    %7873 = vmatprep.subr.mxu0 0.0
    %7874 = vmatpush1.msra.mxu0 %v7493
    %7875 = vmatprep.mubr.f32.mxu0 %v7371
    %7876 = vmatmul.mubr.f32.gmra.mrb[0].mxu0 %v7370
    %v7877 = vpop.f32.mrb[0].mxu0
    %v7878 = vadd.f32 %v7803, %v7877
    %v7879 = vpop.f32.mrb[0].mxu0
    %7880 = vmatprep.mubr.f32.mxu0 %v7387
    %7881 = vmatmul.mubr.f32.gmra.mrb[0].mxu0 %v7386
    %v7882 = vpop.f32.mrb[0].mxu0
    %v7883 = vadd.f32 %v7808, %v7882
    %v7884 = vpop.f32.mrb[0].mxu0
    %7885 = vdwg.mxu0
    %7886 = vmatprep.subr.mxu0 0.0
    %7887 = vmatpush1.msra.mxu0 %v7494
    %7888 = vmatprep.subr.mxu0 0.0
    %7889 = vmatpush1.msra.mxu0 %v7495
    %7890 = vmatprep.subr.mxu0 0.0
    %7891 = vmatpush1.msra.mxu0 %v7496
    %7892 = vmatprep.subr.mxu0 0.0
    %7893 = vmatpush1.msra.mxu0 %v7497
    %7894 = vmatprep.subr.mxu0 0.0
    %7895 = vmatpush1.msra.mxu0 %v7498
    %7896 = vmatprep.subr.mxu0 0.0
    %7897 = vmatpush1.msra.mxu0 %v7499
    %7898 = vmatprep.subr.mxu0 0.0
    %7899 = vmatpush1.msra.mxu0 %v7500
    %7900 = vmatprep.subr.mxu0 0.0
    %7901 = vmatpush1.msra.mxu0 %v7501
    %7902 = vmatprep.subr.mxu0 0.0
    %7903 = vmatpush1.msra.mxu0 %v7502
    %7904 = vmatprep.subr.mxu0 0.0
    %7905 = vmatpush1.msra.mxu0 %v7503
    %7906 = vmatprep.subr.mxu0 0.0
    %7907 = vmatpush1.msra.mxu0 %v7504
    %7908 = vmatprep.subr.mxu0 0.0
    %7909 = vmatpush1.msra.mxu0 %v7505
    %7910 = vmatprep.subr.mxu0 0.0
    %7911 = vmatpush1.msra.mxu0 %v7506
    %7912 = vmatprep.subr.mxu0 0.0
    %7913 = vmatpush1.msra.mxu0 %v7507
    %7914 = vmatprep.subr.mxu0 0.0
    %7915 = vmatpush1.msra.mxu0 %v7508
    %7916 = vmatprep.subr.mxu0 0.0
    %7917 = vmatpush1.msra.mxu0 %v7509
    %7918 = vmatprep.subr.mxu0 0.0
    %7919 = vmatpush1.msra.mxu0 %v7510
    %7920 = vmatprep.subr.mxu0 0.0
    %7921 = vmatpush1.msra.mxu0 %v7511
    %7922 = vmatprep.subr.mxu0 0.0
    %7923 = vmatpush1.msra.mxu0 %v7512
    %7924 = vmatprep.subr.mxu0 0.0
    %7925 = vmatpush1.msra.mxu0 %v7513
    %7926 = vmatprep.subr.mxu0 0.0
    %7927 = vmatpush1.msra.mxu0 %v7514
    %7928 = vmatprep.subr.mxu0 0.0
    %7929 = vmatpush1.msra.mxu0 %v7515
    %7930 = vmatprep.subr.mxu0 0.0
    %7931 = vmatpush1.msra.mxu0 %v7516
    %7932 = vmatprep.subr.mxu0 0.0
    %7933 = vmatpush1.msra.mxu0 %v7517
    %7934 = vmatprep.subr.mxu0 0.0
    %7935 = vmatpush1.msra.mxu0 %v7518
    %7936 = vmatprep.subr.mxu0 0.0
    %7937 = vmatpush1.msra.mxu0 %v7519
    %7938 = vmatprep.subr.mxu0 0.0
    %7939 = vmatpush1.msra.mxu0 %v7520
    %7940 = vmatprep.subr.mxu0 0.0
    %7941 = vmatpush1.msra.mxu0 %v7521
    %7942 = vmatprep.subr.mxu0 0.0
    %7943 = vmatpush1.msra.mxu0 %v7522
    %7944 = vmatprep.subr.mxu0 0.0
    %7945 = vmatpush1.msra.mxu0 %v7523
    %7946 = vmatprep.subr.mxu0 0.0
    %7947 = vmatpush1.msra.mxu0 %v7524
    %7948 = vmatprep.subr.mxu0 0.0
    %7949 = vmatpush1.msra.mxu0 %v7525
    %7950 = vmatprep.mubr.f32.mxu0 %v7373
    %7951 = vmatmul.mubr.f32.gmra.mrb[0].mxu0 %v7372
    %v7952 = vpop.f32.mrb[0].mxu0
    %v7953 = vadd.f32 %v7878, %v7952
    %v7954 = vpop.f32.mrb[0].mxu0
    %7955 = vmatprep.mubr.f32.mxu0 %v7389
    %7956 = vmatmul.mubr.f32.gmra.mrb[0].mxu0 %v7388
    %v7957 = vpop.f32.mrb[0].mxu0
    %v7958 = vadd.f32 %v7883, %v7957
    %v7959 = vpop.f32.mrb[0].mxu0
    %7960 = vdwg.mxu0
    %7961 = vmatprep.subr.mxu0 0.0
    %7962 = vmatpush1.msra.mxu0 %v7526
    %7963 = vmatprep.subr.mxu0 0.0
    %7964 = vmatpush1.msra.mxu0 %v7527
    %7965 = vmatprep.subr.mxu0 0.0
    %7966 = vmatpush1.msra.mxu0 %v7528
    %7967 = vmatprep.subr.mxu0 0.0
    %7968 = vmatpush1.msra.mxu0 %v7529
    %7969 = vmatprep.subr.mxu0 0.0
    %7970 = vmatpush1.msra.mxu0 %v7530
    %7971 = vmatprep.subr.mxu0 0.0
    %7972 = vmatpush1.msra.mxu0 %v7531
    %7973 = vmatprep.subr.mxu0 0.0
    %7974 = vmatpush1.msra.mxu0 %v7532
    %7975 = vmatprep.subr.mxu0 0.0
    %7976 = vmatpush1.msra.mxu0 %v7533
    %7977 = vmatprep.subr.mxu0 0.0
    %7978 = vmatpush1.msra.mxu0 %v7534
    %7979 = vmatprep.subr.mxu0 0.0
    %7980 = vmatpush1.msra.mxu0 %v7535
    %7981 = vmatprep.subr.mxu0 0.0
    %7982 = vmatpush1.msra.mxu0 %v7536
    %7983 = vmatprep.subr.mxu0 0.0
    %7984 = vmatpush1.msra.mxu0 %v7537
    %7985 = vmatprep.subr.mxu0 0.0
    %7986 = vmatpush1.msra.mxu0 %v7538
    %7987 = vmatprep.subr.mxu0 0.0
    %7988 = vmatpush1.msra.mxu0 %v7539
    %7989 = vmatprep.subr.mxu0 0.0
    %7990 = vmatpush1.msra.mxu0 %v7540
    %7991 = vmatprep.subr.mxu0 0.0
    %7992 = vmatpush1.msra.mxu0 %v7541
    %7993 = vmatprep.subr.mxu0 0.0
    %7994 = vmatpush1.msra.mxu0 %v7542
    %7995 = vmatprep.subr.mxu0 0.0
    %7996 = vmatpush1.msra.mxu0 %v7543
    %7997 = vmatprep.subr.mxu0 0.0
    %7998 = vmatpush1.msra.mxu0 %v7544
    %7999 = vmatprep.subr.mxu0 0.0
    %8000 = vmatpush1.msra.mxu0 %v7545
    %8001 = vmatprep.subr.mxu0 0.0
    %8002 = vmatpush1.msra.mxu0 %v7546
    %8003 = vmatprep.subr.mxu0 0.0
    %8004 = vmatpush1.msra.mxu0 %v7547
    %8005 = vmatprep.subr.mxu0 0.0
    %8006 = vmatpush1.msra.mxu0 %v7548
    %8007 = vmatprep.subr.mxu0 0.0
    %8008 = vmatpush1.msra.mxu0 %v7549
    %8009 = vmatprep.subr.mxu0 0.0
    %8010 = vmatpush1.msra.mxu0 %v7550
    %8011 = vmatprep.subr.mxu0 0.0
    %8012 = vmatpush1.msra.mxu0 %v7551
    %8013 = vmatprep.subr.mxu0 0.0
    %8014 = vmatpush1.msra.mxu0 %v7552
    %8015 = vmatprep.subr.mxu0 0.0
    %8016 = vmatpush1.msra.mxu0 %v7553
    %8017 = vmatprep.subr.mxu0 0.0
    %8018 = vmatpush1.msra.mxu0 %v7554
    %8019 = vmatprep.subr.mxu0 0.0
    %8020 = vmatpush1.msra.mxu0 %v7555
    %8021 = vmatprep.subr.mxu0 0.0
    %8022 = vmatpush1.msra.mxu0 %v7556
    %8023 = vmatprep.subr.mxu0 0.0
    %8024 = vmatpush1.msra.mxu0 %v7557
    %8025 = vmatprep.mubr.f32.mxu0 %v7375
    %8026 = vmatmul.mubr.f32.gmra.mrb[0].mxu0 %v7374
    %v8027 = vpop.f32.mrb[0].mxu0
    %v8028 = vadd.f32 %v7953, %v8027
    %v8029 = vpop.f32.mrb[0].mxu0
    %8030 = vmatprep.mubr.f32.mxu0 %v7391
    %8031 = vmatmul.mubr.f32.gmra.mrb[0].mxu0 %v7390
    %v8032 = vpop.f32.mrb[0].mxu0
    %v8033 = vadd.f32 %v7958, %v8032
    %v8034 = vpop.f32.mrb[0].mxu0
    %8035 = vdwg.mxu0
    %8036 = vmatprep.subr.mxu0 0.0
    %8037 = vmatpush1.msra.mxu0 %v7558
    %8038 = vmatprep.subr.mxu0 0.0
    %8039 = vmatpush1.msra.mxu0 %v7559
    %8040 = vmatprep.subr.mxu0 0.0
    %8041 = vmatpush1.msra.mxu0 %v7560
    %8042 = vmatprep.subr.mxu0 0.0
    %8043 = vmatpush1.msra.mxu0 %v7561
    %8044 = vmatprep.subr.mxu0 0.0
    %8045 = vmatpush1.msra.mxu0 %v7562
    %8046 = vmatprep.subr.mxu0 0.0
    %8047 = vmatpush1.msra.mxu0 %v7563
    %8048 = vmatprep.subr.mxu0 0.0
    %8049 = vmatpush1.msra.mxu0 %v7564
    %8050 = vmatprep.subr.mxu0 0.0
    %8051 = vmatpush1.msra.mxu0 %v7565
    %8052 = vmatprep.subr.mxu0 0.0
    %8053 = vmatpush1.msra.mxu0 %v7566
    %8054 = vmatprep.subr.mxu0 0.0
    %8055 = vmatpush1.msra.mxu0 %v7567
    %8056 = vmatprep.subr.mxu0 0.0
    %8057 = vmatpush1.msra.mxu0 %v7568
    %8058 = vmatprep.subr.mxu0 0.0
    %8059 = vmatpush1.msra.mxu0 %v7569
    %8060 = vmatprep.subr.mxu0 0.0
    %8061 = vmatpush1.msra.mxu0 %v7570
    %8062 = vmatprep.subr.mxu0 0.0
    %8063 = vmatpush1.msra.mxu0 %v7571
    %8064 = vmatprep.subr.mxu0 0.0
    %8065 = vmatpush1.msra.mxu0 %v7572
    %8066 = vmatprep.subr.mxu0 0.0
    %8067 = vmatpush1.msra.mxu0 %v7573
    %8068 = vmatprep.subr.mxu0 0.0
    %8069 = vmatpush1.msra.mxu0 %v7574
    %8070 = vmatprep.subr.mxu0 0.0
    %8071 = vmatpush1.msra.mxu0 %v7575
    %8072 = vmatprep.subr.mxu0 0.0
    %8073 = vmatpush1.msra.mxu0 %v7576
    %8074 = vmatprep.subr.mxu0 0.0
    %8075 = vmatpush1.msra.mxu0 %v7577
    %8076 = vmatprep.subr.mxu0 0.0
    %8077 = vmatpush1.msra.mxu0 %v7578
    %8078 = vmatprep.subr.mxu0 0.0
    %8079 = vmatpush1.msra.mxu0 %v7579
    %8080 = vmatprep.subr.mxu0 0.0
    %8081 = vmatpush1.msra.mxu0 %v7580
    %8082 = vmatprep.subr.mxu0 0.0
    %8083 = vmatpush1.msra.mxu0 %v7581
    %8084 = vmatprep.subr.mxu0 0.0
    %8085 = vmatpush1.msra.mxu0 %v7582
    %8086 = vmatprep.subr.mxu0 0.0
    %8087 = vmatpush1.msra.mxu0 %v7583
    %8088 = vmatprep.subr.mxu0 0.0
    %8089 = vmatpush1.msra.mxu0 %v7584
    %8090 = vmatprep.subr.mxu0 0.0
    %8091 = vmatpush1.msra.mxu0 %v7585
    %8092 = vmatprep.subr.mxu0 0.0
    %8093 = vmatpush1.msra.mxu0 %v7586
    %8094 = vmatprep.subr.mxu0 0.0
    %8095 = vmatpush1.msra.mxu0 %v7587
    %8096 = vmatprep.subr.mxu0 0.0
    %8097 = vmatpush1.msra.mxu0 %v7588
    %8098 = vmatprep.subr.mxu0 0.0
    %8099 = vmatpush1.msra.mxu0 %v7589
    %8100 = vmatprep.mubr.f32.mxu0 %v7377
    %8101 = vmatmul.mubr.f32.gmra.mrb[0].mxu0 %v7376
    %v8102 = vpop.f32.mrb[0].mxu0
    %v8103 = vadd.f32 %v8028, %v8102
    %v8104 = vpop.f32.mrb[0].mxu0
    %8105 = vmatprep.mubr.f32.mxu0 %v7393
    %8106 = vmatmul.mubr.f32.gmra.mrb[0].mxu0 %v7392
    %v8107 = vpop.f32.mrb[0].mxu0
    %v8108 = vadd.f32 %v8033, %v8107
    %v8109 = vpop.f32.mrb[0].mxu0
    %8110 = vdwg.mxu0
    %8111 = vmatprep.subr.mxu0 0.0
    %8112 = vmatpush1.msra.mxu0 %v7590
    %8113 = vmatprep.subr.mxu0 0.0
    %8114 = vmatpush1.msra.mxu0 %v7591
    %8115 = vmatprep.subr.mxu0 0.0
    %8116 = vmatpush1.msra.mxu0 %v7592
    %8117 = vmatprep.subr.mxu0 0.0
    %8118 = vmatpush1.msra.mxu0 %v7593
    %8119 = vmatprep.subr.mxu0 0.0
    %8120 = vmatpush1.msra.mxu0 %v7594
    %8121 = vmatprep.subr.mxu0 0.0
    %8122 = vmatpush1.msra.mxu0 %v7595
    %8123 = vmatprep.subr.mxu0 0.0
    %8124 = vmatpush1.msra.mxu0 %v7596
    %8125 = vmatprep.subr.mxu0 0.0
    %8126 = vmatpush1.msra.mxu0 %v7597
    %8127 = vmatprep.subr.mxu0 0.0
    %8128 = vmatpush1.msra.mxu0 %v7598
    %8129 = vmatprep.subr.mxu0 0.0
    %8130 = vmatpush1.msra.mxu0 %v7599
    %8131 = vmatprep.subr.mxu0 0.0
    %8132 = vmatpush1.msra.mxu0 %v7600
    %8133 = vmatprep.subr.mxu0 0.0
    %8134 = vmatpush1.msra.mxu0 %v7601
    %8135 = vmatprep.subr.mxu0 0.0
    %8136 = vmatpush1.msra.mxu0 %v7602
    %8137 = vmatprep.subr.mxu0 0.0
    %8138 = vmatpush1.msra.mxu0 %v7603
    %8139 = vmatprep.subr.mxu0 0.0
    %8140 = vmatpush1.msra.mxu0 %v7604
    %8141 = vmatprep.subr.mxu0 0.0
    %8142 = vmatpush1.msra.mxu0 %v7605
    %8143 = vmatprep.subr.mxu0 0.0
    %8144 = vmatpush1.msra.mxu0 %v7606
    %8145 = vmatprep.subr.mxu0 0.0
    %8146 = vmatpush1.msra.mxu0 %v7607
    %8147 = vmatprep.subr.mxu0 0.0
    %8148 = vmatpush1.msra.mxu0 %v7608
    %8149 = vmatprep.subr.mxu0 0.0
    %8150 = vmatpush1.msra.mxu0 %v7609
    %8151 = vmatprep.subr.mxu0 0.0
    %8152 = vmatpush1.msra.mxu0 %v7610
    %8153 = vmatprep.subr.mxu0 0.0
    %8154 = vmatpush1.msra.mxu0 %v7611
    %8155 = vmatprep.subr.mxu0 0.0
    %8156 = vmatpush1.msra.mxu0 %v7612
    %8157 = vmatprep.subr.mxu0 0.0
    %8158 = vmatpush1.msra.mxu0 %v7613
    %8159 = vmatprep.subr.mxu0 0.0
    %8160 = vmatpush1.msra.mxu0 %v7614
    %8161 = vmatprep.subr.mxu0 0.0
    %8162 = vmatpush1.msra.mxu0 %v7615
    %8163 = vmatprep.subr.mxu0 0.0
    %8164 = vmatpush1.msra.mxu0 %v7616
    %8165 = vmatprep.subr.mxu0 0.0
    %8166 = vmatpush1.msra.mxu0 %v7617
    %8167 = vmatprep.subr.mxu0 0.0
    %8168 = vmatpush1.msra.mxu0 %v7618
    %8169 = vmatprep.subr.mxu0 0.0
    %8170 = vmatpush1.msra.mxu0 %v7619
    %8171 = vmatprep.subr.mxu0 0.0
    %8172 = vmatpush1.msra.mxu0 %v7620
    %8173 = vmatprep.subr.mxu0 0.0
    %8174 = vmatpush1.msra.mxu0 %v7621
    %8175 = vmatprep.mubr.f32.mxu0 %v7379
    %8176 = vmatmul.mubr.f32.gmra.mrb[0].mxu0 %v7378
    %v8177 = vpop.f32.mrb[0].mxu0
    %v8178 = vadd.f32 %v8103, %v8177
    %v8179 = vpop.f32.mrb[0].mxu0
    %8180 = vmatprep.mubr.f32.mxu0 %v7395
    %8181 = vmatmul.mubr.f32.gmra.mrb[0].mxu0 %v7394
    %v8182 = vpop.f32.mrb[0].mxu0
    %v8183 = vadd.f32 %v8108, %v8182
    %v8184 = vpop.f32.mrb[0].mxu0
    %8185 = vdwg.mxu0
    %8186 = vmatprep.subr.mxu0 0.0
    %8187 = vmatpush1.msra.mxu0 %v7622
    %8188 = vmatprep.subr.mxu0 0.0
    %8189 = vmatpush1.msra.mxu0 %v7623
    %8190 = vmatprep.subr.mxu0 0.0
    %8191 = vmatpush1.msra.mxu0 %v7624
    %8192 = vmatprep.subr.mxu0 0.0
    %8193 = vmatpush1.msra.mxu0 %v7625
    %8194 = vmatprep.subr.mxu0 0.0
    %8195 = vmatpush1.msra.mxu0 %v7626
    %8196 = vmatprep.subr.mxu0 0.0
    %8197 = vmatpush1.msra.mxu0 %v7627
    %8198 = vmatprep.subr.mxu0 0.0
    %8199 = vmatpush1.msra.mxu0 %v7628
    %8200 = vmatprep.subr.mxu0 0.0
    %8201 = vmatpush1.msra.mxu0 %v7629
    %8202 = vmatprep.subr.mxu0 0.0
    %8203 = vmatpush1.msra.mxu0 %v7630
    %8204 = vmatprep.subr.mxu0 0.0
    %8205 = vmatpush1.msra.mxu0 %v7631
    %8206 = vmatprep.subr.mxu0 0.0
    %8207 = vmatpush1.msra.mxu0 %v7632
    %8208 = vmatprep.subr.mxu0 0.0
    %8209 = vmatpush1.msra.mxu0 %v7633
    %8210 = vmatprep.subr.mxu0 0.0
    %8211 = vmatpush1.msra.mxu0 %v7634
    %8212 = vmatprep.subr.mxu0 0.0
    %8213 = vmatpush1.msra.mxu0 %v7635
    %8214 = vmatprep.subr.mxu0 0.0
    %8215 = vmatpush1.msra.mxu0 %v7636
    %8216 = vmatprep.subr.mxu0 0.0
    %8217 = vmatpush1.msra.mxu0 %v7637
    %8218 = vmatprep.subr.mxu0 0.0
    %8219 = vmatpush1.msra.mxu0 %v7638
    %8220 = vmatprep.subr.mxu0 0.0
    %8221 = vmatpush1.msra.mxu0 %v7639
    %8222 = vmatprep.subr.mxu0 0.0
    %8223 = vmatpush1.msra.mxu0 %v7640
    %8224 = vmatprep.subr.mxu0 0.0
    %8225 = vmatpush1.msra.mxu0 %v7641
    %8226 = vmatprep.subr.mxu0 0.0
    %8227 = vmatpush1.msra.mxu0 %v7642
    %8228 = vmatprep.subr.mxu0 0.0
    %8229 = vmatpush1.msra.mxu0 %v7643
    %8230 = vmatprep.subr.mxu0 0.0
    %8231 = vmatpush1.msra.mxu0 %v7644
    %8232 = vmatprep.subr.mxu0 0.0
    %8233 = vmatpush1.msra.mxu0 %v7645
    %8234 = vmatprep.subr.mxu0 0.0
    %8235 = vmatpush1.msra.mxu0 %v7646
    %8236 = vmatprep.subr.mxu0 0.0
    %8237 = vmatpush1.msra.mxu0 %v7647
    %8238 = vmatprep.subr.mxu0 0.0
    %8239 = vmatpush1.msra.mxu0 %v7648
    %8240 = vmatprep.subr.mxu0 0.0
    %8241 = vmatpush1.msra.mxu0 %v7649
    %8242 = vmatprep.subr.mxu0 0.0
    %8243 = vmatpush1.msra.mxu0 %v7650
    %8244 = vmatprep.subr.mxu0 0.0
    %8245 = vmatpush1.msra.mxu0 %v7651
    %8246 = vmatprep.subr.mxu0 0.0
    %8247 = vmatpush1.msra.mxu0 %v7652
    %8248 = vmatprep.subr.mxu0 0.0
    %8249 = vmatpush1.msra.mxu0 %v7653
    %8250 = vmatprep.mubr.f32.mxu0 %v7381
    %8251 = vmatmul.mubr.f32.gmra.mrb[0].mxu0 %v7380
    %v8252 = vpop.f32.mrb[0].mxu0
    %v8253 = vadd.f32 %v8178, %v8252
    %v8254 = vpop.f32.mrb[0].mxu0
    %8255 = vmatprep.mubr.f32.mxu0 %v7397
    %8256 = vmatmul.mubr.f32.gmra.mrb[0].mxu0 %v7396
    %v8257 = vpop.f32.mrb[0].mxu0
    %v8258 = vadd.f32 %v8183, %v8257
    %v8259 = vpop.f32.mrb[0].mxu0
    %8260 = vdwg.mxu0
    %v8261 = vadd.f32 %v6530, %v8253
    %v8262 = vadd.f32 %v6531, %v8258
    %v8263 = vld [vmem:[%s67] sm:$0x1]
    %v8264 = vld [vmem:[%s69] sm:$0x1]
    %v8265 = vsel %vm267, %v8261, 0.0
    %8266 = vadd.xlane.f32.xlu0 %v8265
    %v8267 = vpop.xlane.xlu0 %8266
    %v8268 = vsel %vm267, %v8262, 0.0
    %8269 = vadd.xlane.f32.xlu0 %v8268
    %v8270 = vpop.xlane.xlu0 %8269
    %v8271 = vmul.f32 %v8267, %v2469
    %v8272 = vmul.f32 %v8270, %v2469
    %v8273 = vsub.f32 %v8261, %v8271
    %v8274 = vsub.f32 %v8262, %v8272
    %v8275 = vmul.f32 %v8273, %v8273
    %v8276 = vmul.f32 %v8274, %v8274
    %v8277 = vsel %vm267, %v8275, 0.0
    %8278 = vadd.xlane.f32.xlu0 %v8277
    %v8279 = vpop.xlane.xlu0 %8278
    %v8280 = vsel %vm267, %v8276, 0.0
    %8281 = vadd.xlane.f32.xlu0 %v8280
    %v8282 = vpop.xlane.xlu0 %8281
    %v8283 = vmul.f32 %v8279, %v2469
    %v8284 = vmul.f32 %v8282, %v2469
    %v8285 = vadd.f32 %v8283, 1e-05
    %v8286 = vadd.f32 %v8284, 1e-05
    %v8287 = vrsqrt.pop %v8285
    %v8288 = vrsqrt.pop %v8286
    %v8289 = vmul.f32 %v8273, %v8287
    %v8290 = vmul.f32 %v8274, %v8288
    %v8292 = vlaneseq
    %v8293 = vshrl.u32 %v8292, 7
    %v8294 = vsub.s32 0, %v8293
    %v8295 = vrot.slane %v8263, %v8294
    %v8297 = vmul.f32 %v8289, %v8295
    %v8298 = vmul.f32 %v8290, %v8295
    %v8300 = vlaneseq
    %v8301 = vshrl.u32 %v8300, 7
    %v8302 = vsub.s32 0, %v8301
    %v8303 = vrot.slane %v8264, %v8302
    %v8305 = vadd.f32 %v8297, %v8303
    %v8306 = vadd.f32 %v8298, %v8303
    %v8307 = vld [vmem:[%s75] sm:$0x3]
    %v8309 = vsel %vm170, %v8307, 0
    %8311 = vmatprep.subr.mxu0 0.0
    %8312 = vmatpush1.msra.mxu0 %v8305
    %8313 = vmatprep.subr.mxu0 0.0
    %8314 = vmatpush1.msra.mxu0 %v8306
    %8315 = vmatprep.subr.mxu0 0.0
    %8316 = vmatpush1.msra.mxu0 0.0
    %8317 = vmatprep.subr.mxu0 0.0
    %8318 = vmatpush1.msra.mxu0 0.0
    %8319 = vmatprep.subr.mxu0 0.0
    %8320 = vmatpush1.msra.mxu0 0.0
    %8321 = vmatprep.subr.mxu0 0.0
    %8322 = vmatpush1.msra.mxu0 0.0
    %8323 = vmatprep.subr.mxu0 0.0
    %8324 = vmatpush1.msra.mxu0 0.0
    %8325 = vmatprep.subr.mxu0 0.0
    %8326 = vmatpush1.msra.mxu0 0.0
    %8327 = vmatprep.subr.mxu0 0.0
    %8328 = vmatpush1.msra.mxu0 0.0
    %8329 = vmatprep.subr.mxu0 0.0
    %8330 = vmatpush1.msra.mxu0 0.0
    %8331 = vmatprep.subr.mxu0 0.0
    %8332 = vmatpush1.msra.mxu0 0.0
    %8333 = vmatprep.subr.mxu0 0.0
    %8334 = vmatpush1.msra.mxu0 0.0
    %8335 = vmatprep.subr.mxu0 0.0
    %8336 = vmatpush1.msra.mxu0 0.0
    %8337 = vmatprep.subr.mxu0 0.0
    %8338 = vmatpush1.msra.mxu0 0.0
    %8339 = vmatprep.subr.mxu0 0.0
    %8340 = vmatpush1.msra.mxu0 0.0
    %8341 = vmatprep.subr.mxu0 0.0
    %8342 = vmatpush1.msra.mxu0 0.0
    %8343 = vmatprep.subr.mxu0 0.0
    %8344 = vmatpush1.msra.mxu0 0.0
    %8345 = vmatprep.subr.mxu0 0.0
    %8346 = vmatpush1.msra.mxu0 0.0
    %8347 = vmatprep.subr.mxu0 0.0
    %8348 = vmatpush1.msra.mxu0 0.0
    %8349 = vmatprep.subr.mxu0 0.0
    %8350 = vmatpush1.msra.mxu0 0.0
    %8351 = vmatprep.subr.mxu0 0.0
    %8352 = vmatpush1.msra.mxu0 0.0
    %8353 = vmatprep.subr.mxu0 0.0
    %8354 = vmatpush1.msra.mxu0 0.0
    %8355 = vmatprep.subr.mxu0 0.0
    %8356 = vmatpush1.msra.mxu0 0.0
    %8357 = vmatprep.subr.mxu0 0.0
    %8358 = vmatpush1.msra.mxu0 0.0
    %8359 = vmatprep.subr.mxu0 0.0
    %8360 = vmatpush1.msra.mxu0 0.0
    %8361 = vmatprep.subr.mxu0 0.0
    %8362 = vmatpush1.msra.mxu0 0.0
    %8363 = vmatprep.subr.mxu0 0.0
    %8364 = vmatpush1.msra.mxu0 0.0
    %8365 = vmatprep.subr.mxu0 0.0
    %8366 = vmatpush1.msra.mxu0 0.0
    %8367 = vmatprep.subr.mxu0 0.0
    %8368 = vmatpush1.msra.mxu0 0.0
    %8369 = vmatprep.subr.mxu0 0.0
    %8370 = vmatpush1.msra.mxu0 0.0
    %8371 = vmatprep.subr.mxu0 0.0
    %8372 = vmatpush1.msra.mxu0 0.0
    %8373 = vmatprep.subr.mxu0 0.0
    %8374 = vmatpush1.msra.mxu0 0.0
    %8375 = vmatprep.mubr.f32.mxu0 0.0
    %8376 = vmatmul.mubr.f32.gmra.mrb[0].mxu0 %v8309
    %v8377 = vpop.f32.mrb[0].mxu0
    %v8378 = vadd.f32 0.0, %v8377
    %v8379 = vpop.f32.mrb[0].mxu0
    %8380 = vdwg.mxu0
    %v8381 = vld [vmem:[%s71] sm:$0xff]
    %v8382 = vld [vmem:[%s71 + $0x8] sm:$0xff]
    %v8383 = vld [vmem:[%s71 + $0x10] sm:$0xff]
    %v8384 = vld [vmem:[%s71 + $0x18] sm:$0xff]
    %v8385 = vld [vmem:[%s71 + $0x20] sm:$0xff]
    %v8386 = vld [vmem:[%s71 + $0x28] sm:$0xff]
    %v8387 = vld [vmem:[%s71 + $0x30] sm:$0xff]
    %v8388 = vld [vmem:[%s71 + $0x38] sm:$0xff]
    %v8389 = vld [vmem:[%s73] sm:$0x1]
    %v8391 = vlaneseq
    %v8392 = vshrl.u32 %v8391, 7
    %v8393 = vsub.s32 0, %v8392
    %v8394 = vrot.slane %v8389, %v8393
    %v8397 = vsel %vm267, %v8378, 0
    %8399 = vmatprep.subr.mxu0 0.0
    %8400 = vmatpush1.msra.mxu0 %v8381
    %8401 = vmatprep.subr.mxu0 0.0
    %8402 = vmatpush1.msra.mxu0 %v8382
    %8403 = vmatprep.subr.mxu0 0.0
    %8404 = vmatpush1.msra.mxu0 %v8383
    %8405 = vmatprep.subr.mxu0 0.0
    %8406 = vmatpush1.msra.mxu0 %v8384
    %8407 = vmatprep.subr.mxu0 0.0
    %8408 = vmatpush1.msra.mxu0 %v8385
    %8409 = vmatprep.subr.mxu0 0.0
    %8410 = vmatpush1.msra.mxu0 %v8386
    %8411 = vmatprep.subr.mxu0 0.0
    %8412 = vmatpush1.msra.mxu0 %v8387
    %8413 = vmatprep.subr.mxu0 0.0
    %8414 = vmatpush1.msra.mxu0 %v8388
    %8415 = vmatprep.subr.mxu0 0.0
    %8416 = vmatpush1.msra.mxu0 0.0
    %8417 = vmatprep.subr.mxu0 0.0
    %8418 = vmatpush1.msra.mxu0 0.0
    %8419 = vmatprep.subr.mxu0 0.0
    %8420 = vmatpush1.msra.mxu0 0.0
    %8421 = vmatprep.subr.mxu0 0.0
    %8422 = vmatpush1.msra.mxu0 0.0
    %8423 = vmatprep.subr.mxu0 0.0
    %8424 = vmatpush1.msra.mxu0 0.0
    %8425 = vmatprep.subr.mxu0 0.0
    %8426 = vmatpush1.msra.mxu0 0.0
    %8427 = vmatprep.subr.mxu0 0.0
    %8428 = vmatpush1.msra.mxu0 0.0
    %8429 = vmatprep.subr.mxu0 0.0
    %8430 = vmatpush1.msra.mxu0 0.0
    %8431 = vmatprep.subr.mxu0 0.0
    %8432 = vmatpush1.msra.mxu0 0.0
    %8433 = vmatprep.subr.mxu0 0.0
    %8434 = vmatpush1.msra.mxu0 0.0
    %8435 = vmatprep.subr.mxu0 0.0
    %8436 = vmatpush1.msra.mxu0 0.0
    %8437 = vmatprep.subr.mxu0 0.0
    %8438 = vmatpush1.msra.mxu0 0.0
    %8439 = vmatprep.subr.mxu0 0.0
    %8440 = vmatpush1.msra.mxu0 0.0
    %8441 = vmatprep.subr.mxu0 0.0
    %8442 = vmatpush1.msra.mxu0 0.0
    %8443 = vmatprep.subr.mxu0 0.0
    %8444 = vmatpush1.msra.mxu0 0.0
    %8445 = vmatprep.subr.mxu0 0.0
    %8446 = vmatpush1.msra.mxu0 0.0
    %8447 = vmatprep.subr.mxu0 0.0
    %8448 = vmatpush1.msra.mxu0 0.0
    %8449 = vmatprep.subr.mxu0 0.0
    %8450 = vmatpush1.msra.mxu0 0.0
    %8451 = vmatprep.subr.mxu0 0.0
    %8452 = vmatpush1.msra.mxu0 0.0
    %8453 = vmatprep.subr.mxu0 0.0
    %8454 = vmatpush1.msra.mxu0 0.0
    %8455 = vmatprep.subr.mxu0 0.0
    %8456 = vmatpush1.msra.mxu0 0.0
    %8457 = vmatprep.subr.mxu0 0.0
    %8458 = vmatpush1.msra.mxu0 0.0
    %8459 = vmatprep.subr.mxu0 0.0
    %8460 = vmatpush1.msra.mxu0 0.0
    %8461 = vmatprep.subr.mxu0 0.0
    %8462 = vmatpush1.msra.mxu0 0.0
    %8463 = vmatprep.mubr.f32.mxu0 0.0
    %8464 = vmatmul.mubr.f32.gmra.mrb[0].mxu0 %v8397
    %v8465 = vpop.f32.mrb[0].mxu0
    %v8466 = vadd.f32 %v8394, %v8465
    %v8467 = vpop.f32.mrb[0].mxu0
    %8468 = vdwg.mxu0
    %vm8469 = vcmask 33792
    %8470 = vst.msk [vmem:[#allocation3] sm:$0x3] %vm8469, %v8466
    // Predicated region
    $region154: #{transformer_forward.1} parent=1 // pred_check
      _
    $region155: #{transformer_forward.1} parent=1 // pred_check_branch
      %8472 = sbr.rel (0) target = $region157
    $region156: #{transformer_forward.1} parent=1 // pred_region
      %s8474 = ssub.s32 32, 32
      %8475 = vsyncadd [#allocation4], %s8474
      %s8477 = sshll.u32 [#allocation3], 4
      %s8478 = int_to_ptr.vmem [resolvable:$true] %s8477
      %8480 = dma.vmem_to_hbm [thread:$0]  %s8478, 32, %s77, [#allocation4]
    $region157: #{transformer_forward.1} parent=1 // pred_fallthru
      _
    // Predicated region
    $region158: #{transformer_forward.1} parent=1 // pred_check
      _
    $region159: #{transformer_forward.1} parent=1 // pred_check_branch
      %8482 = sbr.rel (0) target = $region161
    $region160: #{transformer_forward.1} parent=1 // pred_region
      %8483 = dma.done [#allocation4], 32
    $region161: #{transformer_forward.1} parent=1 // pred_fallthru
      _
    %8484 = vsyncpa [#allocation4], 1

</llo_original>
